<compile_context>
chip_gen: v5e
topology: v5e:2x2
jax: 0.10.0
libtpu: 0.0.40
codegen_flags: <defaults>
</compile_context>

<pallas_src>
import functools
import math

import jax
import jax.numpy as jnp
from jax.experimental import pallas as pl
from jax.experimental.pallas import tpu as pltpu

LANE = 128  # TPU lane width: every channel-like dim is zero-padded to this.


# ----------------------------- fused Pallas kernel --------------------------- #

def _fused_kernel(x_ref, ws_ref, w1_ref, w2_ref,
                  s0_ref, s1_ref, s2_ref, fcw_ref, fcb_ref,
                  o_ref, pad_a, pad_b, *, hh, ww):
    """One image per grid step:
       stem conv-bn-relu -> BasicBlock (conv-bn-relu, conv-bn, +identity, relu)
       -> global average pool -> Linear classifier.

    x_ref   : [hh+2, ww+2, C]  zero-halo-padded, channel-padded NHWC input
    w*_ref  : [9, C, C]        per-tap 3x3 conv weights, BN scale folded in
    s*_ref  : [1, C]           BN shift (bias) per conv (zero in padded lanes)
    fcw/fcb : [C, CLS] / [1, CLS]
    o_ref   : [1, CLS]         classifier logits for this image
    pad_a/b : [hh+2, ww+2, C]  VMEM scratch: halo-padded intermediate maps
    """
    C = x_ref.shape[-1]
    M = hh * ww

    def conv3x3(src_ref, w_ref, shift):
        # in-kernel im2col: accumulate 9 shifted [M, C] @ [C, C] MXU matmuls
        acc = jnp.zeros((M, C), jnp.float32)
        for t in range(9):                       # static unroll
            dh, dw = divmod(t, 3)
            patch = src_ref[dh:dh + hh, dw:dw + ww, :].reshape(M, C)
            acc = acc + jnp.dot(patch, w_ref[t],
                                preferred_element_type=jnp.float32)
        return acc + shift                       # folded-BN bias

    # Zero the halo buffers each step (cheap; keeps the "parallel" batch grid
    # free of cross-step state). Interiors are overwritten below.
    pad_a[...] = jnp.zeros_like(pad_a)
    pad_b[...] = jnp.zeros_like(pad_b)

    # stem: conv + BN + ReLU  (this is also the identity of the BasicBlock)
    y0 = jnp.maximum(conv3x3(x_ref, ws_ref, s0_ref[...]), 0.0)      # [M, C]
    pad_a[1:hh + 1, 1:ww + 1, :] = y0.reshape(hh, ww, C)

    # block conv1 + BN + ReLU
    y1 = jnp.maximum(conv3x3(pad_a, w1_ref, s1_ref[...]), 0.0)
    pad_b[1:hh + 1, 1:ww + 1, :] = y1.reshape(hh, ww, C)

    # block conv2 + BN + residual add + ReLU
    y2 = jnp.maximum(conv3x3(pad_b, w2_ref, s2_ref[...]) + y0, 0.0)

    # global average pool (padded lanes stay exactly zero) + classifier Linear
    feats = jnp.sum(y2, axis=0, keepdims=True) * (1.0 / M)          # [1, C]
    o_ref[...] = (jnp.dot(feats, fcw_ref[...],
                          preferred_element_type=jnp.float32) + fcb_ref[...])


# --------------------------- parameter construction ------------------------- #

def kaiming_normal_conv(key, kh, kw, cin, cout):
    # nn.init.kaiming_normal_(mode='fan_in', nonlinearity='relu')
    fan_in = cin * kh * kw
    std = math.sqrt(2.0 / fan_in)
    return std * jax.random.normal(key, (kh, kw, cin, cout), dtype=jnp.float32)


def bn_scale_shift(cout, eps=1e-5):
    # gamma=1, beta=0, running_mean=0, running_var=1 (module's init_weight)
    gamma = jnp.ones((cout,), jnp.float32)
    beta = jnp.zeros((cout,), jnp.float32)
    mean = jnp.zeros((cout,), jnp.float32)
    var = jnp.ones((cout,), jnp.float32)
    scale = gamma / jnp.sqrt(var + eps)
    shift = beta - mean * scale
    return scale, shift


def torch_linear_init(key, fan_in, fan_out):
    # PyTorch nn.Linear default init
    kw, kb = jax.random.split(key)
    bound = 1.0 / math.sqrt(fan_in)
    w = jax.random.uniform(kw, (fan_in, fan_out), jnp.float32, -bound, bound)
    b = jax.random.uniform(kb, (fan_out,), jnp.float32, -bound, bound)
    return w, b


def _fold_and_pad_conv(w_kkcio, scale, cpad):
    """Fold BN scale into weight columns, zero-pad Cin/Cout to cpad, split taps."""
    kh, kw, cin, cout = w_kkcio.shape
    w = w_kkcio * scale.reshape(1, 1, 1, cout)
    wp = jnp.zeros((kh, kw, cpad, cpad), jnp.float32).at[:, :, :cin, :cout].set(w)
    return wp.reshape(kh * kw, cpad, cpad)            # [9, cpad, cpad]


def _pad_row(v, cpad):
    return jnp.zeros((1, cpad), jnp.float32).at[0, :v.shape[0]].set(v)


def make_params(key, cin=3, width=16, num_classes=10):
    k = jax.random.split(key, 4)
    stem_w = kaiming_normal_conv(k[0], 3, 3, cin, width)
    blk_w1 = kaiming_normal_conv(k[1], 3, 3, width, width)
    blk_w2 = kaiming_normal_conv(k[2], 3, 3, width, width)
    stem_scale, stem_shift = bn_scale_shift(width)
    bn1_scale, bn1_shift = bn_scale_shift(width)
    bn2_scale, bn2_shift = bn_scale_shift(width)
    fc_w, fc_b = torch_linear_init(k[3], width, num_classes)

    C = LANE
    fused = {
        "stem_w": _fold_and_pad_conv(stem_w, stem_scale, C),
        "blk_w1": _fold_and_pad_conv(blk_w1, bn1_scale, C),
        "blk_w2": _fold_and_pad_conv(blk_w2, bn2_scale, C),
        "stem_shift": _pad_row(stem_shift, C),
        "bn1_shift": _pad_row(bn1_shift, C),
        "bn2_shift": _pad_row(bn2_shift, C),
        "fc_w": jnp.zeros((C, LANE), jnp.float32).at[:width, :num_classes].set(fc_w),
        "fc_b": _pad_row(fc_b, LANE),
    }
    raw = dict(stem_w=stem_w, blk_w1=blk_w1, blk_w2=blk_w2,
               stem_scale=stem_scale, stem_shift=stem_shift,
               bn1_scale=bn1_scale, bn1_shift=bn1_shift,
               bn2_scale=bn2_scale, bn2_shift=bn2_shift,
               fc_w=fc_w, fc_b=fc_b)
    return {"fused": fused, "raw": raw, "num_classes": num_classes}


# -------------------------------- forward ----------------------------------- #

def random_initialization_forward(params, x_nchw):
    """Forward: backbone(x) -> classifier(features).  Input NCHW (PyTorch)."""
    x = jnp.transpose(x_nchw, (0, 2, 3, 1)).astype(jnp.float32)      # NHWC
    n, h, w, cin = x.shape
    C = LANE
    CLS = LANE
    num_classes = params["num_classes"]
    p = params["fused"]

    # Zero halo (+1 pixel) and zero channel padding; padded lanes must be zero
    # so the folded-BN / residual / GAP / classifier are unaffected.
    xpad = jnp.zeros((n, h + 2, w + 2, C), jnp.float32)
    xpad = xpad.at[:, 1:h + 1, 1:w + 1, :cin].set(x)

    kernel = functools.partial(_fused_kernel, hh=h, ww=w)

    out = pl.pallas_call(
        kernel,
        out_shape=jax.ShapeDtypeStruct((n, 1, CLS), jnp.float32),
        grid_spec=pltpu.PrefetchScalarGridSpec(
            num_scalar_prefetch=0,
            grid=(n,),                                   # one image per step
            in_specs=[
                pl.BlockSpec((None, h + 2, w + 2, C), lambda b: (b, 0, 0, 0)),
                pl.BlockSpec((9, C, C), lambda b: (0, 0, 0)),   # weights stay
                pl.BlockSpec((9, C, C), lambda b: (0, 0, 0)),   # resident
                pl.BlockSpec((9, C, C), lambda b: (0, 0, 0)),   # (constant block)
                pl.BlockSpec((1, C), lambda b: (0, 0)),
                pl.BlockSpec((1, C), lambda b: (0, 0)),
                pl.BlockSpec((1, C), lambda b: (0, 0)),
                pl.BlockSpec((C, CLS), lambda b: (0, 0)),
                pl.BlockSpec((1, CLS), lambda b: (0, 0)),
            ],
            out_specs=pl.BlockSpec((None, 1, CLS), lambda b: (b, 0, 0)),
            scratch_shapes=[
                pltpu.VMEM((h + 2, w + 2, C), jnp.float32),  # padded stem out
                pltpu.VMEM((h + 2, w + 2, C), jnp.float32),  # padded conv1 out
            ],
        ),
        compiler_params=pltpu.CompilerParams(
            dimension_semantics=("parallel",),   # shard batch across TCs (v7x)
            vmem_limit_bytes=32 * 1024 * 1024,
        ),
    )(xpad, p["stem_w"], p["blk_w1"], p["blk_w2"],
      p["stem_shift"], p["bn1_shift"], p["bn2_shift"],
      p["fc_w"], p["fc_b"])

    return out.reshape(n, CLS)[:, :num_classes]


# ------------------------- pure-JAX reference check ------------------------- #

def _reference_forward(params, x_nchw):
    p = params["raw"]
    x = jnp.transpose(x_nchw, (0, 2, 3, 1)).astype(jnp.float32)

    def conv(x, w):
        return jax.lax.conv_general_dilated(
            x, w, window_strides=(1, 1), padding="SAME",
            dimension_numbers=("NHWC", "HWIO", "NHWC"))

    def bn(x, scale, shift):
        return x * scale.reshape(1, 1, 1, -1) + shift.reshape(1, 1, 1, -1)

    x = jax.nn.relu(bn(conv(x, p["stem_w"]), p["stem_scale"], p["stem_shift"]))
    idn = x
    y = jax.nn.relu(bn(conv(x, p["blk_w1"]), p["bn1_scale"], p["bn1_shift"]))
    x = jax.nn.relu(bn(conv(y, p["blk_w2"]), p["bn2_scale"], p["bn2_shift"]) + idn)
    feats = jnp.mean(x, axis=(1, 2))
    return feats @ p["fc_w"] + p["fc_b"].reshape(1, -1)


# ----------------------------------- main ------------------------------------ #

if __name__ == "__main__":
    key = jax.random.PRNGKey(0)
    kx, kp = jax.random.split(key)

    batch, cin, spatial = 2, 3, 16
    num_classes = 10

    x = jax.random.normal(kx, (batch, cin, spatial, spatial), dtype=jnp.float32)
    params = make_params(kp, cin=cin, width=16, num_classes=num_classes)

    out = jax.block_until_ready(random_initialization_forward(params, x))
    ref = _reference_forward(params, x)

    assert out.shape == (batch, num_classes), out.shape
    max_diff = jnp.max(jnp.abs(out - ref))
    assert jnp.allclose(out, ref, atol=1e-3, rtol=1e-3), \
        f"mismatch vs JAX reference (max abs diff {max_diff})"

    print("KERNEL_OK")
</pallas_src>

<mosaic_0001>
module attributes {stable_mosaic.version = 11 : i64} {
  func.func @_fused_kernel(%arg0: i32, %arg1: memref<1x18x18x128xf32, #tpu.memory_space<vmem>>, %arg2: memref<9x128x128xf32, #tpu.memory_space<vmem>>, %arg3: memref<9x128x128xf32, #tpu.memory_space<vmem>>, %arg4: memref<9x128x128xf32, #tpu.memory_space<vmem>>, %arg5: memref<1x128xf32, #tpu.memory_space<vmem>>, %arg6: memref<1x128xf32, #tpu.memory_space<vmem>>, %arg7: memref<1x128xf32, #tpu.memory_space<vmem>>, %arg8: memref<128x128xf32, #tpu.memory_space<vmem>>, %arg9: memref<1x128xf32, #tpu.memory_space<vmem>>, %arg10: memref<1x1x128xf32, #tpu.memory_space<vmem>>, %arg11: memref<18x18x128xf32, #tpu.memory_space<vmem>>, %arg12: memref<18x18x128xf32, #tpu.memory_space<vmem>>) attributes {dimension_semantics = [#tpu.dimension_semantics<parallel>], iteration_bounds = array<i64: 2>, scalar_prefetch = 0 : i64, scratch_operands = 2 : i64, tpu.core_type = #tpu.core_type<tc>, window_params = [{transform_indices = @transform_0, window_bounds = array<i64: 1, 18, 18, 128>}, {pipeline_mode = #tpu.pipeline_mode<synchronous>, transform_indices = @transform_1, window_bounds = array<i64: 9, 128, 128>}, {pipeline_mode = #tpu.pipeline_mode<synchronous>, transform_indices = @transform_2, window_bounds = array<i64: 9, 128, 128>}, {pipeline_mode = #tpu.pipeline_mode<synchronous>, transform_indices = @transform_3, window_bounds = array<i64: 9, 128, 128>}, {pipeline_mode = #tpu.pipeline_mode<synchronous>, transform_indices = @transform_4, window_bounds = array<i64: 1, 128>}, {pipeline_mode = #tpu.pipeline_mode<synchronous>, transform_indices = @transform_5, window_bounds = array<i64: 1, 128>}, {pipeline_mode = #tpu.pipeline_mode<synchronous>, transform_indices = @transform_6, window_bounds = array<i64: 1, 128>}, {pipeline_mode = #tpu.pipeline_mode<synchronous>, transform_indices = @transform_7, window_bounds = array<i64: 128, 128>}, {pipeline_mode = #tpu.pipeline_mode<synchronous>, transform_indices = @transform_8, window_bounds = array<i64: 1, 128>}, {transform_indices = @transform_9, window_bounds = array<i64: 1, 1, 128>}]} {
    %cst = arith.constant 0.000000e+00 : f32
    %0 = vector.broadcast %cst : f32 to vector<18x18x128xf32>
    %c0 = arith.constant 0 : index
    %c0_0 = arith.constant 0 : index
    %c0_1 = arith.constant 0 : index
    %1 = vector.load %arg11[%c0, %c0_0, %c0_1] : memref<18x18x128xf32, #tpu.memory_space<vmem>>, vector<18x18x128xf32>
    tpu.vector_store %arg11[%c0, %c0_0, %c0_1], %0 {strides = array<i32>} : memref<18x18x128xf32, #tpu.memory_space<vmem>>, vector<18x18x128xf32>,
    %cst_2 = arith.constant 0.000000e+00 : f32
    %2 = vector.broadcast %cst_2 : f32 to vector<18x18x128xf32>
    %c0_3 = arith.constant 0 : index
    %c0_4 = arith.constant 0 : index
    %c0_5 = arith.constant 0 : index
    %3 = vector.load %arg12[%c0_3, %c0_4, %c0_5] : memref<18x18x128xf32, #tpu.memory_space<vmem>>, vector<18x18x128xf32>
    tpu.vector_store %arg12[%c0_3, %c0_4, %c0_5], %2 {strides = array<i32>} : memref<18x18x128xf32, #tpu.memory_space<vmem>>, vector<18x18x128xf32>,
    %c0_6 = arith.constant 0 : index
    %c0_7 = arith.constant 0 : index
    %4 = vector.load %arg5[%c0_6, %c0_7] : memref<1x128xf32, #tpu.memory_space<vmem>>, vector<1x128xf32>
    %cst_8 = arith.constant 0.000000e+00 : f32
    %5 = vector.broadcast %cst_8 : f32 to vector<256x128xf32>
    %c0_9 = arith.constant 0 : index
    %c0_10 = arith.constant 0 : index
    %c0_11 = arith.constant 0 : index
    %c0_12 = arith.constant 0 : index
    %6 = vector.load %arg1[%c0_9, %c0_10, %c0_11, %c0_12] : memref<1x18x18x128xf32, #tpu.memory_space<vmem>>, vector<1x16x16x128xf32>
    %7 = vector.shape_cast %6 : vector<1x16x16x128xf32> to vector<16x16x128xf32>
    %8 = vector.shape_cast %7 : vector<16x16x128xf32> to vector<256x128xf32>
    %c0_13 = arith.constant 0 : index
    %c0_14 = arith.constant 0 : index
    %c0_15 = arith.constant 0 : index
    %9 = vector.load %arg2[%c0_13, %c0_14, %c0_15] : memref<9x128x128xf32, #tpu.memory_space<vmem>>, vector<1x128x128xf32>
    %10 = vector.shape_cast %9 : vector<1x128x128xf32> to vector<128x128xf32>
    %cst_16 = arith.constant dense<0.000000e+00> : vector<256x128xf32>
    %11 = tpu.matmul %8, %10, %cst_16 {dimension_numbers = #tpu.dot_dimension_numbers<[1], [0], [0], [1], [0, 0, 1, 1], [], []>} : vector<256x128xf32>, vector<128x128xf32>, vector<256x128xf32> -> vector<256x128xf32>
    %12 = arith.addf %5, %11 : vector<256x128xf32>
    %c0_17 = arith.constant 0 : index
    %c0_18 = arith.constant 0 : index
    %c1 = arith.constant 1 : index
    %c0_19 = arith.constant 0 : index
    %13 = vector.load %arg1[%c0_17, %c0_18, %c1, %c0_19] : memref<1x18x18x128xf32, #tpu.memory_space<vmem>>, vector<1x16x16x128xf32>
    %14 = vector.shape_cast %13 : vector<1x16x16x128xf32> to vector<16x16x128xf32>
    %15 = vector.shape_cast %14 : vector<16x16x128xf32> to vector<256x128xf32>
    %c1_20 = arith.constant 1 : index
    %c0_21 = arith.constant 0 : index
    %c0_22 = arith.constant 0 : index
    %16 = vector.load %arg2[%c1_20, %c0_21, %c0_22] : memref<9x128x128xf32, #tpu.memory_space<vmem>>, vector<1x128x128xf32>
    %17 = vector.shape_cast %16 : vector<1x128x128xf32> to vector<128x128xf32>
    %cst_23 = arith.constant dense<0.000000e+00> : vector<256x128xf32>
    %18 = tpu.matmul %15, %17, %cst_23 {dimension_numbers = #tpu.dot_dimension_numbers<[1], [0], [0], [1], [0, 0, 1, 1], [], []>} : vector<256x128xf32>, vector<128x128xf32>, vector<256x128xf32> -> vector<256x128xf32>
    %19 = arith.addf %12, %18 : vector<256x128xf32>
    %c0_24 = arith.constant 0 : index
    %c0_25 = arith.constant 0 : index
    %c2 = arith.constant 2 : index
    %c0_26 = arith.constant 0 : index
    %20 = vector.load %arg1[%c0_24, %c0_25, %c2, %c0_26] : memref<1x18x18x128xf32, #tpu.memory_space<vmem>>, vector<1x16x16x128xf32>
    %21 = vector.shape_cast %20 : vector<1x16x16x128xf32> to vector<16x16x128xf32>
    %22 = vector.shape_cast %21 : vector<16x16x128xf32> to vector<256x128xf32>
    %c2_27 = arith.constant 2 : index
    %c0_28 = arith.constant 0 : index
    %c0_29 = arith.constant 0 : index
    %23 = vector.load %arg2[%c2_27, %c0_28, %c0_29] : memref<9x128x128xf32, #tpu.memory_space<vmem>>, vector<1x128x128xf32>
    %24 = vector.shape_cast %23 : vector<1x128x128xf32> to vector<128x128xf32>
    %cst_30 = arith.constant dense<0.000000e+00> : vector<256x128xf32>
    %25 = tpu.matmul %22, %24, %cst_30 {dimension_numbers = #tpu.dot_dimension_numbers<[1], [0], [0], [1], [0, 0, 1, 1], [], []>} : vector<256x128xf32>, vector<128x128xf32>, vector<256x128xf32> -> vector<256x128xf32>
    %26 = arith.addf %19, %25 : vector<256x128xf32>
    %c0_31 = arith.constant 0 : index
    %c1_32 = arith.constant 1 : index
    %c0_33 = arith.constant 0 : index
    %c0_34 = arith.constant 0 : index
    %27 = vector.load %arg1[%c0_31, %c1_32, %c0_33, %c0_34] : memref<1x18x18x128xf32, #tpu.memory_space<vmem>>, vector<1x16x16x128xf32>
    %28 = vector.shape_cast %27 : vector<1x16x16x128xf32> to vector<16x16x128xf32>
    %29 = vector.shape_cast %28 : vector<16x16x128xf32> to vector<256x128xf32>
    %c3 = arith.constant 3 : index
    %c0_35 = arith.constant 0 : index
    %c0_36 = arith.constant 0 : index
    %30 = vector.load %arg2[%c3, %c0_35, %c0_36] : memref<9x128x128xf32, #tpu.memory_space<vmem>>, vector<1x128x128xf32>
    %31 = vector.shape_cast %30 : vector<1x128x128xf32> to vector<128x128xf32>
    %cst_37 = arith.constant dense<0.000000e+00> : vector<256x128xf32>
    %32 = tpu.matmul %29, %31, %cst_37 {dimension_numbers = #tpu.dot_dimension_numbers<[1], [0], [0], [1], [0, 0, 1, 1], [], []>} : vector<256x128xf32>, vector<128x128xf32>, vector<256x128xf32> -> vector<256x128xf32>
    %33 = arith.addf %26, %32 : vector<256x128xf32>
    %c0_38 = arith.constant 0 : index
    %c1_39 = arith.constant 1 : index
    %c1_40 = arith.constant 1 : index
    %c0_41 = arith.constant 0 : index
    %34 = vector.load %arg1[%c0_38, %c1_39, %c1_40, %c0_41] : memref<1x18x18x128xf32, #tpu.memory_space<vmem>>, vector<1x16x16x128xf32>
    %35 = vector.shape_cast %34 : vector<1x16x16x128xf32> to vector<16x16x128xf32>
    %36 = vector.shape_cast %35 : vector<16x16x128xf32> to vector<256x128xf32>
    %c4 = arith.constant 4 : index
    %c0_42 = arith.constant 0 : index
    %c0_43 = arith.constant 0 : index
    %37 = vector.load %arg2[%c4, %c0_42, %c0_43] : memref<9x128x128xf32, #tpu.memory_space<vmem>>, vector<1x128x128xf32>
    %38 = vector.shape_cast %37 : vector<1x128x128xf32> to vector<128x128xf32>
    %cst_44 = arith.constant dense<0.000000e+00> : vector<256x128xf32>
    %39 = tpu.matmul %36, %38, %cst_44 {dimension_numbers = #tpu.dot_dimension_numbers<[1], [0], [0], [1], [0, 0, 1, 1], [], []>} : vector<256x128xf32>, vector<128x128xf32>, vector<256x128xf32> -> vector<256x128xf32>
    %40 = arith.addf %33, %39 : vector<256x128xf32>
    %c0_45 = arith.constant 0 : index
    %c1_46 = arith.constant 1 : index
    %c2_47 = arith.constant 2 : index
    %c0_48 = arith.constant 0 : index
    %41 = vector.load %arg1[%c0_45, %c1_46, %c2_47, %c0_48] : memref<1x18x18x128xf32, #tpu.memory_space<vmem>>, vector<1x16x16x128xf32>
    %42 = vector.shape_cast %41 : vector<1x16x16x128xf32> to vector<16x16x128xf32>
    %43 = vector.shape_cast %42 : vector<16x16x128xf32> to vector<256x128xf32>
    %c5 = arith.constant 5 : index
    %c0_49 = arith.constant 0 : index
    %c0_50 = arith.constant 0 : index
    %44 = vector.load %arg2[%c5, %c0_49, %c0_50] : memref<9x128x128xf32, #tpu.memory_space<vmem>>, vector<1x128x128xf32>
    %45 = vector.shape_cast %44 : vector<1x128x128xf32> to vector<128x128xf32>
    %cst_51 = arith.constant dense<0.000000e+00> : vector<256x128xf32>
    %46 = tpu.matmul %43, %45, %cst_51 {dimension_numbers = #tpu.dot_dimension_numbers<[1], [0], [0], [1], [0, 0, 1, 1], [], []>} : vector<256x128xf32>, vector<128x128xf32>, vector<256x128xf32> -> vector<256x128xf32>
    %47 = arith.addf %40, %46 : vector<256x128xf32>
    %c0_52 = arith.constant 0 : index
    %c2_53 = arith.constant 2 : index
    %c0_54 = arith.constant 0 : index
    %c0_55 = arith.constant 0 : index
    %48 = vector.load %arg1[%c0_52, %c2_53, %c0_54, %c0_55] : memref<1x18x18x128xf32, #tpu.memory_space<vmem>>, vector<1x16x16x128xf32>
    %49 = vector.shape_cast %48 : vector<1x16x16x128xf32> to vector<16x16x128xf32>
    %50 = vector.shape_cast %49 : vector<16x16x128xf32> to vector<256x128xf32>
    %c6 = arith.constant 6 : index
    %c0_56 = arith.constant 0 : index
    %c0_57 = arith.constant 0 : index
    %51 = vector.load %arg2[%c6, %c0_56, %c0_57] : memref<9x128x128xf32, #tpu.memory_space<vmem>>, vector<1x128x128xf32>
    %52 = vector.shape_cast %51 : vector<1x128x128xf32> to vector<128x128xf32>
    %cst_58 = arith.constant dense<0.000000e+00> : vector<256x128xf32>
    %53 = tpu.matmul %50, %52, %cst_58 {dimension_numbers = #tpu.dot_dimension_numbers<[1], [0], [0], [1], [0, 0, 1, 1], [], []>} : vector<256x128xf32>, vector<128x128xf32>, vector<256x128xf32> -> vector<256x128xf32>
    %54 = arith.addf %47, %53 : vector<256x128xf32>
    %c0_59 = arith.constant 0 : index
    %c2_60 = arith.constant 2 : index
    %c1_61 = arith.constant 1 : index
    %c0_62 = arith.constant 0 : index
    %55 = vector.load %arg1[%c0_59, %c2_60, %c1_61, %c0_62] : memref<1x18x18x128xf32, #tpu.memory_space<vmem>>, vector<1x16x16x128xf32>
    %56 = vector.shape_cast %55 : vector<1x16x16x128xf32> to vector<16x16x128xf32>
    %57 = vector.shape_cast %56 : vector<16x16x128xf32> to vector<256x128xf32>
    %c7 = arith.constant 7 : index
    %c0_63 = arith.constant 0 : index
    %c0_64 = arith.constant 0 : index
    %58 = vector.load %arg2[%c7, %c0_63, %c0_64] : memref<9x128x128xf32, #tpu.memory_space<vmem>>, vector<1x128x128xf32>
    %59 = vector.shape_cast %58 : vector<1x128x128xf32> to vector<128x128xf32>
    %cst_65 = arith.constant dense<0.000000e+00> : vector<256x128xf32>
    %60 = tpu.matmul %57, %59, %cst_65 {dimension_numbers = #tpu.dot_dimension_numbers<[1], [0], [0], [1], [0, 0, 1, 1], [], []>} : vector<256x128xf32>, vector<128x128xf32>, vector<256x128xf32> -> vector<256x128xf32>
    %61 = arith.addf %54, %60 : vector<256x128xf32>
    %c0_66 = arith.constant 0 : index
    %c2_67 = arith.constant 2 : index
    %c2_68 = arith.constant 2 : index
    %c0_69 = arith.constant 0 : index
    %62 = vector.load %arg1[%c0_66, %c2_67, %c2_68, %c0_69] : memref<1x18x18x128xf32, #tpu.memory_space<vmem>>, vector<1x16x16x128xf32>
    %63 = vector.shape_cast %62 : vector<1x16x16x128xf32> to vector<16x16x128xf32>
    %64 = vector.shape_cast %63 : vector<16x16x128xf32> to vector<256x128xf32>
    %c8 = arith.constant 8 : index
    %c0_70 = arith.constant 0 : index
    %c0_71 = arith.constant 0 : index
    %65 = vector.load %arg2[%c8, %c0_70, %c0_71] : memref<9x128x128xf32, #tpu.memory_space<vmem>>, vector<1x128x128xf32>
    %66 = vector.shape_cast %65 : vector<1x128x128xf32> to vector<128x128xf32>
    %cst_72 = arith.constant dense<0.000000e+00> : vector<256x128xf32>
    %67 = tpu.matmul %64, %66, %cst_72 {dimension_numbers = #tpu.dot_dimension_numbers<[1], [0], [0], [1], [0, 0, 1, 1], [], []>} : vector<256x128xf32>, vector<128x128xf32>, vector<256x128xf32> -> vector<256x128xf32>
    %68 = arith.addf %61, %67 : vector<256x128xf32>
    %69 = vector.broadcast %4 : vector<1x128xf32> to vector<256x128xf32>
    %70 = arith.addf %68, %69 : vector<256x128xf32>
    %cst_73 = arith.constant 0.000000e+00 : f32
    %71 = vector.broadcast %cst_73 : f32 to vector<256x128xf32>
    %72 = arith.maximumf %70, %71 : vector<256x128xf32>
    %73 = vector.shape_cast %72 : vector<256x128xf32> to vector<16x16x128xf32>
    %c1_74 = arith.constant 1 : index
    %c1_75 = arith.constant 1 : index
    %c0_76 = arith.constant 0 : index
    %74 = vector.load %arg11[%c1_74, %c1_75, %c0_76] : memref<18x18x128xf32, #tpu.memory_space<vmem>>, vector<16x16x128xf32>
    tpu.vector_store %arg11[%c1_74, %c1_75, %c0_76], %73 {strides = array<i32>} : memref<18x18x128xf32, #tpu.memory_space<vmem>>, vector<16x16x128xf32>,
    %c0_77 = arith.constant 0 : index
    %c0_78 = arith.constant 0 : index
    %75 = vector.load %arg6[%c0_77, %c0_78] : memref<1x128xf32, #tpu.memory_space<vmem>>, vector<1x128xf32>
    %cst_79 = arith.constant 0.000000e+00 : f32
    %76 = vector.broadcast %cst_79 : f32 to vector<256x128xf32>
    %c0_80 = arith.constant 0 : index
    %c0_81 = arith.constant 0 : index
    %c0_82 = arith.constant 0 : index
    %77 = vector.load %arg11[%c0_80, %c0_81, %c0_82] : memref<18x18x128xf32, #tpu.memory_space<vmem>>, vector<16x16x128xf32>
    %78 = vector.shape_cast %77 : vector<16x16x128xf32> to vector<256x128xf32>
    %c0_83 = arith.constant 0 : index
    %c0_84 = arith.constant 0 : index
    %c0_85 = arith.constant 0 : index
    %79 = vector.load %arg3[%c0_83, %c0_84, %c0_85] : memref<9x128x128xf32, #tpu.memory_space<vmem>>, vector<1x128x128xf32>
    %80 = vector.shape_cast %79 : vector<1x128x128xf32> to vector<128x128xf32>
    %cst_86 = arith.constant dense<0.000000e+00> : vector<256x128xf32>
    %81 = tpu.matmul %78, %80, %cst_86 {dimension_numbers = #tpu.dot_dimension_numbers<[1], [0], [0], [1], [0, 0, 1, 1], [], []>} : vector<256x128xf32>, vector<128x128xf32>, vector<256x128xf32> -> vector<256x128xf32>
    %82 = arith.addf %76, %81 : vector<256x128xf32>
    %c0_87 = arith.constant 0 : index
    %c1_88 = arith.constant 1 : index
    %c0_89 = arith.constant 0 : index
    %83 = vector.load %arg11[%c0_87, %c1_88, %c0_89] : memref<18x18x128xf32, #tpu.memory_space<vmem>>, vector<16x16x128xf32>
    %84 = vector.shape_cast %83 : vector<16x16x128xf32> to vector<256x128xf32>
    %c1_90 = arith.constant 1 : index
    %c0_91 = arith.constant 0 : index
    %c0_92 = arith.constant 0 : index
    %85 = vector.load %arg3[%c1_90, %c0_91, %c0_92] : memref<9x128x128xf32, #tpu.memory_space<vmem>>, vector<1x128x128xf32>
    %86 = vector.shape_cast %85 : vector<1x128x128xf32> to vector<128x128xf32>
    %cst_93 = arith.constant dense<0.000000e+00> : vector<256x128xf32>
    %87 = tpu.matmul %84, %86, %cst_93 {dimension_numbers = #tpu.dot_dimension_numbers<[1], [0], [0], [1], [0, 0, 1, 1], [], []>} : vector<256x128xf32>, vector<128x128xf32>, vector<256x128xf32> -> vector<256x128xf32>
    %88 = arith.addf %82, %87 : vector<256x128xf32>
    %c0_94 = arith.constant 0 : index
    %c2_95 = arith.constant 2 : index
    %c0_96 = arith.constant 0 : index
    %89 = vector.load %arg11[%c0_94, %c2_95, %c0_96] : memref<18x18x128xf32, #tpu.memory_space<vmem>>, vector<16x16x128xf32>
    %90 = vector.shape_cast %89 : vector<16x16x128xf32> to vector<256x128xf32>
    %c2_97 = arith.constant 2 : index
    %c0_98 = arith.constant 0 : index
    %c0_99 = arith.constant 0 : index
    %91 = vector.load %arg3[%c2_97, %c0_98, %c0_99] : memref<9x128x128xf32, #tpu.memory_space<vmem>>, vector<1x128x128xf32>
    %92 = vector.shape_cast %91 : vector<1x128x128xf32> to vector<128x128xf32>
    %cst_100 = arith.constant dense<0.000000e+00> : vector<256x128xf32>
    %93 = tpu.matmul %90, %92, %cst_100 {dimension_numbers = #tpu.dot_dimension_numbers<[1], [0], [0], [1], [0, 0, 1, 1], [], []>} : vector<256x128xf32>, vector<128x128xf32>, vector<256x128xf32> -> vector<256x128xf32>
    %94 = arith.addf %88, %93 : vector<256x128xf32>
    %c1_101 = arith.constant 1 : index
    %c0_102 = arith.constant 0 : index
    %c0_103 = arith.constant 0 : index
    %95 = vector.load %arg11[%c1_101, %c0_102, %c0_103] : memref<18x18x128xf32, #tpu.memory_space<vmem>>, vector<16x16x128xf32>
    %96 = vector.shape_cast %95 : vector<16x16x128xf32> to vector<256x128xf32>
    %c3_104 = arith.constant 3 : index
    %c0_105 = arith.constant 0 : index
    %c0_106 = arith.constant 0 : index
    %97 = vector.load %arg3[%c3_104, %c0_105, %c0_106] : memref<9x128x128xf32, #tpu.memory_space<vmem>>, vector<1x128x128xf32>
    %98 = vector.shape_cast %97 : vector<1x128x128xf32> to vector<128x128xf32>
    %cst_107 = arith.constant dense<0.000000e+00> : vector<256x128xf32>
    %99 = tpu.matmul %96, %98, %cst_107 {dimension_numbers = #tpu.dot_dimension_numbers<[1], [0], [0], [1], [0, 0, 1, 1], [], []>} : vector<256x128xf32>, vector<128x128xf32>, vector<256x128xf32> -> vector<256x128xf32>
    %100 = arith.addf %94, %99 : vector<256x128xf32>
    %c1_108 = arith.constant 1 : index
    %c1_109 = arith.constant 1 : index
    %c0_110 = arith.constant 0 : index
    %101 = vector.load %arg11[%c1_108, %c1_109, %c0_110] : memref<18x18x128xf32, #tpu.memory_space<vmem>>, vector<16x16x128xf32>
    %102 = vector.shape_cast %101 : vector<16x16x128xf32> to vector<256x128xf32>
    %c4_111 = arith.constant 4 : index
    %c0_112 = arith.constant 0 : index
    %c0_113 = arith.constant 0 : index
    %103 = vector.load %arg3[%c4_111, %c0_112, %c0_113] : memref<9x128x128xf32, #tpu.memory_space<vmem>>, vector<1x128x128xf32>
    %104 = vector.shape_cast %103 : vector<1x128x128xf32> to vector<128x128xf32>
    %cst_114 = arith.constant dense<0.000000e+00> : vector<256x128xf32>
    %105 = tpu.matmul %102, %104, %cst_114 {dimension_numbers = #tpu.dot_dimension_numbers<[1], [0], [0], [1], [0, 0, 1, 1], [], []>} : vector<256x128xf32>, vector<128x128xf32>, vector<256x128xf32> -> vector<256x128xf32>
    %106 = arith.addf %100, %105 : vector<256x128xf32>
    %c1_115 = arith.constant 1 : index
    %c2_116 = arith.constant 2 : index
    %c0_117 = arith.constant 0 : index
    %107 = vector.load %arg11[%c1_115, %c2_116, %c0_117] : memref<18x18x128xf32, #tpu.memory_space<vmem>>, vector<16x16x128xf32>
    %108 = vector.shape_cast %107 : vector<16x16x128xf32> to vector<256x128xf32>
    %c5_118 = arith.constant 5 : index
    %c0_119 = arith.constant 0 : index
    %c0_120 = arith.constant 0 : index
    %109 = vector.load %arg3[%c5_118, %c0_119, %c0_120] : memref<9x128x128xf32, #tpu.memory_space<vmem>>, vector<1x128x128xf32>
    %110 = vector.shape_cast %109 : vector<1x128x128xf32> to vector<128x128xf32>
    %cst_121 = arith.constant dense<0.000000e+00> : vector<256x128xf32>
    %111 = tpu.matmul %108, %110, %cst_121 {dimension_numbers = #tpu.dot_dimension_numbers<[1], [0], [0], [1], [0, 0, 1, 1], [], []>} : vector<256x128xf32>, vector<128x128xf32>, vector<256x128xf32> -> vector<256x128xf32>
    %112 = arith.addf %106, %111 : vector<256x128xf32>
    %c2_122 = arith.constant 2 : index
    %c0_123 = arith.constant 0 : index
    %c0_124 = arith.constant 0 : index
    %113 = vector.load %arg11[%c2_122, %c0_123, %c0_124] : memref<18x18x128xf32, #tpu.memory_space<vmem>>, vector<16x16x128xf32>
    %114 = vector.shape_cast %113 : vector<16x16x128xf32> to vector<256x128xf32>
    %c6_125 = arith.constant 6 : index
    %c0_126 = arith.constant 0 : index
    %c0_127 = arith.constant 0 : index
    %115 = vector.load %arg3[%c6_125, %c0_126, %c0_127] : memref<9x128x128xf32, #tpu.memory_space<vmem>>, vector<1x128x128xf32>
    %116 = vector.shape_cast %115 : vector<1x128x128xf32> to vector<128x128xf32>
    %cst_128 = arith.constant dense<0.000000e+00> : vector<256x128xf32>
    %117 = tpu.matmul %114, %116, %cst_128 {dimension_numbers = #tpu.dot_dimension_numbers<[1], [0], [0], [1], [0, 0, 1, 1], [], []>} : vector<256x128xf32>, vector<128x128xf32>, vector<256x128xf32> -> vector<256x128xf32>
    %118 = arith.addf %112, %117 : vector<256x128xf32>
    %c2_129 = arith.constant 2 : index
    %c1_130 = arith.constant 1 : index
    %c0_131 = arith.constant 0 : index
    %119 = vector.load %arg11[%c2_129, %c1_130, %c0_131] : memref<18x18x128xf32, #tpu.memory_space<vmem>>, vector<16x16x128xf32>
    %120 = vector.shape_cast %119 : vector<16x16x128xf32> to vector<256x128xf32>
    %c7_132 = arith.constant 7 : index
    %c0_133 = arith.constant 0 : index
    %c0_134 = arith.constant 0 : index
    %121 = vector.load %arg3[%c7_132, %c0_133, %c0_134] : memref<9x128x128xf32, #tpu.memory_space<vmem>>, vector<1x128x128xf32>
    %122 = vector.shape_cast %121 : vector<1x128x128xf32> to vector<128x128xf32>
    %cst_135 = arith.constant dense<0.000000e+00> : vector<256x128xf32>
    %123 = tpu.matmul %120, %122, %cst_135 {dimension_numbers = #tpu.dot_dimension_numbers<[1], [0], [0], [1], [0, 0, 1, 1], [], []>} : vector<256x128xf32>, vector<128x128xf32>, vector<256x128xf32> -> vector<256x128xf32>
    %124 = arith.addf %118, %123 : vector<256x128xf32>
    %c2_136 = arith.constant 2 : index
    %c2_137 = arith.constant 2 : index
    %c0_138 = arith.constant 0 : index
    %125 = vector.load %arg11[%c2_136, %c2_137, %c0_138] : memref<18x18x128xf32, #tpu.memory_space<vmem>>, vector<16x16x128xf32>
    %126 = vector.shape_cast %125 : vector<16x16x128xf32> to vector<256x128xf32>
    %c8_139 = arith.constant 8 : index
    %c0_140 = arith.constant 0 : index
    %c0_141 = arith.constant 0 : index
    %127 = vector.load %arg3[%c8_139, %c0_140, %c0_141] : memref<9x128x128xf32, #tpu.memory_space<vmem>>, vector<1x128x128xf32>
    %128 = vector.shape_cast %127 : vector<1x128x128xf32> to vector<128x128xf32>
    %cst_142 = arith.constant dense<0.000000e+00> : vector<256x128xf32>
    %129 = tpu.matmul %126, %128, %cst_142 {dimension_numbers = #tpu.dot_dimension_numbers<[1], [0], [0], [1], [0, 0, 1, 1], [], []>} : vector<256x128xf32>, vector<128x128xf32>, vector<256x128xf32> -> vector<256x128xf32>
    %130 = arith.addf %124, %129 : vector<256x128xf32>
    %131 = vector.broadcast %75 : vector<1x128xf32> to vector<256x128xf32>
    %132 = arith.addf %130, %131 : vector<256x128xf32>
    %cst_143 = arith.constant 0.000000e+00 : f32
    %133 = vector.broadcast %cst_143 : f32 to vector<256x128xf32>
    %134 = arith.maximumf %132, %133 : vector<256x128xf32>
    %135 = vector.shape_cast %134 : vector<256x128xf32> to vector<16x16x128xf32>
    %c1_144 = arith.constant 1 : index
    %c1_145 = arith.constant 1 : index
    %c0_146 = arith.constant 0 : index
    %136 = vector.load %arg12[%c1_144, %c1_145, %c0_146] : memref<18x18x128xf32, #tpu.memory_space<vmem>>, vector<16x16x128xf32>
    tpu.vector_store %arg12[%c1_144, %c1_145, %c0_146], %135 {strides = array<i32>} : memref<18x18x128xf32, #tpu.memory_space<vmem>>, vector<16x16x128xf32>,
    %c0_147 = arith.constant 0 : index
    %c0_148 = arith.constant 0 : index
    %137 = vector.load %arg7[%c0_147, %c0_148] : memref<1x128xf32, #tpu.memory_space<vmem>>, vector<1x128xf32>
    %cst_149 = arith.constant 0.000000e+00 : f32
    %138 = vector.broadcast %cst_149 : f32 to vector<256x128xf32>
    %c0_150 = arith.constant 0 : index
    %c0_151 = arith.constant 0 : index
    %c0_152 = arith.constant 0 : index
    %139 = vector.load %arg12[%c0_150, %c0_151, %c0_152] : memref<18x18x128xf32, #tpu.memory_space<vmem>>, vector<16x16x128xf32>
    %140 = vector.shape_cast %139 : vector<16x16x128xf32> to vector<256x128xf32>
    %c0_153 = arith.constant 0 : index
    %c0_154 = arith.constant 0 : index
    %c0_155 = arith.constant 0 : index
    %141 = vector.load %arg4[%c0_153, %c0_154, %c0_155] : memref<9x128x128xf32, #tpu.memory_space<vmem>>, vector<1x128x128xf32>
    %142 = vector.shape_cast %141 : vector<1x128x128xf32> to vector<128x128xf32>
    %cst_156 = arith.constant dense<0.000000e+00> : vector<256x128xf32>
    %143 = tpu.matmul %140, %142, %cst_156 {dimension_numbers = #tpu.dot_dimension_numbers<[1], [0], [0], [1], [0, 0, 1, 1], [], []>} : vector<256x128xf32>, vector<128x128xf32>, vector<256x128xf32> -> vector<256x128xf32>
    %144 = arith.addf %138, %143 : vector<256x128xf32>
    %c0_157 = arith.constant 0 : index
    %c1_158 = arith.constant 1 : index
    %c0_159 = arith.constant 0 : index
    %145 = vector.load %arg12[%c0_157, %c1_158, %c0_159] : memref<18x18x128xf32, #tpu.memory_space<vmem>>, vector<16x16x128xf32>
    %146 = vector.shape_cast %145 : vector<16x16x128xf32> to vector<256x128xf32>
    %c1_160 = arith.constant 1 : index
    %c0_161 = arith.constant 0 : index
    %c0_162 = arith.constant 0 : index
    %147 = vector.load %arg4[%c1_160, %c0_161, %c0_162] : memref<9x128x128xf32, #tpu.memory_space<vmem>>, vector<1x128x128xf32>
    %148 = vector.shape_cast %147 : vector<1x128x128xf32> to vector<128x128xf32>
    %cst_163 = arith.constant dense<0.000000e+00> : vector<256x128xf32>
    %149 = tpu.matmul %146, %148, %cst_163 {dimension_numbers = #tpu.dot_dimension_numbers<[1], [0], [0], [1], [0, 0, 1, 1], [], []>} : vector<256x128xf32>, vector<128x128xf32>, vector<256x128xf32> -> vector<256x128xf32>
    %150 = arith.addf %144, %149 : vector<256x128xf32>
    %c0_164 = arith.constant 0 : index
    %c2_165 = arith.constant 2 : index
    %c0_166 = arith.constant 0 : index
    %151 = vector.load %arg12[%c0_164, %c2_165, %c0_166] : memref<18x18x128xf32, #tpu.memory_space<vmem>>, vector<16x16x128xf32>
    %152 = vector.shape_cast %151 : vector<16x16x128xf32> to vector<256x128xf32>
    %c2_167 = arith.constant 2 : index
    %c0_168 = arith.constant 0 : index
    %c0_169 = arith.constant 0 : index
    %153 = vector.load %arg4[%c2_167, %c0_168, %c0_169] : memref<9x128x128xf32, #tpu.memory_space<vmem>>, vector<1x128x128xf32>
    %154 = vector.shape_cast %153 : vector<1x128x128xf32> to vector<128x128xf32>
    %cst_170 = arith.constant dense<0.000000e+00> : vector<256x128xf32>
    %155 = tpu.matmul %152, %154, %cst_170 {dimension_numbers = #tpu.dot_dimension_numbers<[1], [0], [0], [1], [0, 0, 1, 1], [], []>} : vector<256x128xf32>, vector<128x128xf32>, vector<256x128xf32> -> vector<256x128xf32>
    %156 = arith.addf %150, %155 : vector<256x128xf32>
    %c1_171 = arith.constant 1 : index
    %c0_172 = arith.constant 0 : index
    %c0_173 = arith.constant 0 : index
    %157 = vector.load %arg12[%c1_171, %c0_172, %c0_173] : memref<18x18x128xf32, #tpu.memory_space<vmem>>, vector<16x16x128xf32>
    %158 = vector.shape_cast %157 : vector<16x16x128xf32> to vector<256x128xf32>
    %c3_174 = arith.constant 3 : index
    %c0_175 = arith.constant 0 : index
    %c0_176 = arith.constant 0 : index
    %159 = vector.load %arg4[%c3_174, %c0_175, %c0_176] : memref<9x128x128xf32, #tpu.memory_space<vmem>>, vector<1x128x128xf32>
    %160 = vector.shape_cast %159 : vector<1x128x128xf32> to vector<128x128xf32>
    %cst_177 = arith.constant dense<0.000000e+00> : vector<256x128xf32>
    %161 = tpu.matmul %158, %160, %cst_177 {dimension_numbers = #tpu.dot_dimension_numbers<[1], [0], [0], [1], [0, 0, 1, 1], [], []>} : vector<256x128xf32>, vector<128x128xf32>, vector<256x128xf32> -> vector<256x128xf32>
    %162 = arith.addf %156, %161 : vector<256x128xf32>
    %c1_178 = arith.constant 1 : index
    %c1_179 = arith.constant 1 : index
    %c0_180 = arith.constant 0 : index
    %163 = vector.load %arg12[%c1_178, %c1_179, %c0_180] : memref<18x18x128xf32, #tpu.memory_space<vmem>>, vector<16x16x128xf32>
    %164 = vector.shape_cast %163 : vector<16x16x128xf32> to vector<256x128xf32>
    %c4_181 = arith.constant 4 : index
    %c0_182 = arith.constant 0 : index
    %c0_183 = arith.constant 0 : index
    %165 = vector.load %arg4[%c4_181, %c0_182, %c0_183] : memref<9x128x128xf32, #tpu.memory_space<vmem>>, vector<1x128x128xf32>
    %166 = vector.shape_cast %165 : vector<1x128x128xf32> to vector<128x128xf32>
    %cst_184 = arith.constant dense<0.000000e+00> : vector<256x128xf32>
    %167 = tpu.matmul %164, %166, %cst_184 {dimension_numbers = #tpu.dot_dimension_numbers<[1], [0], [0], [1], [0, 0, 1, 1], [], []>} : vector<256x128xf32>, vector<128x128xf32>, vector<256x128xf32> -> vector<256x128xf32>
    %168 = arith.addf %162, %167 : vector<256x128xf32>
    %c1_185 = arith.constant 1 : index
    %c2_186 = arith.constant 2 : index
    %c0_187 = arith.constant 0 : index
    %169 = vector.load %arg12[%c1_185, %c2_186, %c0_187] : memref<18x18x128xf32, #tpu.memory_space<vmem>>, vector<16x16x128xf32>
    %170 = vector.shape_cast %169 : vector<16x16x128xf32> to vector<256x128xf32>
    %c5_188 = arith.constant 5 : index
    %c0_189 = arith.constant 0 : index
    %c0_190 = arith.constant 0 : index
    %171 = vector.load %arg4[%c5_188, %c0_189, %c0_190] : memref<9x128x128xf32, #tpu.memory_space<vmem>>, vector<1x128x128xf32>
    %172 = vector.shape_cast %171 : vector<1x128x128xf32> to vector<128x128xf32>
    %cst_191 = arith.constant dense<0.000000e+00> : vector<256x128xf32>
    %173 = tpu.matmul %170, %172, %cst_191 {dimension_numbers = #tpu.dot_dimension_numbers<[1], [0], [0], [1], [0, 0, 1, 1], [], []>} : vector<256x128xf32>, vector<128x128xf32>, vector<256x128xf32> -> vector<256x128xf32>
    %174 = arith.addf %168, %173 : vector<256x128xf32>
    %c2_192 = arith.constant 2 : index
    %c0_193 = arith.constant 0 : index
    %c0_194 = arith.constant 0 : index
    %175 = vector.load %arg12[%c2_192, %c0_193, %c0_194] : memref<18x18x128xf32, #tpu.memory_space<vmem>>, vector<16x16x128xf32>
    %176 = vector.shape_cast %175 : vector<16x16x128xf32> to vector<256x128xf32>
    %c6_195 = arith.constant 6 : index
    %c0_196 = arith.constant 0 : index
    %c0_197 = arith.constant 0 : index
    %177 = vector.load %arg4[%c6_195, %c0_196, %c0_197] : memref<9x128x128xf32, #tpu.memory_space<vmem>>, vector<1x128x128xf32>
    %178 = vector.shape_cast %177 : vector<1x128x128xf32> to vector<128x128xf32>
    %cst_198 = arith.constant dense<0.000000e+00> : vector<256x128xf32>
    %179 = tpu.matmul %176, %178, %cst_198 {dimension_numbers = #tpu.dot_dimension_numbers<[1], [0], [0], [1], [0, 0, 1, 1], [], []>} : vector<256x128xf32>, vector<128x128xf32>, vector<256x128xf32> -> vector<256x128xf32>
    %180 = arith.addf %174, %179 : vector<256x128xf32>
    %c2_199 = arith.constant 2 : index
    %c1_200 = arith.constant 1 : index
    %c0_201 = arith.constant 0 : index
    %181 = vector.load %arg12[%c2_199, %c1_200, %c0_201] : memref<18x18x128xf32, #tpu.memory_space<vmem>>, vector<16x16x128xf32>
    %182 = vector.shape_cast %181 : vector<16x16x128xf32> to vector<256x128xf32>
    %c7_202 = arith.constant 7 : index
    %c0_203 = arith.constant 0 : index
    %c0_204 = arith.constant 0 : index
    %183 = vector.load %arg4[%c7_202, %c0_203, %c0_204] : memref<9x128x128xf32, #tpu.memory_space<vmem>>, vector<1x128x128xf32>
    %184 = vector.shape_cast %183 : vector<1x128x128xf32> to vector<128x128xf32>
    %cst_205 = arith.constant dense<0.000000e+00> : vector<256x128xf32>
    %185 = tpu.matmul %182, %184, %cst_205 {dimension_numbers = #tpu.dot_dimension_numbers<[1], [0], [0], [1], [0, 0, 1, 1], [], []>} : vector<256x128xf32>, vector<128x128xf32>, vector<256x128xf32> -> vector<256x128xf32>
    %186 = arith.addf %180, %185 : vector<256x128xf32>
    %c2_206 = arith.constant 2 : index
    %c2_207 = arith.constant 2 : index
    %c0_208 = arith.constant 0 : index
    %187 = vector.load %arg12[%c2_206, %c2_207, %c0_208] : memref<18x18x128xf32, #tpu.memory_space<vmem>>, vector<16x16x128xf32>
    %188 = vector.shape_cast %187 : vector<16x16x128xf32> to vector<256x128xf32>
    %c8_209 = arith.constant 8 : index
    %c0_210 = arith.constant 0 : index
    %c0_211 = arith.constant 0 : index
    %189 = vector.load %arg4[%c8_209, %c0_210, %c0_211] : memref<9x128x128xf32, #tpu.memory_space<vmem>>, vector<1x128x128xf32>
    %190 = vector.shape_cast %189 : vector<1x128x128xf32> to vector<128x128xf32>
    %cst_212 = arith.constant dense<0.000000e+00> : vector<256x128xf32>
    %191 = tpu.matmul %188, %190, %cst_212 {dimension_numbers = #tpu.dot_dimension_numbers<[1], [0], [0], [1], [0, 0, 1, 1], [], []>} : vector<256x128xf32>, vector<128x128xf32>, vector<256x128xf32> -> vector<256x128xf32>
    %192 = arith.addf %186, %191 : vector<256x128xf32>
    %193 = vector.broadcast %137 : vector<1x128xf32> to vector<256x128xf32>
    %194 = arith.addf %192, %193 : vector<256x128xf32>
    %195 = arith.addf %194, %72 : vector<256x128xf32>
    %cst_213 = arith.constant 0.000000e+00 : f32
    %196 = vector.broadcast %cst_213 : f32 to vector<256x128xf32>
    %197 = arith.maximumf %195, %196 : vector<256x128xf32>
    %cst_214 = arith.constant dense<0.000000e+00> : vector<128xf32>
    %198 = vector.multi_reduction <add>, %197, %cst_214 [0] : vector<256x128xf32> to vector<128xf32>
    %199 = vector.shape_cast %198 : vector<128xf32> to vector<1x128xf32>
    %cst_215 = arith.constant 3.906250e-03 : f32
    %200 = vector.broadcast %cst_215 : f32 to vector<1x128xf32>
    %201 = arith.mulf %199, %200 : vector<1x128xf32>
    %c0_216 = arith.constant 0 : index
    %c0_217 = arith.constant 0 : index
    %202 = vector.load %arg8[%c0_216, %c0_217] : memref<128x128xf32, #tpu.memory_space<vmem>>, vector<128x128xf32>
    %cst_218 = arith.constant dense<0.000000e+00> : vector<1x128xf32>
    %203 = tpu.matmul %201, %202, %cst_218 {dimension_numbers = #tpu.dot_dimension_numbers<[1], [0], [0], [1], [0, 0, 1, 1], [], []>} : vector<1x128xf32>, vector<128x128xf32>, vector<1x128xf32> -> vector<1x128xf32>
    %c0_219 = arith.constant 0 : index
    %c0_220 = arith.constant 0 : index
    %204 = vector.load %arg9[%c0_219, %c0_220] : memref<1x128xf32, #tpu.memory_space<vmem>>, vector<1x128xf32>
    %205 = arith.addf %203, %204 : vector<1x128xf32>
    %c0_221 = arith.constant 0 : index
    %c0_222 = arith.constant 0 : index
    %c0_223 = arith.constant 0 : index
    %206 = vector.load %arg10[%c0_221, %c0_222, %c0_223] : memref<1x1x128xf32, #tpu.memory_space<vmem>>, vector<1x1x128xf32>
    %207 = vector.shape_cast %206 : vector<1x1x128xf32> to vector<1x128xf32>
    %208 = vector.shape_cast %205 : vector<1x128xf32> to vector<1x1x128xf32>
    tpu.vector_store %arg10[%c0_221, %c0_222, %c0_223], %208 {strides = array<i32>} : memref<1x1x128xf32, #tpu.memory_space<vmem>>, vector<1x1x128xf32>,
    return
  }
  func.func @transform_0(%arg0: i32) -> (i32, i32, i32, i32) {
    %c0_i32 = arith.constant 0 : i32
    %c0_i32_0 = arith.constant 0 : i32
    %c0_i32_1 = arith.constant 0 : i32
    %c0_i32_2 = arith.constant 0 : i32
    return %arg0, %c0_i32, %c0_i32_0, %c0_i32_1 : i32, i32, i32, i32
  }
  func.func @transform_1(%arg0: i32) -> (i32, i32, i32) {
    %c0_i32 = arith.constant 0 : i32
    %c0_i32_0 = arith.constant 0 : i32
    %c0_i32_1 = arith.constant 0 : i32
    %c0_i32_2 = arith.constant 0 : i32
    return %c0_i32, %c0_i32_0, %c0_i32_1 : i32, i32, i32
  }
  func.func @transform_2(%arg0: i32) -> (i32, i32, i32) {
    %c0_i32 = arith.constant 0 : i32
    %c0_i32_0 = arith.constant 0 : i32
    %c0_i32_1 = arith.constant 0 : i32
    %c0_i32_2 = arith.constant 0 : i32
    return %c0_i32, %c0_i32_0, %c0_i32_1 : i32, i32, i32
  }
  func.func @transform_3(%arg0: i32) -> (i32, i32, i32) {
    %c0_i32 = arith.constant 0 : i32
    %c0_i32_0 = arith.constant 0 : i32
    %c0_i32_1 = arith.constant 0 : i32
    %c0_i32_2 = arith.constant 0 : i32
    return %c0_i32, %c0_i32_0, %c0_i32_1 : i32, i32, i32
  }
  func.func @transform_4(%arg0: i32) -> (i32, i32) {
    %c0_i32 = arith.constant 0 : i32
    %c0_i32_0 = arith.constant 0 : i32
    %c0_i32_1 = arith.constant 0 : i32
    return %c0_i32, %c0_i32_0 : i32, i32
  }
  func.func @transform_5(%arg0: i32) -> (i32, i32) {
    %c0_i32 = arith.constant 0 : i32
    %c0_i32_0 = arith.constant 0 : i32
    %c0_i32_1 = arith.constant 0 : i32
    return %c0_i32, %c0_i32_0 : i32, i32
  }
  func.func @transform_6(%arg0: i32) -> (i32, i32) {
    %c0_i32 = arith.constant 0 : i32
    %c0_i32_0 = arith.constant 0 : i32
    %c0_i32_1 = arith.constant 0 : i32
    return %c0_i32, %c0_i32_0 : i32, i32
  }
  func.func @transform_7(%arg0: i32) -> (i32, i32) {
    %c0_i32 = arith.constant 0 : i32
    %c0_i32_0 = arith.constant 0 : i32
    %c0_i32_1 = arith.constant 0 : i32
    return %c0_i32, %c0_i32_0 : i32, i32
  }
  func.func @transform_8(%arg0: i32) -> (i32, i32) {
    %c0_i32 = arith.constant 0 : i32
    %c0_i32_0 = arith.constant 0 : i32
    %c0_i32_1 = arith.constant 0 : i32
    return %c0_i32, %c0_i32_0 : i32, i32
  }
  func.func @transform_9(%arg0: i32) -> (i32, i32, i32) {
    %c0_i32 = arith.constant 0 : i32
    %c0_i32_0 = arith.constant 0 : i32
    %c0_i32_1 = arith.constant 0 : i32
    return %arg0, %c0_i32, %c0_i32_0 : i32, i32, i32
  }
}

</mosaic_0001>

<llo_original>
// kernel: tpu_custom_call.1
$region0: #{tpu_custom_call.1}
  #allocation0 [shape = 'u32[]', space=smem, size = 0x4, offset = 0x4, fixed_abs, tag = 'smem constant byte address 0x4 - core index']
  #allocation1 [shape = 'u32[72,128]{1,0:T(1,128)}', space=vmem, size = 0x9000, scoped, tag = 'internal scratch']
  #allocation2 [shape = 'f32[18,18,128]{2,1,0:T(8,128)}', space=vmem, size = 0x36000, scoped, tag = 'scratch operand']
  #allocation3 [shape = 'f32[18,18,128]{2,1,0:T(8,128)}', space=vmem, size = 0x36000, scoped, tag = 'scratch operand']
  %s0 = inlined_call_operand.vmem [shape: f32[2,18,18,128], index: 0, kind: input, shape index: {}]
  %s1 = inlined_call_operand.vmem [shape: f32[9,128,128], index: 1, kind: input, shape index: {}]
  %s2 = inlined_call_operand.hbm [shape: f32[9,128,128], index: 2, kind: input, shape index: {}]
  %s3 = inlined_call_operand.hbm [shape: f32[9,128,128], index: 3, kind: input, shape index: {}]
  %s4 = inlined_call_operand.vmem [shape: f32[1,128], index: 4, kind: input, shape index: {}]
  %s5 = inlined_call_operand.vmem [shape: f32[1,128], index: 5, kind: input, shape index: {}]
  %s6 = inlined_call_operand.vmem [shape: f32[1,128], index: 6, kind: input, shape index: {}]
  %s7 = inlined_call_operand.vmem [shape: f32[128,128], index: 7, kind: input, shape index: {}]
  %s8 = inlined_call_operand.vmem [shape: f32[1,128], index: 8, kind: input, shape index: {}]
  %s9 = inlined_call_operand.hbm [shape: f32[2,1,128], index: 9, kind: output, shape index: {}]
  %s10 = sld [smem:[#allocation0]]
  $region77: #{tpu_custom_call.1} parent=0
    _
  %s12 = ssub.s32 1, %s10
  %s13 = scalar_select 0, %s12, %s10
  $region1: #{tpu_custom_call.1} parent=0
    #allocation4 [shape = 'u8[589824]{0}', space=vmem, size = 0x90000, scoped, tag = 'input window, operand 2, single buffered']
    #allocation5 [shape = 's32[2]{0}', space=sflag, size = 0x8, scoped, tag = 'scoped memory for tpu_custom_call.1']
    #allocation6 [shape = 's32[2]{0}', space=sflag, size = 0x8, scoped, tag = 'scoped memory for tpu_custom_call.1']
    #allocation7 [shape = 'u8[589824]{0}', space=vmem, size = 0x90000, scoped, tag = 'input window, operand 3, single buffered']
    #allocation8 [shape = 's32[1]{0}', space=sflag, size = 0x4, scoped, tag = 'scoped memory for tpu_custom_call.1']
    #allocation9 [shape = 'u8[1024]{0}', space=vmem, size = 0x400, scoped, tag = 'output window, operand 0']
    %14 = vsyncpa [#allocation5], 0
    %15 = vsyncpa [#allocation8], 0
    %16 = vsyncpa [#allocation6], 0
    %s17 = scalar_lea.sflag [#allocation6], 1
    %18 = vsyncpa %s17, 0
    loop: start=0, step=1, limit=4
    $region2: #{tpu_custom_call.1} parent=1 // loop_pre_header
      _
    $region3: #{tpu_custom_call.1} parent=1 // loop_header
      %s20 = sphi 0, %s24
      %p21 = scmp.ge.s32.totalorder %s20, 4
      %s30 = sphi 0, %s32
      %s33 = sphi 0, %s30
      %s34 = sphi 0, %s33
      %s50 = sphi 0, %s34
      %s54 = sphi 0, %s54
      %s56 = sphi 0, %s54
      %s57 = sphi 0, %s56
      %s71 = sphi 0, %s57
      %s75 = sphi 0, %s75
      %s77 = sphi 0, %s75
      %s78 = sphi 0, %s77
      %s92 = sphi 0, %s78
      %s96 = sphi 0, %s96
      %s98 = sphi 0, %s96
      %s99 = sphi 0, %s98
      %s113 = sphi 0, %s99
      %s117 = sphi 0, %s117
      %s119 = sphi 0, %s117
      %s120 = sphi 0, %s119
      %s134 = sphi 0, %s120
      %s138 = sphi 0, %s138
      %s140 = sphi 0, %s138
      %s141 = sphi 0, %s140
      %s155 = sphi 0, %s141
      %s159 = sphi 0, %s159
      %s161 = sphi 0, %s159
      %s162 = sphi 0, %s161
      %s176 = sphi 0, %s162
      %s180 = sphi 0, %s180
      %s182 = sphi 0, %s180
      %s183 = sphi 0, %s182
      %s197 = sphi 0, %s183
      %s201 = sphi 0, %s201
      %s203 = sphi 0, %s201
      %s204 = sphi 0, %s203
      %s218 = sphi 0, %s204
      %s224 = sphi 0, %s226
      %s227 = sphi 0, %s224
      %s228 = sphi 0, %s227
      %s244 = sphi 0, %s228
    $region4: #{tpu_custom_call.1} parent=1 // loop_header_branch
      %23 = sbr.rel (%p21) target = $region8
    $region5: #{tpu_custom_call.1} parent=1 // loop_body
      %s25 = ssub.s32 %s20, 1
      %s26 = ssub.s32 %s20, 2
      %s27 = sadd.s32 %s20, 1
      %s28 = ssub.s32 %s20, %s27
      %p29 = scmp.eq.s32.totalorder %s28, 0
      %s31 = sadd.s32 %s30, 1
      %s32 = scalar_select %p29, %s30, %s31
      %p35 = pneg %p29
      %p36 = scmp.eq.s32.totalorder %s20, 1
      %p37 = por %p35, %p36
      %p38 = scmp.ne.s32.totalorder %s30, %s33
      %p39 = scmp.eq.s32.totalorder %s20, 0
      %p40 = por %p38, %p39
      %p41 = scmp.ne.s32.totalorder %s30, %s33
      %p42 = scmp.eq.s32.totalorder %s25, 1
      %p43 = por %p41, %p42
      %p44 = scmp.ne.s32.totalorder %s33, %s34
      %p45 = scmp.eq.s32.totalorder %s25, 0
      %p46 = por %p44, %p45
      %p47 = scmp.ne.s32.totalorder %s33, %s34
      %p48 = scmp.eq.s32.totalorder %s26, 1
      %p49 = por %p47, %p48
      %p51 = scmp.ne.s32.totalorder %s34, %s50
      %p52 = scmp.eq.s32.totalorder %s26, 0
      %p53 = por %p51, %p52
      %s55 = sadd.s32 %s54, 1
      %p58 = scmp.eq.s32.totalorder %s20, 1
      %p59 = scmp.ne.s32.totalorder %s54, %s56
      %p60 = scmp.eq.s32.totalorder %s20, 0
      %p61 = por %p59, %p60
      %p62 = scmp.ne.s32.totalorder %s54, %s56
      %p63 = scmp.eq.s32.totalorder %s25, 1
      %p64 = por %p62, %p63
      %p65 = scmp.ne.s32.totalorder %s56, %s57
      %p66 = scmp.eq.s32.totalorder %s25, 0
      %p67 = por %p65, %p66
      %p68 = scmp.ne.s32.totalorder %s56, %s57
      %p69 = scmp.eq.s32.totalorder %s26, 1
      %p70 = por %p68, %p69
      %p72 = scmp.ne.s32.totalorder %s57, %s71
      %p73 = scmp.eq.s32.totalorder %s26, 0
      %p74 = por %p72, %p73
      %s76 = sadd.s32 %s75, 1
      %p79 = scmp.eq.s32.totalorder %s20, 1
      %p80 = scmp.ne.s32.totalorder %s75, %s77
      %p81 = scmp.eq.s32.totalorder %s20, 0
      %p82 = por %p80, %p81
      %p83 = scmp.ne.s32.totalorder %s75, %s77
      %p84 = scmp.eq.s32.totalorder %s25, 1
      %p85 = por %p83, %p84
      %p86 = scmp.ne.s32.totalorder %s77, %s78
      %p87 = scmp.eq.s32.totalorder %s25, 0
      %p88 = por %p86, %p87
      %p89 = scmp.ne.s32.totalorder %s77, %s78
      %p90 = scmp.eq.s32.totalorder %s26, 1
      %p91 = por %p89, %p90
      %p93 = scmp.ne.s32.totalorder %s78, %s92
      %p94 = scmp.eq.s32.totalorder %s26, 0
      %p95 = por %p93, %p94
      %s97 = sadd.s32 %s96, 1
      %p100 = scmp.eq.s32.totalorder %s20, 1
      %p101 = scmp.ne.s32.totalorder %s96, %s98
      %p102 = scmp.eq.s32.totalorder %s20, 0
      %p103 = por %p101, %p102
      %p104 = scmp.ne.s32.totalorder %s96, %s98
      %p105 = scmp.eq.s32.totalorder %s25, 1
      %p106 = por %p104, %p105
      %p107 = scmp.ne.s32.totalorder %s98, %s99
      %p108 = scmp.eq.s32.totalorder %s25, 0
      %p109 = por %p107, %p108
      %p110 = scmp.ne.s32.totalorder %s98, %s99
      %p111 = scmp.eq.s32.totalorder %s26, 1
      %p112 = por %p110, %p111
      %p114 = scmp.ne.s32.totalorder %s99, %s113
      %p115 = scmp.eq.s32.totalorder %s26, 0
      %p116 = por %p114, %p115
      %s118 = sadd.s32 %s117, 1
      %p121 = scmp.eq.s32.totalorder %s20, 1
      %p122 = scmp.ne.s32.totalorder %s117, %s119
      %p123 = scmp.eq.s32.totalorder %s20, 0
      %p124 = por %p122, %p123
      %p125 = scmp.ne.s32.totalorder %s117, %s119
      %p126 = scmp.eq.s32.totalorder %s25, 1
      %p127 = por %p125, %p126
      %p128 = scmp.ne.s32.totalorder %s119, %s120
      %p129 = scmp.eq.s32.totalorder %s25, 0
      %p130 = por %p128, %p129
      %p131 = scmp.ne.s32.totalorder %s119, %s120
      %p132 = scmp.eq.s32.totalorder %s26, 1
      %p133 = por %p131, %p132
      %p135 = scmp.ne.s32.totalorder %s120, %s134
      %p136 = scmp.eq.s32.totalorder %s26, 0
      %p137 = por %p135, %p136
      %s139 = sadd.s32 %s138, 1
      %p142 = scmp.eq.s32.totalorder %s20, 1
      %p143 = scmp.ne.s32.totalorder %s138, %s140
      %p144 = scmp.eq.s32.totalorder %s20, 0
      %p145 = por %p143, %p144
      %p146 = scmp.ne.s32.totalorder %s138, %s140
      %p147 = scmp.eq.s32.totalorder %s25, 1
      %p148 = por %p146, %p147
      %p149 = scmp.ne.s32.totalorder %s140, %s141
      %p150 = scmp.eq.s32.totalorder %s25, 0
      %p151 = por %p149, %p150
      %p152 = scmp.ne.s32.totalorder %s140, %s141
      %p153 = scmp.eq.s32.totalorder %s26, 1
      %p154 = por %p152, %p153
      %p156 = scmp.ne.s32.totalorder %s141, %s155
      %p157 = scmp.eq.s32.totalorder %s26, 0
      %p158 = por %p156, %p157
      %s160 = sadd.s32 %s159, 1
      %p163 = scmp.eq.s32.totalorder %s20, 1
      %p164 = scmp.ne.s32.totalorder %s159, %s161
      %p165 = scmp.eq.s32.totalorder %s20, 0
      %p166 = por %p164, %p165
      %p167 = scmp.ne.s32.totalorder %s159, %s161
      %p168 = scmp.eq.s32.totalorder %s25, 1
      %p169 = por %p167, %p168
      %p170 = scmp.ne.s32.totalorder %s161, %s162
      %p171 = scmp.eq.s32.totalorder %s25, 0
      %p172 = por %p170, %p171
      %p173 = scmp.ne.s32.totalorder %s161, %s162
      %p174 = scmp.eq.s32.totalorder %s26, 1
      %p175 = por %p173, %p174
      %p177 = scmp.ne.s32.totalorder %s162, %s176
      %p178 = scmp.eq.s32.totalorder %s26, 0
      %p179 = por %p177, %p178
      %s181 = sadd.s32 %s180, 1
      %p184 = scmp.eq.s32.totalorder %s20, 1
      %p185 = scmp.ne.s32.totalorder %s180, %s182
      %p186 = scmp.eq.s32.totalorder %s20, 0
      %p187 = por %p185, %p186
      %p188 = scmp.ne.s32.totalorder %s180, %s182
      %p189 = scmp.eq.s32.totalorder %s25, 1
      %p190 = por %p188, %p189
      %p191 = scmp.ne.s32.totalorder %s182, %s183
      %p192 = scmp.eq.s32.totalorder %s25, 0
      %p193 = por %p191, %p192
      %p194 = scmp.ne.s32.totalorder %s182, %s183
      %p195 = scmp.eq.s32.totalorder %s26, 1
      %p196 = por %p194, %p195
      %p198 = scmp.ne.s32.totalorder %s183, %s197
      %p199 = scmp.eq.s32.totalorder %s26, 0
      %p200 = por %p198, %p199
      %s202 = sadd.s32 %s201, 1
      %p205 = scmp.eq.s32.totalorder %s20, 1
      %p206 = scmp.ne.s32.totalorder %s201, %s203
      %p207 = scmp.eq.s32.totalorder %s20, 0
      %p208 = por %p206, %p207
      %p209 = scmp.ne.s32.totalorder %s201, %s203
      %p210 = scmp.eq.s32.totalorder %s25, 1
      %p211 = por %p209, %p210
      %p212 = scmp.ne.s32.totalorder %s203, %s204
      %p213 = scmp.eq.s32.totalorder %s25, 0
      %p214 = por %p212, %p213
      %p215 = scmp.ne.s32.totalorder %s203, %s204
      %p216 = scmp.eq.s32.totalorder %s26, 1
      %p217 = por %p215, %p216
      %p219 = scmp.ne.s32.totalorder %s204, %s218
      %p220 = scmp.eq.s32.totalorder %s26, 0
      %p221 = por %p219, %p220
      %s222 = ssub.s32 %s20, %s27
      %p223 = scmp.eq.s32.totalorder %s222, 0
      %s225 = sadd.s32 %s224, 1
      %s226 = scalar_select %p223, %s224, %s225
      %p229 = pneg %p223
      %p230 = scmp.eq.s32.totalorder %s20, 1
      %p231 = por %p229, %p230
      %p232 = scmp.ne.s32.totalorder %s224, %s227
      %p233 = scmp.eq.s32.totalorder %s20, 0
      %p234 = por %p232, %p233
      %p235 = scmp.ne.s32.totalorder %s224, %s227
      %p236 = scmp.eq.s32.totalorder %s25, 1
      %p237 = por %p235, %p236
      %p238 = scmp.ne.s32.totalorder %s227, %s228
      %p239 = scmp.eq.s32.totalorder %s25, 0
      %p240 = por %p238, %p239
      %p241 = scmp.ne.s32.totalorder %s227, %s228
      %p242 = scmp.eq.s32.totalorder %s26, 1
      %p243 = por %p241, %p242
      %p245 = scmp.ne.s32.totalorder %s228, %s244
      %p246 = scmp.eq.s32.totalorder %s26, 0
      %p247 = por %p245, %p246
      %p248 = scmp.le.s32.totalorder 1, %s20
      %p249 = scmp.lt.s32.totalorder %s20, 3
      %p250 = pnand %p248, %p249
      %p251 = pneg %p250
      // Predicated region
      $region9: #{tpu_custom_call.1} parent=5 // pred_check
        _
      $region10: #{tpu_custom_call.1} parent=5 // pred_check_branch
        %253 = sbr.rel (%p250) target = $region12
      $region11: #{tpu_custom_call.1} parent=5 // pred_region
        %s254 = ssub.s32 %s20, 1
        // Predicated region
        $region13: #{tpu_custom_call.1} parent=11 // pred_check
          %p255 = pneg %p67
        $region14: #{tpu_custom_call.1} parent=11 // pred_check_branch
          %257 = sbr.rel (%p255) target = $region16
        $region15: #{tpu_custom_call.1} parent=11 // pred_region
          _
        $region16: #{tpu_custom_call.1} parent=11 // pred_fallthru
          _
        // Predicated region
        $region17: #{tpu_custom_call.1} parent=11 // pred_check
          %p258 = pneg %p88
        $region18: #{tpu_custom_call.1} parent=11 // pred_check_branch
          %260 = sbr.rel (%p258) target = $region20
        $region19: #{tpu_custom_call.1} parent=11 // pred_region
          %262 = vsyncadd [#allocation5], 0
          %s263 = sshll.u32 %s2, 4
          %s264 = int_to_ptr.hbm [resolvable:$true] %s263
          %s265 = sshll.u32 [#allocation4], 4
          %s266 = int_to_ptr.vmem [resolvable:$true] %s265
          %271 = dma.hbm_to_vmem [thread:$0]  %s264, 18432, %s266, [#allocation5], 128, 128, 8
        $region20: #{tpu_custom_call.1} parent=11 // pred_fallthru
          _
        // Predicated region
        $region21: #{tpu_custom_call.1} parent=11 // pred_check
          %p272 = pneg %p109
        $region22: #{tpu_custom_call.1} parent=11 // pred_check_branch
          %274 = sbr.rel (%p272) target = $region24
        $region23: #{tpu_custom_call.1} parent=11 // pred_region
          %276 = vsyncadd [#allocation8], 0
          %s277 = sshll.u32 %s3, 4
          %s278 = int_to_ptr.hbm [resolvable:$true] %s277
          %s279 = sshll.u32 [#allocation7], 4
          %s280 = int_to_ptr.vmem [resolvable:$true] %s279
          %285 = dma.hbm_to_vmem [thread:$0]  %s278, 18432, %s280, [#allocation8], 128, 128, 8
        $region24: #{tpu_custom_call.1} parent=11 // pred_fallthru
          _
        // Predicated region
        $region25: #{tpu_custom_call.1} parent=11 // pred_check
          %p286 = pneg %p130
        $region26: #{tpu_custom_call.1} parent=11 // pred_check_branch
          %288 = sbr.rel (%p286) target = $region28
        $region27: #{tpu_custom_call.1} parent=11 // pred_region
          _
        $region28: #{tpu_custom_call.1} parent=11 // pred_fallthru
          _
        // Predicated region
        $region29: #{tpu_custom_call.1} parent=11 // pred_check
          %p289 = pneg %p151
        $region30: #{tpu_custom_call.1} parent=11 // pred_check_branch
          %291 = sbr.rel (%p289) target = $region32
        $region31: #{tpu_custom_call.1} parent=11 // pred_region
          _
        $region32: #{tpu_custom_call.1} parent=11 // pred_fallthru
          _
        // Predicated region
        $region33: #{tpu_custom_call.1} parent=11 // pred_check
          %p292 = pneg %p172
        $region34: #{tpu_custom_call.1} parent=11 // pred_check_branch
          %294 = sbr.rel (%p292) target = $region36
        $region35: #{tpu_custom_call.1} parent=11 // pred_region
          _
        $region36: #{tpu_custom_call.1} parent=11 // pred_fallthru
          _
        // Predicated region
        $region37: #{tpu_custom_call.1} parent=11 // pred_check
          %p295 = pneg %p193
        $region38: #{tpu_custom_call.1} parent=11 // pred_check_branch
          %297 = sbr.rel (%p295) target = $region40
        $region39: #{tpu_custom_call.1} parent=11 // pred_region
          _
        $region40: #{tpu_custom_call.1} parent=11 // pred_fallthru
          _
        // Predicated region
        $region41: #{tpu_custom_call.1} parent=11 // pred_check
          %p298 = pneg %p214
        $region42: #{tpu_custom_call.1} parent=11 // pred_check_branch
          %300 = sbr.rel (%p298) target = $region44
        $region43: #{tpu_custom_call.1} parent=11 // pred_region
          _
        $region44: #{tpu_custom_call.1} parent=11 // pred_fallthru
          _
      $region12: #{tpu_custom_call.1} parent=5 // pred_fallthru
        _
      %p301 = scmp.lt.s32.totalorder %s20, 2
      // Predicated region
      $region45: #{tpu_custom_call.1} parent=5 // pred_check
        %p302 = pneg %p301
      $region46: #{tpu_custom_call.1} parent=5 // pred_check_branch
        %304 = sbr.rel (%p302) target = $region48
      $region47: #{tpu_custom_call.1} parent=5 // pred_region
        // Predicated region
        $region49: #{tpu_custom_call.1} parent=47 // pred_check
          %p305 = pneg %p40
        $region50: #{tpu_custom_call.1} parent=47 // pred_check_branch
          %307 = sbr.rel (%p305) target = $region52
        $region51: #{tpu_custom_call.1} parent=47 // pred_region
          %p308 = scmp.lt.s32.totalorder %s20, 1
          %s309 = scalar_select %p308, %s20, 1
          %s310 = smul.addr %s309, 54
          %s311 = smul.addr %s310, 8
          %s312 = scalar_lea.vmem %s0, %s311
        $region52: #{tpu_custom_call.1} parent=47 // pred_fallthru
          _
      $region48: #{tpu_custom_call.1} parent=5 // pred_fallthru
        _
      %p313 = scmp.le.s32.totalorder 1, %s20
      %p314 = scmp.lt.s32.totalorder %s20, 3
      %p315 = pnand %p313, %p314
      %p316 = pneg %p315
      // Predicated region
      $region53: #{tpu_custom_call.1} parent=5 // pred_check
        _
      $region54: #{tpu_custom_call.1} parent=5 // pred_check_branch
        %318 = sbr.rel (%p315) target = $region56
      $region55: #{tpu_custom_call.1} parent=5 // pred_region
        %s319 = ssub.s32 %s20, 1
        // Predicated region
        $region57: #{tpu_custom_call.1} parent=55 // pred_check
          %p320 = pneg %p88
        $region58: #{tpu_custom_call.1} parent=55 // pred_check_branch
          %322 = sbr.rel (%p320) target = $region60
        $region59: #{tpu_custom_call.1} parent=55 // pred_region
          %324 = dma.done [#allocation5], 18432
        $region60: #{tpu_custom_call.1} parent=55 // pred_fallthru
          _
        // Predicated region
        $region61: #{tpu_custom_call.1} parent=55 // pred_check
          %p325 = pneg %p109
        $region62: #{tpu_custom_call.1} parent=55 // pred_check_branch
          %327 = sbr.rel (%p325) target = $region64
        $region63: #{tpu_custom_call.1} parent=55 // pred_region
          %329 = dma.done [#allocation8], 18432
        $region64: #{tpu_custom_call.1} parent=55 // pred_fallthru
          _
        %p330 = scmp.lt.s32.totalorder %s25, 1
        %s331 = scalar_select %p330, %s25, 1
        %s332 = smul.addr %s331, 54
        %s333 = smul.addr %s332, 8
        %s334 = scalar_lea.vmem %s0, %s333
        %p335 = pneg %p46
        %p336 = pneg %p43
        %p337 = pneg %p67
        %p338 = pneg %p64
        %p339 = pneg %p88
        %p340 = pneg %p85
        %p341 = pneg %p109
        %p342 = pneg %p106
        %p343 = pneg %p130
        %p344 = pneg %p127
        %p345 = pneg %p151
        %p346 = pneg %p148
        %p347 = pneg %p172
        %p348 = pneg %p169
        %p349 = pneg %p193
        %p350 = pneg %p190
        %p351 = pneg %p214
        %p352 = pneg %p211
        %p353 = pneg %p240
        %p354 = pneg %p237
        %s355 = sand.u32 %s227, 1
        %s356 = scalar_lea.sflag [#allocation6], %s355
        %s357 = sand.u32 %s227, 1
        %s358 = scalar_lea.vmem [#allocation9], %s357
        %p359 = scmp.lt.s32.totalorder %s25, 1
        %s360 = scalar_select %p359, %s25, 1
        %s361 = smul.addr %s360, 54
        %s362 = smul.addr %s361, 8
        %s363 = scalar_lea.vmem %s0, %s362
        %364 = vst [vmem:[#allocation2] sm:$0xff] 0.0
        %365 = vst [vmem:[#allocation2 + $0x8] sm:$0xff] 0.0
        %366 = vst [vmem:[#allocation2 + $0x10] sm:$0x3] 0.0
        %367 = vst [vmem:[#allocation2 + $0x18] sm:$0xff] 0.0
        %368 = vst [vmem:[#allocation2 + $0x20] sm:$0xff] 0.0
        %369 = vst [vmem:[#allocation2 + $0x28] sm:$0x3] 0.0
        %370 = vst [vmem:[#allocation2 + $0x30] sm:$0xff] 0.0
        %371 = vst [vmem:[#allocation2 + $0x38] sm:$0xff] 0.0
        %372 = vst [vmem:[#allocation2 + $0x40] sm:$0x3] 0.0
        %373 = vst [vmem:[#allocation2 + $0x48] sm:$0xff] 0.0
        %374 = vst [vmem:[#allocation2 + $0x50] sm:$0xff] 0.0
        %375 = vst [vmem:[#allocation2 + $0x58] sm:$0x3] 0.0
        %376 = vst [vmem:[#allocation2 + $0x60] sm:$0xff] 0.0
        %377 = vst [vmem:[#allocation2 + $0x68] sm:$0xff] 0.0
        %378 = vst [vmem:[#allocation2 + $0x70] sm:$0x3] 0.0
        %379 = vst [vmem:[#allocation2 + $0x78] sm:$0xff] 0.0
        %380 = vst [vmem:[#allocation2 + $0x80] sm:$0xff] 0.0
        %381 = vst [vmem:[#allocation2 + $0x88] sm:$0x3] 0.0
        %382 = vst [vmem:[#allocation2 + $0x90] sm:$0xff] 0.0
        %383 = vst [vmem:[#allocation2 + $0x98] sm:$0xff] 0.0
        %384 = vst [vmem:[#allocation2 + $0xa0] sm:$0x3] 0.0
        %385 = vst [vmem:[#allocation2 + $0xa8] sm:$0xff] 0.0
        %386 = vst [vmem:[#allocation2 + $0xb0] sm:$0xff] 0.0
        %387 = vst [vmem:[#allocation2 + $0xb8] sm:$0x3] 0.0
        %388 = vst [vmem:[#allocation2 + $0xc0] sm:$0xff] 0.0
        %389 = vst [vmem:[#allocation2 + $0xc8] sm:$0xff] 0.0
        %390 = vst [vmem:[#allocation2 + $0xd0] sm:$0x3] 0.0
        %391 = vst [vmem:[#allocation2 + $0xd8] sm:$0xff] 0.0
        %392 = vst [vmem:[#allocation2 + $0xe0] sm:$0xff] 0.0
        %393 = vst [vmem:[#allocation2 + $0xe8] sm:$0x3] 0.0
        %394 = vst [vmem:[#allocation2 + $0xf0] sm:$0xff] 0.0
        %395 = vst [vmem:[#allocation2 + $0xf8] sm:$0xff] 0.0
        %396 = vst [vmem:[#allocation2 + $0x100] sm:$0x3] 0.0
        %397 = vst [vmem:[#allocation2 + $0x108] sm:$0xff] 0.0
        %398 = vst [vmem:[#allocation2 + $0x110] sm:$0xff] 0.0
        %399 = vst [vmem:[#allocation2 + $0x118] sm:$0x3] 0.0
        %400 = vst [vmem:[#allocation2 + $0x120] sm:$0xff] 0.0
        %401 = vst [vmem:[#allocation2 + $0x128] sm:$0xff] 0.0
        %402 = vst [vmem:[#allocation2 + $0x130] sm:$0x3] 0.0
        %403 = vst [vmem:[#allocation2 + $0x138] sm:$0xff] 0.0
        %404 = vst [vmem:[#allocation2 + $0x140] sm:$0xff] 0.0
        %405 = vst [vmem:[#allocation2 + $0x148] sm:$0x3] 0.0
        %406 = vst [vmem:[#allocation2 + $0x150] sm:$0xff] 0.0
        %407 = vst [vmem:[#allocation2 + $0x158] sm:$0xff] 0.0
        %408 = vst [vmem:[#allocation2 + $0x160] sm:$0x3] 0.0
        %409 = vst [vmem:[#allocation2 + $0x168] sm:$0xff] 0.0
        %410 = vst [vmem:[#allocation2 + $0x170] sm:$0xff] 0.0
        %411 = vst [vmem:[#allocation2 + $0x178] sm:$0x3] 0.0
        %412 = vst [vmem:[#allocation2 + $0x180] sm:$0xff] 0.0
        %413 = vst [vmem:[#allocation2 + $0x188] sm:$0xff] 0.0
        %414 = vst [vmem:[#allocation2 + $0x190] sm:$0x3] 0.0
        %415 = vst [vmem:[#allocation2 + $0x198] sm:$0xff] 0.0
        %416 = vst [vmem:[#allocation2 + $0x1a0] sm:$0xff] 0.0
        %417 = vst [vmem:[#allocation2 + $0x1a8] sm:$0x3] 0.0
        %418 = vst [vmem:[#allocation3] sm:$0xff] 0.0
        %419 = vst [vmem:[#allocation3 + $0x8] sm:$0xff] 0.0
        %420 = vst [vmem:[#allocation3 + $0x10] sm:$0x3] 0.0
        %421 = vst [vmem:[#allocation3 + $0x18] sm:$0xff] 0.0
        %422 = vst [vmem:[#allocation3 + $0x20] sm:$0xff] 0.0
        %423 = vst [vmem:[#allocation3 + $0x28] sm:$0x3] 0.0
        %424 = vst [vmem:[#allocation3 + $0x30] sm:$0xff] 0.0
        %425 = vst [vmem:[#allocation3 + $0x38] sm:$0xff] 0.0
        %426 = vst [vmem:[#allocation3 + $0x40] sm:$0x3] 0.0
        %427 = vst [vmem:[#allocation3 + $0x48] sm:$0xff] 0.0
        %428 = vst [vmem:[#allocation3 + $0x50] sm:$0xff] 0.0
        %429 = vst [vmem:[#allocation3 + $0x58] sm:$0x3] 0.0
        %430 = vst [vmem:[#allocation3 + $0x60] sm:$0xff] 0.0
        %431 = vst [vmem:[#allocation3 + $0x68] sm:$0xff] 0.0
        %432 = vst [vmem:[#allocation3 + $0x70] sm:$0x3] 0.0
        %433 = vst [vmem:[#allocation3 + $0x78] sm:$0xff] 0.0
        %434 = vst [vmem:[#allocation3 + $0x80] sm:$0xff] 0.0
        %435 = vst [vmem:[#allocation3 + $0x88] sm:$0x3] 0.0
        %436 = vst [vmem:[#allocation3 + $0x90] sm:$0xff] 0.0
        %437 = vst [vmem:[#allocation3 + $0x98] sm:$0xff] 0.0
        %438 = vst [vmem:[#allocation3 + $0xa0] sm:$0x3] 0.0
        %439 = vst [vmem:[#allocation3 + $0xa8] sm:$0xff] 0.0
        %440 = vst [vmem:[#allocation3 + $0xb0] sm:$0xff] 0.0
        %441 = vst [vmem:[#allocation3 + $0xb8] sm:$0x3] 0.0
        %442 = vst [vmem:[#allocation3 + $0xc0] sm:$0xff] 0.0
        %443 = vst [vmem:[#allocation3 + $0xc8] sm:$0xff] 0.0
        %444 = vst [vmem:[#allocation3 + $0xd0] sm:$0x3] 0.0
        %445 = vst [vmem:[#allocation3 + $0xd8] sm:$0xff] 0.0
        %446 = vst [vmem:[#allocation3 + $0xe0] sm:$0xff] 0.0
        %447 = vst [vmem:[#allocation3 + $0xe8] sm:$0x3] 0.0
        %448 = vst [vmem:[#allocation3 + $0xf0] sm:$0xff] 0.0
        %449 = vst [vmem:[#allocation3 + $0xf8] sm:$0xff] 0.0
        %450 = vst [vmem:[#allocation3 + $0x100] sm:$0x3] 0.0
        %451 = vst [vmem:[#allocation3 + $0x108] sm:$0xff] 0.0
        %452 = vst [vmem:[#allocation3 + $0x110] sm:$0xff] 0.0
        %453 = vst [vmem:[#allocation3 + $0x118] sm:$0x3] 0.0
        %454 = vst [vmem:[#allocation3 + $0x120] sm:$0xff] 0.0
        %455 = vst [vmem:[#allocation3 + $0x128] sm:$0xff] 0.0
        %456 = vst [vmem:[#allocation3 + $0x130] sm:$0x3] 0.0
        %457 = vst [vmem:[#allocation3 + $0x138] sm:$0xff] 0.0
        %458 = vst [vmem:[#allocation3 + $0x140] sm:$0xff] 0.0
        %459 = vst [vmem:[#allocation3 + $0x148] sm:$0x3] 0.0
        %460 = vst [vmem:[#allocation3 + $0x150] sm:$0xff] 0.0
        %461 = vst [vmem:[#allocation3 + $0x158] sm:$0xff] 0.0
        %462 = vst [vmem:[#allocation3 + $0x160] sm:$0x3] 0.0
        %463 = vst [vmem:[#allocation3 + $0x168] sm:$0xff] 0.0
        %464 = vst [vmem:[#allocation3 + $0x170] sm:$0xff] 0.0
        %465 = vst [vmem:[#allocation3 + $0x178] sm:$0x3] 0.0
        %466 = vst [vmem:[#allocation3 + $0x180] sm:$0xff] 0.0
        %467 = vst [vmem:[#allocation3 + $0x188] sm:$0xff] 0.0
        %468 = vst [vmem:[#allocation3 + $0x190] sm:$0x3] 0.0
        %469 = vst [vmem:[#allocation3 + $0x198] sm:$0xff] 0.0
        %470 = vst [vmem:[#allocation3 + $0x1a0] sm:$0xff] 0.0
        %471 = vst [vmem:[#allocation3 + $0x1a8] sm:$0x3] 0.0
        %v472 = vld [vmem:[%s4] sm:$0x1]
        %v473 = vld [vmem:[%s363] sm:$0xff]
        %v474 = vld [vmem:[%s363 + $0x8] sm:$0xff]
        %v475 = vld [vmem:[%s363 + $0x18] sm:$0xff]
        %v476 = vld [vmem:[%s363 + $0x20] sm:$0xff]
        %v477 = vld [vmem:[%s363 + $0x30] sm:$0xff]
        %v478 = vld [vmem:[%s363 + $0x38] sm:$0xff]
        %v479 = vld [vmem:[%s363 + $0x48] sm:$0xff]
        %v480 = vld [vmem:[%s363 + $0x50] sm:$0xff]
        %v481 = vld [vmem:[%s363 + $0x60] sm:$0xff]
        %v482 = vld [vmem:[%s363 + $0x68] sm:$0xff]
        %v483 = vld [vmem:[%s363 + $0x78] sm:$0xff]
        %v484 = vld [vmem:[%s363 + $0x80] sm:$0xff]
        %v485 = vld [vmem:[%s363 + $0x90] sm:$0xff]
        %v486 = vld [vmem:[%s363 + $0x98] sm:$0xff]
        %v487 = vld [vmem:[%s363 + $0xa8] sm:$0xff]
        %v488 = vld [vmem:[%s363 + $0xb0] sm:$0xff]
        %v489 = vld [vmem:[%s363 + $0xc0] sm:$0xff]
        %v490 = vld [vmem:[%s363 + $0xc8] sm:$0xff]
        %v491 = vld [vmem:[%s363 + $0xd8] sm:$0xff]
        %v492 = vld [vmem:[%s363 + $0xe0] sm:$0xff]
        %v493 = vld [vmem:[%s363 + $0xf0] sm:$0xff]
        %v494 = vld [vmem:[%s363 + $0xf8] sm:$0xff]
        %v495 = vld [vmem:[%s363 + $0x108] sm:$0xff]
        %v496 = vld [vmem:[%s363 + $0x110] sm:$0xff]
        %v497 = vld [vmem:[%s363 + $0x120] sm:$0xff]
        %v498 = vld [vmem:[%s363 + $0x128] sm:$0xff]
        %v499 = vld [vmem:[%s363 + $0x138] sm:$0xff]
        %v500 = vld [vmem:[%s363 + $0x140] sm:$0xff]
        %v501 = vld [vmem:[%s363 + $0x150] sm:$0xff]
        %v502 = vld [vmem:[%s363 + $0x158] sm:$0xff]
        %v503 = vld [vmem:[%s363 + $0x168] sm:$0xff]
        %v504 = vld [vmem:[%s363 + $0x170] sm:$0xff]
        %v505 = vld [vmem:[%s1] sm:$0xff]
        %v506 = vld [vmem:[%s1 + $0x8] sm:$0xff]
        %v507 = vld [vmem:[%s1 + $0x10] sm:$0xff]
        %v508 = vld [vmem:[%s1 + $0x18] sm:$0xff]
        %v509 = vld [vmem:[%s1 + $0x20] sm:$0xff]
        %v510 = vld [vmem:[%s1 + $0x28] sm:$0xff]
        %v511 = vld [vmem:[%s1 + $0x30] sm:$0xff]
        %v512 = vld [vmem:[%s1 + $0x38] sm:$0xff]
        %v513 = vld [vmem:[%s1 + $0x40] sm:$0xff]
        %v514 = vld [vmem:[%s1 + $0x48] sm:$0xff]
        %v515 = vld [vmem:[%s1 + $0x50] sm:$0xff]
        %v516 = vld [vmem:[%s1 + $0x58] sm:$0xff]
        %v517 = vld [vmem:[%s1 + $0x60] sm:$0xff]
        %v518 = vld [vmem:[%s1 + $0x68] sm:$0xff]
        %v519 = vld [vmem:[%s1 + $0x70] sm:$0xff]
        %v520 = vld [vmem:[%s1 + $0x78] sm:$0xff]
        %v521 = vld [vmem:[%s363 + $0x1] sm:$0xff]
        %v522 = vld [vmem:[%s363 + $0x9] sm:$0xff]
        %v523 = vld [vmem:[%s363 + $0x19] sm:$0xff]
        %v524 = vld [vmem:[%s363 + $0x21] sm:$0xff]
        %v525 = vld [vmem:[%s363 + $0x31] sm:$0xff]
        %v526 = vld [vmem:[%s363 + $0x39] sm:$0xff]
        %v527 = vld [vmem:[%s363 + $0x49] sm:$0xff]
        %v528 = vld [vmem:[%s363 + $0x51] sm:$0xff]
        %v529 = vld [vmem:[%s363 + $0x61] sm:$0xff]
        %v530 = vld [vmem:[%s363 + $0x69] sm:$0xff]
        %v531 = vld [vmem:[%s363 + $0x79] sm:$0xff]
        %v532 = vld [vmem:[%s363 + $0x81] sm:$0xff]
        %v533 = vld [vmem:[%s363 + $0x91] sm:$0xff]
        %v534 = vld [vmem:[%s363 + $0x99] sm:$0xff]
        %v535 = vld [vmem:[%s363 + $0xa9] sm:$0xff]
        %v536 = vld [vmem:[%s363 + $0xb1] sm:$0xff]
        %v537 = vld [vmem:[%s363 + $0xc1] sm:$0xff]
        %v538 = vld [vmem:[%s363 + $0xc9] sm:$0xff]
        %v539 = vld [vmem:[%s363 + $0xd9] sm:$0xff]
        %v540 = vld [vmem:[%s363 + $0xe1] sm:$0xff]
        %v541 = vld [vmem:[%s363 + $0xf1] sm:$0xff]
        %v542 = vld [vmem:[%s363 + $0xf9] sm:$0xff]
        %v543 = vld [vmem:[%s363 + $0x109] sm:$0xff]
        %v544 = vld [vmem:[%s363 + $0x111] sm:$0xff]
        %v545 = vld [vmem:[%s363 + $0x121] sm:$0xff]
        %v546 = vld [vmem:[%s363 + $0x129] sm:$0xff]
        %v547 = vld [vmem:[%s363 + $0x139] sm:$0xff]
        %v548 = vld [vmem:[%s363 + $0x141] sm:$0xff]
        %v549 = vld [vmem:[%s363 + $0x151] sm:$0xff]
        %v550 = vld [vmem:[%s363 + $0x159] sm:$0xff]
        %v551 = vld [vmem:[%s363 + $0x169] sm:$0xff]
        %v552 = vld [vmem:[%s363 + $0x171] sm:$0xff]
        %s553 = scalar_lea.vmem %s1, 128
        %v554 = vld [vmem:[%s553] sm:$0xff]
        %v555 = vld [vmem:[%s553 + $0x8] sm:$0xff]
        %v556 = vld [vmem:[%s553 + $0x10] sm:$0xff]
        %v557 = vld [vmem:[%s553 + $0x18] sm:$0xff]
        %v558 = vld [vmem:[%s553 + $0x20] sm:$0xff]
        %v559 = vld [vmem:[%s553 + $0x28] sm:$0xff]
        %v560 = vld [vmem:[%s553 + $0x30] sm:$0xff]
        %v561 = vld [vmem:[%s553 + $0x38] sm:$0xff]
        %v562 = vld [vmem:[%s553 + $0x40] sm:$0xff]
        %v563 = vld [vmem:[%s553 + $0x48] sm:$0xff]
        %v564 = vld [vmem:[%s553 + $0x50] sm:$0xff]
        %v565 = vld [vmem:[%s553 + $0x58] sm:$0xff]
        %v566 = vld [vmem:[%s553 + $0x60] sm:$0xff]
        %v567 = vld [vmem:[%s553 + $0x68] sm:$0xff]
        %v568 = vld [vmem:[%s553 + $0x70] sm:$0xff]
        %v569 = vld [vmem:[%s553 + $0x78] sm:$0xff]
        %570 = vmatpush.msra.mxu0 %v569
        %571 = vmatpush.msra.mxu0 %v568
        %572 = vmatpush.msra.mxu0 %v567
        %573 = vmatpush.msra.mxu0 %v566
        %574 = vmatpush.msra.mxu0 %v565
        %575 = vmatpush.msra.mxu0 %v564
        %576 = vmatpush.msra.mxu0 %v563
        %577 = vmatpush.msra.mxu0 %v562
        %578 = vmatpush.msra.mxu0 %v561
        %579 = vmatpush.msra.mxu0 %v560
        %580 = vmatpush.msra.mxu0 %v559
        %581 = vmatpush.msra.mxu0 %v558
        %582 = vmatpush.msra.mxu0 %v557
        %583 = vmatpush.msra.mxu0 %v556
        %584 = vmatpush.msra.mxu0 %v555
        %585 = vmatpush.msra.mxu0 %v554
        %586 = vmatmul.f32.gmra.mxu0 %v521
        %v587 = vpop.f32.mrf.mxu0
        %v588 = vadd.f32 0.0, %v587
        %589 = vmatmul.f32.gmra.mxu0 %v522
        %v590 = vpop.f32.mrf.mxu0
        %v591 = vadd.f32 0.0, %v590
        %592 = vmatmul.f32.gmra.mxu0 %v523
        %v593 = vpop.f32.mrf.mxu0
        %v594 = vadd.f32 0.0, %v593
        %595 = vmatmul.f32.gmra.mxu0 %v524
        %v596 = vpop.f32.mrf.mxu0
        %v597 = vadd.f32 0.0, %v596
        %598 = vmatmul.f32.gmra.mxu0 %v525
        %v599 = vpop.f32.mrf.mxu0
        %v600 = vadd.f32 0.0, %v599
        %601 = vmatmul.f32.gmra.mxu0 %v526
        %v602 = vpop.f32.mrf.mxu0
        %v603 = vadd.f32 0.0, %v602
        %604 = vmatmul.f32.gmra.mxu0 %v527
        %v605 = vpop.f32.mrf.mxu0
        %v606 = vadd.f32 0.0, %v605
        %607 = vmatmul.f32.gmra.mxu0 %v528
        %v608 = vpop.f32.mrf.mxu0
        %v609 = vadd.f32 0.0, %v608
        %610 = vmatmul.f32.gmra.mxu0 %v529
        %v611 = vpop.f32.mrf.mxu0
        %v612 = vadd.f32 0.0, %v611
        %613 = vmatmul.f32.gmra.mxu0 %v530
        %v614 = vpop.f32.mrf.mxu0
        %v615 = vadd.f32 0.0, %v614
        %616 = vmatmul.f32.gmra.mxu0 %v531
        %v617 = vpop.f32.mrf.mxu0
        %v618 = vadd.f32 0.0, %v617
        %619 = vmatmul.f32.gmra.mxu0 %v532
        %v620 = vpop.f32.mrf.mxu0
        %v621 = vadd.f32 0.0, %v620
        %622 = vmatmul.f32.gmra.mxu0 %v533
        %v623 = vpop.f32.mrf.mxu0
        %v624 = vadd.f32 0.0, %v623
        %625 = vmatmul.f32.gmra.mxu0 %v534
        %v626 = vpop.f32.mrf.mxu0
        %v627 = vadd.f32 0.0, %v626
        %628 = vmatmul.f32.gmra.mxu0 %v535
        %v629 = vpop.f32.mrf.mxu0
        %v630 = vadd.f32 0.0, %v629
        %631 = vmatmul.f32.gmra.mxu0 %v536
        %v632 = vpop.f32.mrf.mxu0
        %v633 = vadd.f32 0.0, %v632
        %634 = vmatmul.f32.gmra.mxu0 %v537
        %v635 = vpop.f32.mrf.mxu0
        %v636 = vadd.f32 0.0, %v635
        %637 = vmatmul.f32.gmra.mxu0 %v538
        %v638 = vpop.f32.mrf.mxu0
        %v639 = vadd.f32 0.0, %v638
        %640 = vmatmul.f32.gmra.mxu0 %v539
        %v641 = vpop.f32.mrf.mxu0
        %v642 = vadd.f32 0.0, %v641
        %643 = vmatmul.f32.gmra.mxu0 %v540
        %v644 = vpop.f32.mrf.mxu0
        %v645 = vadd.f32 0.0, %v644
        %646 = vmatmul.f32.gmra.mxu0 %v541
        %v647 = vpop.f32.mrf.mxu0
        %v648 = vadd.f32 0.0, %v647
        %649 = vmatmul.f32.gmra.mxu0 %v542
        %v650 = vpop.f32.mrf.mxu0
        %v651 = vadd.f32 0.0, %v650
        %652 = vmatmul.f32.gmra.mxu0 %v543
        %v653 = vpop.f32.mrf.mxu0
        %v654 = vadd.f32 0.0, %v653
        %655 = vmatmul.f32.gmra.mxu0 %v544
        %v656 = vpop.f32.mrf.mxu0
        %v657 = vadd.f32 0.0, %v656
        %658 = vmatmul.f32.gmra.mxu0 %v545
        %v659 = vpop.f32.mrf.mxu0
        %v660 = vadd.f32 0.0, %v659
        %661 = vmatmul.f32.gmra.mxu0 %v546
        %v662 = vpop.f32.mrf.mxu0
        %v663 = vadd.f32 0.0, %v662
        %664 = vmatmul.f32.gmra.mxu0 %v547
        %v665 = vpop.f32.mrf.mxu0
        %v666 = vadd.f32 0.0, %v665
        %667 = vmatmul.f32.gmra.mxu0 %v548
        %v668 = vpop.f32.mrf.mxu0
        %v669 = vadd.f32 0.0, %v668
        %670 = vmatmul.f32.gmra.mxu0 %v549
        %v671 = vpop.f32.mrf.mxu0
        %v672 = vadd.f32 0.0, %v671
        %673 = vmatmul.f32.gmra.mxu0 %v550
        %v674 = vpop.f32.mrf.mxu0
        %v675 = vadd.f32 0.0, %v674
        %676 = vmatmul.f32.gmra.mxu0 %v551
        %v677 = vpop.f32.mrf.mxu0
        %v678 = vadd.f32 0.0, %v677
        %679 = vmatmul.f32.gmra.mxu0 %v552
        %v680 = vpop.f32.mrf.mxu0
        %v681 = vadd.f32 0.0, %v680
        %682 = vdwg.mxu0
        %683 = vmatpush.msra.mxu0 %v520
        %684 = vmatpush.msra.mxu0 %v519
        %685 = vmatpush.msra.mxu0 %v518
        %686 = vmatpush.msra.mxu0 %v517
        %687 = vmatpush.msra.mxu0 %v516
        %688 = vmatpush.msra.mxu0 %v515
        %689 = vmatpush.msra.mxu0 %v514
        %690 = vmatpush.msra.mxu0 %v513
        %691 = vmatpush.msra.mxu0 %v512
        %692 = vmatpush.msra.mxu0 %v511
        %693 = vmatpush.msra.mxu0 %v510
        %694 = vmatpush.msra.mxu0 %v509
        %695 = vmatpush.msra.mxu0 %v508
        %696 = vmatpush.msra.mxu0 %v507
        %697 = vmatpush.msra.mxu0 %v506
        %698 = vmatpush.msra.mxu0 %v505
        %699 = vmatmul.f32.gmra.mxu0 %v473
        %v700 = vpop.f32.mrf.mxu0
        %v701 = vadd.f32 %v588, %v700
        %702 = vmatmul.f32.gmra.mxu0 %v474
        %v703 = vpop.f32.mrf.mxu0
        %v704 = vadd.f32 %v591, %v703
        %705 = vmatmul.f32.gmra.mxu0 %v475
        %v706 = vpop.f32.mrf.mxu0
        %v707 = vadd.f32 %v594, %v706
        %708 = vmatmul.f32.gmra.mxu0 %v476
        %v709 = vpop.f32.mrf.mxu0
        %v710 = vadd.f32 %v597, %v709
        %711 = vmatmul.f32.gmra.mxu0 %v477
        %v712 = vpop.f32.mrf.mxu0
        %v713 = vadd.f32 %v600, %v712
        %714 = vmatmul.f32.gmra.mxu0 %v478
        %v715 = vpop.f32.mrf.mxu0
        %v716 = vadd.f32 %v603, %v715
        %717 = vmatmul.f32.gmra.mxu0 %v479
        %v718 = vpop.f32.mrf.mxu0
        %v719 = vadd.f32 %v606, %v718
        %720 = vmatmul.f32.gmra.mxu0 %v480
        %v721 = vpop.f32.mrf.mxu0
        %v722 = vadd.f32 %v609, %v721
        %723 = vmatmul.f32.gmra.mxu0 %v481
        %v724 = vpop.f32.mrf.mxu0
        %v725 = vadd.f32 %v612, %v724
        %726 = vmatmul.f32.gmra.mxu0 %v482
        %v727 = vpop.f32.mrf.mxu0
        %v728 = vadd.f32 %v615, %v727
        %729 = vmatmul.f32.gmra.mxu0 %v483
        %v730 = vpop.f32.mrf.mxu0
        %v731 = vadd.f32 %v618, %v730
        %732 = vmatmul.f32.gmra.mxu0 %v484
        %v733 = vpop.f32.mrf.mxu0
        %v734 = vadd.f32 %v621, %v733
        %735 = vmatmul.f32.gmra.mxu0 %v485
        %v736 = vpop.f32.mrf.mxu0
        %v737 = vadd.f32 %v624, %v736
        %738 = vmatmul.f32.gmra.mxu0 %v486
        %v739 = vpop.f32.mrf.mxu0
        %v740 = vadd.f32 %v627, %v739
        %741 = vmatmul.f32.gmra.mxu0 %v487
        %v742 = vpop.f32.mrf.mxu0
        %v743 = vadd.f32 %v630, %v742
        %744 = vmatmul.f32.gmra.mxu0 %v488
        %v745 = vpop.f32.mrf.mxu0
        %v746 = vadd.f32 %v633, %v745
        %747 = vmatmul.f32.gmra.mxu0 %v489
        %v748 = vpop.f32.mrf.mxu0
        %v749 = vadd.f32 %v636, %v748
        %750 = vmatmul.f32.gmra.mxu0 %v490
        %v751 = vpop.f32.mrf.mxu0
        %v752 = vadd.f32 %v639, %v751
        %753 = vmatmul.f32.gmra.mxu0 %v491
        %v754 = vpop.f32.mrf.mxu0
        %v755 = vadd.f32 %v642, %v754
        %756 = vmatmul.f32.gmra.mxu0 %v492
        %v757 = vpop.f32.mrf.mxu0
        %v758 = vadd.f32 %v645, %v757
        %759 = vmatmul.f32.gmra.mxu0 %v493
        %v760 = vpop.f32.mrf.mxu0
        %v761 = vadd.f32 %v648, %v760
        %762 = vmatmul.f32.gmra.mxu0 %v494
        %v763 = vpop.f32.mrf.mxu0
        %v764 = vadd.f32 %v651, %v763
        %765 = vmatmul.f32.gmra.mxu0 %v495
        %v766 = vpop.f32.mrf.mxu0
        %v767 = vadd.f32 %v654, %v766
        %768 = vmatmul.f32.gmra.mxu0 %v496
        %v769 = vpop.f32.mrf.mxu0
        %v770 = vadd.f32 %v657, %v769
        %771 = vmatmul.f32.gmra.mxu0 %v497
        %v772 = vpop.f32.mrf.mxu0
        %v773 = vadd.f32 %v660, %v772
        %774 = vmatmul.f32.gmra.mxu0 %v498
        %v775 = vpop.f32.mrf.mxu0
        %v776 = vadd.f32 %v663, %v775
        %777 = vmatmul.f32.gmra.mxu0 %v499
        %v778 = vpop.f32.mrf.mxu0
        %v779 = vadd.f32 %v666, %v778
        %780 = vmatmul.f32.gmra.mxu0 %v500
        %v781 = vpop.f32.mrf.mxu0
        %v782 = vadd.f32 %v669, %v781
        %783 = vmatmul.f32.gmra.mxu0 %v501
        %v784 = vpop.f32.mrf.mxu0
        %v785 = vadd.f32 %v672, %v784
        %786 = vmatmul.f32.gmra.mxu0 %v502
        %v787 = vpop.f32.mrf.mxu0
        %v788 = vadd.f32 %v675, %v787
        %789 = vmatmul.f32.gmra.mxu0 %v503
        %v790 = vpop.f32.mrf.mxu0
        %v791 = vadd.f32 %v678, %v790
        %792 = vmatmul.f32.gmra.mxu0 %v504
        %v793 = vpop.f32.mrf.mxu0
        %v794 = vadd.f32 %v681, %v793
        %795 = vdwg.mxu0
        %v796 = vld [vmem:[%s363 + $0x2] sm:$0xff]
        %v797 = vld [vmem:[%s363 + $0xa] sm:$0xff]
        %v798 = vld [vmem:[%s363 + $0x1a] sm:$0xff]
        %v799 = vld [vmem:[%s363 + $0x22] sm:$0xff]
        %v800 = vld [vmem:[%s363 + $0x32] sm:$0xff]
        %v801 = vld [vmem:[%s363 + $0x3a] sm:$0xff]
        %v802 = vld [vmem:[%s363 + $0x4a] sm:$0xff]
        %v803 = vld [vmem:[%s363 + $0x52] sm:$0xff]
        %v804 = vld [vmem:[%s363 + $0x62] sm:$0xff]
        %v805 = vld [vmem:[%s363 + $0x6a] sm:$0xff]
        %v806 = vld [vmem:[%s363 + $0x7a] sm:$0xff]
        %v807 = vld [vmem:[%s363 + $0x82] sm:$0xff]
        %v808 = vld [vmem:[%s363 + $0x92] sm:$0xff]
        %v809 = vld [vmem:[%s363 + $0x9a] sm:$0xff]
        %v810 = vld [vmem:[%s363 + $0xaa] sm:$0xff]
        %v811 = vld [vmem:[%s363 + $0xb2] sm:$0xff]
        %v812 = vld [vmem:[%s363 + $0xc2] sm:$0xff]
        %v813 = vld [vmem:[%s363 + $0xca] sm:$0xff]
        %v814 = vld [vmem:[%s363 + $0xda] sm:$0xff]
        %v815 = vld [vmem:[%s363 + $0xe2] sm:$0xff]
        %v816 = vld [vmem:[%s363 + $0xf2] sm:$0xff]
        %v817 = vld [vmem:[%s363 + $0xfa] sm:$0xff]
        %v818 = vld [vmem:[%s363 + $0x10a] sm:$0xff]
        %v819 = vld [vmem:[%s363 + $0x112] sm:$0xff]
        %v820 = vld [vmem:[%s363 + $0x122] sm:$0xff]
        %v821 = vld [vmem:[%s363 + $0x12a] sm:$0xff]
        %v822 = vld [vmem:[%s363 + $0x13a] sm:$0xff]
        %v823 = vld [vmem:[%s363 + $0x142] sm:$0xff]
        %v824 = vld [vmem:[%s363 + $0x152] sm:$0xff]
        %v825 = vld [vmem:[%s363 + $0x15a] sm:$0xff]
        %v826 = vld [vmem:[%s363 + $0x16a] sm:$0xff]
        %v827 = vld [vmem:[%s363 + $0x172] sm:$0xff]
        %s828 = scalar_lea.vmem %s1, 256
        %v829 = vld [vmem:[%s828] sm:$0xff]
        %v830 = vld [vmem:[%s828 + $0x8] sm:$0xff]
        %v831 = vld [vmem:[%s828 + $0x10] sm:$0xff]
        %v832 = vld [vmem:[%s828 + $0x18] sm:$0xff]
        %v833 = vld [vmem:[%s828 + $0x20] sm:$0xff]
        %v834 = vld [vmem:[%s828 + $0x28] sm:$0xff]
        %v835 = vld [vmem:[%s828 + $0x30] sm:$0xff]
        %v836 = vld [vmem:[%s828 + $0x38] sm:$0xff]
        %v837 = vld [vmem:[%s828 + $0x40] sm:$0xff]
        %v838 = vld [vmem:[%s828 + $0x48] sm:$0xff]
        %v839 = vld [vmem:[%s828 + $0x50] sm:$0xff]
        %v840 = vld [vmem:[%s828 + $0x58] sm:$0xff]
        %v841 = vld [vmem:[%s828 + $0x60] sm:$0xff]
        %v842 = vld [vmem:[%s828 + $0x68] sm:$0xff]
        %v843 = vld [vmem:[%s828 + $0x70] sm:$0xff]
        %v844 = vld [vmem:[%s828 + $0x78] sm:$0xff]
        %845 = vmatpush.msra.mxu0 %v844
        %846 = vmatpush.msra.mxu0 %v843
        %847 = vmatpush.msra.mxu0 %v842
        %848 = vmatpush.msra.mxu0 %v841
        %849 = vmatpush.msra.mxu0 %v840
        %850 = vmatpush.msra.mxu0 %v839
        %851 = vmatpush.msra.mxu0 %v838
        %852 = vmatpush.msra.mxu0 %v837
        %853 = vmatpush.msra.mxu0 %v836
        %854 = vmatpush.msra.mxu0 %v835
        %855 = vmatpush.msra.mxu0 %v834
        %856 = vmatpush.msra.mxu0 %v833
        %857 = vmatpush.msra.mxu0 %v832
        %858 = vmatpush.msra.mxu0 %v831
        %859 = vmatpush.msra.mxu0 %v830
        %860 = vmatpush.msra.mxu0 %v829
        %861 = vmatmul.f32.gmra.mxu0 %v796
        %v862 = vpop.f32.mrf.mxu0
        %v863 = vadd.f32 0.0, %v862
        %864 = vmatmul.f32.gmra.mxu0 %v797
        %v865 = vpop.f32.mrf.mxu0
        %v866 = vadd.f32 0.0, %v865
        %867 = vmatmul.f32.gmra.mxu0 %v798
        %v868 = vpop.f32.mrf.mxu0
        %v869 = vadd.f32 0.0, %v868
        %870 = vmatmul.f32.gmra.mxu0 %v799
        %v871 = vpop.f32.mrf.mxu0
        %v872 = vadd.f32 0.0, %v871
        %873 = vmatmul.f32.gmra.mxu0 %v800
        %v874 = vpop.f32.mrf.mxu0
        %v875 = vadd.f32 0.0, %v874
        %876 = vmatmul.f32.gmra.mxu0 %v801
        %v877 = vpop.f32.mrf.mxu0
        %v878 = vadd.f32 0.0, %v877
        %879 = vmatmul.f32.gmra.mxu0 %v802
        %v880 = vpop.f32.mrf.mxu0
        %v881 = vadd.f32 0.0, %v880
        %882 = vmatmul.f32.gmra.mxu0 %v803
        %v883 = vpop.f32.mrf.mxu0
        %v884 = vadd.f32 0.0, %v883
        %885 = vmatmul.f32.gmra.mxu0 %v804
        %v886 = vpop.f32.mrf.mxu0
        %v887 = vadd.f32 0.0, %v886
        %888 = vmatmul.f32.gmra.mxu0 %v805
        %v889 = vpop.f32.mrf.mxu0
        %v890 = vadd.f32 0.0, %v889
        %891 = vmatmul.f32.gmra.mxu0 %v806
        %v892 = vpop.f32.mrf.mxu0
        %v893 = vadd.f32 0.0, %v892
        %894 = vmatmul.f32.gmra.mxu0 %v807
        %v895 = vpop.f32.mrf.mxu0
        %v896 = vadd.f32 0.0, %v895
        %897 = vmatmul.f32.gmra.mxu0 %v808
        %v898 = vpop.f32.mrf.mxu0
        %v899 = vadd.f32 0.0, %v898
        %900 = vmatmul.f32.gmra.mxu0 %v809
        %v901 = vpop.f32.mrf.mxu0
        %v902 = vadd.f32 0.0, %v901
        %903 = vmatmul.f32.gmra.mxu0 %v810
        %v904 = vpop.f32.mrf.mxu0
        %v905 = vadd.f32 0.0, %v904
        %906 = vmatmul.f32.gmra.mxu0 %v811
        %v907 = vpop.f32.mrf.mxu0
        %v908 = vadd.f32 0.0, %v907
        %909 = vmatmul.f32.gmra.mxu0 %v812
        %v910 = vpop.f32.mrf.mxu0
        %v911 = vadd.f32 0.0, %v910
        %912 = vmatmul.f32.gmra.mxu0 %v813
        %v913 = vpop.f32.mrf.mxu0
        %v914 = vadd.f32 0.0, %v913
        %915 = vmatmul.f32.gmra.mxu0 %v814
        %v916 = vpop.f32.mrf.mxu0
        %v917 = vadd.f32 0.0, %v916
        %918 = vmatmul.f32.gmra.mxu0 %v815
        %v919 = vpop.f32.mrf.mxu0
        %v920 = vadd.f32 0.0, %v919
        %921 = vmatmul.f32.gmra.mxu0 %v816
        %v922 = vpop.f32.mrf.mxu0
        %v923 = vadd.f32 0.0, %v922
        %924 = vmatmul.f32.gmra.mxu0 %v817
        %v925 = vpop.f32.mrf.mxu0
        %v926 = vadd.f32 0.0, %v925
        %927 = vmatmul.f32.gmra.mxu0 %v818
        %v928 = vpop.f32.mrf.mxu0
        %v929 = vadd.f32 0.0, %v928
        %930 = vmatmul.f32.gmra.mxu0 %v819
        %v931 = vpop.f32.mrf.mxu0
        %v932 = vadd.f32 0.0, %v931
        %933 = vmatmul.f32.gmra.mxu0 %v820
        %v934 = vpop.f32.mrf.mxu0
        %v935 = vadd.f32 0.0, %v934
        %936 = vmatmul.f32.gmra.mxu0 %v821
        %v937 = vpop.f32.mrf.mxu0
        %v938 = vadd.f32 0.0, %v937
        %939 = vmatmul.f32.gmra.mxu0 %v822
        %v940 = vpop.f32.mrf.mxu0
        %v941 = vadd.f32 0.0, %v940
        %942 = vmatmul.f32.gmra.mxu0 %v823
        %v943 = vpop.f32.mrf.mxu0
        %v944 = vadd.f32 0.0, %v943
        %945 = vmatmul.f32.gmra.mxu0 %v824
        %v946 = vpop.f32.mrf.mxu0
        %v947 = vadd.f32 0.0, %v946
        %948 = vmatmul.f32.gmra.mxu0 %v825
        %v949 = vpop.f32.mrf.mxu0
        %v950 = vadd.f32 0.0, %v949
        %951 = vmatmul.f32.gmra.mxu0 %v826
        %v952 = vpop.f32.mrf.mxu0
        %v953 = vadd.f32 0.0, %v952
        %954 = vmatmul.f32.gmra.mxu0 %v827
        %v955 = vpop.f32.mrf.mxu0
        %v956 = vadd.f32 0.0, %v955
        %957 = vdwg.mxu0
        %v958 = vadd.f32 %v701, %v863
        %v959 = vadd.f32 %v704, %v866
        %v960 = vadd.f32 %v707, %v869
        %v961 = vadd.f32 %v710, %v872
        %v962 = vadd.f32 %v713, %v875
        %v963 = vadd.f32 %v716, %v878
        %v964 = vadd.f32 %v719, %v881
        %v965 = vadd.f32 %v722, %v884
        %v966 = vadd.f32 %v725, %v887
        %v967 = vadd.f32 %v728, %v890
        %v968 = vadd.f32 %v731, %v893
        %v969 = vadd.f32 %v734, %v896
        %v970 = vadd.f32 %v737, %v899
        %v971 = vadd.f32 %v740, %v902
        %v972 = vadd.f32 %v743, %v905
        %v973 = vadd.f32 %v746, %v908
        %v974 = vadd.f32 %v749, %v911
        %v975 = vadd.f32 %v752, %v914
        %v976 = vadd.f32 %v755, %v917
        %v977 = vadd.f32 %v758, %v920
        %v978 = vadd.f32 %v761, %v923
        %v979 = vadd.f32 %v764, %v926
        %v980 = vadd.f32 %v767, %v929
        %v981 = vadd.f32 %v770, %v932
        %v982 = vadd.f32 %v773, %v935
        %v983 = vadd.f32 %v776, %v938
        %v984 = vadd.f32 %v779, %v941
        %v985 = vadd.f32 %v782, %v944
        %v986 = vadd.f32 %v785, %v947
        %v987 = vadd.f32 %v788, %v950
        %v988 = vadd.f32 %v791, %v953
        %v989 = vadd.f32 %v794, %v956
        %s990 = scalar_lea.vmem %s363, 24
        %v991 = vld [vmem:[%s990] sm:$0xff]
        %v992 = vld [vmem:[%s990 + $0x8] sm:$0xff]
        %v993 = vld [vmem:[%s990 + $0x18] sm:$0xff]
        %v994 = vld [vmem:[%s990 + $0x20] sm:$0xff]
        %v995 = vld [vmem:[%s990 + $0x30] sm:$0xff]
        %v996 = vld [vmem:[%s990 + $0x38] sm:$0xff]
        %v997 = vld [vmem:[%s990 + $0x48] sm:$0xff]
        %v998 = vld [vmem:[%s990 + $0x50] sm:$0xff]
        %v999 = vld [vmem:[%s990 + $0x60] sm:$0xff]
        %v1000 = vld [vmem:[%s990 + $0x68] sm:$0xff]
        %v1001 = vld [vmem:[%s990 + $0x78] sm:$0xff]
        %v1002 = vld [vmem:[%s990 + $0x80] sm:$0xff]
        %v1003 = vld [vmem:[%s990 + $0x90] sm:$0xff]
        %v1004 = vld [vmem:[%s990 + $0x98] sm:$0xff]
        %v1005 = vld [vmem:[%s990 + $0xa8] sm:$0xff]
        %v1006 = vld [vmem:[%s990 + $0xb0] sm:$0xff]
        %v1007 = vld [vmem:[%s990 + $0xc0] sm:$0xff]
        %v1008 = vld [vmem:[%s990 + $0xc8] sm:$0xff]
        %v1009 = vld [vmem:[%s990 + $0xd8] sm:$0xff]
        %v1010 = vld [vmem:[%s990 + $0xe0] sm:$0xff]
        %v1011 = vld [vmem:[%s990 + $0xf0] sm:$0xff]
        %v1012 = vld [vmem:[%s990 + $0xf8] sm:$0xff]
        %v1013 = vld [vmem:[%s990 + $0x108] sm:$0xff]
        %v1014 = vld [vmem:[%s990 + $0x110] sm:$0xff]
        %v1015 = vld [vmem:[%s990 + $0x120] sm:$0xff]
        %v1016 = vld [vmem:[%s990 + $0x128] sm:$0xff]
        %v1017 = vld [vmem:[%s990 + $0x138] sm:$0xff]
        %v1018 = vld [vmem:[%s990 + $0x140] sm:$0xff]
        %v1019 = vld [vmem:[%s990 + $0x150] sm:$0xff]
        %v1020 = vld [vmem:[%s990 + $0x158] sm:$0xff]
        %v1021 = vld [vmem:[%s990 + $0x168] sm:$0xff]
        %v1022 = vld [vmem:[%s990 + $0x170] sm:$0xff]
        %s1023 = scalar_lea.vmem %s1, 384
        %v1024 = vld [vmem:[%s1023] sm:$0xff]
        %v1025 = vld [vmem:[%s1023 + $0x8] sm:$0xff]
        %v1026 = vld [vmem:[%s1023 + $0x10] sm:$0xff]
        %v1027 = vld [vmem:[%s1023 + $0x18] sm:$0xff]
        %v1028 = vld [vmem:[%s1023 + $0x20] sm:$0xff]
        %v1029 = vld [vmem:[%s1023 + $0x28] sm:$0xff]
        %v1030 = vld [vmem:[%s1023 + $0x30] sm:$0xff]
        %v1031 = vld [vmem:[%s1023 + $0x38] sm:$0xff]
        %v1032 = vld [vmem:[%s1023 + $0x40] sm:$0xff]
        %v1033 = vld [vmem:[%s1023 + $0x48] sm:$0xff]
        %v1034 = vld [vmem:[%s1023 + $0x50] sm:$0xff]
        %v1035 = vld [vmem:[%s1023 + $0x58] sm:$0xff]
        %v1036 = vld [vmem:[%s1023 + $0x60] sm:$0xff]
        %v1037 = vld [vmem:[%s1023 + $0x68] sm:$0xff]
        %v1038 = vld [vmem:[%s1023 + $0x70] sm:$0xff]
        %v1039 = vld [vmem:[%s1023 + $0x78] sm:$0xff]
        %1040 = vmatpush.msra.mxu0 %v1039
        %1041 = vmatpush.msra.mxu0 %v1038
        %1042 = vmatpush.msra.mxu0 %v1037
        %1043 = vmatpush.msra.mxu0 %v1036
        %1044 = vmatpush.msra.mxu0 %v1035
        %1045 = vmatpush.msra.mxu0 %v1034
        %1046 = vmatpush.msra.mxu0 %v1033
        %1047 = vmatpush.msra.mxu0 %v1032
        %1048 = vmatpush.msra.mxu0 %v1031
        %1049 = vmatpush.msra.mxu0 %v1030
        %1050 = vmatpush.msra.mxu0 %v1029
        %1051 = vmatpush.msra.mxu0 %v1028
        %1052 = vmatpush.msra.mxu0 %v1027
        %1053 = vmatpush.msra.mxu0 %v1026
        %1054 = vmatpush.msra.mxu0 %v1025
        %1055 = vmatpush.msra.mxu0 %v1024
        %1056 = vmatmul.f32.gmra.mxu0 %v991
        %v1057 = vpop.f32.mrf.mxu0
        %v1058 = vadd.f32 0.0, %v1057
        %1059 = vmatmul.f32.gmra.mxu0 %v992
        %v1060 = vpop.f32.mrf.mxu0
        %v1061 = vadd.f32 0.0, %v1060
        %1062 = vmatmul.f32.gmra.mxu0 %v993
        %v1063 = vpop.f32.mrf.mxu0
        %v1064 = vadd.f32 0.0, %v1063
        %1065 = vmatmul.f32.gmra.mxu0 %v994
        %v1066 = vpop.f32.mrf.mxu0
        %v1067 = vadd.f32 0.0, %v1066
        %1068 = vmatmul.f32.gmra.mxu0 %v995
        %v1069 = vpop.f32.mrf.mxu0
        %v1070 = vadd.f32 0.0, %v1069
        %1071 = vmatmul.f32.gmra.mxu0 %v996
        %v1072 = vpop.f32.mrf.mxu0
        %v1073 = vadd.f32 0.0, %v1072
        %1074 = vmatmul.f32.gmra.mxu0 %v997
        %v1075 = vpop.f32.mrf.mxu0
        %v1076 = vadd.f32 0.0, %v1075
        %1077 = vmatmul.f32.gmra.mxu0 %v998
        %v1078 = vpop.f32.mrf.mxu0
        %v1079 = vadd.f32 0.0, %v1078
        %1080 = vmatmul.f32.gmra.mxu0 %v999
        %v1081 = vpop.f32.mrf.mxu0
        %v1082 = vadd.f32 0.0, %v1081
        %1083 = vmatmul.f32.gmra.mxu0 %v1000
        %v1084 = vpop.f32.mrf.mxu0
        %v1085 = vadd.f32 0.0, %v1084
        %1086 = vmatmul.f32.gmra.mxu0 %v1001
        %v1087 = vpop.f32.mrf.mxu0
        %v1088 = vadd.f32 0.0, %v1087
        %1089 = vmatmul.f32.gmra.mxu0 %v1002
        %v1090 = vpop.f32.mrf.mxu0
        %v1091 = vadd.f32 0.0, %v1090
        %1092 = vmatmul.f32.gmra.mxu0 %v1003
        %v1093 = vpop.f32.mrf.mxu0
        %v1094 = vadd.f32 0.0, %v1093
        %1095 = vmatmul.f32.gmra.mxu0 %v1004
        %v1096 = vpop.f32.mrf.mxu0
        %v1097 = vadd.f32 0.0, %v1096
        %1098 = vmatmul.f32.gmra.mxu0 %v1005
        %v1099 = vpop.f32.mrf.mxu0
        %v1100 = vadd.f32 0.0, %v1099
        %1101 = vmatmul.f32.gmra.mxu0 %v1006
        %v1102 = vpop.f32.mrf.mxu0
        %v1103 = vadd.f32 0.0, %v1102
        %1104 = vmatmul.f32.gmra.mxu0 %v1007
        %v1105 = vpop.f32.mrf.mxu0
        %v1106 = vadd.f32 0.0, %v1105
        %1107 = vmatmul.f32.gmra.mxu0 %v1008
        %v1108 = vpop.f32.mrf.mxu0
        %v1109 = vadd.f32 0.0, %v1108
        %1110 = vmatmul.f32.gmra.mxu0 %v1009
        %v1111 = vpop.f32.mrf.mxu0
        %v1112 = vadd.f32 0.0, %v1111
        %1113 = vmatmul.f32.gmra.mxu0 %v1010
        %v1114 = vpop.f32.mrf.mxu0
        %v1115 = vadd.f32 0.0, %v1114
        %1116 = vmatmul.f32.gmra.mxu0 %v1011
        %v1117 = vpop.f32.mrf.mxu0
        %v1118 = vadd.f32 0.0, %v1117
        %1119 = vmatmul.f32.gmra.mxu0 %v1012
        %v1120 = vpop.f32.mrf.mxu0
        %v1121 = vadd.f32 0.0, %v1120
        %1122 = vmatmul.f32.gmra.mxu0 %v1013
        %v1123 = vpop.f32.mrf.mxu0
        %v1124 = vadd.f32 0.0, %v1123
        %1125 = vmatmul.f32.gmra.mxu0 %v1014
        %v1126 = vpop.f32.mrf.mxu0
        %v1127 = vadd.f32 0.0, %v1126
        %1128 = vmatmul.f32.gmra.mxu0 %v1015
        %v1129 = vpop.f32.mrf.mxu0
        %v1130 = vadd.f32 0.0, %v1129
        %1131 = vmatmul.f32.gmra.mxu0 %v1016
        %v1132 = vpop.f32.mrf.mxu0
        %v1133 = vadd.f32 0.0, %v1132
        %1134 = vmatmul.f32.gmra.mxu0 %v1017
        %v1135 = vpop.f32.mrf.mxu0
        %v1136 = vadd.f32 0.0, %v1135
        %1137 = vmatmul.f32.gmra.mxu0 %v1018
        %v1138 = vpop.f32.mrf.mxu0
        %v1139 = vadd.f32 0.0, %v1138
        %1140 = vmatmul.f32.gmra.mxu0 %v1019
        %v1141 = vpop.f32.mrf.mxu0
        %v1142 = vadd.f32 0.0, %v1141
        %1143 = vmatmul.f32.gmra.mxu0 %v1020
        %v1144 = vpop.f32.mrf.mxu0
        %v1145 = vadd.f32 0.0, %v1144
        %1146 = vmatmul.f32.gmra.mxu0 %v1021
        %v1147 = vpop.f32.mrf.mxu0
        %v1148 = vadd.f32 0.0, %v1147
        %1149 = vmatmul.f32.gmra.mxu0 %v1022
        %v1150 = vpop.f32.mrf.mxu0
        %v1151 = vadd.f32 0.0, %v1150
        %1152 = vdwg.mxu0
        %v1153 = vadd.f32 %v958, %v1058
        %v1154 = vadd.f32 %v959, %v1061
        %v1155 = vadd.f32 %v960, %v1064
        %v1156 = vadd.f32 %v961, %v1067
        %v1157 = vadd.f32 %v962, %v1070
        %v1158 = vadd.f32 %v963, %v1073
        %v1159 = vadd.f32 %v964, %v1076
        %v1160 = vadd.f32 %v965, %v1079
        %v1161 = vadd.f32 %v966, %v1082
        %v1162 = vadd.f32 %v967, %v1085
        %v1163 = vadd.f32 %v968, %v1088
        %v1164 = vadd.f32 %v969, %v1091
        %v1165 = vadd.f32 %v970, %v1094
        %v1166 = vadd.f32 %v971, %v1097
        %v1167 = vadd.f32 %v972, %v1100
        %v1168 = vadd.f32 %v973, %v1103
        %v1169 = vadd.f32 %v974, %v1106
        %v1170 = vadd.f32 %v975, %v1109
        %v1171 = vadd.f32 %v976, %v1112
        %v1172 = vadd.f32 %v977, %v1115
        %v1173 = vadd.f32 %v978, %v1118
        %v1174 = vadd.f32 %v979, %v1121
        %v1175 = vadd.f32 %v980, %v1124
        %v1176 = vadd.f32 %v981, %v1127
        %v1177 = vadd.f32 %v982, %v1130
        %v1178 = vadd.f32 %v983, %v1133
        %v1179 = vadd.f32 %v984, %v1136
        %v1180 = vadd.f32 %v985, %v1139
        %v1181 = vadd.f32 %v986, %v1142
        %v1182 = vadd.f32 %v987, %v1145
        %v1183 = vadd.f32 %v988, %v1148
        %v1184 = vadd.f32 %v989, %v1151
        %v1185 = vld [vmem:[%s990 + $0x1] sm:$0xff]
        %v1186 = vld [vmem:[%s990 + $0x9] sm:$0xff]
        %v1187 = vld [vmem:[%s990 + $0x19] sm:$0xff]
        %v1188 = vld [vmem:[%s990 + $0x21] sm:$0xff]
        %v1189 = vld [vmem:[%s990 + $0x31] sm:$0xff]
        %v1190 = vld [vmem:[%s990 + $0x39] sm:$0xff]
        %v1191 = vld [vmem:[%s990 + $0x49] sm:$0xff]
        %v1192 = vld [vmem:[%s990 + $0x51] sm:$0xff]
        %v1193 = vld [vmem:[%s990 + $0x61] sm:$0xff]
        %v1194 = vld [vmem:[%s990 + $0x69] sm:$0xff]
        %v1195 = vld [vmem:[%s990 + $0x79] sm:$0xff]
        %v1196 = vld [vmem:[%s990 + $0x81] sm:$0xff]
        %v1197 = vld [vmem:[%s990 + $0x91] sm:$0xff]
        %v1198 = vld [vmem:[%s990 + $0x99] sm:$0xff]
        %v1199 = vld [vmem:[%s990 + $0xa9] sm:$0xff]
        %v1200 = vld [vmem:[%s990 + $0xb1] sm:$0xff]
        %v1201 = vld [vmem:[%s990 + $0xc1] sm:$0xff]
        %v1202 = vld [vmem:[%s990 + $0xc9] sm:$0xff]
        %v1203 = vld [vmem:[%s990 + $0xd9] sm:$0xff]
        %v1204 = vld [vmem:[%s990 + $0xe1] sm:$0xff]
        %v1205 = vld [vmem:[%s990 + $0xf1] sm:$0xff]
        %v1206 = vld [vmem:[%s990 + $0xf9] sm:$0xff]
        %v1207 = vld [vmem:[%s990 + $0x109] sm:$0xff]
        %v1208 = vld [vmem:[%s990 + $0x111] sm:$0xff]
        %v1209 = vld [vmem:[%s990 + $0x121] sm:$0xff]
        %v1210 = vld [vmem:[%s990 + $0x129] sm:$0xff]
        %v1211 = vld [vmem:[%s990 + $0x139] sm:$0xff]
        %v1212 = vld [vmem:[%s990 + $0x141] sm:$0xff]
        %v1213 = vld [vmem:[%s990 + $0x151] sm:$0xff]
        %v1214 = vld [vmem:[%s990 + $0x159] sm:$0xff]
        %v1215 = vld [vmem:[%s990 + $0x169] sm:$0xff]
        %v1216 = vld [vmem:[%s990 + $0x171] sm:$0xff]
        %s1217 = scalar_lea.vmem %s1, 512
        %v1218 = vld [vmem:[%s1217] sm:$0xff]
        %v1219 = vld [vmem:[%s1217 + $0x8] sm:$0xff]
        %v1220 = vld [vmem:[%s1217 + $0x10] sm:$0xff]
        %v1221 = vld [vmem:[%s1217 + $0x18] sm:$0xff]
        %v1222 = vld [vmem:[%s1217 + $0x20] sm:$0xff]
        %v1223 = vld [vmem:[%s1217 + $0x28] sm:$0xff]
        %v1224 = vld [vmem:[%s1217 + $0x30] sm:$0xff]
        %v1225 = vld [vmem:[%s1217 + $0x38] sm:$0xff]
        %v1226 = vld [vmem:[%s1217 + $0x40] sm:$0xff]
        %v1227 = vld [vmem:[%s1217 + $0x48] sm:$0xff]
        %v1228 = vld [vmem:[%s1217 + $0x50] sm:$0xff]
        %v1229 = vld [vmem:[%s1217 + $0x58] sm:$0xff]
        %v1230 = vld [vmem:[%s1217 + $0x60] sm:$0xff]
        %v1231 = vld [vmem:[%s1217 + $0x68] sm:$0xff]
        %v1232 = vld [vmem:[%s1217 + $0x70] sm:$0xff]
        %v1233 = vld [vmem:[%s1217 + $0x78] sm:$0xff]
        %1234 = vmatpush.msra.mxu0 %v1233
        %1235 = vmatpush.msra.mxu0 %v1232
        %1236 = vmatpush.msra.mxu0 %v1231
        %1237 = vmatpush.msra.mxu0 %v1230
        %1238 = vmatpush.msra.mxu0 %v1229
        %1239 = vmatpush.msra.mxu0 %v1228
        %1240 = vmatpush.msra.mxu0 %v1227
        %1241 = vmatpush.msra.mxu0 %v1226
        %1242 = vmatpush.msra.mxu0 %v1225
        %1243 = vmatpush.msra.mxu0 %v1224
        %1244 = vmatpush.msra.mxu0 %v1223
        %1245 = vmatpush.msra.mxu0 %v1222
        %1246 = vmatpush.msra.mxu0 %v1221
        %1247 = vmatpush.msra.mxu0 %v1220
        %1248 = vmatpush.msra.mxu0 %v1219
        %1249 = vmatpush.msra.mxu0 %v1218
        %1250 = vmatmul.f32.gmra.mxu0 %v1185
        %v1251 = vpop.f32.mrf.mxu0
        %v1252 = vadd.f32 0.0, %v1251
        %1253 = vmatmul.f32.gmra.mxu0 %v1186
        %v1254 = vpop.f32.mrf.mxu0
        %v1255 = vadd.f32 0.0, %v1254
        %1256 = vmatmul.f32.gmra.mxu0 %v1187
        %v1257 = vpop.f32.mrf.mxu0
        %v1258 = vadd.f32 0.0, %v1257
        %1259 = vmatmul.f32.gmra.mxu0 %v1188
        %v1260 = vpop.f32.mrf.mxu0
        %v1261 = vadd.f32 0.0, %v1260
        %1262 = vmatmul.f32.gmra.mxu0 %v1189
        %v1263 = vpop.f32.mrf.mxu0
        %v1264 = vadd.f32 0.0, %v1263
        %1265 = vmatmul.f32.gmra.mxu0 %v1190
        %v1266 = vpop.f32.mrf.mxu0
        %v1267 = vadd.f32 0.0, %v1266
        %1268 = vmatmul.f32.gmra.mxu0 %v1191
        %v1269 = vpop.f32.mrf.mxu0
        %v1270 = vadd.f32 0.0, %v1269
        %1271 = vmatmul.f32.gmra.mxu0 %v1192
        %v1272 = vpop.f32.mrf.mxu0
        %v1273 = vadd.f32 0.0, %v1272
        %1274 = vmatmul.f32.gmra.mxu0 %v1193
        %v1275 = vpop.f32.mrf.mxu0
        %v1276 = vadd.f32 0.0, %v1275
        %1277 = vmatmul.f32.gmra.mxu0 %v1194
        %v1278 = vpop.f32.mrf.mxu0
        %v1279 = vadd.f32 0.0, %v1278
        %1280 = vmatmul.f32.gmra.mxu0 %v1195
        %v1281 = vpop.f32.mrf.mxu0
        %v1282 = vadd.f32 0.0, %v1281
        %1283 = vmatmul.f32.gmra.mxu0 %v1196
        %v1284 = vpop.f32.mrf.mxu0
        %v1285 = vadd.f32 0.0, %v1284
        %1286 = vmatmul.f32.gmra.mxu0 %v1197
        %v1287 = vpop.f32.mrf.mxu0
        %v1288 = vadd.f32 0.0, %v1287
        %1289 = vmatmul.f32.gmra.mxu0 %v1198
        %v1290 = vpop.f32.mrf.mxu0
        %v1291 = vadd.f32 0.0, %v1290
        %1292 = vmatmul.f32.gmra.mxu0 %v1199
        %v1293 = vpop.f32.mrf.mxu0
        %v1294 = vadd.f32 0.0, %v1293
        %1295 = vmatmul.f32.gmra.mxu0 %v1200
        %v1296 = vpop.f32.mrf.mxu0
        %v1297 = vadd.f32 0.0, %v1296
        %1298 = vmatmul.f32.gmra.mxu0 %v1201
        %v1299 = vpop.f32.mrf.mxu0
        %v1300 = vadd.f32 0.0, %v1299
        %1301 = vmatmul.f32.gmra.mxu0 %v1202
        %v1302 = vpop.f32.mrf.mxu0
        %v1303 = vadd.f32 0.0, %v1302
        %1304 = vmatmul.f32.gmra.mxu0 %v1203
        %v1305 = vpop.f32.mrf.mxu0
        %v1306 = vadd.f32 0.0, %v1305
        %1307 = vmatmul.f32.gmra.mxu0 %v1204
        %v1308 = vpop.f32.mrf.mxu0
        %v1309 = vadd.f32 0.0, %v1308
        %1310 = vmatmul.f32.gmra.mxu0 %v1205
        %v1311 = vpop.f32.mrf.mxu0
        %v1312 = vadd.f32 0.0, %v1311
        %1313 = vmatmul.f32.gmra.mxu0 %v1206
        %v1314 = vpop.f32.mrf.mxu0
        %v1315 = vadd.f32 0.0, %v1314
        %1316 = vmatmul.f32.gmra.mxu0 %v1207
        %v1317 = vpop.f32.mrf.mxu0
        %v1318 = vadd.f32 0.0, %v1317
        %1319 = vmatmul.f32.gmra.mxu0 %v1208
        %v1320 = vpop.f32.mrf.mxu0
        %v1321 = vadd.f32 0.0, %v1320
        %1322 = vmatmul.f32.gmra.mxu0 %v1209
        %v1323 = vpop.f32.mrf.mxu0
        %v1324 = vadd.f32 0.0, %v1323
        %1325 = vmatmul.f32.gmra.mxu0 %v1210
        %v1326 = vpop.f32.mrf.mxu0
        %v1327 = vadd.f32 0.0, %v1326
        %1328 = vmatmul.f32.gmra.mxu0 %v1211
        %v1329 = vpop.f32.mrf.mxu0
        %v1330 = vadd.f32 0.0, %v1329
        %1331 = vmatmul.f32.gmra.mxu0 %v1212
        %v1332 = vpop.f32.mrf.mxu0
        %v1333 = vadd.f32 0.0, %v1332
        %1334 = vmatmul.f32.gmra.mxu0 %v1213
        %v1335 = vpop.f32.mrf.mxu0
        %v1336 = vadd.f32 0.0, %v1335
        %1337 = vmatmul.f32.gmra.mxu0 %v1214
        %v1338 = vpop.f32.mrf.mxu0
        %v1339 = vadd.f32 0.0, %v1338
        %1340 = vmatmul.f32.gmra.mxu0 %v1215
        %v1341 = vpop.f32.mrf.mxu0
        %v1342 = vadd.f32 0.0, %v1341
        %1343 = vmatmul.f32.gmra.mxu0 %v1216
        %v1344 = vpop.f32.mrf.mxu0
        %v1345 = vadd.f32 0.0, %v1344
        %1346 = vdwg.mxu0
        %v1347 = vadd.f32 %v1153, %v1252
        %v1348 = vadd.f32 %v1154, %v1255
        %v1349 = vadd.f32 %v1155, %v1258
        %v1350 = vadd.f32 %v1156, %v1261
        %v1351 = vadd.f32 %v1157, %v1264
        %v1352 = vadd.f32 %v1158, %v1267
        %v1353 = vadd.f32 %v1159, %v1270
        %v1354 = vadd.f32 %v1160, %v1273
        %v1355 = vadd.f32 %v1161, %v1276
        %v1356 = vadd.f32 %v1162, %v1279
        %v1357 = vadd.f32 %v1163, %v1282
        %v1358 = vadd.f32 %v1164, %v1285
        %v1359 = vadd.f32 %v1165, %v1288
        %v1360 = vadd.f32 %v1166, %v1291
        %v1361 = vadd.f32 %v1167, %v1294
        %v1362 = vadd.f32 %v1168, %v1297
        %v1363 = vadd.f32 %v1169, %v1300
        %v1364 = vadd.f32 %v1170, %v1303
        %v1365 = vadd.f32 %v1171, %v1306
        %v1366 = vadd.f32 %v1172, %v1309
        %v1367 = vadd.f32 %v1173, %v1312
        %v1368 = vadd.f32 %v1174, %v1315
        %v1369 = vadd.f32 %v1175, %v1318
        %v1370 = vadd.f32 %v1176, %v1321
        %v1371 = vadd.f32 %v1177, %v1324
        %v1372 = vadd.f32 %v1178, %v1327
        %v1373 = vadd.f32 %v1179, %v1330
        %v1374 = vadd.f32 %v1180, %v1333
        %v1375 = vadd.f32 %v1181, %v1336
        %v1376 = vadd.f32 %v1182, %v1339
        %v1377 = vadd.f32 %v1183, %v1342
        %v1378 = vadd.f32 %v1184, %v1345
        %v1379 = vld [vmem:[%s990 + $0x2] sm:$0xff]
        %v1380 = vld [vmem:[%s990 + $0xa] sm:$0xff]
        %v1381 = vld [vmem:[%s990 + $0x1a] sm:$0xff]
        %v1382 = vld [vmem:[%s990 + $0x22] sm:$0xff]
        %v1383 = vld [vmem:[%s990 + $0x32] sm:$0xff]
        %v1384 = vld [vmem:[%s990 + $0x3a] sm:$0xff]
        %v1385 = vld [vmem:[%s990 + $0x4a] sm:$0xff]
        %v1386 = vld [vmem:[%s990 + $0x52] sm:$0xff]
        %v1387 = vld [vmem:[%s990 + $0x62] sm:$0xff]
        %v1388 = vld [vmem:[%s990 + $0x6a] sm:$0xff]
        %v1389 = vld [vmem:[%s990 + $0x7a] sm:$0xff]
        %v1390 = vld [vmem:[%s990 + $0x82] sm:$0xff]
        %v1391 = vld [vmem:[%s990 + $0x92] sm:$0xff]
        %v1392 = vld [vmem:[%s990 + $0x9a] sm:$0xff]
        %v1393 = vld [vmem:[%s990 + $0xaa] sm:$0xff]
        %v1394 = vld [vmem:[%s990 + $0xb2] sm:$0xff]
        %v1395 = vld [vmem:[%s990 + $0xc2] sm:$0xff]
        %v1396 = vld [vmem:[%s990 + $0xca] sm:$0xff]
        %v1397 = vld [vmem:[%s990 + $0xda] sm:$0xff]
        %v1398 = vld [vmem:[%s990 + $0xe2] sm:$0xff]
        %v1399 = vld [vmem:[%s990 + $0xf2] sm:$0xff]
        %v1400 = vld [vmem:[%s990 + $0xfa] sm:$0xff]
        %v1401 = vld [vmem:[%s990 + $0x10a] sm:$0xff]
        %v1402 = vld [vmem:[%s990 + $0x112] sm:$0xff]
        %v1403 = vld [vmem:[%s990 + $0x122] sm:$0xff]
        %v1404 = vld [vmem:[%s990 + $0x12a] sm:$0xff]
        %v1405 = vld [vmem:[%s990 + $0x13a] sm:$0xff]
        %v1406 = vld [vmem:[%s990 + $0x142] sm:$0xff]
        %v1407 = vld [vmem:[%s990 + $0x152] sm:$0xff]
        %v1408 = vld [vmem:[%s990 + $0x15a] sm:$0xff]
        %v1409 = vld [vmem:[%s990 + $0x16a] sm:$0xff]
        %v1410 = vld [vmem:[%s990 + $0x172] sm:$0xff]
        %s1411 = scalar_lea.vmem %s1, 640
        %v1412 = vld [vmem:[%s1411] sm:$0xff]
        %v1413 = vld [vmem:[%s1411 + $0x8] sm:$0xff]
        %v1414 = vld [vmem:[%s1411 + $0x10] sm:$0xff]
        %v1415 = vld [vmem:[%s1411 + $0x18] sm:$0xff]
        %v1416 = vld [vmem:[%s1411 + $0x20] sm:$0xff]
        %v1417 = vld [vmem:[%s1411 + $0x28] sm:$0xff]
        %v1418 = vld [vmem:[%s1411 + $0x30] sm:$0xff]
        %v1419 = vld [vmem:[%s1411 + $0x38] sm:$0xff]
        %v1420 = vld [vmem:[%s1411 + $0x40] sm:$0xff]
        %v1421 = vld [vmem:[%s1411 + $0x48] sm:$0xff]
        %v1422 = vld [vmem:[%s1411 + $0x50] sm:$0xff]
        %v1423 = vld [vmem:[%s1411 + $0x58] sm:$0xff]
        %v1424 = vld [vmem:[%s1411 + $0x60] sm:$0xff]
        %v1425 = vld [vmem:[%s1411 + $0x68] sm:$0xff]
        %v1426 = vld [vmem:[%s1411 + $0x70] sm:$0xff]
        %v1427 = vld [vmem:[%s1411 + $0x78] sm:$0xff]
        %1428 = vmatpush.msra.mxu0 %v1427
        %1429 = vmatpush.msra.mxu0 %v1426
        %1430 = vmatpush.msra.mxu0 %v1425
        %1431 = vmatpush.msra.mxu0 %v1424
        %1432 = vmatpush.msra.mxu0 %v1423
        %1433 = vmatpush.msra.mxu0 %v1422
        %1434 = vmatpush.msra.mxu0 %v1421
        %1435 = vmatpush.msra.mxu0 %v1420
        %1436 = vmatpush.msra.mxu0 %v1419
        %1437 = vmatpush.msra.mxu0 %v1418
        %1438 = vmatpush.msra.mxu0 %v1417
        %1439 = vmatpush.msra.mxu0 %v1416
        %1440 = vmatpush.msra.mxu0 %v1415
        %1441 = vmatpush.msra.mxu0 %v1414
        %1442 = vmatpush.msra.mxu0 %v1413
        %1443 = vmatpush.msra.mxu0 %v1412
        %1444 = vmatmul.f32.gmra.mxu0 %v1379
        %v1445 = vpop.f32.mrf.mxu0
        %v1446 = vadd.f32 0.0, %v1445
        %1447 = vmatmul.f32.gmra.mxu0 %v1380
        %v1448 = vpop.f32.mrf.mxu0
        %v1449 = vadd.f32 0.0, %v1448
        %1450 = vmatmul.f32.gmra.mxu0 %v1381
        %v1451 = vpop.f32.mrf.mxu0
        %v1452 = vadd.f32 0.0, %v1451
        %1453 = vmatmul.f32.gmra.mxu0 %v1382
        %v1454 = vpop.f32.mrf.mxu0
        %v1455 = vadd.f32 0.0, %v1454
        %1456 = vmatmul.f32.gmra.mxu0 %v1383
        %v1457 = vpop.f32.mrf.mxu0
        %v1458 = vadd.f32 0.0, %v1457
        %1459 = vmatmul.f32.gmra.mxu0 %v1384
        %v1460 = vpop.f32.mrf.mxu0
        %v1461 = vadd.f32 0.0, %v1460
        %1462 = vmatmul.f32.gmra.mxu0 %v1385
        %v1463 = vpop.f32.mrf.mxu0
        %v1464 = vadd.f32 0.0, %v1463
        %1465 = vmatmul.f32.gmra.mxu0 %v1386
        %v1466 = vpop.f32.mrf.mxu0
        %v1467 = vadd.f32 0.0, %v1466
        %1468 = vmatmul.f32.gmra.mxu0 %v1387
        %v1469 = vpop.f32.mrf.mxu0
        %v1470 = vadd.f32 0.0, %v1469
        %1471 = vmatmul.f32.gmra.mxu0 %v1388
        %v1472 = vpop.f32.mrf.mxu0
        %v1473 = vadd.f32 0.0, %v1472
        %1474 = vmatmul.f32.gmra.mxu0 %v1389
        %v1475 = vpop.f32.mrf.mxu0
        %v1476 = vadd.f32 0.0, %v1475
        %1477 = vmatmul.f32.gmra.mxu0 %v1390
        %v1478 = vpop.f32.mrf.mxu0
        %v1479 = vadd.f32 0.0, %v1478
        %1480 = vmatmul.f32.gmra.mxu0 %v1391
        %v1481 = vpop.f32.mrf.mxu0
        %v1482 = vadd.f32 0.0, %v1481
        %1483 = vmatmul.f32.gmra.mxu0 %v1392
        %v1484 = vpop.f32.mrf.mxu0
        %v1485 = vadd.f32 0.0, %v1484
        %1486 = vmatmul.f32.gmra.mxu0 %v1393
        %v1487 = vpop.f32.mrf.mxu0
        %v1488 = vadd.f32 0.0, %v1487
        %1489 = vmatmul.f32.gmra.mxu0 %v1394
        %v1490 = vpop.f32.mrf.mxu0
        %v1491 = vadd.f32 0.0, %v1490
        %1492 = vmatmul.f32.gmra.mxu0 %v1395
        %v1493 = vpop.f32.mrf.mxu0
        %v1494 = vadd.f32 0.0, %v1493
        %1495 = vmatmul.f32.gmra.mxu0 %v1396
        %v1496 = vpop.f32.mrf.mxu0
        %v1497 = vadd.f32 0.0, %v1496
        %1498 = vmatmul.f32.gmra.mxu0 %v1397
        %v1499 = vpop.f32.mrf.mxu0
        %v1500 = vadd.f32 0.0, %v1499
        %1501 = vmatmul.f32.gmra.mxu0 %v1398
        %v1502 = vpop.f32.mrf.mxu0
        %v1503 = vadd.f32 0.0, %v1502
        %1504 = vmatmul.f32.gmra.mxu0 %v1399
        %v1505 = vpop.f32.mrf.mxu0
        %v1506 = vadd.f32 0.0, %v1505
        %1507 = vmatmul.f32.gmra.mxu0 %v1400
        %v1508 = vpop.f32.mrf.mxu0
        %v1509 = vadd.f32 0.0, %v1508
        %1510 = vmatmul.f32.gmra.mxu0 %v1401
        %v1511 = vpop.f32.mrf.mxu0
        %v1512 = vadd.f32 0.0, %v1511
        %1513 = vmatmul.f32.gmra.mxu0 %v1402
        %v1514 = vpop.f32.mrf.mxu0
        %v1515 = vadd.f32 0.0, %v1514
        %1516 = vmatmul.f32.gmra.mxu0 %v1403
        %v1517 = vpop.f32.mrf.mxu0
        %v1518 = vadd.f32 0.0, %v1517
        %1519 = vmatmul.f32.gmra.mxu0 %v1404
        %v1520 = vpop.f32.mrf.mxu0
        %v1521 = vadd.f32 0.0, %v1520
        %1522 = vmatmul.f32.gmra.mxu0 %v1405
        %v1523 = vpop.f32.mrf.mxu0
        %v1524 = vadd.f32 0.0, %v1523
        %1525 = vmatmul.f32.gmra.mxu0 %v1406
        %v1526 = vpop.f32.mrf.mxu0
        %v1527 = vadd.f32 0.0, %v1526
        %1528 = vmatmul.f32.gmra.mxu0 %v1407
        %v1529 = vpop.f32.mrf.mxu0
        %v1530 = vadd.f32 0.0, %v1529
        %1531 = vmatmul.f32.gmra.mxu0 %v1408
        %v1532 = vpop.f32.mrf.mxu0
        %v1533 = vadd.f32 0.0, %v1532
        %1534 = vmatmul.f32.gmra.mxu0 %v1409
        %v1535 = vpop.f32.mrf.mxu0
        %v1536 = vadd.f32 0.0, %v1535
        %1537 = vmatmul.f32.gmra.mxu0 %v1410
        %v1538 = vpop.f32.mrf.mxu0
        %v1539 = vadd.f32 0.0, %v1538
        %1540 = vdwg.mxu0
        %v1541 = vadd.f32 %v1347, %v1446
        %v1542 = vadd.f32 %v1348, %v1449
        %v1543 = vadd.f32 %v1349, %v1452
        %v1544 = vadd.f32 %v1350, %v1455
        %v1545 = vadd.f32 %v1351, %v1458
        %v1546 = vadd.f32 %v1352, %v1461
        %v1547 = vadd.f32 %v1353, %v1464
        %v1548 = vadd.f32 %v1354, %v1467
        %v1549 = vadd.f32 %v1355, %v1470
        %v1550 = vadd.f32 %v1356, %v1473
        %v1551 = vadd.f32 %v1357, %v1476
        %v1552 = vadd.f32 %v1358, %v1479
        %v1553 = vadd.f32 %v1359, %v1482
        %v1554 = vadd.f32 %v1360, %v1485
        %v1555 = vadd.f32 %v1361, %v1488
        %v1556 = vadd.f32 %v1362, %v1491
        %v1557 = vadd.f32 %v1363, %v1494
        %v1558 = vadd.f32 %v1364, %v1497
        %v1559 = vadd.f32 %v1365, %v1500
        %v1560 = vadd.f32 %v1366, %v1503
        %v1561 = vadd.f32 %v1367, %v1506
        %v1562 = vadd.f32 %v1368, %v1509
        %v1563 = vadd.f32 %v1369, %v1512
        %v1564 = vadd.f32 %v1370, %v1515
        %v1565 = vadd.f32 %v1371, %v1518
        %v1566 = vadd.f32 %v1372, %v1521
        %v1567 = vadd.f32 %v1373, %v1524
        %v1568 = vadd.f32 %v1374, %v1527
        %v1569 = vadd.f32 %v1375, %v1530
        %v1570 = vadd.f32 %v1376, %v1533
        %v1571 = vadd.f32 %v1377, %v1536
        %v1572 = vadd.f32 %v1378, %v1539
        %s1573 = scalar_lea.vmem %s363, 48
        %v1574 = vld [vmem:[%s1573] sm:$0xff]
        %v1575 = vld [vmem:[%s1573 + $0x8] sm:$0xff]
        %v1576 = vld [vmem:[%s1573 + $0x18] sm:$0xff]
        %v1577 = vld [vmem:[%s1573 + $0x20] sm:$0xff]
        %v1578 = vld [vmem:[%s1573 + $0x30] sm:$0xff]
        %v1579 = vld [vmem:[%s1573 + $0x38] sm:$0xff]
        %v1580 = vld [vmem:[%s1573 + $0x48] sm:$0xff]
        %v1581 = vld [vmem:[%s1573 + $0x50] sm:$0xff]
        %v1582 = vld [vmem:[%s1573 + $0x60] sm:$0xff]
        %v1583 = vld [vmem:[%s1573 + $0x68] sm:$0xff]
        %v1584 = vld [vmem:[%s1573 + $0x78] sm:$0xff]
        %v1585 = vld [vmem:[%s1573 + $0x80] sm:$0xff]
        %v1586 = vld [vmem:[%s1573 + $0x90] sm:$0xff]
        %v1587 = vld [vmem:[%s1573 + $0x98] sm:$0xff]
        %v1588 = vld [vmem:[%s1573 + $0xa8] sm:$0xff]
        %v1589 = vld [vmem:[%s1573 + $0xb0] sm:$0xff]
        %v1590 = vld [vmem:[%s1573 + $0xc0] sm:$0xff]
        %v1591 = vld [vmem:[%s1573 + $0xc8] sm:$0xff]
        %v1592 = vld [vmem:[%s1573 + $0xd8] sm:$0xff]
        %v1593 = vld [vmem:[%s1573 + $0xe0] sm:$0xff]
        %v1594 = vld [vmem:[%s1573 + $0xf0] sm:$0xff]
        %v1595 = vld [vmem:[%s1573 + $0xf8] sm:$0xff]
        %v1596 = vld [vmem:[%s1573 + $0x108] sm:$0xff]
        %v1597 = vld [vmem:[%s1573 + $0x110] sm:$0xff]
        %v1598 = vld [vmem:[%s1573 + $0x120] sm:$0xff]
        %v1599 = vld [vmem:[%s1573 + $0x128] sm:$0xff]
        %v1600 = vld [vmem:[%s1573 + $0x138] sm:$0xff]
        %v1601 = vld [vmem:[%s1573 + $0x140] sm:$0xff]
        %v1602 = vld [vmem:[%s1573 + $0x150] sm:$0xff]
        %v1603 = vld [vmem:[%s1573 + $0x158] sm:$0xff]
        %v1604 = vld [vmem:[%s1573 + $0x168] sm:$0xff]
        %v1605 = vld [vmem:[%s1573 + $0x170] sm:$0xff]
        %s1606 = scalar_lea.vmem %s1, 768
        %v1607 = vld [vmem:[%s1606] sm:$0xff]
        %v1608 = vld [vmem:[%s1606 + $0x8] sm:$0xff]
        %v1609 = vld [vmem:[%s1606 + $0x10] sm:$0xff]
        %v1610 = vld [vmem:[%s1606 + $0x18] sm:$0xff]
        %v1611 = vld [vmem:[%s1606 + $0x20] sm:$0xff]
        %v1612 = vld [vmem:[%s1606 + $0x28] sm:$0xff]
        %v1613 = vld [vmem:[%s1606 + $0x30] sm:$0xff]
        %v1614 = vld [vmem:[%s1606 + $0x38] sm:$0xff]
        %v1615 = vld [vmem:[%s1606 + $0x40] sm:$0xff]
        %v1616 = vld [vmem:[%s1606 + $0x48] sm:$0xff]
        %v1617 = vld [vmem:[%s1606 + $0x50] sm:$0xff]
        %v1618 = vld [vmem:[%s1606 + $0x58] sm:$0xff]
        %v1619 = vld [vmem:[%s1606 + $0x60] sm:$0xff]
        %v1620 = vld [vmem:[%s1606 + $0x68] sm:$0xff]
        %v1621 = vld [vmem:[%s1606 + $0x70] sm:$0xff]
        %v1622 = vld [vmem:[%s1606 + $0x78] sm:$0xff]
        %1623 = vmatpush.msra.mxu0 %v1622
        %1624 = vmatpush.msra.mxu0 %v1621
        %1625 = vmatpush.msra.mxu0 %v1620
        %1626 = vmatpush.msra.mxu0 %v1619
        %1627 = vmatpush.msra.mxu0 %v1618
        %1628 = vmatpush.msra.mxu0 %v1617
        %1629 = vmatpush.msra.mxu0 %v1616
        %1630 = vmatpush.msra.mxu0 %v1615
        %1631 = vmatpush.msra.mxu0 %v1614
        %1632 = vmatpush.msra.mxu0 %v1613
        %1633 = vmatpush.msra.mxu0 %v1612
        %1634 = vmatpush.msra.mxu0 %v1611
        %1635 = vmatpush.msra.mxu0 %v1610
        %1636 = vmatpush.msra.mxu0 %v1609
        %1637 = vmatpush.msra.mxu0 %v1608
        %1638 = vmatpush.msra.mxu0 %v1607
        %1639 = vmatmul.f32.gmra.mxu0 %v1574
        %v1640 = vpop.f32.mrf.mxu0
        %v1641 = vadd.f32 0.0, %v1640
        %1642 = vmatmul.f32.gmra.mxu0 %v1575
        %v1643 = vpop.f32.mrf.mxu0
        %v1644 = vadd.f32 0.0, %v1643
        %1645 = vmatmul.f32.gmra.mxu0 %v1576
        %v1646 = vpop.f32.mrf.mxu0
        %v1647 = vadd.f32 0.0, %v1646
        %1648 = vmatmul.f32.gmra.mxu0 %v1577
        %v1649 = vpop.f32.mrf.mxu0
        %v1650 = vadd.f32 0.0, %v1649
        %1651 = vmatmul.f32.gmra.mxu0 %v1578
        %v1652 = vpop.f32.mrf.mxu0
        %v1653 = vadd.f32 0.0, %v1652
        %1654 = vmatmul.f32.gmra.mxu0 %v1579
        %v1655 = vpop.f32.mrf.mxu0
        %v1656 = vadd.f32 0.0, %v1655
        %1657 = vmatmul.f32.gmra.mxu0 %v1580
        %v1658 = vpop.f32.mrf.mxu0
        %v1659 = vadd.f32 0.0, %v1658
        %1660 = vmatmul.f32.gmra.mxu0 %v1581
        %v1661 = vpop.f32.mrf.mxu0
        %v1662 = vadd.f32 0.0, %v1661
        %1663 = vmatmul.f32.gmra.mxu0 %v1582
        %v1664 = vpop.f32.mrf.mxu0
        %v1665 = vadd.f32 0.0, %v1664
        %1666 = vmatmul.f32.gmra.mxu0 %v1583
        %v1667 = vpop.f32.mrf.mxu0
        %v1668 = vadd.f32 0.0, %v1667
        %1669 = vmatmul.f32.gmra.mxu0 %v1584
        %v1670 = vpop.f32.mrf.mxu0
        %v1671 = vadd.f32 0.0, %v1670
        %1672 = vmatmul.f32.gmra.mxu0 %v1585
        %v1673 = vpop.f32.mrf.mxu0
        %v1674 = vadd.f32 0.0, %v1673
        %1675 = vmatmul.f32.gmra.mxu0 %v1586
        %v1676 = vpop.f32.mrf.mxu0
        %v1677 = vadd.f32 0.0, %v1676
        %1678 = vmatmul.f32.gmra.mxu0 %v1587
        %v1679 = vpop.f32.mrf.mxu0
        %v1680 = vadd.f32 0.0, %v1679
        %1681 = vmatmul.f32.gmra.mxu0 %v1588
        %v1682 = vpop.f32.mrf.mxu0
        %v1683 = vadd.f32 0.0, %v1682
        %1684 = vmatmul.f32.gmra.mxu0 %v1589
        %v1685 = vpop.f32.mrf.mxu0
        %v1686 = vadd.f32 0.0, %v1685
        %1687 = vmatmul.f32.gmra.mxu0 %v1590
        %v1688 = vpop.f32.mrf.mxu0
        %v1689 = vadd.f32 0.0, %v1688
        %1690 = vmatmul.f32.gmra.mxu0 %v1591
        %v1691 = vpop.f32.mrf.mxu0
        %v1692 = vadd.f32 0.0, %v1691
        %1693 = vmatmul.f32.gmra.mxu0 %v1592
        %v1694 = vpop.f32.mrf.mxu0
        %v1695 = vadd.f32 0.0, %v1694
        %1696 = vmatmul.f32.gmra.mxu0 %v1593
        %v1697 = vpop.f32.mrf.mxu0
        %v1698 = vadd.f32 0.0, %v1697
        %1699 = vmatmul.f32.gmra.mxu0 %v1594
        %v1700 = vpop.f32.mrf.mxu0
        %v1701 = vadd.f32 0.0, %v1700
        %1702 = vmatmul.f32.gmra.mxu0 %v1595
        %v1703 = vpop.f32.mrf.mxu0
        %v1704 = vadd.f32 0.0, %v1703
        %1705 = vmatmul.f32.gmra.mxu0 %v1596
        %v1706 = vpop.f32.mrf.mxu0
        %v1707 = vadd.f32 0.0, %v1706
        %1708 = vmatmul.f32.gmra.mxu0 %v1597
        %v1709 = vpop.f32.mrf.mxu0
        %v1710 = vadd.f32 0.0, %v1709
        %1711 = vmatmul.f32.gmra.mxu0 %v1598
        %v1712 = vpop.f32.mrf.mxu0
        %v1713 = vadd.f32 0.0, %v1712
        %1714 = vmatmul.f32.gmra.mxu0 %v1599
        %v1715 = vpop.f32.mrf.mxu0
        %v1716 = vadd.f32 0.0, %v1715
        %1717 = vmatmul.f32.gmra.mxu0 %v1600
        %v1718 = vpop.f32.mrf.mxu0
        %v1719 = vadd.f32 0.0, %v1718
        %1720 = vmatmul.f32.gmra.mxu0 %v1601
        %v1721 = vpop.f32.mrf.mxu0
        %v1722 = vadd.f32 0.0, %v1721
        %1723 = vmatmul.f32.gmra.mxu0 %v1602
        %v1724 = vpop.f32.mrf.mxu0
        %v1725 = vadd.f32 0.0, %v1724
        %1726 = vmatmul.f32.gmra.mxu0 %v1603
        %v1727 = vpop.f32.mrf.mxu0
        %v1728 = vadd.f32 0.0, %v1727
        %1729 = vmatmul.f32.gmra.mxu0 %v1604
        %v1730 = vpop.f32.mrf.mxu0
        %v1731 = vadd.f32 0.0, %v1730
        %1732 = vmatmul.f32.gmra.mxu0 %v1605
        %v1733 = vpop.f32.mrf.mxu0
        %v1734 = vadd.f32 0.0, %v1733
        %1735 = vdwg.mxu0
        %v1736 = vadd.f32 %v1541, %v1641
        %v1737 = vadd.f32 %v1542, %v1644
        %v1738 = vadd.f32 %v1543, %v1647
        %v1739 = vadd.f32 %v1544, %v1650
        %v1740 = vadd.f32 %v1545, %v1653
        %v1741 = vadd.f32 %v1546, %v1656
        %v1742 = vadd.f32 %v1547, %v1659
        %v1743 = vadd.f32 %v1548, %v1662
        %v1744 = vadd.f32 %v1549, %v1665
        %v1745 = vadd.f32 %v1550, %v1668
        %v1746 = vadd.f32 %v1551, %v1671
        %v1747 = vadd.f32 %v1552, %v1674
        %v1748 = vadd.f32 %v1553, %v1677
        %v1749 = vadd.f32 %v1554, %v1680
        %v1750 = vadd.f32 %v1555, %v1683
        %v1751 = vadd.f32 %v1556, %v1686
        %v1752 = vadd.f32 %v1557, %v1689
        %v1753 = vadd.f32 %v1558, %v1692
        %v1754 = vadd.f32 %v1559, %v1695
        %v1755 = vadd.f32 %v1560, %v1698
        %v1756 = vadd.f32 %v1561, %v1701
        %v1757 = vadd.f32 %v1562, %v1704
        %v1758 = vadd.f32 %v1563, %v1707
        %v1759 = vadd.f32 %v1564, %v1710
        %v1760 = vadd.f32 %v1565, %v1713
        %v1761 = vadd.f32 %v1566, %v1716
        %v1762 = vadd.f32 %v1567, %v1719
        %v1763 = vadd.f32 %v1568, %v1722
        %v1764 = vadd.f32 %v1569, %v1725
        %v1765 = vadd.f32 %v1570, %v1728
        %v1766 = vadd.f32 %v1571, %v1731
        %v1767 = vadd.f32 %v1572, %v1734
        %v1768 = vld [vmem:[%s1573 + $0x1] sm:$0xff]
        %v1769 = vld [vmem:[%s1573 + $0x9] sm:$0xff]
        %v1770 = vld [vmem:[%s1573 + $0x19] sm:$0xff]
        %v1771 = vld [vmem:[%s1573 + $0x21] sm:$0xff]
        %v1772 = vld [vmem:[%s1573 + $0x31] sm:$0xff]
        %v1773 = vld [vmem:[%s1573 + $0x39] sm:$0xff]
        %v1774 = vld [vmem:[%s1573 + $0x49] sm:$0xff]
        %v1775 = vld [vmem:[%s1573 + $0x51] sm:$0xff]
        %v1776 = vld [vmem:[%s1573 + $0x61] sm:$0xff]
        %v1777 = vld [vmem:[%s1573 + $0x69] sm:$0xff]
        %v1778 = vld [vmem:[%s1573 + $0x79] sm:$0xff]
        %v1779 = vld [vmem:[%s1573 + $0x81] sm:$0xff]
        %v1780 = vld [vmem:[%s1573 + $0x91] sm:$0xff]
        %v1781 = vld [vmem:[%s1573 + $0x99] sm:$0xff]
        %v1782 = vld [vmem:[%s1573 + $0xa9] sm:$0xff]
        %v1783 = vld [vmem:[%s1573 + $0xb1] sm:$0xff]
        %v1784 = vld [vmem:[%s1573 + $0xc1] sm:$0xff]
        %v1785 = vld [vmem:[%s1573 + $0xc9] sm:$0xff]
        %v1786 = vld [vmem:[%s1573 + $0xd9] sm:$0xff]
        %v1787 = vld [vmem:[%s1573 + $0xe1] sm:$0xff]
        %v1788 = vld [vmem:[%s1573 + $0xf1] sm:$0xff]
        %v1789 = vld [vmem:[%s1573 + $0xf9] sm:$0xff]
        %v1790 = vld [vmem:[%s1573 + $0x109] sm:$0xff]
        %v1791 = vld [vmem:[%s1573 + $0x111] sm:$0xff]
        %v1792 = vld [vmem:[%s1573 + $0x121] sm:$0xff]
        %v1793 = vld [vmem:[%s1573 + $0x129] sm:$0xff]
        %v1794 = vld [vmem:[%s1573 + $0x139] sm:$0xff]
        %v1795 = vld [vmem:[%s1573 + $0x141] sm:$0xff]
        %v1796 = vld [vmem:[%s1573 + $0x151] sm:$0xff]
        %v1797 = vld [vmem:[%s1573 + $0x159] sm:$0xff]
        %v1798 = vld [vmem:[%s1573 + $0x169] sm:$0xff]
        %v1799 = vld [vmem:[%s1573 + $0x171] sm:$0xff]
        %s1800 = scalar_lea.vmem %s1, 896
        %v1801 = vld [vmem:[%s1800] sm:$0xff]
        %v1802 = vld [vmem:[%s1800 + $0x8] sm:$0xff]
        %v1803 = vld [vmem:[%s1800 + $0x10] sm:$0xff]
        %v1804 = vld [vmem:[%s1800 + $0x18] sm:$0xff]
        %v1805 = vld [vmem:[%s1800 + $0x20] sm:$0xff]
        %v1806 = vld [vmem:[%s1800 + $0x28] sm:$0xff]
        %v1807 = vld [vmem:[%s1800 + $0x30] sm:$0xff]
        %v1808 = vld [vmem:[%s1800 + $0x38] sm:$0xff]
        %v1809 = vld [vmem:[%s1800 + $0x40] sm:$0xff]
        %v1810 = vld [vmem:[%s1800 + $0x48] sm:$0xff]
        %v1811 = vld [vmem:[%s1800 + $0x50] sm:$0xff]
        %v1812 = vld [vmem:[%s1800 + $0x58] sm:$0xff]
        %v1813 = vld [vmem:[%s1800 + $0x60] sm:$0xff]
        %v1814 = vld [vmem:[%s1800 + $0x68] sm:$0xff]
        %v1815 = vld [vmem:[%s1800 + $0x70] sm:$0xff]
        %v1816 = vld [vmem:[%s1800 + $0x78] sm:$0xff]
        %1817 = vmatpush.msra.mxu0 %v1816
        %1818 = vmatpush.msra.mxu0 %v1815
        %1819 = vmatpush.msra.mxu0 %v1814
        %1820 = vmatpush.msra.mxu0 %v1813
        %1821 = vmatpush.msra.mxu0 %v1812
        %1822 = vmatpush.msra.mxu0 %v1811
        %1823 = vmatpush.msra.mxu0 %v1810
        %1824 = vmatpush.msra.mxu0 %v1809
        %1825 = vmatpush.msra.mxu0 %v1808
        %1826 = vmatpush.msra.mxu0 %v1807
        %1827 = vmatpush.msra.mxu0 %v1806
        %1828 = vmatpush.msra.mxu0 %v1805
        %1829 = vmatpush.msra.mxu0 %v1804
        %1830 = vmatpush.msra.mxu0 %v1803
        %1831 = vmatpush.msra.mxu0 %v1802
        %1832 = vmatpush.msra.mxu0 %v1801
        %1833 = vmatmul.f32.gmra.mxu0 %v1768
        %v1834 = vpop.f32.mrf.mxu0
        %v1835 = vadd.f32 0.0, %v1834
        %1836 = vmatmul.f32.gmra.mxu0 %v1769
        %v1837 = vpop.f32.mrf.mxu0
        %v1838 = vadd.f32 0.0, %v1837
        %1839 = vmatmul.f32.gmra.mxu0 %v1770
        %v1840 = vpop.f32.mrf.mxu0
        %v1841 = vadd.f32 0.0, %v1840
        %1842 = vmatmul.f32.gmra.mxu0 %v1771
        %v1843 = vpop.f32.mrf.mxu0
        %v1844 = vadd.f32 0.0, %v1843
        %1845 = vmatmul.f32.gmra.mxu0 %v1772
        %v1846 = vpop.f32.mrf.mxu0
        %v1847 = vadd.f32 0.0, %v1846
        %1848 = vmatmul.f32.gmra.mxu0 %v1773
        %v1849 = vpop.f32.mrf.mxu0
        %v1850 = vadd.f32 0.0, %v1849
        %1851 = vmatmul.f32.gmra.mxu0 %v1774
        %v1852 = vpop.f32.mrf.mxu0
        %v1853 = vadd.f32 0.0, %v1852
        %1854 = vmatmul.f32.gmra.mxu0 %v1775
        %v1855 = vpop.f32.mrf.mxu0
        %v1856 = vadd.f32 0.0, %v1855
        %1857 = vmatmul.f32.gmra.mxu0 %v1776
        %v1858 = vpop.f32.mrf.mxu0
        %v1859 = vadd.f32 0.0, %v1858
        %1860 = vmatmul.f32.gmra.mxu0 %v1777
        %v1861 = vpop.f32.mrf.mxu0
        %v1862 = vadd.f32 0.0, %v1861
        %1863 = vmatmul.f32.gmra.mxu0 %v1778
        %v1864 = vpop.f32.mrf.mxu0
        %v1865 = vadd.f32 0.0, %v1864
        %1866 = vmatmul.f32.gmra.mxu0 %v1779
        %v1867 = vpop.f32.mrf.mxu0
        %v1868 = vadd.f32 0.0, %v1867
        %1869 = vmatmul.f32.gmra.mxu0 %v1780
        %v1870 = vpop.f32.mrf.mxu0
        %v1871 = vadd.f32 0.0, %v1870
        %1872 = vmatmul.f32.gmra.mxu0 %v1781
        %v1873 = vpop.f32.mrf.mxu0
        %v1874 = vadd.f32 0.0, %v1873
        %1875 = vmatmul.f32.gmra.mxu0 %v1782
        %v1876 = vpop.f32.mrf.mxu0
        %v1877 = vadd.f32 0.0, %v1876
        %1878 = vmatmul.f32.gmra.mxu0 %v1783
        %v1879 = vpop.f32.mrf.mxu0
        %v1880 = vadd.f32 0.0, %v1879
        %1881 = vmatmul.f32.gmra.mxu0 %v1784
        %v1882 = vpop.f32.mrf.mxu0
        %v1883 = vadd.f32 0.0, %v1882
        %1884 = vmatmul.f32.gmra.mxu0 %v1785
        %v1885 = vpop.f32.mrf.mxu0
        %v1886 = vadd.f32 0.0, %v1885
        %1887 = vmatmul.f32.gmra.mxu0 %v1786
        %v1888 = vpop.f32.mrf.mxu0
        %v1889 = vadd.f32 0.0, %v1888
        %1890 = vmatmul.f32.gmra.mxu0 %v1787
        %v1891 = vpop.f32.mrf.mxu0
        %v1892 = vadd.f32 0.0, %v1891
        %1893 = vmatmul.f32.gmra.mxu0 %v1788
        %v1894 = vpop.f32.mrf.mxu0
        %v1895 = vadd.f32 0.0, %v1894
        %1896 = vmatmul.f32.gmra.mxu0 %v1789
        %v1897 = vpop.f32.mrf.mxu0
        %v1898 = vadd.f32 0.0, %v1897
        %1899 = vmatmul.f32.gmra.mxu0 %v1790
        %v1900 = vpop.f32.mrf.mxu0
        %v1901 = vadd.f32 0.0, %v1900
        %1902 = vmatmul.f32.gmra.mxu0 %v1791
        %v1903 = vpop.f32.mrf.mxu0
        %v1904 = vadd.f32 0.0, %v1903
        %1905 = vmatmul.f32.gmra.mxu0 %v1792
        %v1906 = vpop.f32.mrf.mxu0
        %v1907 = vadd.f32 0.0, %v1906
        %1908 = vmatmul.f32.gmra.mxu0 %v1793
        %v1909 = vpop.f32.mrf.mxu0
        %v1910 = vadd.f32 0.0, %v1909
        %1911 = vmatmul.f32.gmra.mxu0 %v1794
        %v1912 = vpop.f32.mrf.mxu0
        %v1913 = vadd.f32 0.0, %v1912
        %1914 = vmatmul.f32.gmra.mxu0 %v1795
        %v1915 = vpop.f32.mrf.mxu0
        %v1916 = vadd.f32 0.0, %v1915
        %1917 = vmatmul.f32.gmra.mxu0 %v1796
        %v1918 = vpop.f32.mrf.mxu0
        %v1919 = vadd.f32 0.0, %v1918
        %1920 = vmatmul.f32.gmra.mxu0 %v1797
        %v1921 = vpop.f32.mrf.mxu0
        %v1922 = vadd.f32 0.0, %v1921
        %1923 = vmatmul.f32.gmra.mxu0 %v1798
        %v1924 = vpop.f32.mrf.mxu0
        %v1925 = vadd.f32 0.0, %v1924
        %1926 = vmatmul.f32.gmra.mxu0 %v1799
        %v1927 = vpop.f32.mrf.mxu0
        %v1928 = vadd.f32 0.0, %v1927
        %1929 = vdwg.mxu0
        %v1930 = vadd.f32 %v1736, %v1835
        %v1931 = vadd.f32 %v1737, %v1838
        %v1932 = vadd.f32 %v1738, %v1841
        %v1933 = vadd.f32 %v1739, %v1844
        %v1934 = vadd.f32 %v1740, %v1847
        %v1935 = vadd.f32 %v1741, %v1850
        %v1936 = vadd.f32 %v1742, %v1853
        %v1937 = vadd.f32 %v1743, %v1856
        %v1938 = vadd.f32 %v1744, %v1859
        %v1939 = vadd.f32 %v1745, %v1862
        %v1940 = vadd.f32 %v1746, %v1865
        %v1941 = vadd.f32 %v1747, %v1868
        %v1942 = vadd.f32 %v1748, %v1871
        %v1943 = vadd.f32 %v1749, %v1874
        %v1944 = vadd.f32 %v1750, %v1877
        %v1945 = vadd.f32 %v1751, %v1880
        %v1946 = vadd.f32 %v1752, %v1883
        %v1947 = vadd.f32 %v1753, %v1886
        %v1948 = vadd.f32 %v1754, %v1889
        %v1949 = vadd.f32 %v1755, %v1892
        %v1950 = vadd.f32 %v1756, %v1895
        %v1951 = vadd.f32 %v1757, %v1898
        %v1952 = vadd.f32 %v1758, %v1901
        %v1953 = vadd.f32 %v1759, %v1904
        %v1954 = vadd.f32 %v1760, %v1907
        %v1955 = vadd.f32 %v1761, %v1910
        %v1956 = vadd.f32 %v1762, %v1913
        %v1957 = vadd.f32 %v1763, %v1916
        %v1958 = vadd.f32 %v1764, %v1919
        %v1959 = vadd.f32 %v1765, %v1922
        %v1960 = vadd.f32 %v1766, %v1925
        %v1961 = vadd.f32 %v1767, %v1928
        %v1962 = vld [vmem:[%s1573 + $0x2] sm:$0xff]
        %v1963 = vld [vmem:[%s1573 + $0xa] sm:$0xff]
        %v1964 = vld [vmem:[%s1573 + $0x1a] sm:$0xff]
        %v1965 = vld [vmem:[%s1573 + $0x22] sm:$0xff]
        %v1966 = vld [vmem:[%s1573 + $0x32] sm:$0xff]
        %v1967 = vld [vmem:[%s1573 + $0x3a] sm:$0xff]
        %v1968 = vld [vmem:[%s1573 + $0x4a] sm:$0xff]
        %v1969 = vld [vmem:[%s1573 + $0x52] sm:$0xff]
        %v1970 = vld [vmem:[%s1573 + $0x62] sm:$0xff]
        %v1971 = vld [vmem:[%s1573 + $0x6a] sm:$0xff]
        %v1972 = vld [vmem:[%s1573 + $0x7a] sm:$0xff]
        %v1973 = vld [vmem:[%s1573 + $0x82] sm:$0xff]
        %v1974 = vld [vmem:[%s1573 + $0x92] sm:$0xff]
        %v1975 = vld [vmem:[%s1573 + $0x9a] sm:$0xff]
        %v1976 = vld [vmem:[%s1573 + $0xaa] sm:$0xff]
        %v1977 = vld [vmem:[%s1573 + $0xb2] sm:$0xff]
        %v1978 = vld [vmem:[%s1573 + $0xc2] sm:$0xff]
        %v1979 = vld [vmem:[%s1573 + $0xca] sm:$0xff]
        %v1980 = vld [vmem:[%s1573 + $0xda] sm:$0xff]
        %v1981 = vld [vmem:[%s1573 + $0xe2] sm:$0xff]
        %v1982 = vld [vmem:[%s1573 + $0xf2] sm:$0xff]
        %v1983 = vld [vmem:[%s1573 + $0xfa] sm:$0xff]
        %v1984 = vld [vmem:[%s1573 + $0x10a] sm:$0xff]
        %v1985 = vld [vmem:[%s1573 + $0x112] sm:$0xff]
        %v1986 = vld [vmem:[%s1573 + $0x122] sm:$0xff]
        %v1987 = vld [vmem:[%s1573 + $0x12a] sm:$0xff]
        %v1988 = vld [vmem:[%s1573 + $0x13a] sm:$0xff]
        %v1989 = vld [vmem:[%s1573 + $0x142] sm:$0xff]
        %v1990 = vld [vmem:[%s1573 + $0x152] sm:$0xff]
        %v1991 = vld [vmem:[%s1573 + $0x15a] sm:$0xff]
        %v1992 = vld [vmem:[%s1573 + $0x16a] sm:$0xff]
        %v1993 = vld [vmem:[%s1573 + $0x172] sm:$0xff]
        %s1994 = scalar_lea.vmem %s1, 1024
        %v1995 = vld [vmem:[%s1994] sm:$0xff]
        %v1996 = vld [vmem:[%s1994 + $0x8] sm:$0xff]
        %v1997 = vld [vmem:[%s1994 + $0x10] sm:$0xff]
        %v1998 = vld [vmem:[%s1994 + $0x18] sm:$0xff]
        %v1999 = vld [vmem:[%s1994 + $0x20] sm:$0xff]
        %v2000 = vld [vmem:[%s1994 + $0x28] sm:$0xff]
        %v2001 = vld [vmem:[%s1994 + $0x30] sm:$0xff]
        %v2002 = vld [vmem:[%s1994 + $0x38] sm:$0xff]
        %v2003 = vld [vmem:[%s1994 + $0x40] sm:$0xff]
        %v2004 = vld [vmem:[%s1994 + $0x48] sm:$0xff]
        %v2005 = vld [vmem:[%s1994 + $0x50] sm:$0xff]
        %v2006 = vld [vmem:[%s1994 + $0x58] sm:$0xff]
        %v2007 = vld [vmem:[%s1994 + $0x60] sm:$0xff]
        %v2008 = vld [vmem:[%s1994 + $0x68] sm:$0xff]
        %v2009 = vld [vmem:[%s1994 + $0x70] sm:$0xff]
        %v2010 = vld [vmem:[%s1994 + $0x78] sm:$0xff]
        %2011 = vmatpush.msra.mxu0 %v2010
        %2012 = vmatpush.msra.mxu0 %v2009
        %2013 = vmatpush.msra.mxu0 %v2008
        %2014 = vmatpush.msra.mxu0 %v2007
        %2015 = vmatpush.msra.mxu0 %v2006
        %2016 = vmatpush.msra.mxu0 %v2005
        %2017 = vmatpush.msra.mxu0 %v2004
        %2018 = vmatpush.msra.mxu0 %v2003
        %2019 = vmatpush.msra.mxu0 %v2002
        %2020 = vmatpush.msra.mxu0 %v2001
        %2021 = vmatpush.msra.mxu0 %v2000
        %2022 = vmatpush.msra.mxu0 %v1999
        %2023 = vmatpush.msra.mxu0 %v1998
        %2024 = vmatpush.msra.mxu0 %v1997
        %2025 = vmatpush.msra.mxu0 %v1996
        %2026 = vmatpush.msra.mxu0 %v1995
        %2027 = vmatmul.f32.gmra.mxu0 %v1962
        %v2028 = vpop.f32.mrf.mxu0
        %v2029 = vadd.f32 0.0, %v2028
        %2030 = vmatmul.f32.gmra.mxu0 %v1963
        %v2031 = vpop.f32.mrf.mxu0
        %v2032 = vadd.f32 0.0, %v2031
        %2033 = vmatmul.f32.gmra.mxu0 %v1964
        %v2034 = vpop.f32.mrf.mxu0
        %v2035 = vadd.f32 0.0, %v2034
        %2036 = vmatmul.f32.gmra.mxu0 %v1965
        %v2037 = vpop.f32.mrf.mxu0
        %v2038 = vadd.f32 0.0, %v2037
        %2039 = vmatmul.f32.gmra.mxu0 %v1966
        %v2040 = vpop.f32.mrf.mxu0
        %v2041 = vadd.f32 0.0, %v2040
        %2042 = vmatmul.f32.gmra.mxu0 %v1967
        %v2043 = vpop.f32.mrf.mxu0
        %v2044 = vadd.f32 0.0, %v2043
        %2045 = vmatmul.f32.gmra.mxu0 %v1968
        %v2046 = vpop.f32.mrf.mxu0
        %v2047 = vadd.f32 0.0, %v2046
        %2048 = vmatmul.f32.gmra.mxu0 %v1969
        %v2049 = vpop.f32.mrf.mxu0
        %v2050 = vadd.f32 0.0, %v2049
        %2051 = vmatmul.f32.gmra.mxu0 %v1970
        %v2052 = vpop.f32.mrf.mxu0
        %v2053 = vadd.f32 0.0, %v2052
        %2054 = vmatmul.f32.gmra.mxu0 %v1971
        %v2055 = vpop.f32.mrf.mxu0
        %v2056 = vadd.f32 0.0, %v2055
        %2057 = vmatmul.f32.gmra.mxu0 %v1972
        %v2058 = vpop.f32.mrf.mxu0
        %v2059 = vadd.f32 0.0, %v2058
        %2060 = vmatmul.f32.gmra.mxu0 %v1973
        %v2061 = vpop.f32.mrf.mxu0
        %v2062 = vadd.f32 0.0, %v2061
        %2063 = vmatmul.f32.gmra.mxu0 %v1974
        %v2064 = vpop.f32.mrf.mxu0
        %v2065 = vadd.f32 0.0, %v2064
        %2066 = vmatmul.f32.gmra.mxu0 %v1975
        %v2067 = vpop.f32.mrf.mxu0
        %v2068 = vadd.f32 0.0, %v2067
        %2069 = vmatmul.f32.gmra.mxu0 %v1976
        %v2070 = vpop.f32.mrf.mxu0
        %v2071 = vadd.f32 0.0, %v2070
        %2072 = vmatmul.f32.gmra.mxu0 %v1977
        %v2073 = vpop.f32.mrf.mxu0
        %v2074 = vadd.f32 0.0, %v2073
        %2075 = vmatmul.f32.gmra.mxu0 %v1978
        %v2076 = vpop.f32.mrf.mxu0
        %v2077 = vadd.f32 0.0, %v2076
        %2078 = vmatmul.f32.gmra.mxu0 %v1979
        %v2079 = vpop.f32.mrf.mxu0
        %v2080 = vadd.f32 0.0, %v2079
        %2081 = vmatmul.f32.gmra.mxu0 %v1980
        %v2082 = vpop.f32.mrf.mxu0
        %v2083 = vadd.f32 0.0, %v2082
        %2084 = vmatmul.f32.gmra.mxu0 %v1981
        %v2085 = vpop.f32.mrf.mxu0
        %v2086 = vadd.f32 0.0, %v2085
        %2087 = vmatmul.f32.gmra.mxu0 %v1982
        %v2088 = vpop.f32.mrf.mxu0
        %v2089 = vadd.f32 0.0, %v2088
        %2090 = vmatmul.f32.gmra.mxu0 %v1983
        %v2091 = vpop.f32.mrf.mxu0
        %v2092 = vadd.f32 0.0, %v2091
        %2093 = vmatmul.f32.gmra.mxu0 %v1984
        %v2094 = vpop.f32.mrf.mxu0
        %v2095 = vadd.f32 0.0, %v2094
        %2096 = vmatmul.f32.gmra.mxu0 %v1985
        %v2097 = vpop.f32.mrf.mxu0
        %v2098 = vadd.f32 0.0, %v2097
        %2099 = vmatmul.f32.gmra.mxu0 %v1986
        %v2100 = vpop.f32.mrf.mxu0
        %v2101 = vadd.f32 0.0, %v2100
        %2102 = vmatmul.f32.gmra.mxu0 %v1987
        %v2103 = vpop.f32.mrf.mxu0
        %v2104 = vadd.f32 0.0, %v2103
        %2105 = vmatmul.f32.gmra.mxu0 %v1988
        %v2106 = vpop.f32.mrf.mxu0
        %v2107 = vadd.f32 0.0, %v2106
        %2108 = vmatmul.f32.gmra.mxu0 %v1989
        %v2109 = vpop.f32.mrf.mxu0
        %v2110 = vadd.f32 0.0, %v2109
        %2111 = vmatmul.f32.gmra.mxu0 %v1990
        %v2112 = vpop.f32.mrf.mxu0
        %v2113 = vadd.f32 0.0, %v2112
        %2114 = vmatmul.f32.gmra.mxu0 %v1991
        %v2115 = vpop.f32.mrf.mxu0
        %v2116 = vadd.f32 0.0, %v2115
        %2117 = vmatmul.f32.gmra.mxu0 %v1992
        %v2118 = vpop.f32.mrf.mxu0
        %v2119 = vadd.f32 0.0, %v2118
        %2120 = vmatmul.f32.gmra.mxu0 %v1993
        %v2121 = vpop.f32.mrf.mxu0
        %v2122 = vadd.f32 0.0, %v2121
        %2123 = vdwg.mxu0
        %v2124 = vadd.f32 %v1930, %v2029
        %v2125 = vadd.f32 %v1931, %v2032
        %v2126 = vadd.f32 %v1932, %v2035
        %v2127 = vadd.f32 %v1933, %v2038
        %v2128 = vadd.f32 %v1934, %v2041
        %v2129 = vadd.f32 %v1935, %v2044
        %v2130 = vadd.f32 %v1936, %v2047
        %v2131 = vadd.f32 %v1937, %v2050
        %v2132 = vadd.f32 %v1938, %v2053
        %v2133 = vadd.f32 %v1939, %v2056
        %v2134 = vadd.f32 %v1940, %v2059
        %v2135 = vadd.f32 %v1941, %v2062
        %v2136 = vadd.f32 %v1942, %v2065
        %v2137 = vadd.f32 %v1943, %v2068
        %v2138 = vadd.f32 %v1944, %v2071
        %v2139 = vadd.f32 %v1945, %v2074
        %v2140 = vadd.f32 %v1946, %v2077
        %v2141 = vadd.f32 %v1947, %v2080
        %v2142 = vadd.f32 %v1948, %v2083
        %v2143 = vadd.f32 %v1949, %v2086
        %v2144 = vadd.f32 %v1950, %v2089
        %v2145 = vadd.f32 %v1951, %v2092
        %v2146 = vadd.f32 %v1952, %v2095
        %v2147 = vadd.f32 %v1953, %v2098
        %v2148 = vadd.f32 %v1954, %v2101
        %v2149 = vadd.f32 %v1955, %v2104
        %v2150 = vadd.f32 %v1956, %v2107
        %v2151 = vadd.f32 %v1957, %v2110
        %v2152 = vadd.f32 %v1958, %v2113
        %v2153 = vadd.f32 %v1959, %v2116
        %v2154 = vadd.f32 %v1960, %v2119
        %v2155 = vadd.f32 %v1961, %v2122
        %v2157 = vperm.slane %v472, 0
        %v2159 = vadd.f32 %v2124, %v2157
        %v2160 = vadd.f32 %v2125, %v2157
        %v2161 = vadd.f32 %v2126, %v2157
        %v2162 = vadd.f32 %v2127, %v2157
        %v2163 = vadd.f32 %v2128, %v2157
        %v2164 = vadd.f32 %v2129, %v2157
        %v2165 = vadd.f32 %v2130, %v2157
        %v2166 = vadd.f32 %v2131, %v2157
        %v2167 = vadd.f32 %v2132, %v2157
        %v2168 = vadd.f32 %v2133, %v2157
        %v2169 = vadd.f32 %v2134, %v2157
        %v2170 = vadd.f32 %v2135, %v2157
        %v2171 = vadd.f32 %v2136, %v2157
        %v2172 = vadd.f32 %v2137, %v2157
        %v2173 = vadd.f32 %v2138, %v2157
        %v2174 = vadd.f32 %v2139, %v2157
        %v2175 = vadd.f32 %v2140, %v2157
        %v2176 = vadd.f32 %v2141, %v2157
        %v2177 = vadd.f32 %v2142, %v2157
        %v2178 = vadd.f32 %v2143, %v2157
        %v2179 = vadd.f32 %v2144, %v2157
        %v2180 = vadd.f32 %v2145, %v2157
        %v2181 = vadd.f32 %v2146, %v2157
        %v2182 = vadd.f32 %v2147, %v2157
        %v2183 = vadd.f32 %v2148, %v2157
        %v2184 = vadd.f32 %v2149, %v2157
        %v2185 = vadd.f32 %v2150, %v2157
        %v2186 = vadd.f32 %v2151, %v2157
        %v2187 = vadd.f32 %v2152, %v2157
        %v2188 = vadd.f32 %v2153, %v2157
        %v2189 = vadd.f32 %v2154, %v2157
        %v2190 = vadd.f32 %v2155, %v2157
        %v2191 = vmax.f32 %v2159, 0.0
        %v2192 = vmax.f32 %v2160, 0.0
        %v2193 = vmax.f32 %v2161, 0.0
        %v2194 = vmax.f32 %v2162, 0.0
        %v2195 = vmax.f32 %v2163, 0.0
        %v2196 = vmax.f32 %v2164, 0.0
        %v2197 = vmax.f32 %v2165, 0.0
        %v2198 = vmax.f32 %v2166, 0.0
        %v2199 = vmax.f32 %v2167, 0.0
        %v2200 = vmax.f32 %v2168, 0.0
        %v2201 = vmax.f32 %v2169, 0.0
        %v2202 = vmax.f32 %v2170, 0.0
        %v2203 = vmax.f32 %v2171, 0.0
        %v2204 = vmax.f32 %v2172, 0.0
        %v2205 = vmax.f32 %v2173, 0.0
        %v2206 = vmax.f32 %v2174, 0.0
        %v2207 = vmax.f32 %v2175, 0.0
        %v2208 = vmax.f32 %v2176, 0.0
        %v2209 = vmax.f32 %v2177, 0.0
        %v2210 = vmax.f32 %v2178, 0.0
        %v2211 = vmax.f32 %v2179, 0.0
        %v2212 = vmax.f32 %v2180, 0.0
        %v2213 = vmax.f32 %v2181, 0.0
        %v2214 = vmax.f32 %v2182, 0.0
        %v2215 = vmax.f32 %v2183, 0.0
        %v2216 = vmax.f32 %v2184, 0.0
        %v2217 = vmax.f32 %v2185, 0.0
        %v2218 = vmax.f32 %v2186, 0.0
        %v2219 = vmax.f32 %v2187, 0.0
        %v2220 = vmax.f32 %v2188, 0.0
        %v2221 = vmax.f32 %v2189, 0.0
        %v2222 = vmax.f32 %v2190, 0.0
        %s2223 = scalar_lea.vmem [#allocation2], 24
        %2224 = vst [vmem:[%s2223 + $0x1] sm:$0xff] %v2191
        %2225 = vst [vmem:[%s2223 + $0x9] sm:$0xff] %v2192
        %2226 = vst [vmem:[%s2223 + $0x19] sm:$0xff] %v2193
        %2227 = vst [vmem:[%s2223 + $0x21] sm:$0xff] %v2194
        %2228 = vst [vmem:[%s2223 + $0x31] sm:$0xff] %v2195
        %2229 = vst [vmem:[%s2223 + $0x39] sm:$0xff] %v2196
        %2230 = vst [vmem:[%s2223 + $0x49] sm:$0xff] %v2197
        %2231 = vst [vmem:[%s2223 + $0x51] sm:$0xff] %v2198
        %2232 = vst [vmem:[%s2223 + $0x61] sm:$0xff] %v2199
        %2233 = vst [vmem:[%s2223 + $0x69] sm:$0xff] %v2200
        %2234 = vst [vmem:[%s2223 + $0x79] sm:$0xff] %v2201
        %2235 = vst [vmem:[%s2223 + $0x81] sm:$0xff] %v2202
        %2236 = vst [vmem:[%s2223 + $0x91] sm:$0xff] %v2203
        %2237 = vst [vmem:[%s2223 + $0x99] sm:$0xff] %v2204
        %2238 = vst [vmem:[%s2223 + $0xa9] sm:$0xff] %v2205
        %2239 = vst [vmem:[%s2223 + $0xb1] sm:$0xff] %v2206
        %2240 = vst [vmem:[%s2223 + $0xc1] sm:$0xff] %v2207
        %2241 = vst [vmem:[%s2223 + $0xc9] sm:$0xff] %v2208
        %2242 = vst [vmem:[%s2223 + $0xd9] sm:$0xff] %v2209
        %2243 = vst [vmem:[%s2223 + $0xe1] sm:$0xff] %v2210
        %2244 = vst [vmem:[%s2223 + $0xf1] sm:$0xff] %v2211
        %2245 = vst [vmem:[%s2223 + $0xf9] sm:$0xff] %v2212
        %2246 = vst [vmem:[%s2223 + $0x109] sm:$0xff] %v2213
        %2247 = vst [vmem:[%s2223 + $0x111] sm:$0xff] %v2214
        %2248 = vst [vmem:[%s2223 + $0x121] sm:$0xff] %v2215
        %2249 = vst [vmem:[%s2223 + $0x129] sm:$0xff] %v2216
        %2250 = vst [vmem:[%s2223 + $0x139] sm:$0xff] %v2217
        %2251 = vst [vmem:[%s2223 + $0x141] sm:$0xff] %v2218
        %2252 = vst [vmem:[%s2223 + $0x151] sm:$0xff] %v2219
        %2253 = vst [vmem:[%s2223 + $0x159] sm:$0xff] %v2220
        %2254 = vst [vmem:[%s2223 + $0x169] sm:$0xff] %v2221
        %2255 = vst [vmem:[%s2223 + $0x171] sm:$0xff] %v2222
        %v2256 = vld [vmem:[%s5] sm:$0x1]
        %v2257 = vld [vmem:[#allocation2] sm:$0xff]
        %v2258 = vld [vmem:[#allocation2 + $0x8] sm:$0xff]
        %v2259 = vld [vmem:[#allocation2 + $0x18] sm:$0xff]
        %v2260 = vld [vmem:[#allocation2 + $0x20] sm:$0xff]
        %v2261 = vld [vmem:[#allocation2 + $0x30] sm:$0xff]
        %v2262 = vld [vmem:[#allocation2 + $0x38] sm:$0xff]
        %v2263 = vld [vmem:[#allocation2 + $0x48] sm:$0xff]
        %v2264 = vld [vmem:[#allocation2 + $0x50] sm:$0xff]
        %v2265 = vld [vmem:[#allocation2 + $0x60] sm:$0xff]
        %v2266 = vld [vmem:[#allocation2 + $0x68] sm:$0xff]
        %v2267 = vld [vmem:[#allocation2 + $0x78] sm:$0xff]
        %v2268 = vld [vmem:[#allocation2 + $0x80] sm:$0xff]
        %v2269 = vld [vmem:[#allocation2 + $0x90] sm:$0xff]
        %v2270 = vld [vmem:[#allocation2 + $0x98] sm:$0xff]
        %v2271 = vld [vmem:[#allocation2 + $0xa8] sm:$0xff]
        %v2272 = vld [vmem:[#allocation2 + $0xb0] sm:$0xff]
        %v2273 = vld [vmem:[#allocation2 + $0xc0] sm:$0xff]
        %v2274 = vld [vmem:[#allocation2 + $0xc8] sm:$0xff]
        %v2275 = vld [vmem:[#allocation2 + $0xd8] sm:$0xff]
        %v2276 = vld [vmem:[#allocation2 + $0xe0] sm:$0xff]
        %v2277 = vld [vmem:[#allocation2 + $0xf0] sm:$0xff]
        %v2278 = vld [vmem:[#allocation2 + $0xf8] sm:$0xff]
        %v2279 = vld [vmem:[#allocation2 + $0x108] sm:$0xff]
        %v2280 = vld [vmem:[#allocation2 + $0x110] sm:$0xff]
        %v2281 = vld [vmem:[#allocation2 + $0x120] sm:$0xff]
        %v2282 = vld [vmem:[#allocation2 + $0x128] sm:$0xff]
        %v2283 = vld [vmem:[#allocation2 + $0x138] sm:$0xff]
        %v2284 = vld [vmem:[#allocation2 + $0x140] sm:$0xff]
        %v2285 = vld [vmem:[#allocation2 + $0x150] sm:$0xff]
        %v2286 = vld [vmem:[#allocation2 + $0x158] sm:$0xff]
        %v2287 = vld [vmem:[#allocation2 + $0x168] sm:$0xff]
        %v2288 = vld [vmem:[#allocation2 + $0x170] sm:$0xff]
        %v2289 = vld [vmem:[#allocation4] sm:$0xff]
        %v2290 = vld [vmem:[#allocation4 + $0x8] sm:$0xff]
        %v2291 = vld [vmem:[#allocation4 + $0x10] sm:$0xff]
        %v2292 = vld [vmem:[#allocation4 + $0x18] sm:$0xff]
        %v2293 = vld [vmem:[#allocation4 + $0x20] sm:$0xff]
        %v2294 = vld [vmem:[#allocation4 + $0x28] sm:$0xff]
        %v2295 = vld [vmem:[#allocation4 + $0x30] sm:$0xff]
        %v2296 = vld [vmem:[#allocation4 + $0x38] sm:$0xff]
        %v2297 = vld [vmem:[#allocation4 + $0x40] sm:$0xff]
        %v2298 = vld [vmem:[#allocation4 + $0x48] sm:$0xff]
        %v2299 = vld [vmem:[#allocation4 + $0x50] sm:$0xff]
        %v2300 = vld [vmem:[#allocation4 + $0x58] sm:$0xff]
        %v2301 = vld [vmem:[#allocation4 + $0x60] sm:$0xff]
        %v2302 = vld [vmem:[#allocation4 + $0x68] sm:$0xff]
        %v2303 = vld [vmem:[#allocation4 + $0x70] sm:$0xff]
        %v2304 = vld [vmem:[#allocation4 + $0x78] sm:$0xff]
        %v2305 = vld [vmem:[#allocation2 + $0x1] sm:$0xff]
        %v2306 = vld [vmem:[#allocation2 + $0x9] sm:$0xff]
        %v2307 = vld [vmem:[#allocation2 + $0x19] sm:$0xff]
        %v2308 = vld [vmem:[#allocation2 + $0x21] sm:$0xff]
        %v2309 = vld [vmem:[#allocation2 + $0x31] sm:$0xff]
        %v2310 = vld [vmem:[#allocation2 + $0x39] sm:$0xff]
        %v2311 = vld [vmem:[#allocation2 + $0x49] sm:$0xff]
        %v2312 = vld [vmem:[#allocation2 + $0x51] sm:$0xff]
        %v2313 = vld [vmem:[#allocation2 + $0x61] sm:$0xff]
        %v2314 = vld [vmem:[#allocation2 + $0x69] sm:$0xff]
        %v2315 = vld [vmem:[#allocation2 + $0x79] sm:$0xff]
        %v2316 = vld [vmem:[#allocation2 + $0x81] sm:$0xff]
        %v2317 = vld [vmem:[#allocation2 + $0x91] sm:$0xff]
        %v2318 = vld [vmem:[#allocation2 + $0x99] sm:$0xff]
        %v2319 = vld [vmem:[#allocation2 + $0xa9] sm:$0xff]
        %v2320 = vld [vmem:[#allocation2 + $0xb1] sm:$0xff]
        %v2321 = vld [vmem:[#allocation2 + $0xc1] sm:$0xff]
        %v2322 = vld [vmem:[#allocation2 + $0xc9] sm:$0xff]
        %v2323 = vld [vmem:[#allocation2 + $0xd9] sm:$0xff]
        %v2324 = vld [vmem:[#allocation2 + $0xe1] sm:$0xff]
        %v2325 = vld [vmem:[#allocation2 + $0xf1] sm:$0xff]
        %v2326 = vld [vmem:[#allocation2 + $0xf9] sm:$0xff]
        %v2327 = vld [vmem:[#allocation2 + $0x109] sm:$0xff]
        %v2328 = vld [vmem:[#allocation2 + $0x111] sm:$0xff]
        %v2329 = vld [vmem:[#allocation2 + $0x121] sm:$0xff]
        %v2330 = vld [vmem:[#allocation2 + $0x129] sm:$0xff]
        %v2331 = vld [vmem:[#allocation2 + $0x139] sm:$0xff]
        %v2332 = vld [vmem:[#allocation2 + $0x141] sm:$0xff]
        %v2333 = vld [vmem:[#allocation2 + $0x151] sm:$0xff]
        %v2334 = vld [vmem:[#allocation2 + $0x159] sm:$0xff]
        %v2335 = vld [vmem:[#allocation2 + $0x169] sm:$0xff]
        %v2336 = vld [vmem:[#allocation2 + $0x171] sm:$0xff]
        %s2337 = scalar_lea.vmem [#allocation4], 128
        %v2338 = vld [vmem:[%s2337] sm:$0xff]
        %v2339 = vld [vmem:[%s2337 + $0x8] sm:$0xff]
        %v2340 = vld [vmem:[%s2337 + $0x10] sm:$0xff]
        %v2341 = vld [vmem:[%s2337 + $0x18] sm:$0xff]
        %v2342 = vld [vmem:[%s2337 + $0x20] sm:$0xff]
        %v2343 = vld [vmem:[%s2337 + $0x28] sm:$0xff]
        %v2344 = vld [vmem:[%s2337 + $0x30] sm:$0xff]
        %v2345 = vld [vmem:[%s2337 + $0x38] sm:$0xff]
        %v2346 = vld [vmem:[%s2337 + $0x40] sm:$0xff]
        %v2347 = vld [vmem:[%s2337 + $0x48] sm:$0xff]
        %v2348 = vld [vmem:[%s2337 + $0x50] sm:$0xff]
        %v2349 = vld [vmem:[%s2337 + $0x58] sm:$0xff]
        %v2350 = vld [vmem:[%s2337 + $0x60] sm:$0xff]
        %v2351 = vld [vmem:[%s2337 + $0x68] sm:$0xff]
        %v2352 = vld [vmem:[%s2337 + $0x70] sm:$0xff]
        %v2353 = vld [vmem:[%s2337 + $0x78] sm:$0xff]
        %2354 = vmatpush.msra.mxu0 %v2353
        %2355 = vmatpush.msra.mxu0 %v2352
        %2356 = vmatpush.msra.mxu0 %v2351
        %2357 = vmatpush.msra.mxu0 %v2350
        %2358 = vmatpush.msra.mxu0 %v2349
        %2359 = vmatpush.msra.mxu0 %v2348
        %2360 = vmatpush.msra.mxu0 %v2347
        %2361 = vmatpush.msra.mxu0 %v2346
        %2362 = vmatpush.msra.mxu0 %v2345
        %2363 = vmatpush.msra.mxu0 %v2344
        %2364 = vmatpush.msra.mxu0 %v2343
        %2365 = vmatpush.msra.mxu0 %v2342
        %2366 = vmatpush.msra.mxu0 %v2341
        %2367 = vmatpush.msra.mxu0 %v2340
        %2368 = vmatpush.msra.mxu0 %v2339
        %2369 = vmatpush.msra.mxu0 %v2338
        %2370 = vmatmul.f32.gmra.mxu0 %v2305
        %v2371 = vpop.f32.mrf.mxu0
        %v2372 = vadd.f32 0.0, %v2371
        %2373 = vmatmul.f32.gmra.mxu0 %v2306
        %v2374 = vpop.f32.mrf.mxu0
        %v2375 = vadd.f32 0.0, %v2374
        %2376 = vmatmul.f32.gmra.mxu0 %v2307
        %v2377 = vpop.f32.mrf.mxu0
        %v2378 = vadd.f32 0.0, %v2377
        %2379 = vmatmul.f32.gmra.mxu0 %v2308
        %v2380 = vpop.f32.mrf.mxu0
        %v2381 = vadd.f32 0.0, %v2380
        %2382 = vmatmul.f32.gmra.mxu0 %v2309
        %v2383 = vpop.f32.mrf.mxu0
        %v2384 = vadd.f32 0.0, %v2383
        %2385 = vmatmul.f32.gmra.mxu0 %v2310
        %v2386 = vpop.f32.mrf.mxu0
        %v2387 = vadd.f32 0.0, %v2386
        %2388 = vmatmul.f32.gmra.mxu0 %v2311
        %v2389 = vpop.f32.mrf.mxu0
        %v2390 = vadd.f32 0.0, %v2389
        %2391 = vmatmul.f32.gmra.mxu0 %v2312
        %v2392 = vpop.f32.mrf.mxu0
        %v2393 = vadd.f32 0.0, %v2392
        %2394 = vmatmul.f32.gmra.mxu0 %v2313
        %v2395 = vpop.f32.mrf.mxu0
        %v2396 = vadd.f32 0.0, %v2395
        %2397 = vmatmul.f32.gmra.mxu0 %v2314
        %v2398 = vpop.f32.mrf.mxu0
        %v2399 = vadd.f32 0.0, %v2398
        %2400 = vmatmul.f32.gmra.mxu0 %v2315
        %v2401 = vpop.f32.mrf.mxu0
        %v2402 = vadd.f32 0.0, %v2401
        %2403 = vmatmul.f32.gmra.mxu0 %v2316
        %v2404 = vpop.f32.mrf.mxu0
        %v2405 = vadd.f32 0.0, %v2404
        %2406 = vmatmul.f32.gmra.mxu0 %v2317
        %v2407 = vpop.f32.mrf.mxu0
        %v2408 = vadd.f32 0.0, %v2407
        %2409 = vmatmul.f32.gmra.mxu0 %v2318
        %v2410 = vpop.f32.mrf.mxu0
        %v2411 = vadd.f32 0.0, %v2410
        %2412 = vmatmul.f32.gmra.mxu0 %v2319
        %v2413 = vpop.f32.mrf.mxu0
        %v2414 = vadd.f32 0.0, %v2413
        %2415 = vmatmul.f32.gmra.mxu0 %v2320
        %v2416 = vpop.f32.mrf.mxu0
        %v2417 = vadd.f32 0.0, %v2416
        %2418 = vmatmul.f32.gmra.mxu0 %v2321
        %v2419 = vpop.f32.mrf.mxu0
        %v2420 = vadd.f32 0.0, %v2419
        %2421 = vmatmul.f32.gmra.mxu0 %v2322
        %v2422 = vpop.f32.mrf.mxu0
        %v2423 = vadd.f32 0.0, %v2422
        %2424 = vmatmul.f32.gmra.mxu0 %v2323
        %v2425 = vpop.f32.mrf.mxu0
        %v2426 = vadd.f32 0.0, %v2425
        %2427 = vmatmul.f32.gmra.mxu0 %v2324
        %v2428 = vpop.f32.mrf.mxu0
        %v2429 = vadd.f32 0.0, %v2428
        %2430 = vmatmul.f32.gmra.mxu0 %v2325
        %v2431 = vpop.f32.mrf.mxu0
        %v2432 = vadd.f32 0.0, %v2431
        %2433 = vmatmul.f32.gmra.mxu0 %v2326
        %v2434 = vpop.f32.mrf.mxu0
        %v2435 = vadd.f32 0.0, %v2434
        %2436 = vmatmul.f32.gmra.mxu0 %v2327
        %v2437 = vpop.f32.mrf.mxu0
        %v2438 = vadd.f32 0.0, %v2437
        %2439 = vmatmul.f32.gmra.mxu0 %v2328
        %v2440 = vpop.f32.mrf.mxu0
        %v2441 = vadd.f32 0.0, %v2440
        %2442 = vmatmul.f32.gmra.mxu0 %v2329
        %v2443 = vpop.f32.mrf.mxu0
        %v2444 = vadd.f32 0.0, %v2443
        %2445 = vmatmul.f32.gmra.mxu0 %v2330
        %v2446 = vpop.f32.mrf.mxu0
        %v2447 = vadd.f32 0.0, %v2446
        %2448 = vmatmul.f32.gmra.mxu0 %v2331
        %v2449 = vpop.f32.mrf.mxu0
        %v2450 = vadd.f32 0.0, %v2449
        %2451 = vmatmul.f32.gmra.mxu0 %v2332
        %v2452 = vpop.f32.mrf.mxu0
        %v2453 = vadd.f32 0.0, %v2452
        %2454 = vmatmul.f32.gmra.mxu0 %v2333
        %v2455 = vpop.f32.mrf.mxu0
        %v2456 = vadd.f32 0.0, %v2455
        %2457 = vmatmul.f32.gmra.mxu0 %v2334
        %v2458 = vpop.f32.mrf.mxu0
        %v2459 = vadd.f32 0.0, %v2458
        %2460 = vmatmul.f32.gmra.mxu0 %v2335
        %v2461 = vpop.f32.mrf.mxu0
        %v2462 = vadd.f32 0.0, %v2461
        %2463 = vmatmul.f32.gmra.mxu0 %v2336
        %v2464 = vpop.f32.mrf.mxu0
        %v2465 = vadd.f32 0.0, %v2464
        %2466 = vdwg.mxu0
        %2467 = vmatpush.msra.mxu0 %v2304
        %2468 = vmatpush.msra.mxu0 %v2303
        %2469 = vmatpush.msra.mxu0 %v2302
        %2470 = vmatpush.msra.mxu0 %v2301
        %2471 = vmatpush.msra.mxu0 %v2300
        %2472 = vmatpush.msra.mxu0 %v2299
        %2473 = vmatpush.msra.mxu0 %v2298
        %2474 = vmatpush.msra.mxu0 %v2297
        %2475 = vmatpush.msra.mxu0 %v2296
        %2476 = vmatpush.msra.mxu0 %v2295
        %2477 = vmatpush.msra.mxu0 %v2294
        %2478 = vmatpush.msra.mxu0 %v2293
        %2479 = vmatpush.msra.mxu0 %v2292
        %2480 = vmatpush.msra.mxu0 %v2291
        %2481 = vmatpush.msra.mxu0 %v2290
        %2482 = vmatpush.msra.mxu0 %v2289
        %2483 = vmatmul.f32.gmra.mxu0 %v2257
        %v2484 = vpop.f32.mrf.mxu0
        %v2485 = vadd.f32 %v2372, %v2484
        %2486 = vmatmul.f32.gmra.mxu0 %v2258
        %v2487 = vpop.f32.mrf.mxu0
        %v2488 = vadd.f32 %v2375, %v2487
        %2489 = vmatmul.f32.gmra.mxu0 %v2259
        %v2490 = vpop.f32.mrf.mxu0
        %v2491 = vadd.f32 %v2378, %v2490
        %2492 = vmatmul.f32.gmra.mxu0 %v2260
        %v2493 = vpop.f32.mrf.mxu0
        %v2494 = vadd.f32 %v2381, %v2493
        %2495 = vmatmul.f32.gmra.mxu0 %v2261
        %v2496 = vpop.f32.mrf.mxu0
        %v2497 = vadd.f32 %v2384, %v2496
        %2498 = vmatmul.f32.gmra.mxu0 %v2262
        %v2499 = vpop.f32.mrf.mxu0
        %v2500 = vadd.f32 %v2387, %v2499
        %2501 = vmatmul.f32.gmra.mxu0 %v2263
        %v2502 = vpop.f32.mrf.mxu0
        %v2503 = vadd.f32 %v2390, %v2502
        %2504 = vmatmul.f32.gmra.mxu0 %v2264
        %v2505 = vpop.f32.mrf.mxu0
        %v2506 = vadd.f32 %v2393, %v2505
        %2507 = vmatmul.f32.gmra.mxu0 %v2265
        %v2508 = vpop.f32.mrf.mxu0
        %v2509 = vadd.f32 %v2396, %v2508
        %2510 = vmatmul.f32.gmra.mxu0 %v2266
        %v2511 = vpop.f32.mrf.mxu0
        %v2512 = vadd.f32 %v2399, %v2511
        %2513 = vmatmul.f32.gmra.mxu0 %v2267
        %v2514 = vpop.f32.mrf.mxu0
        %v2515 = vadd.f32 %v2402, %v2514
        %2516 = vmatmul.f32.gmra.mxu0 %v2268
        %v2517 = vpop.f32.mrf.mxu0
        %v2518 = vadd.f32 %v2405, %v2517
        %2519 = vmatmul.f32.gmra.mxu0 %v2269
        %v2520 = vpop.f32.mrf.mxu0
        %v2521 = vadd.f32 %v2408, %v2520
        %2522 = vmatmul.f32.gmra.mxu0 %v2270
        %v2523 = vpop.f32.mrf.mxu0
        %v2524 = vadd.f32 %v2411, %v2523
        %2525 = vmatmul.f32.gmra.mxu0 %v2271
        %v2526 = vpop.f32.mrf.mxu0
        %v2527 = vadd.f32 %v2414, %v2526
        %2528 = vmatmul.f32.gmra.mxu0 %v2272
        %v2529 = vpop.f32.mrf.mxu0
        %v2530 = vadd.f32 %v2417, %v2529
        %2531 = vmatmul.f32.gmra.mxu0 %v2273
        %v2532 = vpop.f32.mrf.mxu0
        %v2533 = vadd.f32 %v2420, %v2532
        %2534 = vmatmul.f32.gmra.mxu0 %v2274
        %v2535 = vpop.f32.mrf.mxu0
        %v2536 = vadd.f32 %v2423, %v2535
        %2537 = vmatmul.f32.gmra.mxu0 %v2275
        %v2538 = vpop.f32.mrf.mxu0
        %v2539 = vadd.f32 %v2426, %v2538
        %2540 = vmatmul.f32.gmra.mxu0 %v2276
        %v2541 = vpop.f32.mrf.mxu0
        %v2542 = vadd.f32 %v2429, %v2541
        %2543 = vmatmul.f32.gmra.mxu0 %v2277
        %v2544 = vpop.f32.mrf.mxu0
        %v2545 = vadd.f32 %v2432, %v2544
        %2546 = vmatmul.f32.gmra.mxu0 %v2278
        %v2547 = vpop.f32.mrf.mxu0
        %v2548 = vadd.f32 %v2435, %v2547
        %2549 = vmatmul.f32.gmra.mxu0 %v2279
        %v2550 = vpop.f32.mrf.mxu0
        %v2551 = vadd.f32 %v2438, %v2550
        %2552 = vmatmul.f32.gmra.mxu0 %v2280
        %v2553 = vpop.f32.mrf.mxu0
        %v2554 = vadd.f32 %v2441, %v2553
        %2555 = vmatmul.f32.gmra.mxu0 %v2281
        %v2556 = vpop.f32.mrf.mxu0
        %v2557 = vadd.f32 %v2444, %v2556
        %2558 = vmatmul.f32.gmra.mxu0 %v2282
        %v2559 = vpop.f32.mrf.mxu0
        %v2560 = vadd.f32 %v2447, %v2559
        %2561 = vmatmul.f32.gmra.mxu0 %v2283
        %v2562 = vpop.f32.mrf.mxu0
        %v2563 = vadd.f32 %v2450, %v2562
        %2564 = vmatmul.f32.gmra.mxu0 %v2284
        %v2565 = vpop.f32.mrf.mxu0
        %v2566 = vadd.f32 %v2453, %v2565
        %2567 = vmatmul.f32.gmra.mxu0 %v2285
        %v2568 = vpop.f32.mrf.mxu0
        %v2569 = vadd.f32 %v2456, %v2568
        %2570 = vmatmul.f32.gmra.mxu0 %v2286
        %v2571 = vpop.f32.mrf.mxu0
        %v2572 = vadd.f32 %v2459, %v2571
        %2573 = vmatmul.f32.gmra.mxu0 %v2287
        %v2574 = vpop.f32.mrf.mxu0
        %v2575 = vadd.f32 %v2462, %v2574
        %2576 = vmatmul.f32.gmra.mxu0 %v2288
        %v2577 = vpop.f32.mrf.mxu0
        %v2578 = vadd.f32 %v2465, %v2577
        %2579 = vdwg.mxu0
        %v2580 = vld [vmem:[#allocation2 + $0x2] sm:$0xff]
        %v2581 = vld [vmem:[#allocation2 + $0xa] sm:$0xff]
        %v2582 = vld [vmem:[#allocation2 + $0x1a] sm:$0xff]
        %v2583 = vld [vmem:[#allocation2 + $0x22] sm:$0xff]
        %v2584 = vld [vmem:[#allocation2 + $0x32] sm:$0xff]
        %v2585 = vld [vmem:[#allocation2 + $0x3a] sm:$0xff]
        %v2586 = vld [vmem:[#allocation2 + $0x4a] sm:$0xff]
        %v2587 = vld [vmem:[#allocation2 + $0x52] sm:$0xff]
        %v2588 = vld [vmem:[#allocation2 + $0x62] sm:$0xff]
        %v2589 = vld [vmem:[#allocation2 + $0x6a] sm:$0xff]
        %v2590 = vld [vmem:[#allocation2 + $0x7a] sm:$0xff]
        %v2591 = vld [vmem:[#allocation2 + $0x82] sm:$0xff]
        %v2592 = vld [vmem:[#allocation2 + $0x92] sm:$0xff]
        %v2593 = vld [vmem:[#allocation2 + $0x9a] sm:$0xff]
        %v2594 = vld [vmem:[#allocation2 + $0xaa] sm:$0xff]
        %v2595 = vld [vmem:[#allocation2 + $0xb2] sm:$0xff]
        %v2596 = vld [vmem:[#allocation2 + $0xc2] sm:$0xff]
        %v2597 = vld [vmem:[#allocation2 + $0xca] sm:$0xff]
        %v2598 = vld [vmem:[#allocation2 + $0xda] sm:$0xff]
        %v2599 = vld [vmem:[#allocation2 + $0xe2] sm:$0xff]
        %v2600 = vld [vmem:[#allocation2 + $0xf2] sm:$0xff]
        %v2601 = vld [vmem:[#allocation2 + $0xfa] sm:$0xff]
        %v2602 = vld [vmem:[#allocation2 + $0x10a] sm:$0xff]
        %v2603 = vld [vmem:[#allocation2 + $0x112] sm:$0xff]
        %v2604 = vld [vmem:[#allocation2 + $0x122] sm:$0xff]
        %v2605 = vld [vmem:[#allocation2 + $0x12a] sm:$0xff]
        %v2606 = vld [vmem:[#allocation2 + $0x13a] sm:$0xff]
        %v2607 = vld [vmem:[#allocation2 + $0x142] sm:$0xff]
        %v2608 = vld [vmem:[#allocation2 + $0x152] sm:$0xff]
        %v2609 = vld [vmem:[#allocation2 + $0x15a] sm:$0xff]
        %v2610 = vld [vmem:[#allocation2 + $0x16a] sm:$0xff]
        %v2611 = vld [vmem:[#allocation2 + $0x172] sm:$0xff]
        %s2612 = scalar_lea.vmem [#allocation4], 256
        %v2613 = vld [vmem:[%s2612] sm:$0xff]
        %v2614 = vld [vmem:[%s2612 + $0x8] sm:$0xff]
        %v2615 = vld [vmem:[%s2612 + $0x10] sm:$0xff]
        %v2616 = vld [vmem:[%s2612 + $0x18] sm:$0xff]
        %v2617 = vld [vmem:[%s2612 + $0x20] sm:$0xff]
        %v2618 = vld [vmem:[%s2612 + $0x28] sm:$0xff]
        %v2619 = vld [vmem:[%s2612 + $0x30] sm:$0xff]
        %v2620 = vld [vmem:[%s2612 + $0x38] sm:$0xff]
        %v2621 = vld [vmem:[%s2612 + $0x40] sm:$0xff]
        %v2622 = vld [vmem:[%s2612 + $0x48] sm:$0xff]
        %v2623 = vld [vmem:[%s2612 + $0x50] sm:$0xff]
        %v2624 = vld [vmem:[%s2612 + $0x58] sm:$0xff]
        %v2625 = vld [vmem:[%s2612 + $0x60] sm:$0xff]
        %v2626 = vld [vmem:[%s2612 + $0x68] sm:$0xff]
        %v2627 = vld [vmem:[%s2612 + $0x70] sm:$0xff]
        %v2628 = vld [vmem:[%s2612 + $0x78] sm:$0xff]
        %2629 = vmatpush.msra.mxu0 %v2628
        %2630 = vmatpush.msra.mxu0 %v2627
        %2631 = vmatpush.msra.mxu0 %v2626
        %2632 = vmatpush.msra.mxu0 %v2625
        %2633 = vmatpush.msra.mxu0 %v2624
        %2634 = vmatpush.msra.mxu0 %v2623
        %2635 = vmatpush.msra.mxu0 %v2622
        %2636 = vmatpush.msra.mxu0 %v2621
        %2637 = vmatpush.msra.mxu0 %v2620
        %2638 = vmatpush.msra.mxu0 %v2619
        %2639 = vmatpush.msra.mxu0 %v2618
        %2640 = vmatpush.msra.mxu0 %v2617
        %2641 = vmatpush.msra.mxu0 %v2616
        %2642 = vmatpush.msra.mxu0 %v2615
        %2643 = vmatpush.msra.mxu0 %v2614
        %2644 = vmatpush.msra.mxu0 %v2613
        %2645 = vmatmul.f32.gmra.mxu0 %v2580
        %v2646 = vpop.f32.mrf.mxu0
        %v2647 = vadd.f32 0.0, %v2646
        %2648 = vmatmul.f32.gmra.mxu0 %v2581
        %v2649 = vpop.f32.mrf.mxu0
        %v2650 = vadd.f32 0.0, %v2649
        %2651 = vmatmul.f32.gmra.mxu0 %v2582
        %v2652 = vpop.f32.mrf.mxu0
        %v2653 = vadd.f32 0.0, %v2652
        %2654 = vmatmul.f32.gmra.mxu0 %v2583
        %v2655 = vpop.f32.mrf.mxu0
        %v2656 = vadd.f32 0.0, %v2655
        %2657 = vmatmul.f32.gmra.mxu0 %v2584
        %v2658 = vpop.f32.mrf.mxu0
        %v2659 = vadd.f32 0.0, %v2658
        %2660 = vmatmul.f32.gmra.mxu0 %v2585
        %v2661 = vpop.f32.mrf.mxu0
        %v2662 = vadd.f32 0.0, %v2661
        %2663 = vmatmul.f32.gmra.mxu0 %v2586
        %v2664 = vpop.f32.mrf.mxu0
        %v2665 = vadd.f32 0.0, %v2664
        %2666 = vmatmul.f32.gmra.mxu0 %v2587
        %v2667 = vpop.f32.mrf.mxu0
        %v2668 = vadd.f32 0.0, %v2667
        %2669 = vmatmul.f32.gmra.mxu0 %v2588
        %v2670 = vpop.f32.mrf.mxu0
        %v2671 = vadd.f32 0.0, %v2670
        %2672 = vmatmul.f32.gmra.mxu0 %v2589
        %v2673 = vpop.f32.mrf.mxu0
        %v2674 = vadd.f32 0.0, %v2673
        %2675 = vmatmul.f32.gmra.mxu0 %v2590
        %v2676 = vpop.f32.mrf.mxu0
        %v2677 = vadd.f32 0.0, %v2676
        %2678 = vmatmul.f32.gmra.mxu0 %v2591
        %v2679 = vpop.f32.mrf.mxu0
        %v2680 = vadd.f32 0.0, %v2679
        %2681 = vmatmul.f32.gmra.mxu0 %v2592
        %v2682 = vpop.f32.mrf.mxu0
        %v2683 = vadd.f32 0.0, %v2682
        %2684 = vmatmul.f32.gmra.mxu0 %v2593
        %v2685 = vpop.f32.mrf.mxu0
        %v2686 = vadd.f32 0.0, %v2685
        %2687 = vmatmul.f32.gmra.mxu0 %v2594
        %v2688 = vpop.f32.mrf.mxu0
        %v2689 = vadd.f32 0.0, %v2688
        %2690 = vmatmul.f32.gmra.mxu0 %v2595
        %v2691 = vpop.f32.mrf.mxu0
        %v2692 = vadd.f32 0.0, %v2691
        %2693 = vmatmul.f32.gmra.mxu0 %v2596
        %v2694 = vpop.f32.mrf.mxu0
        %v2695 = vadd.f32 0.0, %v2694
        %2696 = vmatmul.f32.gmra.mxu0 %v2597
        %v2697 = vpop.f32.mrf.mxu0
        %v2698 = vadd.f32 0.0, %v2697
        %2699 = vmatmul.f32.gmra.mxu0 %v2598
        %v2700 = vpop.f32.mrf.mxu0
        %v2701 = vadd.f32 0.0, %v2700
        %2702 = vmatmul.f32.gmra.mxu0 %v2599
        %v2703 = vpop.f32.mrf.mxu0
        %v2704 = vadd.f32 0.0, %v2703
        %2705 = vmatmul.f32.gmra.mxu0 %v2600
        %v2706 = vpop.f32.mrf.mxu0
        %v2707 = vadd.f32 0.0, %v2706
        %2708 = vmatmul.f32.gmra.mxu0 %v2601
        %v2709 = vpop.f32.mrf.mxu0
        %v2710 = vadd.f32 0.0, %v2709
        %2711 = vmatmul.f32.gmra.mxu0 %v2602
        %v2712 = vpop.f32.mrf.mxu0
        %v2713 = vadd.f32 0.0, %v2712
        %2714 = vmatmul.f32.gmra.mxu0 %v2603
        %v2715 = vpop.f32.mrf.mxu0
        %v2716 = vadd.f32 0.0, %v2715
        %2717 = vmatmul.f32.gmra.mxu0 %v2604
        %v2718 = vpop.f32.mrf.mxu0
        %v2719 = vadd.f32 0.0, %v2718
        %2720 = vmatmul.f32.gmra.mxu0 %v2605
        %v2721 = vpop.f32.mrf.mxu0
        %v2722 = vadd.f32 0.0, %v2721
        %2723 = vmatmul.f32.gmra.mxu0 %v2606
        %v2724 = vpop.f32.mrf.mxu0
        %v2725 = vadd.f32 0.0, %v2724
        %2726 = vmatmul.f32.gmra.mxu0 %v2607
        %v2727 = vpop.f32.mrf.mxu0
        %v2728 = vadd.f32 0.0, %v2727
        %2729 = vmatmul.f32.gmra.mxu0 %v2608
        %v2730 = vpop.f32.mrf.mxu0
        %v2731 = vadd.f32 0.0, %v2730
        %2732 = vmatmul.f32.gmra.mxu0 %v2609
        %v2733 = vpop.f32.mrf.mxu0
        %v2734 = vadd.f32 0.0, %v2733
        %2735 = vmatmul.f32.gmra.mxu0 %v2610
        %v2736 = vpop.f32.mrf.mxu0
        %v2737 = vadd.f32 0.0, %v2736
        %2738 = vmatmul.f32.gmra.mxu0 %v2611
        %v2739 = vpop.f32.mrf.mxu0
        %v2740 = vadd.f32 0.0, %v2739
        %2741 = vdwg.mxu0
        %v2742 = vadd.f32 %v2485, %v2647
        %v2743 = vadd.f32 %v2488, %v2650
        %v2744 = vadd.f32 %v2491, %v2653
        %v2745 = vadd.f32 %v2494, %v2656
        %v2746 = vadd.f32 %v2497, %v2659
        %v2747 = vadd.f32 %v2500, %v2662
        %v2748 = vadd.f32 %v2503, %v2665
        %v2749 = vadd.f32 %v2506, %v2668
        %v2750 = vadd.f32 %v2509, %v2671
        %v2751 = vadd.f32 %v2512, %v2674
        %v2752 = vadd.f32 %v2515, %v2677
        %v2753 = vadd.f32 %v2518, %v2680
        %v2754 = vadd.f32 %v2521, %v2683
        %v2755 = vadd.f32 %v2524, %v2686
        %v2756 = vadd.f32 %v2527, %v2689
        %v2757 = vadd.f32 %v2530, %v2692
        %v2758 = vadd.f32 %v2533, %v2695
        %v2759 = vadd.f32 %v2536, %v2698
        %v2760 = vadd.f32 %v2539, %v2701
        %v2761 = vadd.f32 %v2542, %v2704
        %v2762 = vadd.f32 %v2545, %v2707
        %v2763 = vadd.f32 %v2548, %v2710
        %v2764 = vadd.f32 %v2551, %v2713
        %v2765 = vadd.f32 %v2554, %v2716
        %v2766 = vadd.f32 %v2557, %v2719
        %v2767 = vadd.f32 %v2560, %v2722
        %v2768 = vadd.f32 %v2563, %v2725
        %v2769 = vadd.f32 %v2566, %v2728
        %v2770 = vadd.f32 %v2569, %v2731
        %v2771 = vadd.f32 %v2572, %v2734
        %v2772 = vadd.f32 %v2575, %v2737
        %v2773 = vadd.f32 %v2578, %v2740
        %v2774 = vld [vmem:[%s2223] sm:$0xff]
        %v2775 = vld [vmem:[%s2223 + $0x8] sm:$0xff]
        %v2776 = vld [vmem:[%s2223 + $0x18] sm:$0xff]
        %v2777 = vld [vmem:[%s2223 + $0x20] sm:$0xff]
        %v2778 = vld [vmem:[%s2223 + $0x30] sm:$0xff]
        %v2779 = vld [vmem:[%s2223 + $0x38] sm:$0xff]
        %v2780 = vld [vmem:[%s2223 + $0x48] sm:$0xff]
        %v2781 = vld [vmem:[%s2223 + $0x50] sm:$0xff]
        %v2782 = vld [vmem:[%s2223 + $0x60] sm:$0xff]
        %v2783 = vld [vmem:[%s2223 + $0x68] sm:$0xff]
        %v2784 = vld [vmem:[%s2223 + $0x78] sm:$0xff]
        %v2785 = vld [vmem:[%s2223 + $0x80] sm:$0xff]
        %v2786 = vld [vmem:[%s2223 + $0x90] sm:$0xff]
        %v2787 = vld [vmem:[%s2223 + $0x98] sm:$0xff]
        %v2788 = vld [vmem:[%s2223 + $0xa8] sm:$0xff]
        %v2789 = vld [vmem:[%s2223 + $0xb0] sm:$0xff]
        %v2790 = vld [vmem:[%s2223 + $0xc0] sm:$0xff]
        %v2791 = vld [vmem:[%s2223 + $0xc8] sm:$0xff]
        %v2792 = vld [vmem:[%s2223 + $0xd8] sm:$0xff]
        %v2793 = vld [vmem:[%s2223 + $0xe0] sm:$0xff]
        %v2794 = vld [vmem:[%s2223 + $0xf0] sm:$0xff]
        %v2795 = vld [vmem:[%s2223 + $0xf8] sm:$0xff]
        %v2796 = vld [vmem:[%s2223 + $0x108] sm:$0xff]
        %v2797 = vld [vmem:[%s2223 + $0x110] sm:$0xff]
        %v2798 = vld [vmem:[%s2223 + $0x120] sm:$0xff]
        %v2799 = vld [vmem:[%s2223 + $0x128] sm:$0xff]
        %v2800 = vld [vmem:[%s2223 + $0x138] sm:$0xff]
        %v2801 = vld [vmem:[%s2223 + $0x140] sm:$0xff]
        %v2802 = vld [vmem:[%s2223 + $0x150] sm:$0xff]
        %v2803 = vld [vmem:[%s2223 + $0x158] sm:$0xff]
        %v2804 = vld [vmem:[%s2223 + $0x168] sm:$0xff]
        %v2805 = vld [vmem:[%s2223 + $0x170] sm:$0xff]
        %s2806 = scalar_lea.vmem [#allocation4], 384
        %v2807 = vld [vmem:[%s2806] sm:$0xff]
        %v2808 = vld [vmem:[%s2806 + $0x8] sm:$0xff]
        %v2809 = vld [vmem:[%s2806 + $0x10] sm:$0xff]
        %v2810 = vld [vmem:[%s2806 + $0x18] sm:$0xff]
        %v2811 = vld [vmem:[%s2806 + $0x20] sm:$0xff]
        %v2812 = vld [vmem:[%s2806 + $0x28] sm:$0xff]
        %v2813 = vld [vmem:[%s2806 + $0x30] sm:$0xff]
        %v2814 = vld [vmem:[%s2806 + $0x38] sm:$0xff]
        %v2815 = vld [vmem:[%s2806 + $0x40] sm:$0xff]
        %v2816 = vld [vmem:[%s2806 + $0x48] sm:$0xff]
        %v2817 = vld [vmem:[%s2806 + $0x50] sm:$0xff]
        %v2818 = vld [vmem:[%s2806 + $0x58] sm:$0xff]
        %v2819 = vld [vmem:[%s2806 + $0x60] sm:$0xff]
        %v2820 = vld [vmem:[%s2806 + $0x68] sm:$0xff]
        %v2821 = vld [vmem:[%s2806 + $0x70] sm:$0xff]
        %v2822 = vld [vmem:[%s2806 + $0x78] sm:$0xff]
        %2823 = vmatpush.msra.mxu0 %v2822
        %2824 = vmatpush.msra.mxu0 %v2821
        %2825 = vmatpush.msra.mxu0 %v2820
        %2826 = vmatpush.msra.mxu0 %v2819
        %2827 = vmatpush.msra.mxu0 %v2818
        %2828 = vmatpush.msra.mxu0 %v2817
        %2829 = vmatpush.msra.mxu0 %v2816
        %2830 = vmatpush.msra.mxu0 %v2815
        %2831 = vmatpush.msra.mxu0 %v2814
        %2832 = vmatpush.msra.mxu0 %v2813
        %2833 = vmatpush.msra.mxu0 %v2812
        %2834 = vmatpush.msra.mxu0 %v2811
        %2835 = vmatpush.msra.mxu0 %v2810
        %2836 = vmatpush.msra.mxu0 %v2809
        %2837 = vmatpush.msra.mxu0 %v2808
        %2838 = vmatpush.msra.mxu0 %v2807
        %2839 = vmatmul.f32.gmra.mxu0 %v2774
        %v2840 = vpop.f32.mrf.mxu0
        %v2841 = vadd.f32 0.0, %v2840
        %2842 = vmatmul.f32.gmra.mxu0 %v2775
        %v2843 = vpop.f32.mrf.mxu0
        %v2844 = vadd.f32 0.0, %v2843
        %2845 = vmatmul.f32.gmra.mxu0 %v2776
        %v2846 = vpop.f32.mrf.mxu0
        %v2847 = vadd.f32 0.0, %v2846
        %2848 = vmatmul.f32.gmra.mxu0 %v2777
        %v2849 = vpop.f32.mrf.mxu0
        %v2850 = vadd.f32 0.0, %v2849
        %2851 = vmatmul.f32.gmra.mxu0 %v2778
        %v2852 = vpop.f32.mrf.mxu0
        %v2853 = vadd.f32 0.0, %v2852
        %2854 = vmatmul.f32.gmra.mxu0 %v2779
        %v2855 = vpop.f32.mrf.mxu0
        %v2856 = vadd.f32 0.0, %v2855
        %2857 = vmatmul.f32.gmra.mxu0 %v2780
        %v2858 = vpop.f32.mrf.mxu0
        %v2859 = vadd.f32 0.0, %v2858
        %2860 = vmatmul.f32.gmra.mxu0 %v2781
        %v2861 = vpop.f32.mrf.mxu0
        %v2862 = vadd.f32 0.0, %v2861
        %2863 = vmatmul.f32.gmra.mxu0 %v2782
        %v2864 = vpop.f32.mrf.mxu0
        %v2865 = vadd.f32 0.0, %v2864
        %2866 = vmatmul.f32.gmra.mxu0 %v2783
        %v2867 = vpop.f32.mrf.mxu0
        %v2868 = vadd.f32 0.0, %v2867
        %2869 = vmatmul.f32.gmra.mxu0 %v2784
        %v2870 = vpop.f32.mrf.mxu0
        %v2871 = vadd.f32 0.0, %v2870
        %2872 = vmatmul.f32.gmra.mxu0 %v2785
        %v2873 = vpop.f32.mrf.mxu0
        %v2874 = vadd.f32 0.0, %v2873
        %2875 = vmatmul.f32.gmra.mxu0 %v2786
        %v2876 = vpop.f32.mrf.mxu0
        %v2877 = vadd.f32 0.0, %v2876
        %2878 = vmatmul.f32.gmra.mxu0 %v2787
        %v2879 = vpop.f32.mrf.mxu0
        %v2880 = vadd.f32 0.0, %v2879
        %2881 = vmatmul.f32.gmra.mxu0 %v2788
        %v2882 = vpop.f32.mrf.mxu0
        %v2883 = vadd.f32 0.0, %v2882
        %2884 = vmatmul.f32.gmra.mxu0 %v2789
        %v2885 = vpop.f32.mrf.mxu0
        %v2886 = vadd.f32 0.0, %v2885
        %2887 = vmatmul.f32.gmra.mxu0 %v2790
        %v2888 = vpop.f32.mrf.mxu0
        %v2889 = vadd.f32 0.0, %v2888
        %2890 = vmatmul.f32.gmra.mxu0 %v2791
        %v2891 = vpop.f32.mrf.mxu0
        %v2892 = vadd.f32 0.0, %v2891
        %2893 = vmatmul.f32.gmra.mxu0 %v2792
        %v2894 = vpop.f32.mrf.mxu0
        %v2895 = vadd.f32 0.0, %v2894
        %2896 = vmatmul.f32.gmra.mxu0 %v2793
        %v2897 = vpop.f32.mrf.mxu0
        %v2898 = vadd.f32 0.0, %v2897
        %2899 = vmatmul.f32.gmra.mxu0 %v2794
        %v2900 = vpop.f32.mrf.mxu0
        %v2901 = vadd.f32 0.0, %v2900
        %2902 = vmatmul.f32.gmra.mxu0 %v2795
        %v2903 = vpop.f32.mrf.mxu0
        %v2904 = vadd.f32 0.0, %v2903
        %2905 = vmatmul.f32.gmra.mxu0 %v2796
        %v2906 = vpop.f32.mrf.mxu0
        %v2907 = vadd.f32 0.0, %v2906
        %2908 = vmatmul.f32.gmra.mxu0 %v2797
        %v2909 = vpop.f32.mrf.mxu0
        %v2910 = vadd.f32 0.0, %v2909
        %2911 = vmatmul.f32.gmra.mxu0 %v2798
        %v2912 = vpop.f32.mrf.mxu0
        %v2913 = vadd.f32 0.0, %v2912
        %2914 = vmatmul.f32.gmra.mxu0 %v2799
        %v2915 = vpop.f32.mrf.mxu0
        %v2916 = vadd.f32 0.0, %v2915
        %2917 = vmatmul.f32.gmra.mxu0 %v2800
        %v2918 = vpop.f32.mrf.mxu0
        %v2919 = vadd.f32 0.0, %v2918
        %2920 = vmatmul.f32.gmra.mxu0 %v2801
        %v2921 = vpop.f32.mrf.mxu0
        %v2922 = vadd.f32 0.0, %v2921
        %2923 = vmatmul.f32.gmra.mxu0 %v2802
        %v2924 = vpop.f32.mrf.mxu0
        %v2925 = vadd.f32 0.0, %v2924
        %2926 = vmatmul.f32.gmra.mxu0 %v2803
        %v2927 = vpop.f32.mrf.mxu0
        %v2928 = vadd.f32 0.0, %v2927
        %2929 = vmatmul.f32.gmra.mxu0 %v2804
        %v2930 = vpop.f32.mrf.mxu0
        %v2931 = vadd.f32 0.0, %v2930
        %2932 = vmatmul.f32.gmra.mxu0 %v2805
        %v2933 = vpop.f32.mrf.mxu0
        %v2934 = vadd.f32 0.0, %v2933
        %2935 = vdwg.mxu0
        %v2936 = vadd.f32 %v2742, %v2841
        %v2937 = vadd.f32 %v2743, %v2844
        %v2938 = vadd.f32 %v2744, %v2847
        %v2939 = vadd.f32 %v2745, %v2850
        %v2940 = vadd.f32 %v2746, %v2853
        %v2941 = vadd.f32 %v2747, %v2856
        %v2942 = vadd.f32 %v2748, %v2859
        %v2943 = vadd.f32 %v2749, %v2862
        %v2944 = vadd.f32 %v2750, %v2865
        %v2945 = vadd.f32 %v2751, %v2868
        %v2946 = vadd.f32 %v2752, %v2871
        %v2947 = vadd.f32 %v2753, %v2874
        %v2948 = vadd.f32 %v2754, %v2877
        %v2949 = vadd.f32 %v2755, %v2880
        %v2950 = vadd.f32 %v2756, %v2883
        %v2951 = vadd.f32 %v2757, %v2886
        %v2952 = vadd.f32 %v2758, %v2889
        %v2953 = vadd.f32 %v2759, %v2892
        %v2954 = vadd.f32 %v2760, %v2895
        %v2955 = vadd.f32 %v2761, %v2898
        %v2956 = vadd.f32 %v2762, %v2901
        %v2957 = vadd.f32 %v2763, %v2904
        %v2958 = vadd.f32 %v2764, %v2907
        %v2959 = vadd.f32 %v2765, %v2910
        %v2960 = vadd.f32 %v2766, %v2913
        %v2961 = vadd.f32 %v2767, %v2916
        %v2962 = vadd.f32 %v2768, %v2919
        %v2963 = vadd.f32 %v2769, %v2922
        %v2964 = vadd.f32 %v2770, %v2925
        %v2965 = vadd.f32 %v2771, %v2928
        %v2966 = vadd.f32 %v2772, %v2931
        %v2967 = vadd.f32 %v2773, %v2934
        %v2968 = vld [vmem:[%s2223 + $0x1] sm:$0xff]
        %v2969 = vld [vmem:[%s2223 + $0x9] sm:$0xff]
        %v2970 = vld [vmem:[%s2223 + $0x19] sm:$0xff]
        %v2971 = vld [vmem:[%s2223 + $0x21] sm:$0xff]
        %v2972 = vld [vmem:[%s2223 + $0x31] sm:$0xff]
        %v2973 = vld [vmem:[%s2223 + $0x39] sm:$0xff]
        %v2974 = vld [vmem:[%s2223 + $0x49] sm:$0xff]
        %v2975 = vld [vmem:[%s2223 + $0x51] sm:$0xff]
        %v2976 = vld [vmem:[%s2223 + $0x61] sm:$0xff]
        %v2977 = vld [vmem:[%s2223 + $0x69] sm:$0xff]
        %v2978 = vld [vmem:[%s2223 + $0x79] sm:$0xff]
        %v2979 = vld [vmem:[%s2223 + $0x81] sm:$0xff]
        %v2980 = vld [vmem:[%s2223 + $0x91] sm:$0xff]
        %v2981 = vld [vmem:[%s2223 + $0x99] sm:$0xff]
        %v2982 = vld [vmem:[%s2223 + $0xa9] sm:$0xff]
        %v2983 = vld [vmem:[%s2223 + $0xb1] sm:$0xff]
        %v2984 = vld [vmem:[%s2223 + $0xc1] sm:$0xff]
        %v2985 = vld [vmem:[%s2223 + $0xc9] sm:$0xff]
        %v2986 = vld [vmem:[%s2223 + $0xd9] sm:$0xff]
        %v2987 = vld [vmem:[%s2223 + $0xe1] sm:$0xff]
        %v2988 = vld [vmem:[%s2223 + $0xf1] sm:$0xff]
        %v2989 = vld [vmem:[%s2223 + $0xf9] sm:$0xff]
        %v2990 = vld [vmem:[%s2223 + $0x109] sm:$0xff]
        %v2991 = vld [vmem:[%s2223 + $0x111] sm:$0xff]
        %v2992 = vld [vmem:[%s2223 + $0x121] sm:$0xff]
        %v2993 = vld [vmem:[%s2223 + $0x129] sm:$0xff]
        %v2994 = vld [vmem:[%s2223 + $0x139] sm:$0xff]
        %v2995 = vld [vmem:[%s2223 + $0x141] sm:$0xff]
        %v2996 = vld [vmem:[%s2223 + $0x151] sm:$0xff]
        %v2997 = vld [vmem:[%s2223 + $0x159] sm:$0xff]
        %v2998 = vld [vmem:[%s2223 + $0x169] sm:$0xff]
        %v2999 = vld [vmem:[%s2223 + $0x171] sm:$0xff]
        %s3000 = scalar_lea.vmem [#allocation4], 512
        %v3001 = vld [vmem:[%s3000] sm:$0xff]
        %v3002 = vld [vmem:[%s3000 + $0x8] sm:$0xff]
        %v3003 = vld [vmem:[%s3000 + $0x10] sm:$0xff]
        %v3004 = vld [vmem:[%s3000 + $0x18] sm:$0xff]
        %v3005 = vld [vmem:[%s3000 + $0x20] sm:$0xff]
        %v3006 = vld [vmem:[%s3000 + $0x28] sm:$0xff]
        %v3007 = vld [vmem:[%s3000 + $0x30] sm:$0xff]
        %v3008 = vld [vmem:[%s3000 + $0x38] sm:$0xff]
        %v3009 = vld [vmem:[%s3000 + $0x40] sm:$0xff]
        %v3010 = vld [vmem:[%s3000 + $0x48] sm:$0xff]
        %v3011 = vld [vmem:[%s3000 + $0x50] sm:$0xff]
        %v3012 = vld [vmem:[%s3000 + $0x58] sm:$0xff]
        %v3013 = vld [vmem:[%s3000 + $0x60] sm:$0xff]
        %v3014 = vld [vmem:[%s3000 + $0x68] sm:$0xff]
        %v3015 = vld [vmem:[%s3000 + $0x70] sm:$0xff]
        %v3016 = vld [vmem:[%s3000 + $0x78] sm:$0xff]
        %3017 = vmatpush.msra.mxu0 %v3016
        %3018 = vmatpush.msra.mxu0 %v3015
        %3019 = vmatpush.msra.mxu0 %v3014
        %3020 = vmatpush.msra.mxu0 %v3013
        %3021 = vmatpush.msra.mxu0 %v3012
        %3022 = vmatpush.msra.mxu0 %v3011
        %3023 = vmatpush.msra.mxu0 %v3010
        %3024 = vmatpush.msra.mxu0 %v3009
        %3025 = vmatpush.msra.mxu0 %v3008
        %3026 = vmatpush.msra.mxu0 %v3007
        %3027 = vmatpush.msra.mxu0 %v3006
        %3028 = vmatpush.msra.mxu0 %v3005
        %3029 = vmatpush.msra.mxu0 %v3004
        %3030 = vmatpush.msra.mxu0 %v3003
        %3031 = vmatpush.msra.mxu0 %v3002
        %3032 = vmatpush.msra.mxu0 %v3001
        %3033 = vmatmul.f32.gmra.mxu0 %v2968
        %v3034 = vpop.f32.mrf.mxu0
        %v3035 = vadd.f32 0.0, %v3034
        %3036 = vmatmul.f32.gmra.mxu0 %v2969
        %v3037 = vpop.f32.mrf.mxu0
        %v3038 = vadd.f32 0.0, %v3037
        %3039 = vmatmul.f32.gmra.mxu0 %v2970
        %v3040 = vpop.f32.mrf.mxu0
        %v3041 = vadd.f32 0.0, %v3040
        %3042 = vmatmul.f32.gmra.mxu0 %v2971
        %v3043 = vpop.f32.mrf.mxu0
        %v3044 = vadd.f32 0.0, %v3043
        %3045 = vmatmul.f32.gmra.mxu0 %v2972
        %v3046 = vpop.f32.mrf.mxu0
        %v3047 = vadd.f32 0.0, %v3046
        %3048 = vmatmul.f32.gmra.mxu0 %v2973
        %v3049 = vpop.f32.mrf.mxu0
        %v3050 = vadd.f32 0.0, %v3049
        %3051 = vmatmul.f32.gmra.mxu0 %v2974
        %v3052 = vpop.f32.mrf.mxu0
        %v3053 = vadd.f32 0.0, %v3052
        %3054 = vmatmul.f32.gmra.mxu0 %v2975
        %v3055 = vpop.f32.mrf.mxu0
        %v3056 = vadd.f32 0.0, %v3055
        %3057 = vmatmul.f32.gmra.mxu0 %v2976
        %v3058 = vpop.f32.mrf.mxu0
        %v3059 = vadd.f32 0.0, %v3058
        %3060 = vmatmul.f32.gmra.mxu0 %v2977
        %v3061 = vpop.f32.mrf.mxu0
        %v3062 = vadd.f32 0.0, %v3061
        %3063 = vmatmul.f32.gmra.mxu0 %v2978
        %v3064 = vpop.f32.mrf.mxu0
        %v3065 = vadd.f32 0.0, %v3064
        %3066 = vmatmul.f32.gmra.mxu0 %v2979
        %v3067 = vpop.f32.mrf.mxu0
        %v3068 = vadd.f32 0.0, %v3067
        %3069 = vmatmul.f32.gmra.mxu0 %v2980
        %v3070 = vpop.f32.mrf.mxu0
        %v3071 = vadd.f32 0.0, %v3070
        %3072 = vmatmul.f32.gmra.mxu0 %v2981
        %v3073 = vpop.f32.mrf.mxu0
        %v3074 = vadd.f32 0.0, %v3073
        %3075 = vmatmul.f32.gmra.mxu0 %v2982
        %v3076 = vpop.f32.mrf.mxu0
        %v3077 = vadd.f32 0.0, %v3076
        %3078 = vmatmul.f32.gmra.mxu0 %v2983
        %v3079 = vpop.f32.mrf.mxu0
        %v3080 = vadd.f32 0.0, %v3079
        %3081 = vmatmul.f32.gmra.mxu0 %v2984
        %v3082 = vpop.f32.mrf.mxu0
        %v3083 = vadd.f32 0.0, %v3082
        %3084 = vmatmul.f32.gmra.mxu0 %v2985
        %v3085 = vpop.f32.mrf.mxu0
        %v3086 = vadd.f32 0.0, %v3085
        %3087 = vmatmul.f32.gmra.mxu0 %v2986
        %v3088 = vpop.f32.mrf.mxu0
        %v3089 = vadd.f32 0.0, %v3088
        %3090 = vmatmul.f32.gmra.mxu0 %v2987
        %v3091 = vpop.f32.mrf.mxu0
        %v3092 = vadd.f32 0.0, %v3091
        %3093 = vmatmul.f32.gmra.mxu0 %v2988
        %v3094 = vpop.f32.mrf.mxu0
        %v3095 = vadd.f32 0.0, %v3094
        %3096 = vmatmul.f32.gmra.mxu0 %v2989
        %v3097 = vpop.f32.mrf.mxu0
        %v3098 = vadd.f32 0.0, %v3097
        %3099 = vmatmul.f32.gmra.mxu0 %v2990
        %v3100 = vpop.f32.mrf.mxu0
        %v3101 = vadd.f32 0.0, %v3100
        %3102 = vmatmul.f32.gmra.mxu0 %v2991
        %v3103 = vpop.f32.mrf.mxu0
        %v3104 = vadd.f32 0.0, %v3103
        %3105 = vmatmul.f32.gmra.mxu0 %v2992
        %v3106 = vpop.f32.mrf.mxu0
        %v3107 = vadd.f32 0.0, %v3106
        %3108 = vmatmul.f32.gmra.mxu0 %v2993
        %v3109 = vpop.f32.mrf.mxu0
        %v3110 = vadd.f32 0.0, %v3109
        %3111 = vmatmul.f32.gmra.mxu0 %v2994
        %v3112 = vpop.f32.mrf.mxu0
        %v3113 = vadd.f32 0.0, %v3112
        %3114 = vmatmul.f32.gmra.mxu0 %v2995
        %v3115 = vpop.f32.mrf.mxu0
        %v3116 = vadd.f32 0.0, %v3115
        %3117 = vmatmul.f32.gmra.mxu0 %v2996
        %v3118 = vpop.f32.mrf.mxu0
        %v3119 = vadd.f32 0.0, %v3118
        %3120 = vmatmul.f32.gmra.mxu0 %v2997
        %v3121 = vpop.f32.mrf.mxu0
        %v3122 = vadd.f32 0.0, %v3121
        %3123 = vmatmul.f32.gmra.mxu0 %v2998
        %v3124 = vpop.f32.mrf.mxu0
        %v3125 = vadd.f32 0.0, %v3124
        %3126 = vmatmul.f32.gmra.mxu0 %v2999
        %v3127 = vpop.f32.mrf.mxu0
        %v3128 = vadd.f32 0.0, %v3127
        %3129 = vdwg.mxu0
        %v3130 = vadd.f32 %v2936, %v3035
        %v3131 = vadd.f32 %v2937, %v3038
        %v3132 = vadd.f32 %v2938, %v3041
        %v3133 = vadd.f32 %v2939, %v3044
        %v3134 = vadd.f32 %v2940, %v3047
        %v3135 = vadd.f32 %v2941, %v3050
        %v3136 = vadd.f32 %v2942, %v3053
        %v3137 = vadd.f32 %v2943, %v3056
        %v3138 = vadd.f32 %v2944, %v3059
        %v3139 = vadd.f32 %v2945, %v3062
        %v3140 = vadd.f32 %v2946, %v3065
        %v3141 = vadd.f32 %v2947, %v3068
        %v3142 = vadd.f32 %v2948, %v3071
        %v3143 = vadd.f32 %v2949, %v3074
        %v3144 = vadd.f32 %v2950, %v3077
        %v3145 = vadd.f32 %v2951, %v3080
        %v3146 = vadd.f32 %v2952, %v3083
        %v3147 = vadd.f32 %v2953, %v3086
        %v3148 = vadd.f32 %v2954, %v3089
        %v3149 = vadd.f32 %v2955, %v3092
        %v3150 = vadd.f32 %v2956, %v3095
        %v3151 = vadd.f32 %v2957, %v3098
        %v3152 = vadd.f32 %v2958, %v3101
        %v3153 = vadd.f32 %v2959, %v3104
        %v3154 = vadd.f32 %v2960, %v3107
        %v3155 = vadd.f32 %v2961, %v3110
        %v3156 = vadd.f32 %v2962, %v3113
        %v3157 = vadd.f32 %v2963, %v3116
        %v3158 = vadd.f32 %v2964, %v3119
        %v3159 = vadd.f32 %v2965, %v3122
        %v3160 = vadd.f32 %v2966, %v3125
        %v3161 = vadd.f32 %v2967, %v3128
        %v3162 = vld [vmem:[%s2223 + $0x2] sm:$0xff]
        %v3163 = vld [vmem:[%s2223 + $0xa] sm:$0xff]
        %v3164 = vld [vmem:[%s2223 + $0x1a] sm:$0xff]
        %v3165 = vld [vmem:[%s2223 + $0x22] sm:$0xff]
        %v3166 = vld [vmem:[%s2223 + $0x32] sm:$0xff]
        %v3167 = vld [vmem:[%s2223 + $0x3a] sm:$0xff]
        %v3168 = vld [vmem:[%s2223 + $0x4a] sm:$0xff]
        %v3169 = vld [vmem:[%s2223 + $0x52] sm:$0xff]
        %v3170 = vld [vmem:[%s2223 + $0x62] sm:$0xff]
        %v3171 = vld [vmem:[%s2223 + $0x6a] sm:$0xff]
        %v3172 = vld [vmem:[%s2223 + $0x7a] sm:$0xff]
        %v3173 = vld [vmem:[%s2223 + $0x82] sm:$0xff]
        %v3174 = vld [vmem:[%s2223 + $0x92] sm:$0xff]
        %v3175 = vld [vmem:[%s2223 + $0x9a] sm:$0xff]
        %v3176 = vld [vmem:[%s2223 + $0xaa] sm:$0xff]
        %v3177 = vld [vmem:[%s2223 + $0xb2] sm:$0xff]
        %v3178 = vld [vmem:[%s2223 + $0xc2] sm:$0xff]
        %v3179 = vld [vmem:[%s2223 + $0xca] sm:$0xff]
        %v3180 = vld [vmem:[%s2223 + $0xda] sm:$0xff]
        %v3181 = vld [vmem:[%s2223 + $0xe2] sm:$0xff]
        %v3182 = vld [vmem:[%s2223 + $0xf2] sm:$0xff]
        %v3183 = vld [vmem:[%s2223 + $0xfa] sm:$0xff]
        %v3184 = vld [vmem:[%s2223 + $0x10a] sm:$0xff]
        %v3185 = vld [vmem:[%s2223 + $0x112] sm:$0xff]
        %v3186 = vld [vmem:[%s2223 + $0x122] sm:$0xff]
        %v3187 = vld [vmem:[%s2223 + $0x12a] sm:$0xff]
        %v3188 = vld [vmem:[%s2223 + $0x13a] sm:$0xff]
        %v3189 = vld [vmem:[%s2223 + $0x142] sm:$0xff]
        %v3190 = vld [vmem:[%s2223 + $0x152] sm:$0xff]
        %v3191 = vld [vmem:[%s2223 + $0x15a] sm:$0xff]
        %v3192 = vld [vmem:[%s2223 + $0x16a] sm:$0xff]
        %v3193 = vld [vmem:[%s2223 + $0x172] sm:$0xff]
        %s3194 = scalar_lea.vmem [#allocation4], 640
        %v3195 = vld [vmem:[%s3194] sm:$0xff]
        %v3196 = vld [vmem:[%s3194 + $0x8] sm:$0xff]
        %v3197 = vld [vmem:[%s3194 + $0x10] sm:$0xff]
        %v3198 = vld [vmem:[%s3194 + $0x18] sm:$0xff]
        %v3199 = vld [vmem:[%s3194 + $0x20] sm:$0xff]
        %v3200 = vld [vmem:[%s3194 + $0x28] sm:$0xff]
        %v3201 = vld [vmem:[%s3194 + $0x30] sm:$0xff]
        %v3202 = vld [vmem:[%s3194 + $0x38] sm:$0xff]
        %v3203 = vld [vmem:[%s3194 + $0x40] sm:$0xff]
        %v3204 = vld [vmem:[%s3194 + $0x48] sm:$0xff]
        %v3205 = vld [vmem:[%s3194 + $0x50] sm:$0xff]
        %v3206 = vld [vmem:[%s3194 + $0x58] sm:$0xff]
        %v3207 = vld [vmem:[%s3194 + $0x60] sm:$0xff]
        %v3208 = vld [vmem:[%s3194 + $0x68] sm:$0xff]
        %v3209 = vld [vmem:[%s3194 + $0x70] sm:$0xff]
        %v3210 = vld [vmem:[%s3194 + $0x78] sm:$0xff]
        %3211 = vmatpush.msra.mxu0 %v3210
        %3212 = vmatpush.msra.mxu0 %v3209
        %3213 = vmatpush.msra.mxu0 %v3208
        %3214 = vmatpush.msra.mxu0 %v3207
        %3215 = vmatpush.msra.mxu0 %v3206
        %3216 = vmatpush.msra.mxu0 %v3205
        %3217 = vmatpush.msra.mxu0 %v3204
        %3218 = vmatpush.msra.mxu0 %v3203
        %3219 = vmatpush.msra.mxu0 %v3202
        %3220 = vmatpush.msra.mxu0 %v3201
        %3221 = vmatpush.msra.mxu0 %v3200
        %3222 = vmatpush.msra.mxu0 %v3199
        %3223 = vmatpush.msra.mxu0 %v3198
        %3224 = vmatpush.msra.mxu0 %v3197
        %3225 = vmatpush.msra.mxu0 %v3196
        %3226 = vmatpush.msra.mxu0 %v3195
        %3227 = vmatmul.f32.gmra.mxu0 %v3162
        %v3228 = vpop.f32.mrf.mxu0
        %v3229 = vadd.f32 0.0, %v3228
        %3230 = vmatmul.f32.gmra.mxu0 %v3163
        %v3231 = vpop.f32.mrf.mxu0
        %v3232 = vadd.f32 0.0, %v3231
        %3233 = vmatmul.f32.gmra.mxu0 %v3164
        %v3234 = vpop.f32.mrf.mxu0
        %v3235 = vadd.f32 0.0, %v3234
        %3236 = vmatmul.f32.gmra.mxu0 %v3165
        %v3237 = vpop.f32.mrf.mxu0
        %v3238 = vadd.f32 0.0, %v3237
        %3239 = vmatmul.f32.gmra.mxu0 %v3166
        %v3240 = vpop.f32.mrf.mxu0
        %v3241 = vadd.f32 0.0, %v3240
        %3242 = vmatmul.f32.gmra.mxu0 %v3167
        %v3243 = vpop.f32.mrf.mxu0
        %v3244 = vadd.f32 0.0, %v3243
        %3245 = vmatmul.f32.gmra.mxu0 %v3168
        %v3246 = vpop.f32.mrf.mxu0
        %v3247 = vadd.f32 0.0, %v3246
        %3248 = vmatmul.f32.gmra.mxu0 %v3169
        %v3249 = vpop.f32.mrf.mxu0
        %v3250 = vadd.f32 0.0, %v3249
        %3251 = vmatmul.f32.gmra.mxu0 %v3170
        %v3252 = vpop.f32.mrf.mxu0
        %v3253 = vadd.f32 0.0, %v3252
        %3254 = vmatmul.f32.gmra.mxu0 %v3171
        %v3255 = vpop.f32.mrf.mxu0
        %v3256 = vadd.f32 0.0, %v3255
        %3257 = vmatmul.f32.gmra.mxu0 %v3172
        %v3258 = vpop.f32.mrf.mxu0
        %v3259 = vadd.f32 0.0, %v3258
        %3260 = vmatmul.f32.gmra.mxu0 %v3173
        %v3261 = vpop.f32.mrf.mxu0
        %v3262 = vadd.f32 0.0, %v3261
        %3263 = vmatmul.f32.gmra.mxu0 %v3174
        %v3264 = vpop.f32.mrf.mxu0
        %v3265 = vadd.f32 0.0, %v3264
        %3266 = vmatmul.f32.gmra.mxu0 %v3175
        %v3267 = vpop.f32.mrf.mxu0
        %v3268 = vadd.f32 0.0, %v3267
        %3269 = vmatmul.f32.gmra.mxu0 %v3176
        %v3270 = vpop.f32.mrf.mxu0
        %v3271 = vadd.f32 0.0, %v3270
        %3272 = vmatmul.f32.gmra.mxu0 %v3177
        %v3273 = vpop.f32.mrf.mxu0
        %v3274 = vadd.f32 0.0, %v3273
        %3275 = vmatmul.f32.gmra.mxu0 %v3178
        %v3276 = vpop.f32.mrf.mxu0
        %v3277 = vadd.f32 0.0, %v3276
        %3278 = vmatmul.f32.gmra.mxu0 %v3179
        %v3279 = vpop.f32.mrf.mxu0
        %v3280 = vadd.f32 0.0, %v3279
        %3281 = vmatmul.f32.gmra.mxu0 %v3180
        %v3282 = vpop.f32.mrf.mxu0
        %v3283 = vadd.f32 0.0, %v3282
        %3284 = vmatmul.f32.gmra.mxu0 %v3181
        %v3285 = vpop.f32.mrf.mxu0
        %v3286 = vadd.f32 0.0, %v3285
        %3287 = vmatmul.f32.gmra.mxu0 %v3182
        %v3288 = vpop.f32.mrf.mxu0
        %v3289 = vadd.f32 0.0, %v3288
        %3290 = vmatmul.f32.gmra.mxu0 %v3183
        %v3291 = vpop.f32.mrf.mxu0
        %v3292 = vadd.f32 0.0, %v3291
        %3293 = vmatmul.f32.gmra.mxu0 %v3184
        %v3294 = vpop.f32.mrf.mxu0
        %v3295 = vadd.f32 0.0, %v3294
        %3296 = vmatmul.f32.gmra.mxu0 %v3185
        %v3297 = vpop.f32.mrf.mxu0
        %v3298 = vadd.f32 0.0, %v3297
        %3299 = vmatmul.f32.gmra.mxu0 %v3186
        %v3300 = vpop.f32.mrf.mxu0
        %v3301 = vadd.f32 0.0, %v3300
        %3302 = vmatmul.f32.gmra.mxu0 %v3187
        %v3303 = vpop.f32.mrf.mxu0
        %v3304 = vadd.f32 0.0, %v3303
        %3305 = vmatmul.f32.gmra.mxu0 %v3188
        %v3306 = vpop.f32.mrf.mxu0
        %v3307 = vadd.f32 0.0, %v3306
        %3308 = vmatmul.f32.gmra.mxu0 %v3189
        %v3309 = vpop.f32.mrf.mxu0
        %v3310 = vadd.f32 0.0, %v3309
        %3311 = vmatmul.f32.gmra.mxu0 %v3190
        %v3312 = vpop.f32.mrf.mxu0
        %v3313 = vadd.f32 0.0, %v3312
        %3314 = vmatmul.f32.gmra.mxu0 %v3191
        %v3315 = vpop.f32.mrf.mxu0
        %v3316 = vadd.f32 0.0, %v3315
        %3317 = vmatmul.f32.gmra.mxu0 %v3192
        %v3318 = vpop.f32.mrf.mxu0
        %v3319 = vadd.f32 0.0, %v3318
        %3320 = vmatmul.f32.gmra.mxu0 %v3193
        %v3321 = vpop.f32.mrf.mxu0
        %v3322 = vadd.f32 0.0, %v3321
        %3323 = vdwg.mxu0
        %v3324 = vadd.f32 %v3130, %v3229
        %v3325 = vadd.f32 %v3131, %v3232
        %v3326 = vadd.f32 %v3132, %v3235
        %v3327 = vadd.f32 %v3133, %v3238
        %v3328 = vadd.f32 %v3134, %v3241
        %v3329 = vadd.f32 %v3135, %v3244
        %v3330 = vadd.f32 %v3136, %v3247
        %v3331 = vadd.f32 %v3137, %v3250
        %v3332 = vadd.f32 %v3138, %v3253
        %v3333 = vadd.f32 %v3139, %v3256
        %v3334 = vadd.f32 %v3140, %v3259
        %v3335 = vadd.f32 %v3141, %v3262
        %v3336 = vadd.f32 %v3142, %v3265
        %v3337 = vadd.f32 %v3143, %v3268
        %v3338 = vadd.f32 %v3144, %v3271
        %v3339 = vadd.f32 %v3145, %v3274
        %v3340 = vadd.f32 %v3146, %v3277
        %v3341 = vadd.f32 %v3147, %v3280
        %v3342 = vadd.f32 %v3148, %v3283
        %v3343 = vadd.f32 %v3149, %v3286
        %v3344 = vadd.f32 %v3150, %v3289
        %v3345 = vadd.f32 %v3151, %v3292
        %v3346 = vadd.f32 %v3152, %v3295
        %v3347 = vadd.f32 %v3153, %v3298
        %v3348 = vadd.f32 %v3154, %v3301
        %v3349 = vadd.f32 %v3155, %v3304
        %v3350 = vadd.f32 %v3156, %v3307
        %v3351 = vadd.f32 %v3157, %v3310
        %v3352 = vadd.f32 %v3158, %v3313
        %v3353 = vadd.f32 %v3159, %v3316
        %v3354 = vadd.f32 %v3160, %v3319
        %v3355 = vadd.f32 %v3161, %v3322
        %s3356 = scalar_lea.vmem [#allocation2], 48
        %v3357 = vld [vmem:[%s3356] sm:$0xff]
        %v3358 = vld [vmem:[%s3356 + $0x8] sm:$0xff]
        %v3359 = vld [vmem:[%s3356 + $0x18] sm:$0xff]
        %v3360 = vld [vmem:[%s3356 + $0x20] sm:$0xff]
        %v3361 = vld [vmem:[%s3356 + $0x30] sm:$0xff]
        %v3362 = vld [vmem:[%s3356 + $0x38] sm:$0xff]
        %v3363 = vld [vmem:[%s3356 + $0x48] sm:$0xff]
        %v3364 = vld [vmem:[%s3356 + $0x50] sm:$0xff]
        %v3365 = vld [vmem:[%s3356 + $0x60] sm:$0xff]
        %v3366 = vld [vmem:[%s3356 + $0x68] sm:$0xff]
        %v3367 = vld [vmem:[%s3356 + $0x78] sm:$0xff]
        %v3368 = vld [vmem:[%s3356 + $0x80] sm:$0xff]
        %v3369 = vld [vmem:[%s3356 + $0x90] sm:$0xff]
        %v3370 = vld [vmem:[%s3356 + $0x98] sm:$0xff]
        %v3371 = vld [vmem:[%s3356 + $0xa8] sm:$0xff]
        %v3372 = vld [vmem:[%s3356 + $0xb0] sm:$0xff]
        %v3373 = vld [vmem:[%s3356 + $0xc0] sm:$0xff]
        %v3374 = vld [vmem:[%s3356 + $0xc8] sm:$0xff]
        %v3375 = vld [vmem:[%s3356 + $0xd8] sm:$0xff]
        %v3376 = vld [vmem:[%s3356 + $0xe0] sm:$0xff]
        %v3377 = vld [vmem:[%s3356 + $0xf0] sm:$0xff]
        %v3378 = vld [vmem:[%s3356 + $0xf8] sm:$0xff]
        %v3379 = vld [vmem:[%s3356 + $0x108] sm:$0xff]
        %v3380 = vld [vmem:[%s3356 + $0x110] sm:$0xff]
        %v3381 = vld [vmem:[%s3356 + $0x120] sm:$0xff]
        %v3382 = vld [vmem:[%s3356 + $0x128] sm:$0xff]
        %v3383 = vld [vmem:[%s3356 + $0x138] sm:$0xff]
        %v3384 = vld [vmem:[%s3356 + $0x140] sm:$0xff]
        %v3385 = vld [vmem:[%s3356 + $0x150] sm:$0xff]
        %v3386 = vld [vmem:[%s3356 + $0x158] sm:$0xff]
        %v3387 = vld [vmem:[%s3356 + $0x168] sm:$0xff]
        %v3388 = vld [vmem:[%s3356 + $0x170] sm:$0xff]
        %s3389 = scalar_lea.vmem [#allocation4], 768
        %v3390 = vld [vmem:[%s3389] sm:$0xff]
        %v3391 = vld [vmem:[%s3389 + $0x8] sm:$0xff]
        %v3392 = vld [vmem:[%s3389 + $0x10] sm:$0xff]
        %v3393 = vld [vmem:[%s3389 + $0x18] sm:$0xff]
        %v3394 = vld [vmem:[%s3389 + $0x20] sm:$0xff]
        %v3395 = vld [vmem:[%s3389 + $0x28] sm:$0xff]
        %v3396 = vld [vmem:[%s3389 + $0x30] sm:$0xff]
        %v3397 = vld [vmem:[%s3389 + $0x38] sm:$0xff]
        %v3398 = vld [vmem:[%s3389 + $0x40] sm:$0xff]
        %v3399 = vld [vmem:[%s3389 + $0x48] sm:$0xff]
        %v3400 = vld [vmem:[%s3389 + $0x50] sm:$0xff]
        %v3401 = vld [vmem:[%s3389 + $0x58] sm:$0xff]
        %v3402 = vld [vmem:[%s3389 + $0x60] sm:$0xff]
        %v3403 = vld [vmem:[%s3389 + $0x68] sm:$0xff]
        %v3404 = vld [vmem:[%s3389 + $0x70] sm:$0xff]
        %v3405 = vld [vmem:[%s3389 + $0x78] sm:$0xff]
        %3406 = vmatpush.msra.mxu0 %v3405
        %3407 = vmatpush.msra.mxu0 %v3404
        %3408 = vmatpush.msra.mxu0 %v3403
        %3409 = vmatpush.msra.mxu0 %v3402
        %3410 = vmatpush.msra.mxu0 %v3401
        %3411 = vmatpush.msra.mxu0 %v3400
        %3412 = vmatpush.msra.mxu0 %v3399
        %3413 = vmatpush.msra.mxu0 %v3398
        %3414 = vmatpush.msra.mxu0 %v3397
        %3415 = vmatpush.msra.mxu0 %v3396
        %3416 = vmatpush.msra.mxu0 %v3395
        %3417 = vmatpush.msra.mxu0 %v3394
        %3418 = vmatpush.msra.mxu0 %v3393
        %3419 = vmatpush.msra.mxu0 %v3392
        %3420 = vmatpush.msra.mxu0 %v3391
        %3421 = vmatpush.msra.mxu0 %v3390
        %3422 = vmatmul.f32.gmra.mxu0 %v3357
        %v3423 = vpop.f32.mrf.mxu0
        %v3424 = vadd.f32 0.0, %v3423
        %3425 = vmatmul.f32.gmra.mxu0 %v3358
        %v3426 = vpop.f32.mrf.mxu0
        %v3427 = vadd.f32 0.0, %v3426
        %3428 = vmatmul.f32.gmra.mxu0 %v3359
        %v3429 = vpop.f32.mrf.mxu0
        %v3430 = vadd.f32 0.0, %v3429
        %3431 = vmatmul.f32.gmra.mxu0 %v3360
        %v3432 = vpop.f32.mrf.mxu0
        %v3433 = vadd.f32 0.0, %v3432
        %3434 = vmatmul.f32.gmra.mxu0 %v3361
        %v3435 = vpop.f32.mrf.mxu0
        %v3436 = vadd.f32 0.0, %v3435
        %3437 = vmatmul.f32.gmra.mxu0 %v3362
        %v3438 = vpop.f32.mrf.mxu0
        %v3439 = vadd.f32 0.0, %v3438
        %3440 = vmatmul.f32.gmra.mxu0 %v3363
        %v3441 = vpop.f32.mrf.mxu0
        %v3442 = vadd.f32 0.0, %v3441
        %3443 = vmatmul.f32.gmra.mxu0 %v3364
        %v3444 = vpop.f32.mrf.mxu0
        %v3445 = vadd.f32 0.0, %v3444
        %3446 = vmatmul.f32.gmra.mxu0 %v3365
        %v3447 = vpop.f32.mrf.mxu0
        %v3448 = vadd.f32 0.0, %v3447
        %3449 = vmatmul.f32.gmra.mxu0 %v3366
        %v3450 = vpop.f32.mrf.mxu0
        %v3451 = vadd.f32 0.0, %v3450
        %3452 = vmatmul.f32.gmra.mxu0 %v3367
        %v3453 = vpop.f32.mrf.mxu0
        %v3454 = vadd.f32 0.0, %v3453
        %3455 = vmatmul.f32.gmra.mxu0 %v3368
        %v3456 = vpop.f32.mrf.mxu0
        %v3457 = vadd.f32 0.0, %v3456
        %3458 = vmatmul.f32.gmra.mxu0 %v3369
        %v3459 = vpop.f32.mrf.mxu0
        %v3460 = vadd.f32 0.0, %v3459
        %3461 = vmatmul.f32.gmra.mxu0 %v3370
        %v3462 = vpop.f32.mrf.mxu0
        %v3463 = vadd.f32 0.0, %v3462
        %3464 = vmatmul.f32.gmra.mxu0 %v3371
        %v3465 = vpop.f32.mrf.mxu0
        %v3466 = vadd.f32 0.0, %v3465
        %3467 = vmatmul.f32.gmra.mxu0 %v3372
        %v3468 = vpop.f32.mrf.mxu0
        %v3469 = vadd.f32 0.0, %v3468
        %3470 = vmatmul.f32.gmra.mxu0 %v3373
        %v3471 = vpop.f32.mrf.mxu0
        %v3472 = vadd.f32 0.0, %v3471
        %3473 = vmatmul.f32.gmra.mxu0 %v3374
        %v3474 = vpop.f32.mrf.mxu0
        %v3475 = vadd.f32 0.0, %v3474
        %3476 = vmatmul.f32.gmra.mxu0 %v3375
        %v3477 = vpop.f32.mrf.mxu0
        %v3478 = vadd.f32 0.0, %v3477
        %3479 = vmatmul.f32.gmra.mxu0 %v3376
        %v3480 = vpop.f32.mrf.mxu0
        %v3481 = vadd.f32 0.0, %v3480
        %3482 = vmatmul.f32.gmra.mxu0 %v3377
        %v3483 = vpop.f32.mrf.mxu0
        %v3484 = vadd.f32 0.0, %v3483
        %3485 = vmatmul.f32.gmra.mxu0 %v3378
        %v3486 = vpop.f32.mrf.mxu0
        %v3487 = vadd.f32 0.0, %v3486
        %3488 = vmatmul.f32.gmra.mxu0 %v3379
        %v3489 = vpop.f32.mrf.mxu0
        %v3490 = vadd.f32 0.0, %v3489
        %3491 = vmatmul.f32.gmra.mxu0 %v3380
        %v3492 = vpop.f32.mrf.mxu0
        %v3493 = vadd.f32 0.0, %v3492
        %3494 = vmatmul.f32.gmra.mxu0 %v3381
        %v3495 = vpop.f32.mrf.mxu0
        %v3496 = vadd.f32 0.0, %v3495
        %3497 = vmatmul.f32.gmra.mxu0 %v3382
        %v3498 = vpop.f32.mrf.mxu0
        %v3499 = vadd.f32 0.0, %v3498
        %3500 = vmatmul.f32.gmra.mxu0 %v3383
        %v3501 = vpop.f32.mrf.mxu0
        %v3502 = vadd.f32 0.0, %v3501
        %3503 = vmatmul.f32.gmra.mxu0 %v3384
        %v3504 = vpop.f32.mrf.mxu0
        %v3505 = vadd.f32 0.0, %v3504
        %3506 = vmatmul.f32.gmra.mxu0 %v3385
        %v3507 = vpop.f32.mrf.mxu0
        %v3508 = vadd.f32 0.0, %v3507
        %3509 = vmatmul.f32.gmra.mxu0 %v3386
        %v3510 = vpop.f32.mrf.mxu0
        %v3511 = vadd.f32 0.0, %v3510
        %3512 = vmatmul.f32.gmra.mxu0 %v3387
        %v3513 = vpop.f32.mrf.mxu0
        %v3514 = vadd.f32 0.0, %v3513
        %3515 = vmatmul.f32.gmra.mxu0 %v3388
        %v3516 = vpop.f32.mrf.mxu0
        %v3517 = vadd.f32 0.0, %v3516
        %3518 = vdwg.mxu0
        %v3519 = vadd.f32 %v3324, %v3424
        %v3520 = vadd.f32 %v3325, %v3427
        %v3521 = vadd.f32 %v3326, %v3430
        %v3522 = vadd.f32 %v3327, %v3433
        %v3523 = vadd.f32 %v3328, %v3436
        %v3524 = vadd.f32 %v3329, %v3439
        %v3525 = vadd.f32 %v3330, %v3442
        %v3526 = vadd.f32 %v3331, %v3445
        %v3527 = vadd.f32 %v3332, %v3448
        %v3528 = vadd.f32 %v3333, %v3451
        %v3529 = vadd.f32 %v3334, %v3454
        %v3530 = vadd.f32 %v3335, %v3457
        %v3531 = vadd.f32 %v3336, %v3460
        %v3532 = vadd.f32 %v3337, %v3463
        %v3533 = vadd.f32 %v3338, %v3466
        %v3534 = vadd.f32 %v3339, %v3469
        %v3535 = vadd.f32 %v3340, %v3472
        %v3536 = vadd.f32 %v3341, %v3475
        %v3537 = vadd.f32 %v3342, %v3478
        %v3538 = vadd.f32 %v3343, %v3481
        %v3539 = vadd.f32 %v3344, %v3484
        %v3540 = vadd.f32 %v3345, %v3487
        %v3541 = vadd.f32 %v3346, %v3490
        %v3542 = vadd.f32 %v3347, %v3493
        %v3543 = vadd.f32 %v3348, %v3496
        %v3544 = vadd.f32 %v3349, %v3499
        %v3545 = vadd.f32 %v3350, %v3502
        %v3546 = vadd.f32 %v3351, %v3505
        %v3547 = vadd.f32 %v3352, %v3508
        %v3548 = vadd.f32 %v3353, %v3511
        %v3549 = vadd.f32 %v3354, %v3514
        %v3550 = vadd.f32 %v3355, %v3517
        %v3551 = vld [vmem:[%s3356 + $0x1] sm:$0xff]
        %v3552 = vld [vmem:[%s3356 + $0x9] sm:$0xff]
        %v3553 = vld [vmem:[%s3356 + $0x19] sm:$0xff]
        %v3554 = vld [vmem:[%s3356 + $0x21] sm:$0xff]
        %v3555 = vld [vmem:[%s3356 + $0x31] sm:$0xff]
        %v3556 = vld [vmem:[%s3356 + $0x39] sm:$0xff]
        %v3557 = vld [vmem:[%s3356 + $0x49] sm:$0xff]
        %v3558 = vld [vmem:[%s3356 + $0x51] sm:$0xff]
        %v3559 = vld [vmem:[%s3356 + $0x61] sm:$0xff]
        %v3560 = vld [vmem:[%s3356 + $0x69] sm:$0xff]
        %v3561 = vld [vmem:[%s3356 + $0x79] sm:$0xff]
        %v3562 = vld [vmem:[%s3356 + $0x81] sm:$0xff]
        %v3563 = vld [vmem:[%s3356 + $0x91] sm:$0xff]
        %v3564 = vld [vmem:[%s3356 + $0x99] sm:$0xff]
        %v3565 = vld [vmem:[%s3356 + $0xa9] sm:$0xff]
        %v3566 = vld [vmem:[%s3356 + $0xb1] sm:$0xff]
        %v3567 = vld [vmem:[%s3356 + $0xc1] sm:$0xff]
        %v3568 = vld [vmem:[%s3356 + $0xc9] sm:$0xff]
        %v3569 = vld [vmem:[%s3356 + $0xd9] sm:$0xff]
        %v3570 = vld [vmem:[%s3356 + $0xe1] sm:$0xff]
        %v3571 = vld [vmem:[%s3356 + $0xf1] sm:$0xff]
        %v3572 = vld [vmem:[%s3356 + $0xf9] sm:$0xff]
        %v3573 = vld [vmem:[%s3356 + $0x109] sm:$0xff]
        %v3574 = vld [vmem:[%s3356 + $0x111] sm:$0xff]
        %v3575 = vld [vmem:[%s3356 + $0x121] sm:$0xff]
        %v3576 = vld [vmem:[%s3356 + $0x129] sm:$0xff]
        %v3577 = vld [vmem:[%s3356 + $0x139] sm:$0xff]
        %v3578 = vld [vmem:[%s3356 + $0x141] sm:$0xff]
        %v3579 = vld [vmem:[%s3356 + $0x151] sm:$0xff]
        %v3580 = vld [vmem:[%s3356 + $0x159] sm:$0xff]
        %v3581 = vld [vmem:[%s3356 + $0x169] sm:$0xff]
        %v3582 = vld [vmem:[%s3356 + $0x171] sm:$0xff]
        %s3583 = scalar_lea.vmem [#allocation4], 896
        %v3584 = vld [vmem:[%s3583] sm:$0xff]
        %v3585 = vld [vmem:[%s3583 + $0x8] sm:$0xff]
        %v3586 = vld [vmem:[%s3583 + $0x10] sm:$0xff]
        %v3587 = vld [vmem:[%s3583 + $0x18] sm:$0xff]
        %v3588 = vld [vmem:[%s3583 + $0x20] sm:$0xff]
        %v3589 = vld [vmem:[%s3583 + $0x28] sm:$0xff]
        %v3590 = vld [vmem:[%s3583 + $0x30] sm:$0xff]
        %v3591 = vld [vmem:[%s3583 + $0x38] sm:$0xff]
        %v3592 = vld [vmem:[%s3583 + $0x40] sm:$0xff]
        %v3593 = vld [vmem:[%s3583 + $0x48] sm:$0xff]
        %v3594 = vld [vmem:[%s3583 + $0x50] sm:$0xff]
        %v3595 = vld [vmem:[%s3583 + $0x58] sm:$0xff]
        %v3596 = vld [vmem:[%s3583 + $0x60] sm:$0xff]
        %v3597 = vld [vmem:[%s3583 + $0x68] sm:$0xff]
        %v3598 = vld [vmem:[%s3583 + $0x70] sm:$0xff]
        %v3599 = vld [vmem:[%s3583 + $0x78] sm:$0xff]
        %3600 = vmatpush.msra.mxu0 %v3599
        %3601 = vmatpush.msra.mxu0 %v3598
        %3602 = vmatpush.msra.mxu0 %v3597
        %3603 = vmatpush.msra.mxu0 %v3596
        %3604 = vmatpush.msra.mxu0 %v3595
        %3605 = vmatpush.msra.mxu0 %v3594
        %3606 = vmatpush.msra.mxu0 %v3593
        %3607 = vmatpush.msra.mxu0 %v3592
        %3608 = vmatpush.msra.mxu0 %v3591
        %3609 = vmatpush.msra.mxu0 %v3590
        %3610 = vmatpush.msra.mxu0 %v3589
        %3611 = vmatpush.msra.mxu0 %v3588
        %3612 = vmatpush.msra.mxu0 %v3587
        %3613 = vmatpush.msra.mxu0 %v3586
        %3614 = vmatpush.msra.mxu0 %v3585
        %3615 = vmatpush.msra.mxu0 %v3584
        %3616 = vmatmul.f32.gmra.mxu0 %v3551
        %v3617 = vpop.f32.mrf.mxu0
        %v3618 = vadd.f32 0.0, %v3617
        %3619 = vmatmul.f32.gmra.mxu0 %v3552
        %v3620 = vpop.f32.mrf.mxu0
        %v3621 = vadd.f32 0.0, %v3620
        %3622 = vmatmul.f32.gmra.mxu0 %v3553
        %v3623 = vpop.f32.mrf.mxu0
        %v3624 = vadd.f32 0.0, %v3623
        %3625 = vmatmul.f32.gmra.mxu0 %v3554
        %v3626 = vpop.f32.mrf.mxu0
        %v3627 = vadd.f32 0.0, %v3626
        %3628 = vmatmul.f32.gmra.mxu0 %v3555
        %v3629 = vpop.f32.mrf.mxu0
        %v3630 = vadd.f32 0.0, %v3629
        %3631 = vmatmul.f32.gmra.mxu0 %v3556
        %v3632 = vpop.f32.mrf.mxu0
        %v3633 = vadd.f32 0.0, %v3632
        %3634 = vmatmul.f32.gmra.mxu0 %v3557
        %v3635 = vpop.f32.mrf.mxu0
        %v3636 = vadd.f32 0.0, %v3635
        %3637 = vmatmul.f32.gmra.mxu0 %v3558
        %v3638 = vpop.f32.mrf.mxu0
        %v3639 = vadd.f32 0.0, %v3638
        %3640 = vmatmul.f32.gmra.mxu0 %v3559
        %v3641 = vpop.f32.mrf.mxu0
        %v3642 = vadd.f32 0.0, %v3641
        %3643 = vmatmul.f32.gmra.mxu0 %v3560
        %v3644 = vpop.f32.mrf.mxu0
        %v3645 = vadd.f32 0.0, %v3644
        %3646 = vmatmul.f32.gmra.mxu0 %v3561
        %v3647 = vpop.f32.mrf.mxu0
        %v3648 = vadd.f32 0.0, %v3647
        %3649 = vmatmul.f32.gmra.mxu0 %v3562
        %v3650 = vpop.f32.mrf.mxu0
        %v3651 = vadd.f32 0.0, %v3650
        %3652 = vmatmul.f32.gmra.mxu0 %v3563
        %v3653 = vpop.f32.mrf.mxu0
        %v3654 = vadd.f32 0.0, %v3653
        %3655 = vmatmul.f32.gmra.mxu0 %v3564
        %v3656 = vpop.f32.mrf.mxu0
        %v3657 = vadd.f32 0.0, %v3656
        %3658 = vmatmul.f32.gmra.mxu0 %v3565
        %v3659 = vpop.f32.mrf.mxu0
        %v3660 = vadd.f32 0.0, %v3659
        %3661 = vmatmul.f32.gmra.mxu0 %v3566
        %v3662 = vpop.f32.mrf.mxu0
        %v3663 = vadd.f32 0.0, %v3662
        %3664 = vmatmul.f32.gmra.mxu0 %v3567
        %v3665 = vpop.f32.mrf.mxu0
        %v3666 = vadd.f32 0.0, %v3665
        %3667 = vmatmul.f32.gmra.mxu0 %v3568
        %v3668 = vpop.f32.mrf.mxu0
        %v3669 = vadd.f32 0.0, %v3668
        %3670 = vmatmul.f32.gmra.mxu0 %v3569
        %v3671 = vpop.f32.mrf.mxu0
        %v3672 = vadd.f32 0.0, %v3671
        %3673 = vmatmul.f32.gmra.mxu0 %v3570
        %v3674 = vpop.f32.mrf.mxu0
        %v3675 = vadd.f32 0.0, %v3674
        %3676 = vmatmul.f32.gmra.mxu0 %v3571
        %v3677 = vpop.f32.mrf.mxu0
        %v3678 = vadd.f32 0.0, %v3677
        %3679 = vmatmul.f32.gmra.mxu0 %v3572
        %v3680 = vpop.f32.mrf.mxu0
        %v3681 = vadd.f32 0.0, %v3680
        %3682 = vmatmul.f32.gmra.mxu0 %v3573
        %v3683 = vpop.f32.mrf.mxu0
        %v3684 = vadd.f32 0.0, %v3683
        %3685 = vmatmul.f32.gmra.mxu0 %v3574
        %v3686 = vpop.f32.mrf.mxu0
        %v3687 = vadd.f32 0.0, %v3686
        %3688 = vmatmul.f32.gmra.mxu0 %v3575
        %v3689 = vpop.f32.mrf.mxu0
        %v3690 = vadd.f32 0.0, %v3689
        %3691 = vmatmul.f32.gmra.mxu0 %v3576
        %v3692 = vpop.f32.mrf.mxu0
        %v3693 = vadd.f32 0.0, %v3692
        %3694 = vmatmul.f32.gmra.mxu0 %v3577
        %v3695 = vpop.f32.mrf.mxu0
        %v3696 = vadd.f32 0.0, %v3695
        %3697 = vmatmul.f32.gmra.mxu0 %v3578
        %v3698 = vpop.f32.mrf.mxu0
        %v3699 = vadd.f32 0.0, %v3698
        %3700 = vmatmul.f32.gmra.mxu0 %v3579
        %v3701 = vpop.f32.mrf.mxu0
        %v3702 = vadd.f32 0.0, %v3701
        %3703 = vmatmul.f32.gmra.mxu0 %v3580
        %v3704 = vpop.f32.mrf.mxu0
        %v3705 = vadd.f32 0.0, %v3704
        %3706 = vmatmul.f32.gmra.mxu0 %v3581
        %v3707 = vpop.f32.mrf.mxu0
        %v3708 = vadd.f32 0.0, %v3707
        %3709 = vmatmul.f32.gmra.mxu0 %v3582
        %v3710 = vpop.f32.mrf.mxu0
        %v3711 = vadd.f32 0.0, %v3710
        %3712 = vdwg.mxu0
        %v3713 = vadd.f32 %v3519, %v3618
        %v3714 = vadd.f32 %v3520, %v3621
        %v3715 = vadd.f32 %v3521, %v3624
        %v3716 = vadd.f32 %v3522, %v3627
        %v3717 = vadd.f32 %v3523, %v3630
        %v3718 = vadd.f32 %v3524, %v3633
        %v3719 = vadd.f32 %v3525, %v3636
        %v3720 = vadd.f32 %v3526, %v3639
        %v3721 = vadd.f32 %v3527, %v3642
        %v3722 = vadd.f32 %v3528, %v3645
        %v3723 = vadd.f32 %v3529, %v3648
        %v3724 = vadd.f32 %v3530, %v3651
        %v3725 = vadd.f32 %v3531, %v3654
        %v3726 = vadd.f32 %v3532, %v3657
        %v3727 = vadd.f32 %v3533, %v3660
        %v3728 = vadd.f32 %v3534, %v3663
        %v3729 = vadd.f32 %v3535, %v3666
        %v3730 = vadd.f32 %v3536, %v3669
        %v3731 = vadd.f32 %v3537, %v3672
        %v3732 = vadd.f32 %v3538, %v3675
        %v3733 = vadd.f32 %v3539, %v3678
        %v3734 = vadd.f32 %v3540, %v3681
        %v3735 = vadd.f32 %v3541, %v3684
        %v3736 = vadd.f32 %v3542, %v3687
        %v3737 = vadd.f32 %v3543, %v3690
        %v3738 = vadd.f32 %v3544, %v3693
        %v3739 = vadd.f32 %v3545, %v3696
        %v3740 = vadd.f32 %v3546, %v3699
        %v3741 = vadd.f32 %v3547, %v3702
        %v3742 = vadd.f32 %v3548, %v3705
        %v3743 = vadd.f32 %v3549, %v3708
        %v3744 = vadd.f32 %v3550, %v3711
        %v3745 = vld [vmem:[%s3356 + $0x2] sm:$0xff]
        %v3746 = vld [vmem:[%s3356 + $0xa] sm:$0xff]
        %v3747 = vld [vmem:[%s3356 + $0x1a] sm:$0xff]
        %v3748 = vld [vmem:[%s3356 + $0x22] sm:$0xff]
        %v3749 = vld [vmem:[%s3356 + $0x32] sm:$0xff]
        %v3750 = vld [vmem:[%s3356 + $0x3a] sm:$0xff]
        %v3751 = vld [vmem:[%s3356 + $0x4a] sm:$0xff]
        %v3752 = vld [vmem:[%s3356 + $0x52] sm:$0xff]
        %v3753 = vld [vmem:[%s3356 + $0x62] sm:$0xff]
        %v3754 = vld [vmem:[%s3356 + $0x6a] sm:$0xff]
        %v3755 = vld [vmem:[%s3356 + $0x7a] sm:$0xff]
        %v3756 = vld [vmem:[%s3356 + $0x82] sm:$0xff]
        %v3757 = vld [vmem:[%s3356 + $0x92] sm:$0xff]
        %v3758 = vld [vmem:[%s3356 + $0x9a] sm:$0xff]
        %v3759 = vld [vmem:[%s3356 + $0xaa] sm:$0xff]
        %v3760 = vld [vmem:[%s3356 + $0xb2] sm:$0xff]
        %v3761 = vld [vmem:[%s3356 + $0xc2] sm:$0xff]
        %v3762 = vld [vmem:[%s3356 + $0xca] sm:$0xff]
        %v3763 = vld [vmem:[%s3356 + $0xda] sm:$0xff]
        %v3764 = vld [vmem:[%s3356 + $0xe2] sm:$0xff]
        %v3765 = vld [vmem:[%s3356 + $0xf2] sm:$0xff]
        %v3766 = vld [vmem:[%s3356 + $0xfa] sm:$0xff]
        %v3767 = vld [vmem:[%s3356 + $0x10a] sm:$0xff]
        %v3768 = vld [vmem:[%s3356 + $0x112] sm:$0xff]
        %v3769 = vld [vmem:[%s3356 + $0x122] sm:$0xff]
        %v3770 = vld [vmem:[%s3356 + $0x12a] sm:$0xff]
        %v3771 = vld [vmem:[%s3356 + $0x13a] sm:$0xff]
        %v3772 = vld [vmem:[%s3356 + $0x142] sm:$0xff]
        %v3773 = vld [vmem:[%s3356 + $0x152] sm:$0xff]
        %v3774 = vld [vmem:[%s3356 + $0x15a] sm:$0xff]
        %v3775 = vld [vmem:[%s3356 + $0x16a] sm:$0xff]
        %v3776 = vld [vmem:[%s3356 + $0x172] sm:$0xff]
        %s3777 = scalar_lea.vmem [#allocation4], 1024
        %v3778 = vld [vmem:[%s3777] sm:$0xff]
        %v3779 = vld [vmem:[%s3777 + $0x8] sm:$0xff]
        %v3780 = vld [vmem:[%s3777 + $0x10] sm:$0xff]
        %v3781 = vld [vmem:[%s3777 + $0x18] sm:$0xff]
        %v3782 = vld [vmem:[%s3777 + $0x20] sm:$0xff]
        %v3783 = vld [vmem:[%s3777 + $0x28] sm:$0xff]
        %v3784 = vld [vmem:[%s3777 + $0x30] sm:$0xff]
        %v3785 = vld [vmem:[%s3777 + $0x38] sm:$0xff]
        %v3786 = vld [vmem:[%s3777 + $0x40] sm:$0xff]
        %v3787 = vld [vmem:[%s3777 + $0x48] sm:$0xff]
        %v3788 = vld [vmem:[%s3777 + $0x50] sm:$0xff]
        %v3789 = vld [vmem:[%s3777 + $0x58] sm:$0xff]
        %v3790 = vld [vmem:[%s3777 + $0x60] sm:$0xff]
        %v3791 = vld [vmem:[%s3777 + $0x68] sm:$0xff]
        %v3792 = vld [vmem:[%s3777 + $0x70] sm:$0xff]
        %v3793 = vld [vmem:[%s3777 + $0x78] sm:$0xff]
        %3794 = vmatpush.msra.mxu0 %v3793
        %3795 = vmatpush.msra.mxu0 %v3792
        %3796 = vmatpush.msra.mxu0 %v3791
        %3797 = vmatpush.msra.mxu0 %v3790
        %3798 = vmatpush.msra.mxu0 %v3789
        %3799 = vmatpush.msra.mxu0 %v3788
        %3800 = vmatpush.msra.mxu0 %v3787
        %3801 = vmatpush.msra.mxu0 %v3786
        %3802 = vmatpush.msra.mxu0 %v3785
        %3803 = vmatpush.msra.mxu0 %v3784
        %3804 = vmatpush.msra.mxu0 %v3783
        %3805 = vmatpush.msra.mxu0 %v3782
        %3806 = vmatpush.msra.mxu0 %v3781
        %3807 = vmatpush.msra.mxu0 %v3780
        %3808 = vmatpush.msra.mxu0 %v3779
        %3809 = vmatpush.msra.mxu0 %v3778
        %3810 = vmatmul.f32.gmra.mxu0 %v3745
        %v3811 = vpop.f32.mrf.mxu0
        %v3812 = vadd.f32 0.0, %v3811
        %3813 = vmatmul.f32.gmra.mxu0 %v3746
        %v3814 = vpop.f32.mrf.mxu0
        %v3815 = vadd.f32 0.0, %v3814
        %3816 = vmatmul.f32.gmra.mxu0 %v3747
        %v3817 = vpop.f32.mrf.mxu0
        %v3818 = vadd.f32 0.0, %v3817
        %3819 = vmatmul.f32.gmra.mxu0 %v3748
        %v3820 = vpop.f32.mrf.mxu0
        %v3821 = vadd.f32 0.0, %v3820
        %3822 = vmatmul.f32.gmra.mxu0 %v3749
        %v3823 = vpop.f32.mrf.mxu0
        %v3824 = vadd.f32 0.0, %v3823
        %3825 = vmatmul.f32.gmra.mxu0 %v3750
        %v3826 = vpop.f32.mrf.mxu0
        %v3827 = vadd.f32 0.0, %v3826
        %3828 = vmatmul.f32.gmra.mxu0 %v3751
        %v3829 = vpop.f32.mrf.mxu0
        %v3830 = vadd.f32 0.0, %v3829
        %3831 = vmatmul.f32.gmra.mxu0 %v3752
        %v3832 = vpop.f32.mrf.mxu0
        %v3833 = vadd.f32 0.0, %v3832
        %3834 = vmatmul.f32.gmra.mxu0 %v3753
        %v3835 = vpop.f32.mrf.mxu0
        %v3836 = vadd.f32 0.0, %v3835
        %3837 = vmatmul.f32.gmra.mxu0 %v3754
        %v3838 = vpop.f32.mrf.mxu0
        %v3839 = vadd.f32 0.0, %v3838
        %3840 = vmatmul.f32.gmra.mxu0 %v3755
        %v3841 = vpop.f32.mrf.mxu0
        %v3842 = vadd.f32 0.0, %v3841
        %3843 = vmatmul.f32.gmra.mxu0 %v3756
        %v3844 = vpop.f32.mrf.mxu0
        %v3845 = vadd.f32 0.0, %v3844
        %3846 = vmatmul.f32.gmra.mxu0 %v3757
        %v3847 = vpop.f32.mrf.mxu0
        %v3848 = vadd.f32 0.0, %v3847
        %3849 = vmatmul.f32.gmra.mxu0 %v3758
        %v3850 = vpop.f32.mrf.mxu0
        %v3851 = vadd.f32 0.0, %v3850
        %3852 = vmatmul.f32.gmra.mxu0 %v3759
        %v3853 = vpop.f32.mrf.mxu0
        %v3854 = vadd.f32 0.0, %v3853
        %3855 = vmatmul.f32.gmra.mxu0 %v3760
        %v3856 = vpop.f32.mrf.mxu0
        %v3857 = vadd.f32 0.0, %v3856
        %3858 = vmatmul.f32.gmra.mxu0 %v3761
        %v3859 = vpop.f32.mrf.mxu0
        %v3860 = vadd.f32 0.0, %v3859
        %3861 = vmatmul.f32.gmra.mxu0 %v3762
        %v3862 = vpop.f32.mrf.mxu0
        %v3863 = vadd.f32 0.0, %v3862
        %3864 = vmatmul.f32.gmra.mxu0 %v3763
        %v3865 = vpop.f32.mrf.mxu0
        %v3866 = vadd.f32 0.0, %v3865
        %3867 = vmatmul.f32.gmra.mxu0 %v3764
        %v3868 = vpop.f32.mrf.mxu0
        %v3869 = vadd.f32 0.0, %v3868
        %3870 = vmatmul.f32.gmra.mxu0 %v3765
        %v3871 = vpop.f32.mrf.mxu0
        %v3872 = vadd.f32 0.0, %v3871
        %3873 = vmatmul.f32.gmra.mxu0 %v3766
        %v3874 = vpop.f32.mrf.mxu0
        %v3875 = vadd.f32 0.0, %v3874
        %3876 = vmatmul.f32.gmra.mxu0 %v3767
        %v3877 = vpop.f32.mrf.mxu0
        %v3878 = vadd.f32 0.0, %v3877
        %3879 = vmatmul.f32.gmra.mxu0 %v3768
        %v3880 = vpop.f32.mrf.mxu0
        %v3881 = vadd.f32 0.0, %v3880
        %3882 = vmatmul.f32.gmra.mxu0 %v3769
        %v3883 = vpop.f32.mrf.mxu0
        %v3884 = vadd.f32 0.0, %v3883
        %3885 = vmatmul.f32.gmra.mxu0 %v3770
        %v3886 = vpop.f32.mrf.mxu0
        %v3887 = vadd.f32 0.0, %v3886
        %3888 = vmatmul.f32.gmra.mxu0 %v3771
        %v3889 = vpop.f32.mrf.mxu0
        %v3890 = vadd.f32 0.0, %v3889
        %3891 = vmatmul.f32.gmra.mxu0 %v3772
        %v3892 = vpop.f32.mrf.mxu0
        %v3893 = vadd.f32 0.0, %v3892
        %3894 = vmatmul.f32.gmra.mxu0 %v3773
        %v3895 = vpop.f32.mrf.mxu0
        %v3896 = vadd.f32 0.0, %v3895
        %3897 = vmatmul.f32.gmra.mxu0 %v3774
        %v3898 = vpop.f32.mrf.mxu0
        %v3899 = vadd.f32 0.0, %v3898
        %3900 = vmatmul.f32.gmra.mxu0 %v3775
        %v3901 = vpop.f32.mrf.mxu0
        %v3902 = vadd.f32 0.0, %v3901
        %3903 = vmatmul.f32.gmra.mxu0 %v3776
        %v3904 = vpop.f32.mrf.mxu0
        %v3905 = vadd.f32 0.0, %v3904
        %3906 = vdwg.mxu0
        %v3907 = vadd.f32 %v3713, %v3812
        %v3908 = vadd.f32 %v3714, %v3815
        %v3909 = vadd.f32 %v3715, %v3818
        %v3910 = vadd.f32 %v3716, %v3821
        %v3911 = vadd.f32 %v3717, %v3824
        %v3912 = vadd.f32 %v3718, %v3827
        %v3913 = vadd.f32 %v3719, %v3830
        %v3914 = vadd.f32 %v3720, %v3833
        %v3915 = vadd.f32 %v3721, %v3836
        %v3916 = vadd.f32 %v3722, %v3839
        %v3917 = vadd.f32 %v3723, %v3842
        %v3918 = vadd.f32 %v3724, %v3845
        %v3919 = vadd.f32 %v3725, %v3848
        %v3920 = vadd.f32 %v3726, %v3851
        %v3921 = vadd.f32 %v3727, %v3854
        %v3922 = vadd.f32 %v3728, %v3857
        %v3923 = vadd.f32 %v3729, %v3860
        %v3924 = vadd.f32 %v3730, %v3863
        %v3925 = vadd.f32 %v3731, %v3866
        %v3926 = vadd.f32 %v3732, %v3869
        %v3927 = vadd.f32 %v3733, %v3872
        %v3928 = vadd.f32 %v3734, %v3875
        %v3929 = vadd.f32 %v3735, %v3878
        %v3930 = vadd.f32 %v3736, %v3881
        %v3931 = vadd.f32 %v3737, %v3884
        %v3932 = vadd.f32 %v3738, %v3887
        %v3933 = vadd.f32 %v3739, %v3890
        %v3934 = vadd.f32 %v3740, %v3893
        %v3935 = vadd.f32 %v3741, %v3896
        %v3936 = vadd.f32 %v3742, %v3899
        %v3937 = vadd.f32 %v3743, %v3902
        %v3938 = vadd.f32 %v3744, %v3905
        %v3940 = vperm.slane %v2256, 0
        %v3942 = vadd.f32 %v3907, %v3940
        %v3943 = vadd.f32 %v3908, %v3940
        %v3944 = vadd.f32 %v3909, %v3940
        %v3945 = vadd.f32 %v3910, %v3940
        %v3946 = vadd.f32 %v3911, %v3940
        %v3947 = vadd.f32 %v3912, %v3940
        %v3948 = vadd.f32 %v3913, %v3940
        %v3949 = vadd.f32 %v3914, %v3940
        %v3950 = vadd.f32 %v3915, %v3940
        %v3951 = vadd.f32 %v3916, %v3940
        %v3952 = vadd.f32 %v3917, %v3940
        %v3953 = vadd.f32 %v3918, %v3940
        %v3954 = vadd.f32 %v3919, %v3940
        %v3955 = vadd.f32 %v3920, %v3940
        %v3956 = vadd.f32 %v3921, %v3940
        %v3957 = vadd.f32 %v3922, %v3940
        %v3958 = vadd.f32 %v3923, %v3940
        %v3959 = vadd.f32 %v3924, %v3940
        %v3960 = vadd.f32 %v3925, %v3940
        %v3961 = vadd.f32 %v3926, %v3940
        %v3962 = vadd.f32 %v3927, %v3940
        %v3963 = vadd.f32 %v3928, %v3940
        %v3964 = vadd.f32 %v3929, %v3940
        %v3965 = vadd.f32 %v3930, %v3940
        %v3966 = vadd.f32 %v3931, %v3940
        %v3967 = vadd.f32 %v3932, %v3940
        %v3968 = vadd.f32 %v3933, %v3940
        %v3969 = vadd.f32 %v3934, %v3940
        %v3970 = vadd.f32 %v3935, %v3940
        %v3971 = vadd.f32 %v3936, %v3940
        %v3972 = vadd.f32 %v3937, %v3940
        %v3973 = vadd.f32 %v3938, %v3940
        %v3974 = vmax.f32 %v3942, 0.0
        %v3975 = vmax.f32 %v3943, 0.0
        %v3976 = vmax.f32 %v3944, 0.0
        %v3977 = vmax.f32 %v3945, 0.0
        %v3978 = vmax.f32 %v3946, 0.0
        %v3979 = vmax.f32 %v3947, 0.0
        %v3980 = vmax.f32 %v3948, 0.0
        %v3981 = vmax.f32 %v3949, 0.0
        %v3982 = vmax.f32 %v3950, 0.0
        %v3983 = vmax.f32 %v3951, 0.0
        %v3984 = vmax.f32 %v3952, 0.0
        %v3985 = vmax.f32 %v3953, 0.0
        %v3986 = vmax.f32 %v3954, 0.0
        %v3987 = vmax.f32 %v3955, 0.0
        %v3988 = vmax.f32 %v3956, 0.0
        %v3989 = vmax.f32 %v3957, 0.0
        %v3990 = vmax.f32 %v3958, 0.0
        %v3991 = vmax.f32 %v3959, 0.0
        %v3992 = vmax.f32 %v3960, 0.0
        %v3993 = vmax.f32 %v3961, 0.0
        %v3994 = vmax.f32 %v3962, 0.0
        %v3995 = vmax.f32 %v3963, 0.0
        %v3996 = vmax.f32 %v3964, 0.0
        %v3997 = vmax.f32 %v3965, 0.0
        %v3998 = vmax.f32 %v3966, 0.0
        %v3999 = vmax.f32 %v3967, 0.0
        %v4000 = vmax.f32 %v3968, 0.0
        %v4001 = vmax.f32 %v3969, 0.0
        %v4002 = vmax.f32 %v3970, 0.0
        %v4003 = vmax.f32 %v3971, 0.0
        %v4004 = vmax.f32 %v3972, 0.0
        %v4005 = vmax.f32 %v3973, 0.0
        %s4006 = scalar_lea.vmem [#allocation3], 24
        %4007 = vst [vmem:[%s4006 + $0x1] sm:$0xff] %v3974
        %4008 = vst [vmem:[%s4006 + $0x9] sm:$0xff] %v3975
        %4009 = vst [vmem:[%s4006 + $0x19] sm:$0xff] %v3976
        %4010 = vst [vmem:[%s4006 + $0x21] sm:$0xff] %v3977
        %4011 = vst [vmem:[%s4006 + $0x31] sm:$0xff] %v3978
        %4012 = vst [vmem:[%s4006 + $0x39] sm:$0xff] %v3979
        %4013 = vst [vmem:[%s4006 + $0x49] sm:$0xff] %v3980
        %4014 = vst [vmem:[%s4006 + $0x51] sm:$0xff] %v3981
        %4015 = vst [vmem:[%s4006 + $0x61] sm:$0xff] %v3982
        %4016 = vst [vmem:[%s4006 + $0x69] sm:$0xff] %v3983
        %4017 = vst [vmem:[%s4006 + $0x79] sm:$0xff] %v3984
        %4018 = vst [vmem:[%s4006 + $0x81] sm:$0xff] %v3985
        %4019 = vst [vmem:[%s4006 + $0x91] sm:$0xff] %v3986
        %4020 = vst [vmem:[%s4006 + $0x99] sm:$0xff] %v3987
        %4021 = vst [vmem:[%s4006 + $0xa9] sm:$0xff] %v3988
        %4022 = vst [vmem:[%s4006 + $0xb1] sm:$0xff] %v3989
        %4023 = vst [vmem:[%s4006 + $0xc1] sm:$0xff] %v3990
        %4024 = vst [vmem:[%s4006 + $0xc9] sm:$0xff] %v3991
        %4025 = vst [vmem:[%s4006 + $0xd9] sm:$0xff] %v3992
        %4026 = vst [vmem:[%s4006 + $0xe1] sm:$0xff] %v3993
        %4027 = vst [vmem:[%s4006 + $0xf1] sm:$0xff] %v3994
        %4028 = vst [vmem:[%s4006 + $0xf9] sm:$0xff] %v3995
        %4029 = vst [vmem:[%s4006 + $0x109] sm:$0xff] %v3996
        %4030 = vst [vmem:[%s4006 + $0x111] sm:$0xff] %v3997
        %4031 = vst [vmem:[%s4006 + $0x121] sm:$0xff] %v3998
        %4032 = vst [vmem:[%s4006 + $0x129] sm:$0xff] %v3999
        %4033 = vst [vmem:[%s4006 + $0x139] sm:$0xff] %v4000
        %4034 = vst [vmem:[%s4006 + $0x141] sm:$0xff] %v4001
        %4035 = vst [vmem:[%s4006 + $0x151] sm:$0xff] %v4002
        %4036 = vst [vmem:[%s4006 + $0x159] sm:$0xff] %v4003
        %4037 = vst [vmem:[%s4006 + $0x169] sm:$0xff] %v4004
        %4038 = vst [vmem:[%s4006 + $0x171] sm:$0xff] %v4005
        %v4039 = vld [vmem:[%s6] sm:$0x1]
        %v4040 = vld [vmem:[#allocation3] sm:$0xff]
        %v4041 = vld [vmem:[#allocation3 + $0x8] sm:$0xff]
        %v4042 = vld [vmem:[#allocation3 + $0x18] sm:$0xff]
        %v4043 = vld [vmem:[#allocation3 + $0x20] sm:$0xff]
        %v4044 = vld [vmem:[#allocation3 + $0x30] sm:$0xff]
        %v4045 = vld [vmem:[#allocation3 + $0x38] sm:$0xff]
        %v4046 = vld [vmem:[#allocation3 + $0x48] sm:$0xff]
        %v4047 = vld [vmem:[#allocation3 + $0x50] sm:$0xff]
        %v4048 = vld [vmem:[#allocation3 + $0x60] sm:$0xff]
        %v4049 = vld [vmem:[#allocation3 + $0x68] sm:$0xff]
        %v4050 = vld [vmem:[#allocation3 + $0x78] sm:$0xff]
        %v4051 = vld [vmem:[#allocation3 + $0x80] sm:$0xff]
        %v4052 = vld [vmem:[#allocation3 + $0x90] sm:$0xff]
        %v4053 = vld [vmem:[#allocation3 + $0x98] sm:$0xff]
        %v4054 = vld [vmem:[#allocation3 + $0xa8] sm:$0xff]
        %v4055 = vld [vmem:[#allocation3 + $0xb0] sm:$0xff]
        %v4056 = vld [vmem:[#allocation3 + $0xc0] sm:$0xff]
        %v4057 = vld [vmem:[#allocation3 + $0xc8] sm:$0xff]
        %v4058 = vld [vmem:[#allocation3 + $0xd8] sm:$0xff]
        %v4059 = vld [vmem:[#allocation3 + $0xe0] sm:$0xff]
        %v4060 = vld [vmem:[#allocation3 + $0xf0] sm:$0xff]
        %v4061 = vld [vmem:[#allocation3 + $0xf8] sm:$0xff]
        %v4062 = vld [vmem:[#allocation3 + $0x108] sm:$0xff]
        %v4063 = vld [vmem:[#allocation3 + $0x110] sm:$0xff]
        %v4064 = vld [vmem:[#allocation3 + $0x120] sm:$0xff]
        %v4065 = vld [vmem:[#allocation3 + $0x128] sm:$0xff]
        %v4066 = vld [vmem:[#allocation3 + $0x138] sm:$0xff]
        %v4067 = vld [vmem:[#allocation3 + $0x140] sm:$0xff]
        %v4068 = vld [vmem:[#allocation3 + $0x150] sm:$0xff]
        %v4069 = vld [vmem:[#allocation3 + $0x158] sm:$0xff]
        %v4070 = vld [vmem:[#allocation3 + $0x168] sm:$0xff]
        %v4071 = vld [vmem:[#allocation3 + $0x170] sm:$0xff]
        %v4072 = vld [vmem:[#allocation7] sm:$0xff]
        %v4073 = vld [vmem:[#allocation7 + $0x8] sm:$0xff]
        %v4074 = vld [vmem:[#allocation7 + $0x10] sm:$0xff]
        %v4075 = vld [vmem:[#allocation7 + $0x18] sm:$0xff]
        %v4076 = vld [vmem:[#allocation7 + $0x20] sm:$0xff]
        %v4077 = vld [vmem:[#allocation7 + $0x28] sm:$0xff]
        %v4078 = vld [vmem:[#allocation7 + $0x30] sm:$0xff]
        %v4079 = vld [vmem:[#allocation7 + $0x38] sm:$0xff]
        %v4080 = vld [vmem:[#allocation7 + $0x40] sm:$0xff]
        %v4081 = vld [vmem:[#allocation7 + $0x48] sm:$0xff]
        %v4082 = vld [vmem:[#allocation7 + $0x50] sm:$0xff]
        %v4083 = vld [vmem:[#allocation7 + $0x58] sm:$0xff]
        %v4084 = vld [vmem:[#allocation7 + $0x60] sm:$0xff]
        %v4085 = vld [vmem:[#allocation7 + $0x68] sm:$0xff]
        %v4086 = vld [vmem:[#allocation7 + $0x70] sm:$0xff]
        %v4087 = vld [vmem:[#allocation7 + $0x78] sm:$0xff]
        %v4088 = vld [vmem:[#allocation3 + $0x1] sm:$0xff]
        %v4089 = vld [vmem:[#allocation3 + $0x9] sm:$0xff]
        %v4090 = vld [vmem:[#allocation3 + $0x19] sm:$0xff]
        %v4091 = vld [vmem:[#allocation3 + $0x21] sm:$0xff]
        %v4092 = vld [vmem:[#allocation3 + $0x31] sm:$0xff]
        %v4093 = vld [vmem:[#allocation3 + $0x39] sm:$0xff]
        %v4094 = vld [vmem:[#allocation3 + $0x49] sm:$0xff]
        %v4095 = vld [vmem:[#allocation3 + $0x51] sm:$0xff]
        %v4096 = vld [vmem:[#allocation3 + $0x61] sm:$0xff]
        %v4097 = vld [vmem:[#allocation3 + $0x69] sm:$0xff]
        %v4098 = vld [vmem:[#allocation3 + $0x79] sm:$0xff]
        %v4099 = vld [vmem:[#allocation3 + $0x81] sm:$0xff]
        %v4100 = vld [vmem:[#allocation3 + $0x91] sm:$0xff]
        %v4101 = vld [vmem:[#allocation3 + $0x99] sm:$0xff]
        %v4102 = vld [vmem:[#allocation3 + $0xa9] sm:$0xff]
        %v4103 = vld [vmem:[#allocation3 + $0xb1] sm:$0xff]
        %v4104 = vld [vmem:[#allocation3 + $0xc1] sm:$0xff]
        %v4105 = vld [vmem:[#allocation3 + $0xc9] sm:$0xff]
        %v4106 = vld [vmem:[#allocation3 + $0xd9] sm:$0xff]
        %v4107 = vld [vmem:[#allocation3 + $0xe1] sm:$0xff]
        %v4108 = vld [vmem:[#allocation3 + $0xf1] sm:$0xff]
        %v4109 = vld [vmem:[#allocation3 + $0xf9] sm:$0xff]
        %v4110 = vld [vmem:[#allocation3 + $0x109] sm:$0xff]
        %v4111 = vld [vmem:[#allocation3 + $0x111] sm:$0xff]
        %v4112 = vld [vmem:[#allocation3 + $0x121] sm:$0xff]
        %v4113 = vld [vmem:[#allocation3 + $0x129] sm:$0xff]
        %v4114 = vld [vmem:[#allocation3 + $0x139] sm:$0xff]
        %v4115 = vld [vmem:[#allocation3 + $0x141] sm:$0xff]
        %v4116 = vld [vmem:[#allocation3 + $0x151] sm:$0xff]
        %v4117 = vld [vmem:[#allocation3 + $0x159] sm:$0xff]
        %v4118 = vld [vmem:[#allocation3 + $0x169] sm:$0xff]
        %v4119 = vld [vmem:[#allocation3 + $0x171] sm:$0xff]
        %s4120 = scalar_lea.vmem [#allocation7], 128
        %v4121 = vld [vmem:[%s4120] sm:$0xff]
        %v4122 = vld [vmem:[%s4120 + $0x8] sm:$0xff]
        %v4123 = vld [vmem:[%s4120 + $0x10] sm:$0xff]
        %v4124 = vld [vmem:[%s4120 + $0x18] sm:$0xff]
        %v4125 = vld [vmem:[%s4120 + $0x20] sm:$0xff]
        %v4126 = vld [vmem:[%s4120 + $0x28] sm:$0xff]
        %v4127 = vld [vmem:[%s4120 + $0x30] sm:$0xff]
        %v4128 = vld [vmem:[%s4120 + $0x38] sm:$0xff]
        %v4129 = vld [vmem:[%s4120 + $0x40] sm:$0xff]
        %v4130 = vld [vmem:[%s4120 + $0x48] sm:$0xff]
        %v4131 = vld [vmem:[%s4120 + $0x50] sm:$0xff]
        %v4132 = vld [vmem:[%s4120 + $0x58] sm:$0xff]
        %v4133 = vld [vmem:[%s4120 + $0x60] sm:$0xff]
        %v4134 = vld [vmem:[%s4120 + $0x68] sm:$0xff]
        %v4135 = vld [vmem:[%s4120 + $0x70] sm:$0xff]
        %v4136 = vld [vmem:[%s4120 + $0x78] sm:$0xff]
        %4137 = vmatpush.msra.mxu0 %v4136
        %4138 = vmatpush.msra.mxu0 %v4135
        %4139 = vmatpush.msra.mxu0 %v4134
        %4140 = vmatpush.msra.mxu0 %v4133
        %4141 = vmatpush.msra.mxu0 %v4132
        %4142 = vmatpush.msra.mxu0 %v4131
        %4143 = vmatpush.msra.mxu0 %v4130
        %4144 = vmatpush.msra.mxu0 %v4129
        %4145 = vmatpush.msra.mxu0 %v4128
        %4146 = vmatpush.msra.mxu0 %v4127
        %4147 = vmatpush.msra.mxu0 %v4126
        %4148 = vmatpush.msra.mxu0 %v4125
        %4149 = vmatpush.msra.mxu0 %v4124
        %4150 = vmatpush.msra.mxu0 %v4123
        %4151 = vmatpush.msra.mxu0 %v4122
        %4152 = vmatpush.msra.mxu0 %v4121
        %4153 = vmatmul.f32.gmra.mxu0 %v4088
        %v4154 = vpop.f32.mrf.mxu0
        %v4155 = vadd.f32 0.0, %v4154
        %4156 = vmatmul.f32.gmra.mxu0 %v4089
        %v4157 = vpop.f32.mrf.mxu0
        %v4158 = vadd.f32 0.0, %v4157
        %4159 = vmatmul.f32.gmra.mxu0 %v4090
        %v4160 = vpop.f32.mrf.mxu0
        %v4161 = vadd.f32 0.0, %v4160
        %4162 = vmatmul.f32.gmra.mxu0 %v4091
        %v4163 = vpop.f32.mrf.mxu0
        %v4164 = vadd.f32 0.0, %v4163
        %4165 = vmatmul.f32.gmra.mxu0 %v4092
        %v4166 = vpop.f32.mrf.mxu0
        %v4167 = vadd.f32 0.0, %v4166
        %4168 = vmatmul.f32.gmra.mxu0 %v4093
        %v4169 = vpop.f32.mrf.mxu0
        %v4170 = vadd.f32 0.0, %v4169
        %4171 = vmatmul.f32.gmra.mxu0 %v4094
        %v4172 = vpop.f32.mrf.mxu0
        %v4173 = vadd.f32 0.0, %v4172
        %4174 = vmatmul.f32.gmra.mxu0 %v4095
        %v4175 = vpop.f32.mrf.mxu0
        %v4176 = vadd.f32 0.0, %v4175
        %4177 = vmatmul.f32.gmra.mxu0 %v4096
        %v4178 = vpop.f32.mrf.mxu0
        %v4179 = vadd.f32 0.0, %v4178
        %4180 = vmatmul.f32.gmra.mxu0 %v4097
        %v4181 = vpop.f32.mrf.mxu0
        %v4182 = vadd.f32 0.0, %v4181
        %4183 = vmatmul.f32.gmra.mxu0 %v4098
        %v4184 = vpop.f32.mrf.mxu0
        %v4185 = vadd.f32 0.0, %v4184
        %4186 = vmatmul.f32.gmra.mxu0 %v4099
        %v4187 = vpop.f32.mrf.mxu0
        %v4188 = vadd.f32 0.0, %v4187
        %4189 = vmatmul.f32.gmra.mxu0 %v4100
        %v4190 = vpop.f32.mrf.mxu0
        %v4191 = vadd.f32 0.0, %v4190
        %4192 = vmatmul.f32.gmra.mxu0 %v4101
        %v4193 = vpop.f32.mrf.mxu0
        %v4194 = vadd.f32 0.0, %v4193
        %4195 = vmatmul.f32.gmra.mxu0 %v4102
        %v4196 = vpop.f32.mrf.mxu0
        %v4197 = vadd.f32 0.0, %v4196
        %4198 = vmatmul.f32.gmra.mxu0 %v4103
        %v4199 = vpop.f32.mrf.mxu0
        %v4200 = vadd.f32 0.0, %v4199
        %4201 = vmatmul.f32.gmra.mxu0 %v4104
        %v4202 = vpop.f32.mrf.mxu0
        %v4203 = vadd.f32 0.0, %v4202
        %4204 = vmatmul.f32.gmra.mxu0 %v4105
        %v4205 = vpop.f32.mrf.mxu0
        %v4206 = vadd.f32 0.0, %v4205
        %4207 = vmatmul.f32.gmra.mxu0 %v4106
        %v4208 = vpop.f32.mrf.mxu0
        %v4209 = vadd.f32 0.0, %v4208
        %4210 = vmatmul.f32.gmra.mxu0 %v4107
        %v4211 = vpop.f32.mrf.mxu0
        %v4212 = vadd.f32 0.0, %v4211
        %4213 = vmatmul.f32.gmra.mxu0 %v4108
        %v4214 = vpop.f32.mrf.mxu0
        %v4215 = vadd.f32 0.0, %v4214
        %4216 = vmatmul.f32.gmra.mxu0 %v4109
        %v4217 = vpop.f32.mrf.mxu0
        %v4218 = vadd.f32 0.0, %v4217
        %4219 = vmatmul.f32.gmra.mxu0 %v4110
        %v4220 = vpop.f32.mrf.mxu0
        %v4221 = vadd.f32 0.0, %v4220
        %4222 = vmatmul.f32.gmra.mxu0 %v4111
        %v4223 = vpop.f32.mrf.mxu0
        %v4224 = vadd.f32 0.0, %v4223
        %4225 = vmatmul.f32.gmra.mxu0 %v4112
        %v4226 = vpop.f32.mrf.mxu0
        %v4227 = vadd.f32 0.0, %v4226
        %4228 = vmatmul.f32.gmra.mxu0 %v4113
        %v4229 = vpop.f32.mrf.mxu0
        %v4230 = vadd.f32 0.0, %v4229
        %4231 = vmatmul.f32.gmra.mxu0 %v4114
        %v4232 = vpop.f32.mrf.mxu0
        %v4233 = vadd.f32 0.0, %v4232
        %4234 = vmatmul.f32.gmra.mxu0 %v4115
        %v4235 = vpop.f32.mrf.mxu0
        %v4236 = vadd.f32 0.0, %v4235
        %4237 = vmatmul.f32.gmra.mxu0 %v4116
        %v4238 = vpop.f32.mrf.mxu0
        %v4239 = vadd.f32 0.0, %v4238
        %4240 = vmatmul.f32.gmra.mxu0 %v4117
        %v4241 = vpop.f32.mrf.mxu0
        %v4242 = vadd.f32 0.0, %v4241
        %4243 = vmatmul.f32.gmra.mxu0 %v4118
        %v4244 = vpop.f32.mrf.mxu0
        %v4245 = vadd.f32 0.0, %v4244
        %4246 = vmatmul.f32.gmra.mxu0 %v4119
        %v4247 = vpop.f32.mrf.mxu0
        %v4248 = vadd.f32 0.0, %v4247
        %4249 = vdwg.mxu0
        %4250 = vmatpush.msra.mxu0 %v4087
        %4251 = vmatpush.msra.mxu0 %v4086
        %4252 = vmatpush.msra.mxu0 %v4085
        %4253 = vmatpush.msra.mxu0 %v4084
        %4254 = vmatpush.msra.mxu0 %v4083
        %4255 = vmatpush.msra.mxu0 %v4082
        %4256 = vmatpush.msra.mxu0 %v4081
        %4257 = vmatpush.msra.mxu0 %v4080
        %4258 = vmatpush.msra.mxu0 %v4079
        %4259 = vmatpush.msra.mxu0 %v4078
        %4260 = vmatpush.msra.mxu0 %v4077
        %4261 = vmatpush.msra.mxu0 %v4076
        %4262 = vmatpush.msra.mxu0 %v4075
        %4263 = vmatpush.msra.mxu0 %v4074
        %4264 = vmatpush.msra.mxu0 %v4073
        %4265 = vmatpush.msra.mxu0 %v4072
        %4266 = vmatmul.f32.gmra.mxu0 %v4040
        %v4267 = vpop.f32.mrf.mxu0
        %v4268 = vadd.f32 %v4155, %v4267
        %4269 = vmatmul.f32.gmra.mxu0 %v4041
        %v4270 = vpop.f32.mrf.mxu0
        %v4271 = vadd.f32 %v4158, %v4270
        %4272 = vmatmul.f32.gmra.mxu0 %v4042
        %v4273 = vpop.f32.mrf.mxu0
        %v4274 = vadd.f32 %v4161, %v4273
        %4275 = vmatmul.f32.gmra.mxu0 %v4043
        %v4276 = vpop.f32.mrf.mxu0
        %v4277 = vadd.f32 %v4164, %v4276
        %4278 = vmatmul.f32.gmra.mxu0 %v4044
        %v4279 = vpop.f32.mrf.mxu0
        %v4280 = vadd.f32 %v4167, %v4279
        %4281 = vmatmul.f32.gmra.mxu0 %v4045
        %v4282 = vpop.f32.mrf.mxu0
        %v4283 = vadd.f32 %v4170, %v4282
        %4284 = vmatmul.f32.gmra.mxu0 %v4046
        %v4285 = vpop.f32.mrf.mxu0
        %v4286 = vadd.f32 %v4173, %v4285
        %4287 = vmatmul.f32.gmra.mxu0 %v4047
        %v4288 = vpop.f32.mrf.mxu0
        %v4289 = vadd.f32 %v4176, %v4288
        %4290 = vmatmul.f32.gmra.mxu0 %v4048
        %v4291 = vpop.f32.mrf.mxu0
        %v4292 = vadd.f32 %v4179, %v4291
        %4293 = vmatmul.f32.gmra.mxu0 %v4049
        %v4294 = vpop.f32.mrf.mxu0
        %v4295 = vadd.f32 %v4182, %v4294
        %4296 = vmatmul.f32.gmra.mxu0 %v4050
        %v4297 = vpop.f32.mrf.mxu0
        %v4298 = vadd.f32 %v4185, %v4297
        %4299 = vmatmul.f32.gmra.mxu0 %v4051
        %v4300 = vpop.f32.mrf.mxu0
        %v4301 = vadd.f32 %v4188, %v4300
        %4302 = vmatmul.f32.gmra.mxu0 %v4052
        %v4303 = vpop.f32.mrf.mxu0
        %v4304 = vadd.f32 %v4191, %v4303
        %4305 = vmatmul.f32.gmra.mxu0 %v4053
        %v4306 = vpop.f32.mrf.mxu0
        %v4307 = vadd.f32 %v4194, %v4306
        %4308 = vmatmul.f32.gmra.mxu0 %v4054
        %v4309 = vpop.f32.mrf.mxu0
        %v4310 = vadd.f32 %v4197, %v4309
        %4311 = vmatmul.f32.gmra.mxu0 %v4055
        %v4312 = vpop.f32.mrf.mxu0
        %v4313 = vadd.f32 %v4200, %v4312
        %4314 = vmatmul.f32.gmra.mxu0 %v4056
        %v4315 = vpop.f32.mrf.mxu0
        %v4316 = vadd.f32 %v4203, %v4315
        %4317 = vmatmul.f32.gmra.mxu0 %v4057
        %v4318 = vpop.f32.mrf.mxu0
        %v4319 = vadd.f32 %v4206, %v4318
        %4320 = vmatmul.f32.gmra.mxu0 %v4058
        %v4321 = vpop.f32.mrf.mxu0
        %v4322 = vadd.f32 %v4209, %v4321
        %4323 = vmatmul.f32.gmra.mxu0 %v4059
        %v4324 = vpop.f32.mrf.mxu0
        %v4325 = vadd.f32 %v4212, %v4324
        %4326 = vmatmul.f32.gmra.mxu0 %v4060
        %v4327 = vpop.f32.mrf.mxu0
        %v4328 = vadd.f32 %v4215, %v4327
        %4329 = vmatmul.f32.gmra.mxu0 %v4061
        %v4330 = vpop.f32.mrf.mxu0
        %v4331 = vadd.f32 %v4218, %v4330
        %4332 = vmatmul.f32.gmra.mxu0 %v4062
        %v4333 = vpop.f32.mrf.mxu0
        %v4334 = vadd.f32 %v4221, %v4333
        %4335 = vmatmul.f32.gmra.mxu0 %v4063
        %v4336 = vpop.f32.mrf.mxu0
        %v4337 = vadd.f32 %v4224, %v4336
        %4338 = vmatmul.f32.gmra.mxu0 %v4064
        %v4339 = vpop.f32.mrf.mxu0
        %v4340 = vadd.f32 %v4227, %v4339
        %4341 = vmatmul.f32.gmra.mxu0 %v4065
        %v4342 = vpop.f32.mrf.mxu0
        %v4343 = vadd.f32 %v4230, %v4342
        %4344 = vmatmul.f32.gmra.mxu0 %v4066
        %v4345 = vpop.f32.mrf.mxu0
        %v4346 = vadd.f32 %v4233, %v4345
        %4347 = vmatmul.f32.gmra.mxu0 %v4067
        %v4348 = vpop.f32.mrf.mxu0
        %v4349 = vadd.f32 %v4236, %v4348
        %4350 = vmatmul.f32.gmra.mxu0 %v4068
        %v4351 = vpop.f32.mrf.mxu0
        %v4352 = vadd.f32 %v4239, %v4351
        %4353 = vmatmul.f32.gmra.mxu0 %v4069
        %v4354 = vpop.f32.mrf.mxu0
        %v4355 = vadd.f32 %v4242, %v4354
        %4356 = vmatmul.f32.gmra.mxu0 %v4070
        %v4357 = vpop.f32.mrf.mxu0
        %v4358 = vadd.f32 %v4245, %v4357
        %4359 = vmatmul.f32.gmra.mxu0 %v4071
        %v4360 = vpop.f32.mrf.mxu0
        %v4361 = vadd.f32 %v4248, %v4360
        %4362 = vdwg.mxu0
        %v4363 = vld [vmem:[#allocation3 + $0x2] sm:$0xff]
        %v4364 = vld [vmem:[#allocation3 + $0xa] sm:$0xff]
        %v4365 = vld [vmem:[#allocation3 + $0x1a] sm:$0xff]
        %v4366 = vld [vmem:[#allocation3 + $0x22] sm:$0xff]
        %v4367 = vld [vmem:[#allocation3 + $0x32] sm:$0xff]
        %v4368 = vld [vmem:[#allocation3 + $0x3a] sm:$0xff]
        %v4369 = vld [vmem:[#allocation3 + $0x4a] sm:$0xff]
        %v4370 = vld [vmem:[#allocation3 + $0x52] sm:$0xff]
        %v4371 = vld [vmem:[#allocation3 + $0x62] sm:$0xff]
        %v4372 = vld [vmem:[#allocation3 + $0x6a] sm:$0xff]
        %v4373 = vld [vmem:[#allocation3 + $0x7a] sm:$0xff]
        %v4374 = vld [vmem:[#allocation3 + $0x82] sm:$0xff]
        %v4375 = vld [vmem:[#allocation3 + $0x92] sm:$0xff]
        %v4376 = vld [vmem:[#allocation3 + $0x9a] sm:$0xff]
        %v4377 = vld [vmem:[#allocation3 + $0xaa] sm:$0xff]
        %v4378 = vld [vmem:[#allocation3 + $0xb2] sm:$0xff]
        %v4379 = vld [vmem:[#allocation3 + $0xc2] sm:$0xff]
        %v4380 = vld [vmem:[#allocation3 + $0xca] sm:$0xff]
        %v4381 = vld [vmem:[#allocation3 + $0xda] sm:$0xff]
        %v4382 = vld [vmem:[#allocation3 + $0xe2] sm:$0xff]
        %v4383 = vld [vmem:[#allocation3 + $0xf2] sm:$0xff]
        %v4384 = vld [vmem:[#allocation3 + $0xfa] sm:$0xff]
        %v4385 = vld [vmem:[#allocation3 + $0x10a] sm:$0xff]
        %v4386 = vld [vmem:[#allocation3 + $0x112] sm:$0xff]
        %v4387 = vld [vmem:[#allocation3 + $0x122] sm:$0xff]
        %v4388 = vld [vmem:[#allocation3 + $0x12a] sm:$0xff]
        %v4389 = vld [vmem:[#allocation3 + $0x13a] sm:$0xff]
        %v4390 = vld [vmem:[#allocation3 + $0x142] sm:$0xff]
        %v4391 = vld [vmem:[#allocation3 + $0x152] sm:$0xff]
        %v4392 = vld [vmem:[#allocation3 + $0x15a] sm:$0xff]
        %v4393 = vld [vmem:[#allocation3 + $0x16a] sm:$0xff]
        %v4394 = vld [vmem:[#allocation3 + $0x172] sm:$0xff]
        %s4395 = scalar_lea.vmem [#allocation7], 256
        %v4396 = vld [vmem:[%s4395] sm:$0xff]
        %v4397 = vld [vmem:[%s4395 + $0x8] sm:$0xff]
        %v4398 = vld [vmem:[%s4395 + $0x10] sm:$0xff]
        %v4399 = vld [vmem:[%s4395 + $0x18] sm:$0xff]
        %v4400 = vld [vmem:[%s4395 + $0x20] sm:$0xff]
        %v4401 = vld [vmem:[%s4395 + $0x28] sm:$0xff]
        %v4402 = vld [vmem:[%s4395 + $0x30] sm:$0xff]
        %v4403 = vld [vmem:[%s4395 + $0x38] sm:$0xff]
        %v4404 = vld [vmem:[%s4395 + $0x40] sm:$0xff]
        %v4405 = vld [vmem:[%s4395 + $0x48] sm:$0xff]
        %v4406 = vld [vmem:[%s4395 + $0x50] sm:$0xff]
        %v4407 = vld [vmem:[%s4395 + $0x58] sm:$0xff]
        %v4408 = vld [vmem:[%s4395 + $0x60] sm:$0xff]
        %v4409 = vld [vmem:[%s4395 + $0x68] sm:$0xff]
        %v4410 = vld [vmem:[%s4395 + $0x70] sm:$0xff]
        %v4411 = vld [vmem:[%s4395 + $0x78] sm:$0xff]
        %4412 = vmatpush.msra.mxu0 %v4411
        %4413 = vmatpush.msra.mxu0 %v4410
        %4414 = vmatpush.msra.mxu0 %v4409
        %4415 = vmatpush.msra.mxu0 %v4408
        %4416 = vmatpush.msra.mxu0 %v4407
        %4417 = vmatpush.msra.mxu0 %v4406
        %4418 = vmatpush.msra.mxu0 %v4405
        %4419 = vmatpush.msra.mxu0 %v4404
        %4420 = vmatpush.msra.mxu0 %v4403
        %4421 = vmatpush.msra.mxu0 %v4402
        %4422 = vmatpush.msra.mxu0 %v4401
        %4423 = vmatpush.msra.mxu0 %v4400
        %4424 = vmatpush.msra.mxu0 %v4399
        %4425 = vmatpush.msra.mxu0 %v4398
        %4426 = vmatpush.msra.mxu0 %v4397
        %4427 = vmatpush.msra.mxu0 %v4396
        %4428 = vmatmul.f32.gmra.mxu0 %v4363
        %v4429 = vpop.f32.mrf.mxu0
        %v4430 = vadd.f32 0.0, %v4429
        %4431 = vmatmul.f32.gmra.mxu0 %v4364
        %v4432 = vpop.f32.mrf.mxu0
        %v4433 = vadd.f32 0.0, %v4432
        %4434 = vmatmul.f32.gmra.mxu0 %v4365
        %v4435 = vpop.f32.mrf.mxu0
        %v4436 = vadd.f32 0.0, %v4435
        %4437 = vmatmul.f32.gmra.mxu0 %v4366
        %v4438 = vpop.f32.mrf.mxu0
        %v4439 = vadd.f32 0.0, %v4438
        %4440 = vmatmul.f32.gmra.mxu0 %v4367
        %v4441 = vpop.f32.mrf.mxu0
        %v4442 = vadd.f32 0.0, %v4441
        %4443 = vmatmul.f32.gmra.mxu0 %v4368
        %v4444 = vpop.f32.mrf.mxu0
        %v4445 = vadd.f32 0.0, %v4444
        %4446 = vmatmul.f32.gmra.mxu0 %v4369
        %v4447 = vpop.f32.mrf.mxu0
        %v4448 = vadd.f32 0.0, %v4447
        %4449 = vmatmul.f32.gmra.mxu0 %v4370
        %v4450 = vpop.f32.mrf.mxu0
        %v4451 = vadd.f32 0.0, %v4450
        %4452 = vmatmul.f32.gmra.mxu0 %v4371
        %v4453 = vpop.f32.mrf.mxu0
        %v4454 = vadd.f32 0.0, %v4453
        %4455 = vmatmul.f32.gmra.mxu0 %v4372
        %v4456 = vpop.f32.mrf.mxu0
        %v4457 = vadd.f32 0.0, %v4456
        %4458 = vmatmul.f32.gmra.mxu0 %v4373
        %v4459 = vpop.f32.mrf.mxu0
        %v4460 = vadd.f32 0.0, %v4459
        %4461 = vmatmul.f32.gmra.mxu0 %v4374
        %v4462 = vpop.f32.mrf.mxu0
        %v4463 = vadd.f32 0.0, %v4462
        %4464 = vmatmul.f32.gmra.mxu0 %v4375
        %v4465 = vpop.f32.mrf.mxu0
        %v4466 = vadd.f32 0.0, %v4465
        %4467 = vmatmul.f32.gmra.mxu0 %v4376
        %v4468 = vpop.f32.mrf.mxu0
        %v4469 = vadd.f32 0.0, %v4468
        %4470 = vmatmul.f32.gmra.mxu0 %v4377
        %v4471 = vpop.f32.mrf.mxu0
        %v4472 = vadd.f32 0.0, %v4471
        %4473 = vmatmul.f32.gmra.mxu0 %v4378
        %v4474 = vpop.f32.mrf.mxu0
        %v4475 = vadd.f32 0.0, %v4474
        %4476 = vmatmul.f32.gmra.mxu0 %v4379
        %v4477 = vpop.f32.mrf.mxu0
        %v4478 = vadd.f32 0.0, %v4477
        %4479 = vmatmul.f32.gmra.mxu0 %v4380
        %v4480 = vpop.f32.mrf.mxu0
        %v4481 = vadd.f32 0.0, %v4480
        %4482 = vmatmul.f32.gmra.mxu0 %v4381
        %v4483 = vpop.f32.mrf.mxu0
        %v4484 = vadd.f32 0.0, %v4483
        %4485 = vmatmul.f32.gmra.mxu0 %v4382
        %v4486 = vpop.f32.mrf.mxu0
        %v4487 = vadd.f32 0.0, %v4486
        %4488 = vmatmul.f32.gmra.mxu0 %v4383
        %v4489 = vpop.f32.mrf.mxu0
        %v4490 = vadd.f32 0.0, %v4489
        %4491 = vmatmul.f32.gmra.mxu0 %v4384
        %v4492 = vpop.f32.mrf.mxu0
        %v4493 = vadd.f32 0.0, %v4492
        %4494 = vmatmul.f32.gmra.mxu0 %v4385
        %v4495 = vpop.f32.mrf.mxu0
        %v4496 = vadd.f32 0.0, %v4495
        %4497 = vmatmul.f32.gmra.mxu0 %v4386
        %v4498 = vpop.f32.mrf.mxu0
        %v4499 = vadd.f32 0.0, %v4498
        %4500 = vmatmul.f32.gmra.mxu0 %v4387
        %v4501 = vpop.f32.mrf.mxu0
        %v4502 = vadd.f32 0.0, %v4501
        %4503 = vmatmul.f32.gmra.mxu0 %v4388
        %v4504 = vpop.f32.mrf.mxu0
        %v4505 = vadd.f32 0.0, %v4504
        %4506 = vmatmul.f32.gmra.mxu0 %v4389
        %v4507 = vpop.f32.mrf.mxu0
        %v4508 = vadd.f32 0.0, %v4507
        %4509 = vmatmul.f32.gmra.mxu0 %v4390
        %v4510 = vpop.f32.mrf.mxu0
        %v4511 = vadd.f32 0.0, %v4510
        %4512 = vmatmul.f32.gmra.mxu0 %v4391
        %v4513 = vpop.f32.mrf.mxu0
        %v4514 = vadd.f32 0.0, %v4513
        %4515 = vmatmul.f32.gmra.mxu0 %v4392
        %v4516 = vpop.f32.mrf.mxu0
        %v4517 = vadd.f32 0.0, %v4516
        %4518 = vmatmul.f32.gmra.mxu0 %v4393
        %v4519 = vpop.f32.mrf.mxu0
        %v4520 = vadd.f32 0.0, %v4519
        %4521 = vmatmul.f32.gmra.mxu0 %v4394
        %v4522 = vpop.f32.mrf.mxu0
        %v4523 = vadd.f32 0.0, %v4522
        %4524 = vdwg.mxu0
        %v4525 = vadd.f32 %v4268, %v4430
        %v4526 = vadd.f32 %v4271, %v4433
        %v4527 = vadd.f32 %v4274, %v4436
        %v4528 = vadd.f32 %v4277, %v4439
        %v4529 = vadd.f32 %v4280, %v4442
        %v4530 = vadd.f32 %v4283, %v4445
        %v4531 = vadd.f32 %v4286, %v4448
        %v4532 = vadd.f32 %v4289, %v4451
        %v4533 = vadd.f32 %v4292, %v4454
        %v4534 = vadd.f32 %v4295, %v4457
        %v4535 = vadd.f32 %v4298, %v4460
        %v4536 = vadd.f32 %v4301, %v4463
        %v4537 = vadd.f32 %v4304, %v4466
        %v4538 = vadd.f32 %v4307, %v4469
        %v4539 = vadd.f32 %v4310, %v4472
        %v4540 = vadd.f32 %v4313, %v4475
        %v4541 = vadd.f32 %v4316, %v4478
        %v4542 = vadd.f32 %v4319, %v4481
        %v4543 = vadd.f32 %v4322, %v4484
        %v4544 = vadd.f32 %v4325, %v4487
        %v4545 = vadd.f32 %v4328, %v4490
        %v4546 = vadd.f32 %v4331, %v4493
        %v4547 = vadd.f32 %v4334, %v4496
        %v4548 = vadd.f32 %v4337, %v4499
        %v4549 = vadd.f32 %v4340, %v4502
        %v4550 = vadd.f32 %v4343, %v4505
        %v4551 = vadd.f32 %v4346, %v4508
        %v4552 = vadd.f32 %v4349, %v4511
        %v4553 = vadd.f32 %v4352, %v4514
        %v4554 = vadd.f32 %v4355, %v4517
        %v4555 = vadd.f32 %v4358, %v4520
        %v4556 = vadd.f32 %v4361, %v4523
        %v4557 = vld [vmem:[%s4006] sm:$0xff]
        %v4558 = vld [vmem:[%s4006 + $0x8] sm:$0xff]
        %v4559 = vld [vmem:[%s4006 + $0x18] sm:$0xff]
        %v4560 = vld [vmem:[%s4006 + $0x20] sm:$0xff]
        %v4561 = vld [vmem:[%s4006 + $0x30] sm:$0xff]
        %v4562 = vld [vmem:[%s4006 + $0x38] sm:$0xff]
        %v4563 = vld [vmem:[%s4006 + $0x48] sm:$0xff]
        %v4564 = vld [vmem:[%s4006 + $0x50] sm:$0xff]
        %v4565 = vld [vmem:[%s4006 + $0x60] sm:$0xff]
        %v4566 = vld [vmem:[%s4006 + $0x68] sm:$0xff]
        %v4567 = vld [vmem:[%s4006 + $0x78] sm:$0xff]
        %v4568 = vld [vmem:[%s4006 + $0x80] sm:$0xff]
        %v4569 = vld [vmem:[%s4006 + $0x90] sm:$0xff]
        %v4570 = vld [vmem:[%s4006 + $0x98] sm:$0xff]
        %v4571 = vld [vmem:[%s4006 + $0xa8] sm:$0xff]
        %v4572 = vld [vmem:[%s4006 + $0xb0] sm:$0xff]
        %v4573 = vld [vmem:[%s4006 + $0xc0] sm:$0xff]
        %v4574 = vld [vmem:[%s4006 + $0xc8] sm:$0xff]
        %v4575 = vld [vmem:[%s4006 + $0xd8] sm:$0xff]
        %v4576 = vld [vmem:[%s4006 + $0xe0] sm:$0xff]
        %v4577 = vld [vmem:[%s4006 + $0xf0] sm:$0xff]
        %v4578 = vld [vmem:[%s4006 + $0xf8] sm:$0xff]
        %v4579 = vld [vmem:[%s4006 + $0x108] sm:$0xff]
        %v4580 = vld [vmem:[%s4006 + $0x110] sm:$0xff]
        %v4581 = vld [vmem:[%s4006 + $0x120] sm:$0xff]
        %v4582 = vld [vmem:[%s4006 + $0x128] sm:$0xff]
        %v4583 = vld [vmem:[%s4006 + $0x138] sm:$0xff]
        %v4584 = vld [vmem:[%s4006 + $0x140] sm:$0xff]
        %v4585 = vld [vmem:[%s4006 + $0x150] sm:$0xff]
        %v4586 = vld [vmem:[%s4006 + $0x158] sm:$0xff]
        %v4587 = vld [vmem:[%s4006 + $0x168] sm:$0xff]
        %v4588 = vld [vmem:[%s4006 + $0x170] sm:$0xff]
        %s4589 = scalar_lea.vmem [#allocation7], 384
        %v4590 = vld [vmem:[%s4589] sm:$0xff]
        %v4591 = vld [vmem:[%s4589 + $0x8] sm:$0xff]
        %v4592 = vld [vmem:[%s4589 + $0x10] sm:$0xff]
        %v4593 = vld [vmem:[%s4589 + $0x18] sm:$0xff]
        %v4594 = vld [vmem:[%s4589 + $0x20] sm:$0xff]
        %v4595 = vld [vmem:[%s4589 + $0x28] sm:$0xff]
        %v4596 = vld [vmem:[%s4589 + $0x30] sm:$0xff]
        %v4597 = vld [vmem:[%s4589 + $0x38] sm:$0xff]
        %v4598 = vld [vmem:[%s4589 + $0x40] sm:$0xff]
        %v4599 = vld [vmem:[%s4589 + $0x48] sm:$0xff]
        %v4600 = vld [vmem:[%s4589 + $0x50] sm:$0xff]
        %v4601 = vld [vmem:[%s4589 + $0x58] sm:$0xff]
        %v4602 = vld [vmem:[%s4589 + $0x60] sm:$0xff]
        %v4603 = vld [vmem:[%s4589 + $0x68] sm:$0xff]
        %v4604 = vld [vmem:[%s4589 + $0x70] sm:$0xff]
        %v4605 = vld [vmem:[%s4589 + $0x78] sm:$0xff]
        %4606 = vmatpush.msra.mxu0 %v4605
        %4607 = vmatpush.msra.mxu0 %v4604
        %4608 = vmatpush.msra.mxu0 %v4603
        %4609 = vmatpush.msra.mxu0 %v4602
        %4610 = vmatpush.msra.mxu0 %v4601
        %4611 = vmatpush.msra.mxu0 %v4600
        %4612 = vmatpush.msra.mxu0 %v4599
        %4613 = vmatpush.msra.mxu0 %v4598
        %4614 = vmatpush.msra.mxu0 %v4597
        %4615 = vmatpush.msra.mxu0 %v4596
        %4616 = vmatpush.msra.mxu0 %v4595
        %4617 = vmatpush.msra.mxu0 %v4594
        %4618 = vmatpush.msra.mxu0 %v4593
        %4619 = vmatpush.msra.mxu0 %v4592
        %4620 = vmatpush.msra.mxu0 %v4591
        %4621 = vmatpush.msra.mxu0 %v4590
        %4622 = vmatmul.f32.gmra.mxu0 %v4557
        %v4623 = vpop.f32.mrf.mxu0
        %v4624 = vadd.f32 0.0, %v4623
        %4625 = vmatmul.f32.gmra.mxu0 %v4558
        %v4626 = vpop.f32.mrf.mxu0
        %v4627 = vadd.f32 0.0, %v4626
        %4628 = vmatmul.f32.gmra.mxu0 %v4559
        %v4629 = vpop.f32.mrf.mxu0
        %v4630 = vadd.f32 0.0, %v4629
        %4631 = vmatmul.f32.gmra.mxu0 %v4560
        %v4632 = vpop.f32.mrf.mxu0
        %v4633 = vadd.f32 0.0, %v4632
        %4634 = vmatmul.f32.gmra.mxu0 %v4561
        %v4635 = vpop.f32.mrf.mxu0
        %v4636 = vadd.f32 0.0, %v4635
        %4637 = vmatmul.f32.gmra.mxu0 %v4562
        %v4638 = vpop.f32.mrf.mxu0
        %v4639 = vadd.f32 0.0, %v4638
        %4640 = vmatmul.f32.gmra.mxu0 %v4563
        %v4641 = vpop.f32.mrf.mxu0
        %v4642 = vadd.f32 0.0, %v4641
        %4643 = vmatmul.f32.gmra.mxu0 %v4564
        %v4644 = vpop.f32.mrf.mxu0
        %v4645 = vadd.f32 0.0, %v4644
        %4646 = vmatmul.f32.gmra.mxu0 %v4565
        %v4647 = vpop.f32.mrf.mxu0
        %v4648 = vadd.f32 0.0, %v4647
        %4649 = vmatmul.f32.gmra.mxu0 %v4566
        %v4650 = vpop.f32.mrf.mxu0
        %v4651 = vadd.f32 0.0, %v4650
        %4652 = vmatmul.f32.gmra.mxu0 %v4567
        %v4653 = vpop.f32.mrf.mxu0
        %v4654 = vadd.f32 0.0, %v4653
        %4655 = vmatmul.f32.gmra.mxu0 %v4568
        %v4656 = vpop.f32.mrf.mxu0
        %v4657 = vadd.f32 0.0, %v4656
        %4658 = vmatmul.f32.gmra.mxu0 %v4569
        %v4659 = vpop.f32.mrf.mxu0
        %v4660 = vadd.f32 0.0, %v4659
        %4661 = vmatmul.f32.gmra.mxu0 %v4570
        %v4662 = vpop.f32.mrf.mxu0
        %v4663 = vadd.f32 0.0, %v4662
        %4664 = vmatmul.f32.gmra.mxu0 %v4571
        %v4665 = vpop.f32.mrf.mxu0
        %v4666 = vadd.f32 0.0, %v4665
        %4667 = vmatmul.f32.gmra.mxu0 %v4572
        %v4668 = vpop.f32.mrf.mxu0
        %v4669 = vadd.f32 0.0, %v4668
        %4670 = vmatmul.f32.gmra.mxu0 %v4573
        %v4671 = vpop.f32.mrf.mxu0
        %v4672 = vadd.f32 0.0, %v4671
        %4673 = vmatmul.f32.gmra.mxu0 %v4574
        %v4674 = vpop.f32.mrf.mxu0
        %v4675 = vadd.f32 0.0, %v4674
        %4676 = vmatmul.f32.gmra.mxu0 %v4575
        %v4677 = vpop.f32.mrf.mxu0
        %v4678 = vadd.f32 0.0, %v4677
        %4679 = vmatmul.f32.gmra.mxu0 %v4576
        %v4680 = vpop.f32.mrf.mxu0
        %v4681 = vadd.f32 0.0, %v4680
        %4682 = vmatmul.f32.gmra.mxu0 %v4577
        %v4683 = vpop.f32.mrf.mxu0
        %v4684 = vadd.f32 0.0, %v4683
        %4685 = vmatmul.f32.gmra.mxu0 %v4578
        %v4686 = vpop.f32.mrf.mxu0
        %v4687 = vadd.f32 0.0, %v4686
        %4688 = vmatmul.f32.gmra.mxu0 %v4579
        %v4689 = vpop.f32.mrf.mxu0
        %v4690 = vadd.f32 0.0, %v4689
        %4691 = vmatmul.f32.gmra.mxu0 %v4580
        %v4692 = vpop.f32.mrf.mxu0
        %v4693 = vadd.f32 0.0, %v4692
        %4694 = vmatmul.f32.gmra.mxu0 %v4581
        %v4695 = vpop.f32.mrf.mxu0
        %v4696 = vadd.f32 0.0, %v4695
        %4697 = vmatmul.f32.gmra.mxu0 %v4582
        %v4698 = vpop.f32.mrf.mxu0
        %v4699 = vadd.f32 0.0, %v4698
        %4700 = vmatmul.f32.gmra.mxu0 %v4583
        %v4701 = vpop.f32.mrf.mxu0
        %v4702 = vadd.f32 0.0, %v4701
        %4703 = vmatmul.f32.gmra.mxu0 %v4584
        %v4704 = vpop.f32.mrf.mxu0
        %v4705 = vadd.f32 0.0, %v4704
        %4706 = vmatmul.f32.gmra.mxu0 %v4585
        %v4707 = vpop.f32.mrf.mxu0
        %v4708 = vadd.f32 0.0, %v4707
        %4709 = vmatmul.f32.gmra.mxu0 %v4586
        %v4710 = vpop.f32.mrf.mxu0
        %v4711 = vadd.f32 0.0, %v4710
        %4712 = vmatmul.f32.gmra.mxu0 %v4587
        %v4713 = vpop.f32.mrf.mxu0
        %v4714 = vadd.f32 0.0, %v4713
        %4715 = vmatmul.f32.gmra.mxu0 %v4588
        %v4716 = vpop.f32.mrf.mxu0
        %v4717 = vadd.f32 0.0, %v4716
        %4718 = vdwg.mxu0
        %v4719 = vadd.f32 %v4525, %v4624
        %v4720 = vadd.f32 %v4526, %v4627
        %v4721 = vadd.f32 %v4527, %v4630
        %v4722 = vadd.f32 %v4528, %v4633
        %v4723 = vadd.f32 %v4529, %v4636
        %v4724 = vadd.f32 %v4530, %v4639
        %v4725 = vadd.f32 %v4531, %v4642
        %v4726 = vadd.f32 %v4532, %v4645
        %v4727 = vadd.f32 %v4533, %v4648
        %v4728 = vadd.f32 %v4534, %v4651
        %v4729 = vadd.f32 %v4535, %v4654
        %v4730 = vadd.f32 %v4536, %v4657
        %v4731 = vadd.f32 %v4537, %v4660
        %v4732 = vadd.f32 %v4538, %v4663
        %v4733 = vadd.f32 %v4539, %v4666
        %v4734 = vadd.f32 %v4540, %v4669
        %v4735 = vadd.f32 %v4541, %v4672
        %v4736 = vadd.f32 %v4542, %v4675
        %v4737 = vadd.f32 %v4543, %v4678
        %v4738 = vadd.f32 %v4544, %v4681
        %v4739 = vadd.f32 %v4545, %v4684
        %v4740 = vadd.f32 %v4546, %v4687
        %v4741 = vadd.f32 %v4547, %v4690
        %v4742 = vadd.f32 %v4548, %v4693
        %v4743 = vadd.f32 %v4549, %v4696
        %v4744 = vadd.f32 %v4550, %v4699
        %v4745 = vadd.f32 %v4551, %v4702
        %v4746 = vadd.f32 %v4552, %v4705
        %v4747 = vadd.f32 %v4553, %v4708
        %v4748 = vadd.f32 %v4554, %v4711
        %v4749 = vadd.f32 %v4555, %v4714
        %v4750 = vadd.f32 %v4556, %v4717
        %v4751 = vld [vmem:[%s4006 + $0x1] sm:$0xff]
        %v4752 = vld [vmem:[%s4006 + $0x9] sm:$0xff]
        %v4753 = vld [vmem:[%s4006 + $0x19] sm:$0xff]
        %v4754 = vld [vmem:[%s4006 + $0x21] sm:$0xff]
        %v4755 = vld [vmem:[%s4006 + $0x31] sm:$0xff]
        %v4756 = vld [vmem:[%s4006 + $0x39] sm:$0xff]
        %v4757 = vld [vmem:[%s4006 + $0x49] sm:$0xff]
        %v4758 = vld [vmem:[%s4006 + $0x51] sm:$0xff]
        %v4759 = vld [vmem:[%s4006 + $0x61] sm:$0xff]
        %v4760 = vld [vmem:[%s4006 + $0x69] sm:$0xff]
        %v4761 = vld [vmem:[%s4006 + $0x79] sm:$0xff]
        %v4762 = vld [vmem:[%s4006 + $0x81] sm:$0xff]
        %v4763 = vld [vmem:[%s4006 + $0x91] sm:$0xff]
        %v4764 = vld [vmem:[%s4006 + $0x99] sm:$0xff]
        %v4765 = vld [vmem:[%s4006 + $0xa9] sm:$0xff]
        %v4766 = vld [vmem:[%s4006 + $0xb1] sm:$0xff]
        %v4767 = vld [vmem:[%s4006 + $0xc1] sm:$0xff]
        %v4768 = vld [vmem:[%s4006 + $0xc9] sm:$0xff]
        %v4769 = vld [vmem:[%s4006 + $0xd9] sm:$0xff]
        %v4770 = vld [vmem:[%s4006 + $0xe1] sm:$0xff]
        %v4771 = vld [vmem:[%s4006 + $0xf1] sm:$0xff]
        %v4772 = vld [vmem:[%s4006 + $0xf9] sm:$0xff]
        %v4773 = vld [vmem:[%s4006 + $0x109] sm:$0xff]
        %v4774 = vld [vmem:[%s4006 + $0x111] sm:$0xff]
        %v4775 = vld [vmem:[%s4006 + $0x121] sm:$0xff]
        %v4776 = vld [vmem:[%s4006 + $0x129] sm:$0xff]
        %v4777 = vld [vmem:[%s4006 + $0x139] sm:$0xff]
        %v4778 = vld [vmem:[%s4006 + $0x141] sm:$0xff]
        %v4779 = vld [vmem:[%s4006 + $0x151] sm:$0xff]
        %v4780 = vld [vmem:[%s4006 + $0x159] sm:$0xff]
        %v4781 = vld [vmem:[%s4006 + $0x169] sm:$0xff]
        %v4782 = vld [vmem:[%s4006 + $0x171] sm:$0xff]
        %s4783 = scalar_lea.vmem [#allocation7], 512
        %v4784 = vld [vmem:[%s4783] sm:$0xff]
        %v4785 = vld [vmem:[%s4783 + $0x8] sm:$0xff]
        %v4786 = vld [vmem:[%s4783 + $0x10] sm:$0xff]
        %v4787 = vld [vmem:[%s4783 + $0x18] sm:$0xff]
        %v4788 = vld [vmem:[%s4783 + $0x20] sm:$0xff]
        %v4789 = vld [vmem:[%s4783 + $0x28] sm:$0xff]
        %v4790 = vld [vmem:[%s4783 + $0x30] sm:$0xff]
        %v4791 = vld [vmem:[%s4783 + $0x38] sm:$0xff]
        %v4792 = vld [vmem:[%s4783 + $0x40] sm:$0xff]
        %v4793 = vld [vmem:[%s4783 + $0x48] sm:$0xff]
        %v4794 = vld [vmem:[%s4783 + $0x50] sm:$0xff]
        %v4795 = vld [vmem:[%s4783 + $0x58] sm:$0xff]
        %v4796 = vld [vmem:[%s4783 + $0x60] sm:$0xff]
        %v4797 = vld [vmem:[%s4783 + $0x68] sm:$0xff]
        %v4798 = vld [vmem:[%s4783 + $0x70] sm:$0xff]
        %v4799 = vld [vmem:[%s4783 + $0x78] sm:$0xff]
        %4800 = vmatpush.msra.mxu0 %v4799
        %4801 = vmatpush.msra.mxu0 %v4798
        %4802 = vmatpush.msra.mxu0 %v4797
        %4803 = vmatpush.msra.mxu0 %v4796
        %4804 = vmatpush.msra.mxu0 %v4795
        %4805 = vmatpush.msra.mxu0 %v4794
        %4806 = vmatpush.msra.mxu0 %v4793
        %4807 = vmatpush.msra.mxu0 %v4792
        %4808 = vmatpush.msra.mxu0 %v4791
        %4809 = vmatpush.msra.mxu0 %v4790
        %4810 = vmatpush.msra.mxu0 %v4789
        %4811 = vmatpush.msra.mxu0 %v4788
        %4812 = vmatpush.msra.mxu0 %v4787
        %4813 = vmatpush.msra.mxu0 %v4786
        %4814 = vmatpush.msra.mxu0 %v4785
        %4815 = vmatpush.msra.mxu0 %v4784
        %4816 = vmatmul.f32.gmra.mxu0 %v4751
        %v4817 = vpop.f32.mrf.mxu0
        %v4818 = vadd.f32 0.0, %v4817
        %4819 = vmatmul.f32.gmra.mxu0 %v4752
        %v4820 = vpop.f32.mrf.mxu0
        %v4821 = vadd.f32 0.0, %v4820
        %4822 = vmatmul.f32.gmra.mxu0 %v4753
        %v4823 = vpop.f32.mrf.mxu0
        %v4824 = vadd.f32 0.0, %v4823
        %4825 = vmatmul.f32.gmra.mxu0 %v4754
        %v4826 = vpop.f32.mrf.mxu0
        %v4827 = vadd.f32 0.0, %v4826
        %4828 = vmatmul.f32.gmra.mxu0 %v4755
        %v4829 = vpop.f32.mrf.mxu0
        %v4830 = vadd.f32 0.0, %v4829
        %4831 = vmatmul.f32.gmra.mxu0 %v4756
        %v4832 = vpop.f32.mrf.mxu0
        %v4833 = vadd.f32 0.0, %v4832
        %4834 = vmatmul.f32.gmra.mxu0 %v4757
        %v4835 = vpop.f32.mrf.mxu0
        %v4836 = vadd.f32 0.0, %v4835
        %4837 = vmatmul.f32.gmra.mxu0 %v4758
        %v4838 = vpop.f32.mrf.mxu0
        %v4839 = vadd.f32 0.0, %v4838
        %4840 = vmatmul.f32.gmra.mxu0 %v4759
        %v4841 = vpop.f32.mrf.mxu0
        %v4842 = vadd.f32 0.0, %v4841
        %4843 = vmatmul.f32.gmra.mxu0 %v4760
        %v4844 = vpop.f32.mrf.mxu0
        %v4845 = vadd.f32 0.0, %v4844
        %4846 = vmatmul.f32.gmra.mxu0 %v4761
        %v4847 = vpop.f32.mrf.mxu0
        %v4848 = vadd.f32 0.0, %v4847
        %4849 = vmatmul.f32.gmra.mxu0 %v4762
        %v4850 = vpop.f32.mrf.mxu0
        %v4851 = vadd.f32 0.0, %v4850
        %4852 = vmatmul.f32.gmra.mxu0 %v4763
        %v4853 = vpop.f32.mrf.mxu0
        %v4854 = vadd.f32 0.0, %v4853
        %4855 = vmatmul.f32.gmra.mxu0 %v4764
        %v4856 = vpop.f32.mrf.mxu0
        %v4857 = vadd.f32 0.0, %v4856
        %4858 = vmatmul.f32.gmra.mxu0 %v4765
        %v4859 = vpop.f32.mrf.mxu0
        %v4860 = vadd.f32 0.0, %v4859
        %4861 = vmatmul.f32.gmra.mxu0 %v4766
        %v4862 = vpop.f32.mrf.mxu0
        %v4863 = vadd.f32 0.0, %v4862
        %4864 = vmatmul.f32.gmra.mxu0 %v4767
        %v4865 = vpop.f32.mrf.mxu0
        %v4866 = vadd.f32 0.0, %v4865
        %4867 = vmatmul.f32.gmra.mxu0 %v4768
        %v4868 = vpop.f32.mrf.mxu0
        %v4869 = vadd.f32 0.0, %v4868
        %4870 = vmatmul.f32.gmra.mxu0 %v4769
        %v4871 = vpop.f32.mrf.mxu0
        %v4872 = vadd.f32 0.0, %v4871
        %4873 = vmatmul.f32.gmra.mxu0 %v4770
        %v4874 = vpop.f32.mrf.mxu0
        %v4875 = vadd.f32 0.0, %v4874
        %4876 = vmatmul.f32.gmra.mxu0 %v4771
        %v4877 = vpop.f32.mrf.mxu0
        %v4878 = vadd.f32 0.0, %v4877
        %4879 = vmatmul.f32.gmra.mxu0 %v4772
        %v4880 = vpop.f32.mrf.mxu0
        %v4881 = vadd.f32 0.0, %v4880
        %4882 = vmatmul.f32.gmra.mxu0 %v4773
        %v4883 = vpop.f32.mrf.mxu0
        %v4884 = vadd.f32 0.0, %v4883
        %4885 = vmatmul.f32.gmra.mxu0 %v4774
        %v4886 = vpop.f32.mrf.mxu0
        %v4887 = vadd.f32 0.0, %v4886
        %4888 = vmatmul.f32.gmra.mxu0 %v4775
        %v4889 = vpop.f32.mrf.mxu0
        %v4890 = vadd.f32 0.0, %v4889
        %4891 = vmatmul.f32.gmra.mxu0 %v4776
        %v4892 = vpop.f32.mrf.mxu0
        %v4893 = vadd.f32 0.0, %v4892
        %4894 = vmatmul.f32.gmra.mxu0 %v4777
        %v4895 = vpop.f32.mrf.mxu0
        %v4896 = vadd.f32 0.0, %v4895
        %4897 = vmatmul.f32.gmra.mxu0 %v4778
        %v4898 = vpop.f32.mrf.mxu0
        %v4899 = vadd.f32 0.0, %v4898
        %4900 = vmatmul.f32.gmra.mxu0 %v4779
        %v4901 = vpop.f32.mrf.mxu0
        %v4902 = vadd.f32 0.0, %v4901
        %4903 = vmatmul.f32.gmra.mxu0 %v4780
        %v4904 = vpop.f32.mrf.mxu0
        %v4905 = vadd.f32 0.0, %v4904
        %4906 = vmatmul.f32.gmra.mxu0 %v4781
        %v4907 = vpop.f32.mrf.mxu0
        %v4908 = vadd.f32 0.0, %v4907
        %4909 = vmatmul.f32.gmra.mxu0 %v4782
        %v4910 = vpop.f32.mrf.mxu0
        %v4911 = vadd.f32 0.0, %v4910
        %4912 = vdwg.mxu0
        %v4913 = vadd.f32 %v4719, %v4818
        %v4914 = vadd.f32 %v4720, %v4821
        %v4915 = vadd.f32 %v4721, %v4824
        %v4916 = vadd.f32 %v4722, %v4827
        %v4917 = vadd.f32 %v4723, %v4830
        %v4918 = vadd.f32 %v4724, %v4833
        %v4919 = vadd.f32 %v4725, %v4836
        %v4920 = vadd.f32 %v4726, %v4839
        %v4921 = vadd.f32 %v4727, %v4842
        %v4922 = vadd.f32 %v4728, %v4845
        %v4923 = vadd.f32 %v4729, %v4848
        %v4924 = vadd.f32 %v4730, %v4851
        %v4925 = vadd.f32 %v4731, %v4854
        %v4926 = vadd.f32 %v4732, %v4857
        %v4927 = vadd.f32 %v4733, %v4860
        %v4928 = vadd.f32 %v4734, %v4863
        %v4929 = vadd.f32 %v4735, %v4866
        %v4930 = vadd.f32 %v4736, %v4869
        %v4931 = vadd.f32 %v4737, %v4872
        %v4932 = vadd.f32 %v4738, %v4875
        %v4933 = vadd.f32 %v4739, %v4878
        %v4934 = vadd.f32 %v4740, %v4881
        %v4935 = vadd.f32 %v4741, %v4884
        %v4936 = vadd.f32 %v4742, %v4887
        %v4937 = vadd.f32 %v4743, %v4890
        %v4938 = vadd.f32 %v4744, %v4893
        %v4939 = vadd.f32 %v4745, %v4896
        %v4940 = vadd.f32 %v4746, %v4899
        %v4941 = vadd.f32 %v4747, %v4902
        %v4942 = vadd.f32 %v4748, %v4905
        %v4943 = vadd.f32 %v4749, %v4908
        %v4944 = vadd.f32 %v4750, %v4911
        %v4945 = vld [vmem:[%s4006 + $0x2] sm:$0xff]
        %v4946 = vld [vmem:[%s4006 + $0xa] sm:$0xff]
        %v4947 = vld [vmem:[%s4006 + $0x1a] sm:$0xff]
        %v4948 = vld [vmem:[%s4006 + $0x22] sm:$0xff]
        %v4949 = vld [vmem:[%s4006 + $0x32] sm:$0xff]
        %v4950 = vld [vmem:[%s4006 + $0x3a] sm:$0xff]
        %v4951 = vld [vmem:[%s4006 + $0x4a] sm:$0xff]
        %v4952 = vld [vmem:[%s4006 + $0x52] sm:$0xff]
        %v4953 = vld [vmem:[%s4006 + $0x62] sm:$0xff]
        %v4954 = vld [vmem:[%s4006 + $0x6a] sm:$0xff]
        %v4955 = vld [vmem:[%s4006 + $0x7a] sm:$0xff]
        %v4956 = vld [vmem:[%s4006 + $0x82] sm:$0xff]
        %v4957 = vld [vmem:[%s4006 + $0x92] sm:$0xff]
        %v4958 = vld [vmem:[%s4006 + $0x9a] sm:$0xff]
        %v4959 = vld [vmem:[%s4006 + $0xaa] sm:$0xff]
        %v4960 = vld [vmem:[%s4006 + $0xb2] sm:$0xff]
        %v4961 = vld [vmem:[%s4006 + $0xc2] sm:$0xff]
        %v4962 = vld [vmem:[%s4006 + $0xca] sm:$0xff]
        %v4963 = vld [vmem:[%s4006 + $0xda] sm:$0xff]
        %v4964 = vld [vmem:[%s4006 + $0xe2] sm:$0xff]
        %v4965 = vld [vmem:[%s4006 + $0xf2] sm:$0xff]
        %v4966 = vld [vmem:[%s4006 + $0xfa] sm:$0xff]
        %v4967 = vld [vmem:[%s4006 + $0x10a] sm:$0xff]
        %v4968 = vld [vmem:[%s4006 + $0x112] sm:$0xff]
        %v4969 = vld [vmem:[%s4006 + $0x122] sm:$0xff]
        %v4970 = vld [vmem:[%s4006 + $0x12a] sm:$0xff]
        %v4971 = vld [vmem:[%s4006 + $0x13a] sm:$0xff]
        %v4972 = vld [vmem:[%s4006 + $0x142] sm:$0xff]
        %v4973 = vld [vmem:[%s4006 + $0x152] sm:$0xff]
        %v4974 = vld [vmem:[%s4006 + $0x15a] sm:$0xff]
        %v4975 = vld [vmem:[%s4006 + $0x16a] sm:$0xff]
        %v4976 = vld [vmem:[%s4006 + $0x172] sm:$0xff]
        %s4977 = scalar_lea.vmem [#allocation7], 640
        %v4978 = vld [vmem:[%s4977] sm:$0xff]
        %v4979 = vld [vmem:[%s4977 + $0x8] sm:$0xff]
        %v4980 = vld [vmem:[%s4977 + $0x10] sm:$0xff]
        %v4981 = vld [vmem:[%s4977 + $0x18] sm:$0xff]
        %v4982 = vld [vmem:[%s4977 + $0x20] sm:$0xff]
        %v4983 = vld [vmem:[%s4977 + $0x28] sm:$0xff]
        %v4984 = vld [vmem:[%s4977 + $0x30] sm:$0xff]
        %v4985 = vld [vmem:[%s4977 + $0x38] sm:$0xff]
        %v4986 = vld [vmem:[%s4977 + $0x40] sm:$0xff]
        %v4987 = vld [vmem:[%s4977 + $0x48] sm:$0xff]
        %v4988 = vld [vmem:[%s4977 + $0x50] sm:$0xff]
        %v4989 = vld [vmem:[%s4977 + $0x58] sm:$0xff]
        %v4990 = vld [vmem:[%s4977 + $0x60] sm:$0xff]
        %v4991 = vld [vmem:[%s4977 + $0x68] sm:$0xff]
        %v4992 = vld [vmem:[%s4977 + $0x70] sm:$0xff]
        %v4993 = vld [vmem:[%s4977 + $0x78] sm:$0xff]
        %4994 = vmatpush.msra.mxu0 %v4993
        %4995 = vmatpush.msra.mxu0 %v4992
        %4996 = vmatpush.msra.mxu0 %v4991
        %4997 = vmatpush.msra.mxu0 %v4990
        %4998 = vmatpush.msra.mxu0 %v4989
        %4999 = vmatpush.msra.mxu0 %v4988
        %5000 = vmatpush.msra.mxu0 %v4987
        %5001 = vmatpush.msra.mxu0 %v4986
        %5002 = vmatpush.msra.mxu0 %v4985
        %5003 = vmatpush.msra.mxu0 %v4984
        %5004 = vmatpush.msra.mxu0 %v4983
        %5005 = vmatpush.msra.mxu0 %v4982
        %5006 = vmatpush.msra.mxu0 %v4981
        %5007 = vmatpush.msra.mxu0 %v4980
        %5008 = vmatpush.msra.mxu0 %v4979
        %5009 = vmatpush.msra.mxu0 %v4978
        %5010 = vmatmul.f32.gmra.mxu0 %v4945
        %v5011 = vpop.f32.mrf.mxu0
        %v5012 = vadd.f32 0.0, %v5011
        %5013 = vmatmul.f32.gmra.mxu0 %v4946
        %v5014 = vpop.f32.mrf.mxu0
        %v5015 = vadd.f32 0.0, %v5014
        %5016 = vmatmul.f32.gmra.mxu0 %v4947
        %v5017 = vpop.f32.mrf.mxu0
        %v5018 = vadd.f32 0.0, %v5017
        %5019 = vmatmul.f32.gmra.mxu0 %v4948
        %v5020 = vpop.f32.mrf.mxu0
        %v5021 = vadd.f32 0.0, %v5020
        %5022 = vmatmul.f32.gmra.mxu0 %v4949
        %v5023 = vpop.f32.mrf.mxu0
        %v5024 = vadd.f32 0.0, %v5023
        %5025 = vmatmul.f32.gmra.mxu0 %v4950
        %v5026 = vpop.f32.mrf.mxu0
        %v5027 = vadd.f32 0.0, %v5026
        %5028 = vmatmul.f32.gmra.mxu0 %v4951
        %v5029 = vpop.f32.mrf.mxu0
        %v5030 = vadd.f32 0.0, %v5029
        %5031 = vmatmul.f32.gmra.mxu0 %v4952
        %v5032 = vpop.f32.mrf.mxu0
        %v5033 = vadd.f32 0.0, %v5032
        %5034 = vmatmul.f32.gmra.mxu0 %v4953
        %v5035 = vpop.f32.mrf.mxu0
        %v5036 = vadd.f32 0.0, %v5035
        %5037 = vmatmul.f32.gmra.mxu0 %v4954
        %v5038 = vpop.f32.mrf.mxu0
        %v5039 = vadd.f32 0.0, %v5038
        %5040 = vmatmul.f32.gmra.mxu0 %v4955
        %v5041 = vpop.f32.mrf.mxu0
        %v5042 = vadd.f32 0.0, %v5041
        %5043 = vmatmul.f32.gmra.mxu0 %v4956
        %v5044 = vpop.f32.mrf.mxu0
        %v5045 = vadd.f32 0.0, %v5044
        %5046 = vmatmul.f32.gmra.mxu0 %v4957
        %v5047 = vpop.f32.mrf.mxu0
        %v5048 = vadd.f32 0.0, %v5047
        %5049 = vmatmul.f32.gmra.mxu0 %v4958
        %v5050 = vpop.f32.mrf.mxu0
        %v5051 = vadd.f32 0.0, %v5050
        %5052 = vmatmul.f32.gmra.mxu0 %v4959
        %v5053 = vpop.f32.mrf.mxu0
        %v5054 = vadd.f32 0.0, %v5053
        %5055 = vmatmul.f32.gmra.mxu0 %v4960
        %v5056 = vpop.f32.mrf.mxu0
        %v5057 = vadd.f32 0.0, %v5056
        %5058 = vmatmul.f32.gmra.mxu0 %v4961
        %v5059 = vpop.f32.mrf.mxu0
        %v5060 = vadd.f32 0.0, %v5059
        %5061 = vmatmul.f32.gmra.mxu0 %v4962
        %v5062 = vpop.f32.mrf.mxu0
        %v5063 = vadd.f32 0.0, %v5062
        %5064 = vmatmul.f32.gmra.mxu0 %v4963
        %v5065 = vpop.f32.mrf.mxu0
        %v5066 = vadd.f32 0.0, %v5065
        %5067 = vmatmul.f32.gmra.mxu0 %v4964
        %v5068 = vpop.f32.mrf.mxu0
        %v5069 = vadd.f32 0.0, %v5068
        %5070 = vmatmul.f32.gmra.mxu0 %v4965
        %v5071 = vpop.f32.mrf.mxu0
        %v5072 = vadd.f32 0.0, %v5071
        %5073 = vmatmul.f32.gmra.mxu0 %v4966
        %v5074 = vpop.f32.mrf.mxu0
        %v5075 = vadd.f32 0.0, %v5074
        %5076 = vmatmul.f32.gmra.mxu0 %v4967
        %v5077 = vpop.f32.mrf.mxu0
        %v5078 = vadd.f32 0.0, %v5077
        %5079 = vmatmul.f32.gmra.mxu0 %v4968
        %v5080 = vpop.f32.mrf.mxu0
        %v5081 = vadd.f32 0.0, %v5080
        %5082 = vmatmul.f32.gmra.mxu0 %v4969
        %v5083 = vpop.f32.mrf.mxu0
        %v5084 = vadd.f32 0.0, %v5083
        %5085 = vmatmul.f32.gmra.mxu0 %v4970
        %v5086 = vpop.f32.mrf.mxu0
        %v5087 = vadd.f32 0.0, %v5086
        %5088 = vmatmul.f32.gmra.mxu0 %v4971
        %v5089 = vpop.f32.mrf.mxu0
        %v5090 = vadd.f32 0.0, %v5089
        %5091 = vmatmul.f32.gmra.mxu0 %v4972
        %v5092 = vpop.f32.mrf.mxu0
        %v5093 = vadd.f32 0.0, %v5092
        %5094 = vmatmul.f32.gmra.mxu0 %v4973
        %v5095 = vpop.f32.mrf.mxu0
        %v5096 = vadd.f32 0.0, %v5095
        %5097 = vmatmul.f32.gmra.mxu0 %v4974
        %v5098 = vpop.f32.mrf.mxu0
        %v5099 = vadd.f32 0.0, %v5098
        %5100 = vmatmul.f32.gmra.mxu0 %v4975
        %v5101 = vpop.f32.mrf.mxu0
        %v5102 = vadd.f32 0.0, %v5101
        %5103 = vmatmul.f32.gmra.mxu0 %v4976
        %v5104 = vpop.f32.mrf.mxu0
        %v5105 = vadd.f32 0.0, %v5104
        %5106 = vdwg.mxu0
        %v5107 = vadd.f32 %v4913, %v5012
        %v5108 = vadd.f32 %v4914, %v5015
        %v5109 = vadd.f32 %v4915, %v5018
        %v5110 = vadd.f32 %v4916, %v5021
        %v5111 = vadd.f32 %v4917, %v5024
        %v5112 = vadd.f32 %v4918, %v5027
        %v5113 = vadd.f32 %v4919, %v5030
        %v5114 = vadd.f32 %v4920, %v5033
        %v5115 = vadd.f32 %v4921, %v5036
        %v5116 = vadd.f32 %v4922, %v5039
        %v5117 = vadd.f32 %v4923, %v5042
        %v5118 = vadd.f32 %v4924, %v5045
        %v5119 = vadd.f32 %v4925, %v5048
        %v5120 = vadd.f32 %v4926, %v5051
        %v5121 = vadd.f32 %v4927, %v5054
        %v5122 = vadd.f32 %v4928, %v5057
        %v5123 = vadd.f32 %v4929, %v5060
        %v5124 = vadd.f32 %v4930, %v5063
        %v5125 = vadd.f32 %v4931, %v5066
        %v5126 = vadd.f32 %v4932, %v5069
        %v5127 = vadd.f32 %v4933, %v5072
        %v5128 = vadd.f32 %v4934, %v5075
        %v5129 = vadd.f32 %v4935, %v5078
        %v5130 = vadd.f32 %v4936, %v5081
        %v5131 = vadd.f32 %v4937, %v5084
        %v5132 = vadd.f32 %v4938, %v5087
        %v5133 = vadd.f32 %v4939, %v5090
        %v5134 = vadd.f32 %v4940, %v5093
        %v5135 = vadd.f32 %v4941, %v5096
        %v5136 = vadd.f32 %v4942, %v5099
        %v5137 = vadd.f32 %v4943, %v5102
        %v5138 = vadd.f32 %v4944, %v5105
        %s5139 = scalar_lea.vmem [#allocation3], 48
        %v5140 = vld [vmem:[%s5139] sm:$0xff]
        %v5141 = vld [vmem:[%s5139 + $0x8] sm:$0xff]
        %v5142 = vld [vmem:[%s5139 + $0x18] sm:$0xff]
        %v5143 = vld [vmem:[%s5139 + $0x20] sm:$0xff]
        %v5144 = vld [vmem:[%s5139 + $0x30] sm:$0xff]
        %v5145 = vld [vmem:[%s5139 + $0x38] sm:$0xff]
        %v5146 = vld [vmem:[%s5139 + $0x48] sm:$0xff]
        %v5147 = vld [vmem:[%s5139 + $0x50] sm:$0xff]
        %v5148 = vld [vmem:[%s5139 + $0x60] sm:$0xff]
        %v5149 = vld [vmem:[%s5139 + $0x68] sm:$0xff]
        %v5150 = vld [vmem:[%s5139 + $0x78] sm:$0xff]
        %v5151 = vld [vmem:[%s5139 + $0x80] sm:$0xff]
        %v5152 = vld [vmem:[%s5139 + $0x90] sm:$0xff]
        %v5153 = vld [vmem:[%s5139 + $0x98] sm:$0xff]
        %v5154 = vld [vmem:[%s5139 + $0xa8] sm:$0xff]
        %v5155 = vld [vmem:[%s5139 + $0xb0] sm:$0xff]
        %v5156 = vld [vmem:[%s5139 + $0xc0] sm:$0xff]
        %v5157 = vld [vmem:[%s5139 + $0xc8] sm:$0xff]
        %v5158 = vld [vmem:[%s5139 + $0xd8] sm:$0xff]
        %v5159 = vld [vmem:[%s5139 + $0xe0] sm:$0xff]
        %v5160 = vld [vmem:[%s5139 + $0xf0] sm:$0xff]
        %v5161 = vld [vmem:[%s5139 + $0xf8] sm:$0xff]
        %v5162 = vld [vmem:[%s5139 + $0x108] sm:$0xff]
        %v5163 = vld [vmem:[%s5139 + $0x110] sm:$0xff]
        %v5164 = vld [vmem:[%s5139 + $0x120] sm:$0xff]
        %v5165 = vld [vmem:[%s5139 + $0x128] sm:$0xff]
        %v5166 = vld [vmem:[%s5139 + $0x138] sm:$0xff]
        %v5167 = vld [vmem:[%s5139 + $0x140] sm:$0xff]
        %v5168 = vld [vmem:[%s5139 + $0x150] sm:$0xff]
        %v5169 = vld [vmem:[%s5139 + $0x158] sm:$0xff]
        %v5170 = vld [vmem:[%s5139 + $0x168] sm:$0xff]
        %v5171 = vld [vmem:[%s5139 + $0x170] sm:$0xff]
        %s5172 = scalar_lea.vmem [#allocation7], 768
        %v5173 = vld [vmem:[%s5172] sm:$0xff]
        %v5174 = vld [vmem:[%s5172 + $0x8] sm:$0xff]
        %v5175 = vld [vmem:[%s5172 + $0x10] sm:$0xff]
        %v5176 = vld [vmem:[%s5172 + $0x18] sm:$0xff]
        %v5177 = vld [vmem:[%s5172 + $0x20] sm:$0xff]
        %v5178 = vld [vmem:[%s5172 + $0x28] sm:$0xff]
        %v5179 = vld [vmem:[%s5172 + $0x30] sm:$0xff]
        %v5180 = vld [vmem:[%s5172 + $0x38] sm:$0xff]
        %v5181 = vld [vmem:[%s5172 + $0x40] sm:$0xff]
        %v5182 = vld [vmem:[%s5172 + $0x48] sm:$0xff]
        %v5183 = vld [vmem:[%s5172 + $0x50] sm:$0xff]
        %v5184 = vld [vmem:[%s5172 + $0x58] sm:$0xff]
        %v5185 = vld [vmem:[%s5172 + $0x60] sm:$0xff]
        %v5186 = vld [vmem:[%s5172 + $0x68] sm:$0xff]
        %v5187 = vld [vmem:[%s5172 + $0x70] sm:$0xff]
        %v5188 = vld [vmem:[%s5172 + $0x78] sm:$0xff]
        %5189 = vmatpush.msra.mxu0 %v5188
        %5190 = vmatpush.msra.mxu0 %v5187
        %5191 = vmatpush.msra.mxu0 %v5186
        %5192 = vmatpush.msra.mxu0 %v5185
        %5193 = vmatpush.msra.mxu0 %v5184
        %5194 = vmatpush.msra.mxu0 %v5183
        %5195 = vmatpush.msra.mxu0 %v5182
        %5196 = vmatpush.msra.mxu0 %v5181
        %5197 = vmatpush.msra.mxu0 %v5180
        %5198 = vmatpush.msra.mxu0 %v5179
        %5199 = vmatpush.msra.mxu0 %v5178
        %5200 = vmatpush.msra.mxu0 %v5177
        %5201 = vmatpush.msra.mxu0 %v5176
        %5202 = vmatpush.msra.mxu0 %v5175
        %5203 = vmatpush.msra.mxu0 %v5174
        %5204 = vmatpush.msra.mxu0 %v5173
        %5205 = vmatmul.f32.gmra.mxu0 %v5140
        %v5206 = vpop.f32.mrf.mxu0
        %v5207 = vadd.f32 0.0, %v5206
        %5208 = vmatmul.f32.gmra.mxu0 %v5141
        %v5209 = vpop.f32.mrf.mxu0
        %v5210 = vadd.f32 0.0, %v5209
        %5211 = vmatmul.f32.gmra.mxu0 %v5142
        %v5212 = vpop.f32.mrf.mxu0
        %v5213 = vadd.f32 0.0, %v5212
        %5214 = vmatmul.f32.gmra.mxu0 %v5143
        %v5215 = vpop.f32.mrf.mxu0
        %v5216 = vadd.f32 0.0, %v5215
        %5217 = vmatmul.f32.gmra.mxu0 %v5144
        %v5218 = vpop.f32.mrf.mxu0
        %v5219 = vadd.f32 0.0, %v5218
        %5220 = vmatmul.f32.gmra.mxu0 %v5145
        %v5221 = vpop.f32.mrf.mxu0
        %v5222 = vadd.f32 0.0, %v5221
        %5223 = vmatmul.f32.gmra.mxu0 %v5146
        %v5224 = vpop.f32.mrf.mxu0
        %v5225 = vadd.f32 0.0, %v5224
        %5226 = vmatmul.f32.gmra.mxu0 %v5147
        %v5227 = vpop.f32.mrf.mxu0
        %v5228 = vadd.f32 0.0, %v5227
        %5229 = vmatmul.f32.gmra.mxu0 %v5148
        %v5230 = vpop.f32.mrf.mxu0
        %v5231 = vadd.f32 0.0, %v5230
        %5232 = vmatmul.f32.gmra.mxu0 %v5149
        %v5233 = vpop.f32.mrf.mxu0
        %v5234 = vadd.f32 0.0, %v5233
        %5235 = vmatmul.f32.gmra.mxu0 %v5150
        %v5236 = vpop.f32.mrf.mxu0
        %v5237 = vadd.f32 0.0, %v5236
        %5238 = vmatmul.f32.gmra.mxu0 %v5151
        %v5239 = vpop.f32.mrf.mxu0
        %v5240 = vadd.f32 0.0, %v5239
        %5241 = vmatmul.f32.gmra.mxu0 %v5152
        %v5242 = vpop.f32.mrf.mxu0
        %v5243 = vadd.f32 0.0, %v5242
        %5244 = vmatmul.f32.gmra.mxu0 %v5153
        %v5245 = vpop.f32.mrf.mxu0
        %v5246 = vadd.f32 0.0, %v5245
        %5247 = vmatmul.f32.gmra.mxu0 %v5154
        %v5248 = vpop.f32.mrf.mxu0
        %v5249 = vadd.f32 0.0, %v5248
        %5250 = vmatmul.f32.gmra.mxu0 %v5155
        %v5251 = vpop.f32.mrf.mxu0
        %v5252 = vadd.f32 0.0, %v5251
        %5253 = vmatmul.f32.gmra.mxu0 %v5156
        %v5254 = vpop.f32.mrf.mxu0
        %v5255 = vadd.f32 0.0, %v5254
        %5256 = vmatmul.f32.gmra.mxu0 %v5157
        %v5257 = vpop.f32.mrf.mxu0
        %v5258 = vadd.f32 0.0, %v5257
        %5259 = vmatmul.f32.gmra.mxu0 %v5158
        %v5260 = vpop.f32.mrf.mxu0
        %v5261 = vadd.f32 0.0, %v5260
        %5262 = vmatmul.f32.gmra.mxu0 %v5159
        %v5263 = vpop.f32.mrf.mxu0
        %v5264 = vadd.f32 0.0, %v5263
        %5265 = vmatmul.f32.gmra.mxu0 %v5160
        %v5266 = vpop.f32.mrf.mxu0
        %v5267 = vadd.f32 0.0, %v5266
        %5268 = vmatmul.f32.gmra.mxu0 %v5161
        %v5269 = vpop.f32.mrf.mxu0
        %v5270 = vadd.f32 0.0, %v5269
        %5271 = vmatmul.f32.gmra.mxu0 %v5162
        %v5272 = vpop.f32.mrf.mxu0
        %v5273 = vadd.f32 0.0, %v5272
        %5274 = vmatmul.f32.gmra.mxu0 %v5163
        %v5275 = vpop.f32.mrf.mxu0
        %v5276 = vadd.f32 0.0, %v5275
        %5277 = vmatmul.f32.gmra.mxu0 %v5164
        %v5278 = vpop.f32.mrf.mxu0
        %v5279 = vadd.f32 0.0, %v5278
        %5280 = vmatmul.f32.gmra.mxu0 %v5165
        %v5281 = vpop.f32.mrf.mxu0
        %v5282 = vadd.f32 0.0, %v5281
        %5283 = vmatmul.f32.gmra.mxu0 %v5166
        %v5284 = vpop.f32.mrf.mxu0
        %v5285 = vadd.f32 0.0, %v5284
        %5286 = vmatmul.f32.gmra.mxu0 %v5167
        %v5287 = vpop.f32.mrf.mxu0
        %v5288 = vadd.f32 0.0, %v5287
        %5289 = vmatmul.f32.gmra.mxu0 %v5168
        %v5290 = vpop.f32.mrf.mxu0
        %v5291 = vadd.f32 0.0, %v5290
        %5292 = vmatmul.f32.gmra.mxu0 %v5169
        %v5293 = vpop.f32.mrf.mxu0
        %v5294 = vadd.f32 0.0, %v5293
        %5295 = vmatmul.f32.gmra.mxu0 %v5170
        %v5296 = vpop.f32.mrf.mxu0
        %v5297 = vadd.f32 0.0, %v5296
        %5298 = vmatmul.f32.gmra.mxu0 %v5171
        %v5299 = vpop.f32.mrf.mxu0
        %v5300 = vadd.f32 0.0, %v5299
        %5301 = vdwg.mxu0
        %v5302 = vadd.f32 %v5107, %v5207
        %v5303 = vadd.f32 %v5108, %v5210
        %v5304 = vadd.f32 %v5109, %v5213
        %v5305 = vadd.f32 %v5110, %v5216
        %v5306 = vadd.f32 %v5111, %v5219
        %v5307 = vadd.f32 %v5112, %v5222
        %v5308 = vadd.f32 %v5113, %v5225
        %v5309 = vadd.f32 %v5114, %v5228
        %v5310 = vadd.f32 %v5115, %v5231
        %v5311 = vadd.f32 %v5116, %v5234
        %v5312 = vadd.f32 %v5117, %v5237
        %v5313 = vadd.f32 %v5118, %v5240
        %v5314 = vadd.f32 %v5119, %v5243
        %v5315 = vadd.f32 %v5120, %v5246
        %v5316 = vadd.f32 %v5121, %v5249
        %v5317 = vadd.f32 %v5122, %v5252
        %v5318 = vadd.f32 %v5123, %v5255
        %v5319 = vadd.f32 %v5124, %v5258
        %v5320 = vadd.f32 %v5125, %v5261
        %v5321 = vadd.f32 %v5126, %v5264
        %v5322 = vadd.f32 %v5127, %v5267
        %v5323 = vadd.f32 %v5128, %v5270
        %v5324 = vadd.f32 %v5129, %v5273
        %v5325 = vadd.f32 %v5130, %v5276
        %v5326 = vadd.f32 %v5131, %v5279
        %v5327 = vadd.f32 %v5132, %v5282
        %v5328 = vadd.f32 %v5133, %v5285
        %v5329 = vadd.f32 %v5134, %v5288
        %v5330 = vadd.f32 %v5135, %v5291
        %v5331 = vadd.f32 %v5136, %v5294
        %v5332 = vadd.f32 %v5137, %v5297
        %v5333 = vadd.f32 %v5138, %v5300
        %v5334 = vld [vmem:[%s5139 + $0x1] sm:$0xff]
        %v5335 = vld [vmem:[%s5139 + $0x9] sm:$0xff]
        %v5336 = vld [vmem:[%s5139 + $0x19] sm:$0xff]
        %v5337 = vld [vmem:[%s5139 + $0x21] sm:$0xff]
        %v5338 = vld [vmem:[%s5139 + $0x31] sm:$0xff]
        %v5339 = vld [vmem:[%s5139 + $0x39] sm:$0xff]
        %v5340 = vld [vmem:[%s5139 + $0x49] sm:$0xff]
        %v5341 = vld [vmem:[%s5139 + $0x51] sm:$0xff]
        %v5342 = vld [vmem:[%s5139 + $0x61] sm:$0xff]
        %v5343 = vld [vmem:[%s5139 + $0x69] sm:$0xff]
        %v5344 = vld [vmem:[%s5139 + $0x79] sm:$0xff]
        %v5345 = vld [vmem:[%s5139 + $0x81] sm:$0xff]
        %v5346 = vld [vmem:[%s5139 + $0x91] sm:$0xff]
        %v5347 = vld [vmem:[%s5139 + $0x99] sm:$0xff]
        %v5348 = vld [vmem:[%s5139 + $0xa9] sm:$0xff]
        %v5349 = vld [vmem:[%s5139 + $0xb1] sm:$0xff]
        %v5350 = vld [vmem:[%s5139 + $0xc1] sm:$0xff]
        %v5351 = vld [vmem:[%s5139 + $0xc9] sm:$0xff]
        %v5352 = vld [vmem:[%s5139 + $0xd9] sm:$0xff]
        %v5353 = vld [vmem:[%s5139 + $0xe1] sm:$0xff]
        %v5354 = vld [vmem:[%s5139 + $0xf1] sm:$0xff]
        %v5355 = vld [vmem:[%s5139 + $0xf9] sm:$0xff]
        %v5356 = vld [vmem:[%s5139 + $0x109] sm:$0xff]
        %v5357 = vld [vmem:[%s5139 + $0x111] sm:$0xff]
        %v5358 = vld [vmem:[%s5139 + $0x121] sm:$0xff]
        %v5359 = vld [vmem:[%s5139 + $0x129] sm:$0xff]
        %v5360 = vld [vmem:[%s5139 + $0x139] sm:$0xff]
        %v5361 = vld [vmem:[%s5139 + $0x141] sm:$0xff]
        %v5362 = vld [vmem:[%s5139 + $0x151] sm:$0xff]
        %v5363 = vld [vmem:[%s5139 + $0x159] sm:$0xff]
        %v5364 = vld [vmem:[%s5139 + $0x169] sm:$0xff]
        %v5365 = vld [vmem:[%s5139 + $0x171] sm:$0xff]
        %s5366 = scalar_lea.vmem [#allocation7], 896
        %v5367 = vld [vmem:[%s5366] sm:$0xff]
        %v5368 = vld [vmem:[%s5366 + $0x8] sm:$0xff]
        %v5369 = vld [vmem:[%s5366 + $0x10] sm:$0xff]
        %v5370 = vld [vmem:[%s5366 + $0x18] sm:$0xff]
        %v5371 = vld [vmem:[%s5366 + $0x20] sm:$0xff]
        %v5372 = vld [vmem:[%s5366 + $0x28] sm:$0xff]
        %v5373 = vld [vmem:[%s5366 + $0x30] sm:$0xff]
        %v5374 = vld [vmem:[%s5366 + $0x38] sm:$0xff]
        %v5375 = vld [vmem:[%s5366 + $0x40] sm:$0xff]
        %v5376 = vld [vmem:[%s5366 + $0x48] sm:$0xff]
        %v5377 = vld [vmem:[%s5366 + $0x50] sm:$0xff]
        %v5378 = vld [vmem:[%s5366 + $0x58] sm:$0xff]
        %v5379 = vld [vmem:[%s5366 + $0x60] sm:$0xff]
        %v5380 = vld [vmem:[%s5366 + $0x68] sm:$0xff]
        %v5381 = vld [vmem:[%s5366 + $0x70] sm:$0xff]
        %v5382 = vld [vmem:[%s5366 + $0x78] sm:$0xff]
        %5383 = vmatpush.msra.mxu0 %v5382
        %5384 = vmatpush.msra.mxu0 %v5381
        %5385 = vmatpush.msra.mxu0 %v5380
        %5386 = vmatpush.msra.mxu0 %v5379
        %5387 = vmatpush.msra.mxu0 %v5378
        %5388 = vmatpush.msra.mxu0 %v5377
        %5389 = vmatpush.msra.mxu0 %v5376
        %5390 = vmatpush.msra.mxu0 %v5375
        %5391 = vmatpush.msra.mxu0 %v5374
        %5392 = vmatpush.msra.mxu0 %v5373
        %5393 = vmatpush.msra.mxu0 %v5372
        %5394 = vmatpush.msra.mxu0 %v5371
        %5395 = vmatpush.msra.mxu0 %v5370
        %5396 = vmatpush.msra.mxu0 %v5369
        %5397 = vmatpush.msra.mxu0 %v5368
        %5398 = vmatpush.msra.mxu0 %v5367
        %5399 = vmatmul.f32.gmra.mxu0 %v5334
        %v5400 = vpop.f32.mrf.mxu0
        %v5401 = vadd.f32 0.0, %v5400
        %5402 = vmatmul.f32.gmra.mxu0 %v5335
        %v5403 = vpop.f32.mrf.mxu0
        %v5404 = vadd.f32 0.0, %v5403
        %5405 = vmatmul.f32.gmra.mxu0 %v5336
        %v5406 = vpop.f32.mrf.mxu0
        %v5407 = vadd.f32 0.0, %v5406
        %5408 = vmatmul.f32.gmra.mxu0 %v5337
        %v5409 = vpop.f32.mrf.mxu0
        %v5410 = vadd.f32 0.0, %v5409
        %5411 = vmatmul.f32.gmra.mxu0 %v5338
        %v5412 = vpop.f32.mrf.mxu0
        %v5413 = vadd.f32 0.0, %v5412
        %5414 = vmatmul.f32.gmra.mxu0 %v5339
        %v5415 = vpop.f32.mrf.mxu0
        %v5416 = vadd.f32 0.0, %v5415
        %5417 = vmatmul.f32.gmra.mxu0 %v5340
        %v5418 = vpop.f32.mrf.mxu0
        %v5419 = vadd.f32 0.0, %v5418
        %5420 = vmatmul.f32.gmra.mxu0 %v5341
        %v5421 = vpop.f32.mrf.mxu0
        %v5422 = vadd.f32 0.0, %v5421
        %5423 = vmatmul.f32.gmra.mxu0 %v5342
        %v5424 = vpop.f32.mrf.mxu0
        %v5425 = vadd.f32 0.0, %v5424
        %5426 = vmatmul.f32.gmra.mxu0 %v5343
        %v5427 = vpop.f32.mrf.mxu0
        %v5428 = vadd.f32 0.0, %v5427
        %5429 = vmatmul.f32.gmra.mxu0 %v5344
        %v5430 = vpop.f32.mrf.mxu0
        %v5431 = vadd.f32 0.0, %v5430
        %5432 = vmatmul.f32.gmra.mxu0 %v5345
        %v5433 = vpop.f32.mrf.mxu0
        %v5434 = vadd.f32 0.0, %v5433
        %5435 = vmatmul.f32.gmra.mxu0 %v5346
        %v5436 = vpop.f32.mrf.mxu0
        %v5437 = vadd.f32 0.0, %v5436
        %5438 = vmatmul.f32.gmra.mxu0 %v5347
        %v5439 = vpop.f32.mrf.mxu0
        %v5440 = vadd.f32 0.0, %v5439
        %5441 = vmatmul.f32.gmra.mxu0 %v5348
        %v5442 = vpop.f32.mrf.mxu0
        %v5443 = vadd.f32 0.0, %v5442
        %5444 = vmatmul.f32.gmra.mxu0 %v5349
        %v5445 = vpop.f32.mrf.mxu0
        %v5446 = vadd.f32 0.0, %v5445
        %5447 = vmatmul.f32.gmra.mxu0 %v5350
        %v5448 = vpop.f32.mrf.mxu0
        %v5449 = vadd.f32 0.0, %v5448
        %5450 = vmatmul.f32.gmra.mxu0 %v5351
        %v5451 = vpop.f32.mrf.mxu0
        %v5452 = vadd.f32 0.0, %v5451
        %5453 = vmatmul.f32.gmra.mxu0 %v5352
        %v5454 = vpop.f32.mrf.mxu0
        %v5455 = vadd.f32 0.0, %v5454
        %5456 = vmatmul.f32.gmra.mxu0 %v5353
        %v5457 = vpop.f32.mrf.mxu0
        %v5458 = vadd.f32 0.0, %v5457
        %5459 = vmatmul.f32.gmra.mxu0 %v5354
        %v5460 = vpop.f32.mrf.mxu0
        %v5461 = vadd.f32 0.0, %v5460
        %5462 = vmatmul.f32.gmra.mxu0 %v5355
        %v5463 = vpop.f32.mrf.mxu0
        %v5464 = vadd.f32 0.0, %v5463
        %5465 = vmatmul.f32.gmra.mxu0 %v5356
        %v5466 = vpop.f32.mrf.mxu0
        %v5467 = vadd.f32 0.0, %v5466
        %5468 = vmatmul.f32.gmra.mxu0 %v5357
        %v5469 = vpop.f32.mrf.mxu0
        %v5470 = vadd.f32 0.0, %v5469
        %5471 = vmatmul.f32.gmra.mxu0 %v5358
        %v5472 = vpop.f32.mrf.mxu0
        %v5473 = vadd.f32 0.0, %v5472
        %5474 = vmatmul.f32.gmra.mxu0 %v5359
        %v5475 = vpop.f32.mrf.mxu0
        %v5476 = vadd.f32 0.0, %v5475
        %5477 = vmatmul.f32.gmra.mxu0 %v5360
        %v5478 = vpop.f32.mrf.mxu0
        %v5479 = vadd.f32 0.0, %v5478
        %5480 = vmatmul.f32.gmra.mxu0 %v5361
        %v5481 = vpop.f32.mrf.mxu0
        %v5482 = vadd.f32 0.0, %v5481
        %5483 = vmatmul.f32.gmra.mxu0 %v5362
        %v5484 = vpop.f32.mrf.mxu0
        %v5485 = vadd.f32 0.0, %v5484
        %5486 = vmatmul.f32.gmra.mxu0 %v5363
        %v5487 = vpop.f32.mrf.mxu0
        %v5488 = vadd.f32 0.0, %v5487
        %5489 = vmatmul.f32.gmra.mxu0 %v5364
        %v5490 = vpop.f32.mrf.mxu0
        %v5491 = vadd.f32 0.0, %v5490
        %5492 = vmatmul.f32.gmra.mxu0 %v5365
        %v5493 = vpop.f32.mrf.mxu0
        %v5494 = vadd.f32 0.0, %v5493
        %5495 = vdwg.mxu0
        %v5496 = vadd.f32 %v5302, %v5401
        %v5497 = vadd.f32 %v5303, %v5404
        %v5498 = vadd.f32 %v5304, %v5407
        %v5499 = vadd.f32 %v5305, %v5410
        %v5500 = vadd.f32 %v5306, %v5413
        %v5501 = vadd.f32 %v5307, %v5416
        %v5502 = vadd.f32 %v5308, %v5419
        %v5503 = vadd.f32 %v5309, %v5422
        %v5504 = vadd.f32 %v5310, %v5425
        %v5505 = vadd.f32 %v5311, %v5428
        %v5506 = vadd.f32 %v5312, %v5431
        %v5507 = vadd.f32 %v5313, %v5434
        %v5508 = vadd.f32 %v5314, %v5437
        %v5509 = vadd.f32 %v5315, %v5440
        %v5510 = vadd.f32 %v5316, %v5443
        %v5511 = vadd.f32 %v5317, %v5446
        %v5512 = vadd.f32 %v5318, %v5449
        %v5513 = vadd.f32 %v5319, %v5452
        %v5514 = vadd.f32 %v5320, %v5455
        %v5515 = vadd.f32 %v5321, %v5458
        %v5516 = vadd.f32 %v5322, %v5461
        %v5517 = vadd.f32 %v5323, %v5464
        %v5518 = vadd.f32 %v5324, %v5467
        %v5519 = vadd.f32 %v5325, %v5470
        %v5520 = vadd.f32 %v5326, %v5473
        %v5521 = vadd.f32 %v5327, %v5476
        %v5522 = vadd.f32 %v5328, %v5479
        %v5523 = vadd.f32 %v5329, %v5482
        %v5524 = vadd.f32 %v5330, %v5485
        %v5525 = vadd.f32 %v5331, %v5488
        %v5526 = vadd.f32 %v5332, %v5491
        %v5527 = vadd.f32 %v5333, %v5494
        %v5528 = vld [vmem:[%s5139 + $0x2] sm:$0xff]
        %v5529 = vld [vmem:[%s5139 + $0xa] sm:$0xff]
        %v5530 = vld [vmem:[%s5139 + $0x1a] sm:$0xff]
        %v5531 = vld [vmem:[%s5139 + $0x22] sm:$0xff]
        %v5532 = vld [vmem:[%s5139 + $0x32] sm:$0xff]
        %v5533 = vld [vmem:[%s5139 + $0x3a] sm:$0xff]
        %v5534 = vld [vmem:[%s5139 + $0x4a] sm:$0xff]
        %v5535 = vld [vmem:[%s5139 + $0x52] sm:$0xff]
        %v5536 = vld [vmem:[%s5139 + $0x62] sm:$0xff]
        %v5537 = vld [vmem:[%s5139 + $0x6a] sm:$0xff]
        %v5538 = vld [vmem:[%s5139 + $0x7a] sm:$0xff]
        %v5539 = vld [vmem:[%s5139 + $0x82] sm:$0xff]
        %v5540 = vld [vmem:[%s5139 + $0x92] sm:$0xff]
        %v5541 = vld [vmem:[%s5139 + $0x9a] sm:$0xff]
        %v5542 = vld [vmem:[%s5139 + $0xaa] sm:$0xff]
        %v5543 = vld [vmem:[%s5139 + $0xb2] sm:$0xff]
        %v5544 = vld [vmem:[%s5139 + $0xc2] sm:$0xff]
        %v5545 = vld [vmem:[%s5139 + $0xca] sm:$0xff]
        %v5546 = vld [vmem:[%s5139 + $0xda] sm:$0xff]
        %v5547 = vld [vmem:[%s5139 + $0xe2] sm:$0xff]
        %v5548 = vld [vmem:[%s5139 + $0xf2] sm:$0xff]
        %v5549 = vld [vmem:[%s5139 + $0xfa] sm:$0xff]
        %v5550 = vld [vmem:[%s5139 + $0x10a] sm:$0xff]
        %v5551 = vld [vmem:[%s5139 + $0x112] sm:$0xff]
        %v5552 = vld [vmem:[%s5139 + $0x122] sm:$0xff]
        %v5553 = vld [vmem:[%s5139 + $0x12a] sm:$0xff]
        %v5554 = vld [vmem:[%s5139 + $0x13a] sm:$0xff]
        %v5555 = vld [vmem:[%s5139 + $0x142] sm:$0xff]
        %v5556 = vld [vmem:[%s5139 + $0x152] sm:$0xff]
        %v5557 = vld [vmem:[%s5139 + $0x15a] sm:$0xff]
        %v5558 = vld [vmem:[%s5139 + $0x16a] sm:$0xff]
        %v5559 = vld [vmem:[%s5139 + $0x172] sm:$0xff]
        %s5560 = scalar_lea.vmem [#allocation7], 1024
        %v5561 = vld [vmem:[%s5560] sm:$0xff]
        %v5562 = vld [vmem:[%s5560 + $0x8] sm:$0xff]
        %v5563 = vld [vmem:[%s5560 + $0x10] sm:$0xff]
        %v5564 = vld [vmem:[%s5560 + $0x18] sm:$0xff]
        %v5565 = vld [vmem:[%s5560 + $0x20] sm:$0xff]
        %v5566 = vld [vmem:[%s5560 + $0x28] sm:$0xff]
        %v5567 = vld [vmem:[%s5560 + $0x30] sm:$0xff]
        %v5568 = vld [vmem:[%s5560 + $0x38] sm:$0xff]
        %v5569 = vld [vmem:[%s5560 + $0x40] sm:$0xff]
        %v5570 = vld [vmem:[%s5560 + $0x48] sm:$0xff]
        %v5571 = vld [vmem:[%s5560 + $0x50] sm:$0xff]
        %v5572 = vld [vmem:[%s5560 + $0x58] sm:$0xff]
        %v5573 = vld [vmem:[%s5560 + $0x60] sm:$0xff]
        %v5574 = vld [vmem:[%s5560 + $0x68] sm:$0xff]
        %v5575 = vld [vmem:[%s5560 + $0x70] sm:$0xff]
        %v5576 = vld [vmem:[%s5560 + $0x78] sm:$0xff]
        %5577 = vmatpush.msra.mxu0 %v5576
        %5578 = vmatpush.msra.mxu0 %v5575
        %5579 = vmatpush.msra.mxu0 %v5574
        %5580 = vmatpush.msra.mxu0 %v5573
        %5581 = vmatpush.msra.mxu0 %v5572
        %5582 = vmatpush.msra.mxu0 %v5571
        %5583 = vmatpush.msra.mxu0 %v5570
        %5584 = vmatpush.msra.mxu0 %v5569
        %5585 = vmatpush.msra.mxu0 %v5568
        %5586 = vmatpush.msra.mxu0 %v5567
        %5587 = vmatpush.msra.mxu0 %v5566
        %5588 = vmatpush.msra.mxu0 %v5565
        %5589 = vmatpush.msra.mxu0 %v5564
        %5590 = vmatpush.msra.mxu0 %v5563
        %5591 = vmatpush.msra.mxu0 %v5562
        %5592 = vmatpush.msra.mxu0 %v5561
        %5593 = vmatmul.f32.gmra.mxu0 %v5528
        %v5594 = vpop.f32.mrf.mxu0
        %v5595 = vadd.f32 0.0, %v5594
        %5596 = vmatmul.f32.gmra.mxu0 %v5529
        %v5597 = vpop.f32.mrf.mxu0
        %v5598 = vadd.f32 0.0, %v5597
        %5599 = vmatmul.f32.gmra.mxu0 %v5530
        %v5600 = vpop.f32.mrf.mxu0
        %v5601 = vadd.f32 0.0, %v5600
        %5602 = vmatmul.f32.gmra.mxu0 %v5531
        %v5603 = vpop.f32.mrf.mxu0
        %v5604 = vadd.f32 0.0, %v5603
        %5605 = vmatmul.f32.gmra.mxu0 %v5532
        %v5606 = vpop.f32.mrf.mxu0
        %v5607 = vadd.f32 0.0, %v5606
        %5608 = vmatmul.f32.gmra.mxu0 %v5533
        %v5609 = vpop.f32.mrf.mxu0
        %v5610 = vadd.f32 0.0, %v5609
        %5611 = vmatmul.f32.gmra.mxu0 %v5534
        %v5612 = vpop.f32.mrf.mxu0
        %v5613 = vadd.f32 0.0, %v5612
        %5614 = vmatmul.f32.gmra.mxu0 %v5535
        %v5615 = vpop.f32.mrf.mxu0
        %v5616 = vadd.f32 0.0, %v5615
        %5617 = vmatmul.f32.gmra.mxu0 %v5536
        %v5618 = vpop.f32.mrf.mxu0
        %v5619 = vadd.f32 0.0, %v5618
        %5620 = vmatmul.f32.gmra.mxu0 %v5537
        %v5621 = vpop.f32.mrf.mxu0
        %v5622 = vadd.f32 0.0, %v5621
        %5623 = vmatmul.f32.gmra.mxu0 %v5538
        %v5624 = vpop.f32.mrf.mxu0
        %v5625 = vadd.f32 0.0, %v5624
        %5626 = vmatmul.f32.gmra.mxu0 %v5539
        %v5627 = vpop.f32.mrf.mxu0
        %v5628 = vadd.f32 0.0, %v5627
        %5629 = vmatmul.f32.gmra.mxu0 %v5540
        %v5630 = vpop.f32.mrf.mxu0
        %v5631 = vadd.f32 0.0, %v5630
        %5632 = vmatmul.f32.gmra.mxu0 %v5541
        %v5633 = vpop.f32.mrf.mxu0
        %v5634 = vadd.f32 0.0, %v5633
        %5635 = vmatmul.f32.gmra.mxu0 %v5542
        %v5636 = vpop.f32.mrf.mxu0
        %v5637 = vadd.f32 0.0, %v5636
        %5638 = vmatmul.f32.gmra.mxu0 %v5543
        %v5639 = vpop.f32.mrf.mxu0
        %v5640 = vadd.f32 0.0, %v5639
        %5641 = vmatmul.f32.gmra.mxu0 %v5544
        %v5642 = vpop.f32.mrf.mxu0
        %v5643 = vadd.f32 0.0, %v5642
        %5644 = vmatmul.f32.gmra.mxu0 %v5545
        %v5645 = vpop.f32.mrf.mxu0
        %v5646 = vadd.f32 0.0, %v5645
        %5647 = vmatmul.f32.gmra.mxu0 %v5546
        %v5648 = vpop.f32.mrf.mxu0
        %v5649 = vadd.f32 0.0, %v5648
        %5650 = vmatmul.f32.gmra.mxu0 %v5547
        %v5651 = vpop.f32.mrf.mxu0
        %v5652 = vadd.f32 0.0, %v5651
        %5653 = vmatmul.f32.gmra.mxu0 %v5548
        %v5654 = vpop.f32.mrf.mxu0
        %v5655 = vadd.f32 0.0, %v5654
        %5656 = vmatmul.f32.gmra.mxu0 %v5549
        %v5657 = vpop.f32.mrf.mxu0
        %v5658 = vadd.f32 0.0, %v5657
        %5659 = vmatmul.f32.gmra.mxu0 %v5550
        %v5660 = vpop.f32.mrf.mxu0
        %v5661 = vadd.f32 0.0, %v5660
        %5662 = vmatmul.f32.gmra.mxu0 %v5551
        %v5663 = vpop.f32.mrf.mxu0
        %v5664 = vadd.f32 0.0, %v5663
        %5665 = vmatmul.f32.gmra.mxu0 %v5552
        %v5666 = vpop.f32.mrf.mxu0
        %v5667 = vadd.f32 0.0, %v5666
        %5668 = vmatmul.f32.gmra.mxu0 %v5553
        %v5669 = vpop.f32.mrf.mxu0
        %v5670 = vadd.f32 0.0, %v5669
        %5671 = vmatmul.f32.gmra.mxu0 %v5554
        %v5672 = vpop.f32.mrf.mxu0
        %v5673 = vadd.f32 0.0, %v5672
        %5674 = vmatmul.f32.gmra.mxu0 %v5555
        %v5675 = vpop.f32.mrf.mxu0
        %v5676 = vadd.f32 0.0, %v5675
        %5677 = vmatmul.f32.gmra.mxu0 %v5556
        %v5678 = vpop.f32.mrf.mxu0
        %v5679 = vadd.f32 0.0, %v5678
        %5680 = vmatmul.f32.gmra.mxu0 %v5557
        %v5681 = vpop.f32.mrf.mxu0
        %v5682 = vadd.f32 0.0, %v5681
        %5683 = vmatmul.f32.gmra.mxu0 %v5558
        %v5684 = vpop.f32.mrf.mxu0
        %v5685 = vadd.f32 0.0, %v5684
        %5686 = vmatmul.f32.gmra.mxu0 %v5559
        %v5687 = vpop.f32.mrf.mxu0
        %v5688 = vadd.f32 0.0, %v5687
        %5689 = vdwg.mxu0
        %v5690 = vadd.f32 %v5496, %v5595
        %v5691 = vadd.f32 %v5497, %v5598
        %v5692 = vadd.f32 %v5498, %v5601
        %v5693 = vadd.f32 %v5499, %v5604
        %v5694 = vadd.f32 %v5500, %v5607
        %v5695 = vadd.f32 %v5501, %v5610
        %v5696 = vadd.f32 %v5502, %v5613
        %v5697 = vadd.f32 %v5503, %v5616
        %v5698 = vadd.f32 %v5504, %v5619
        %v5699 = vadd.f32 %v5505, %v5622
        %v5700 = vadd.f32 %v5506, %v5625
        %v5701 = vadd.f32 %v5507, %v5628
        %v5702 = vadd.f32 %v5508, %v5631
        %v5703 = vadd.f32 %v5509, %v5634
        %v5704 = vadd.f32 %v5510, %v5637
        %v5705 = vadd.f32 %v5511, %v5640
        %v5706 = vadd.f32 %v5512, %v5643
        %v5707 = vadd.f32 %v5513, %v5646
        %v5708 = vadd.f32 %v5514, %v5649
        %v5709 = vadd.f32 %v5515, %v5652
        %v5710 = vadd.f32 %v5516, %v5655
        %v5711 = vadd.f32 %v5517, %v5658
        %v5712 = vadd.f32 %v5518, %v5661
        %v5713 = vadd.f32 %v5519, %v5664
        %v5714 = vadd.f32 %v5520, %v5667
        %v5715 = vadd.f32 %v5521, %v5670
        %v5716 = vadd.f32 %v5522, %v5673
        %v5717 = vadd.f32 %v5523, %v5676
        %v5718 = vadd.f32 %v5524, %v5679
        %v5719 = vadd.f32 %v5525, %v5682
        %v5720 = vadd.f32 %v5526, %v5685
        %v5721 = vadd.f32 %v5527, %v5688
        %v5723 = vperm.slane %v4039, 0
        %v5725 = vadd.f32 %v5690, %v5723
        %v5726 = vadd.f32 %v5691, %v5723
        %v5727 = vadd.f32 %v5692, %v5723
        %v5728 = vadd.f32 %v5693, %v5723
        %v5729 = vadd.f32 %v5694, %v5723
        %v5730 = vadd.f32 %v5695, %v5723
        %v5731 = vadd.f32 %v5696, %v5723
        %v5732 = vadd.f32 %v5697, %v5723
        %v5733 = vadd.f32 %v5698, %v5723
        %v5734 = vadd.f32 %v5699, %v5723
        %v5735 = vadd.f32 %v5700, %v5723
        %v5736 = vadd.f32 %v5701, %v5723
        %v5737 = vadd.f32 %v5702, %v5723
        %v5738 = vadd.f32 %v5703, %v5723
        %v5739 = vadd.f32 %v5704, %v5723
        %v5740 = vadd.f32 %v5705, %v5723
        %v5741 = vadd.f32 %v5706, %v5723
        %v5742 = vadd.f32 %v5707, %v5723
        %v5743 = vadd.f32 %v5708, %v5723
        %v5744 = vadd.f32 %v5709, %v5723
        %v5745 = vadd.f32 %v5710, %v5723
        %v5746 = vadd.f32 %v5711, %v5723
        %v5747 = vadd.f32 %v5712, %v5723
        %v5748 = vadd.f32 %v5713, %v5723
        %v5749 = vadd.f32 %v5714, %v5723
        %v5750 = vadd.f32 %v5715, %v5723
        %v5751 = vadd.f32 %v5716, %v5723
        %v5752 = vadd.f32 %v5717, %v5723
        %v5753 = vadd.f32 %v5718, %v5723
        %v5754 = vadd.f32 %v5719, %v5723
        %v5755 = vadd.f32 %v5720, %v5723
        %v5756 = vadd.f32 %v5721, %v5723
        %v5757 = vadd.f32 %v5725, %v2191
        %v5758 = vadd.f32 %v5726, %v2192
        %v5759 = vadd.f32 %v5727, %v2193
        %v5760 = vadd.f32 %v5728, %v2194
        %v5761 = vadd.f32 %v5729, %v2195
        %v5762 = vadd.f32 %v5730, %v2196
        %v5763 = vadd.f32 %v5731, %v2197
        %v5764 = vadd.f32 %v5732, %v2198
        %v5765 = vadd.f32 %v5733, %v2199
        %v5766 = vadd.f32 %v5734, %v2200
        %v5767 = vadd.f32 %v5735, %v2201
        %v5768 = vadd.f32 %v5736, %v2202
        %v5769 = vadd.f32 %v5737, %v2203
        %v5770 = vadd.f32 %v5738, %v2204
        %v5771 = vadd.f32 %v5739, %v2205
        %v5772 = vadd.f32 %v5740, %v2206
        %v5773 = vadd.f32 %v5741, %v2207
        %v5774 = vadd.f32 %v5742, %v2208
        %v5775 = vadd.f32 %v5743, %v2209
        %v5776 = vadd.f32 %v5744, %v2210
        %v5777 = vadd.f32 %v5745, %v2211
        %v5778 = vadd.f32 %v5746, %v2212
        %v5779 = vadd.f32 %v5747, %v2213
        %v5780 = vadd.f32 %v5748, %v2214
        %v5781 = vadd.f32 %v5749, %v2215
        %v5782 = vadd.f32 %v5750, %v2216
        %v5783 = vadd.f32 %v5751, %v2217
        %v5784 = vadd.f32 %v5752, %v2218
        %v5785 = vadd.f32 %v5753, %v2219
        %v5786 = vadd.f32 %v5754, %v2220
        %v5787 = vadd.f32 %v5755, %v2221
        %v5788 = vadd.f32 %v5756, %v2222
        %v5789 = vmax.f32 %v5757, 0.0
        %v5790 = vmax.f32 %v5758, 0.0
        %v5791 = vmax.f32 %v5759, 0.0
        %v5792 = vmax.f32 %v5760, 0.0
        %v5793 = vmax.f32 %v5761, 0.0
        %v5794 = vmax.f32 %v5762, 0.0
        %v5795 = vmax.f32 %v5763, 0.0
        %v5796 = vmax.f32 %v5764, 0.0
        %v5797 = vmax.f32 %v5765, 0.0
        %v5798 = vmax.f32 %v5766, 0.0
        %v5799 = vmax.f32 %v5767, 0.0
        %v5800 = vmax.f32 %v5768, 0.0
        %v5801 = vmax.f32 %v5769, 0.0
        %v5802 = vmax.f32 %v5770, 0.0
        %v5803 = vmax.f32 %v5771, 0.0
        %v5804 = vmax.f32 %v5772, 0.0
        %v5805 = vmax.f32 %v5773, 0.0
        %v5806 = vmax.f32 %v5774, 0.0
        %v5807 = vmax.f32 %v5775, 0.0
        %v5808 = vmax.f32 %v5776, 0.0
        %v5809 = vmax.f32 %v5777, 0.0
        %v5810 = vmax.f32 %v5778, 0.0
        %v5811 = vmax.f32 %v5779, 0.0
        %v5812 = vmax.f32 %v5780, 0.0
        %v5813 = vmax.f32 %v5781, 0.0
        %v5814 = vmax.f32 %v5782, 0.0
        %v5815 = vmax.f32 %v5783, 0.0
        %v5816 = vmax.f32 %v5784, 0.0
        %v5817 = vmax.f32 %v5785, 0.0
        %v5818 = vmax.f32 %v5786, 0.0
        %v5819 = vmax.f32 %v5787, 0.0
        %v5820 = vmax.f32 %v5788, 0.0
        %v5821 = vadd.f32 %v5789, %v5790
        %v5822 = vadd.f32 %v5821, %v5791
        %v5823 = vadd.f32 %v5822, %v5792
        %v5824 = vadd.f32 %v5823, %v5793
        %v5825 = vadd.f32 %v5824, %v5794
        %v5826 = vadd.f32 %v5825, %v5795
        %v5827 = vadd.f32 %v5826, %v5796
        %v5828 = vadd.f32 %v5827, %v5797
        %v5829 = vadd.f32 %v5828, %v5798
        %v5830 = vadd.f32 %v5829, %v5799
        %v5831 = vadd.f32 %v5830, %v5800
        %v5832 = vadd.f32 %v5831, %v5801
        %v5833 = vadd.f32 %v5832, %v5802
        %v5834 = vadd.f32 %v5833, %v5803
        %v5835 = vadd.f32 %v5834, %v5804
        %v5836 = vadd.f32 %v5835, %v5805
        %v5837 = vadd.f32 %v5836, %v5806
        %v5838 = vadd.f32 %v5837, %v5807
        %v5839 = vadd.f32 %v5838, %v5808
        %v5840 = vadd.f32 %v5839, %v5809
        %v5841 = vadd.f32 %v5840, %v5810
        %v5842 = vadd.f32 %v5841, %v5811
        %v5843 = vadd.f32 %v5842, %v5812
        %v5844 = vadd.f32 %v5843, %v5813
        %v5845 = vadd.f32 %v5844, %v5814
        %v5846 = vadd.f32 %v5845, %v5815
        %v5847 = vadd.f32 %v5846, %v5816
        %v5848 = vadd.f32 %v5847, %v5817
        %v5849 = vadd.f32 %v5848, %v5818
        %v5850 = vadd.f32 %v5849, %v5819
        %v5851 = vadd.f32 %v5850, %v5820
        %v5852 = vrot.slane %v5851, 4
        %v5853 = vadd.f32 %v5851, %v5852
        %v5854 = vrot.slane %v5853, 2
        %v5855 = vadd.f32 %v5853, %v5854
        %v5856 = vrot.slane %v5855, 1
        %v5857 = vadd.f32 %v5855, %v5856
        %v5858 = vmul.f32 %v5857, 0.00390625
        %v5859 = vld [vmem:[%s7] sm:$0xff]
        %v5860 = vld [vmem:[%s7 + $0x8] sm:$0xff]
        %v5861 = vld [vmem:[%s7 + $0x10] sm:$0xff]
        %v5862 = vld [vmem:[%s7 + $0x18] sm:$0xff]
        %v5863 = vld [vmem:[%s7 + $0x20] sm:$0xff]
        %v5864 = vld [vmem:[%s7 + $0x28] sm:$0xff]
        %v5865 = vld [vmem:[%s7 + $0x30] sm:$0xff]
        %v5866 = vld [vmem:[%s7 + $0x38] sm:$0xff]
        %v5867 = vld [vmem:[%s7 + $0x40] sm:$0xff]
        %v5868 = vld [vmem:[%s7 + $0x48] sm:$0xff]
        %v5869 = vld [vmem:[%s7 + $0x50] sm:$0xff]
        %v5870 = vld [vmem:[%s7 + $0x58] sm:$0xff]
        %v5871 = vld [vmem:[%s7 + $0x60] sm:$0xff]
        %v5872 = vld [vmem:[%s7 + $0x68] sm:$0xff]
        %v5873 = vld [vmem:[%s7 + $0x70] sm:$0xff]
        %v5874 = vld [vmem:[%s7 + $0x78] sm:$0xff]
        %v5875 = vld [vmem:[%s8] sm:$0x1]
        %5876 = vmatpush.msra.mxu0 %v5874
        %5877 = vmatpush.msra.mxu0 %v5873
        %5878 = vmatpush.msra.mxu0 %v5872
        %5879 = vmatpush.msra.mxu0 %v5871
        %5880 = vmatpush.msra.mxu0 %v5870
        %5881 = vmatpush.msra.mxu0 %v5869
        %5882 = vmatpush.msra.mxu0 %v5868
        %5883 = vmatpush.msra.mxu0 %v5867
        %5884 = vmatpush.msra.mxu0 %v5866
        %5885 = vmatpush.msra.mxu0 %v5865
        %5886 = vmatpush.msra.mxu0 %v5864
        %5887 = vmatpush.msra.mxu0 %v5863
        %5888 = vmatpush.msra.mxu0 %v5862
        %5889 = vmatpush.msra.mxu0 %v5861
        %5890 = vmatpush.msra.mxu0 %v5860
        %5891 = vmatpush.msra.mxu0 %v5859
        %5892 = vmatmul.f32.gmra.mxu0 %v5858
        %v5893 = vpop.f32.mrf.mxu0
        %v5894 = vadd.f32 %v5875, %v5893
        %5895 = vdwg.mxu0
        %5896 = vst [vmem:[%s358] sm:$0x1] %v5894
        %s5897 = sand.u32 %s227, 1
        %s5898 = scalar_lea.sflag [#allocation6], %s5897
        %s5899 = sand.u32 %s227, 1
        %s5900 = scalar_lea.vmem [#allocation9], %s5899
        // Predicated region
        $region65: #{tpu_custom_call.1} parent=55 // pred_check
          %p5901 = pneg %p237
        $region66: #{tpu_custom_call.1} parent=55 // pred_check_branch
          %5903 = sbr.rel (%p5901) target = $region68
        $region67: #{tpu_custom_call.1} parent=55 // pred_region
          %5905 = vsyncadd %s5898, 0
          %s5906 = scalar_lea.hbm %s9, %s25
          %s5908 = sshll.u32 %s5900, 4
          %s5909 = int_to_ptr.vmem [resolvable:$true] %s5908
          %s5910 = sshll.u32 %s5906, 4
          %s5911 = int_to_ptr.hbm [resolvable:$true] %s5910
          %5913 = dma.vmem_to_hbm [thread:$0]  %s5909, 16, %s5911, %s5898
        $region68: #{tpu_custom_call.1} parent=55 // pred_fallthru
          _
      $region56: #{tpu_custom_call.1} parent=5 // pred_fallthru
        _
      %p5914 = scmp.le.s32.totalorder 2, %s20
      // Predicated region
      $region69: #{tpu_custom_call.1} parent=5 // pred_check
        %p5915 = pneg %p5914
      $region70: #{tpu_custom_call.1} parent=5 // pred_check_branch
        %5917 = sbr.rel (%p5915) target = $region72
      $region71: #{tpu_custom_call.1} parent=5 // pred_region
        %s5918 = ssub.s32 %s20, 2
        // Predicated region
        $region73: #{tpu_custom_call.1} parent=71 // pred_check
          %p5919 = pneg %p243
        $region74: #{tpu_custom_call.1} parent=71 // pred_check_branch
          %5921 = sbr.rel (%p5919) target = $region76
        $region75: #{tpu_custom_call.1} parent=71 // pred_region
          %s5922 = sand.u32 %s228, 1
          %s5923 = scalar_lea.sflag [#allocation6], %s5922
          %s5924 = sand.u32 %s228, 1
          %s5925 = scalar_lea.vmem [#allocation9], %s5924
          %5927 = dma.done %s5923, 16
        $region76: #{tpu_custom_call.1} parent=71 // pred_fallthru
          _
      $region72: #{tpu_custom_call.1} parent=5 // pred_fallthru
        _
    $region6: #{tpu_custom_call.1} parent=1 // loop_footer
      %s24 = sadd.s32 1, %s20
    $region7: #{tpu_custom_call.1} parent=1 // loop_footer_branch
      %19 = sbr.rel target = $region3
    $region8: #{tpu_custom_call.1} parent=1 // loop_exit
      _
    %5928 = vsyncpa [#allocation5], 1
    %s5929 = scalar_lea.sflag [#allocation5], 1
    %5930 = vsyncpa %s5929, 1
    %5931 = vsyncpa [#allocation8], 1
    %5932 = vsyncpa [#allocation6], 1
    %s5933 = scalar_lea.sflag [#allocation6], 1
    %5934 = vsyncpa %s5933, 1

</llo_original>
